<compile_context>
chip_gen: v6e
topology: v6e:2x2x1
jax: 0.10.0
libtpu: 0.0.40
codegen_flags: <defaults>
</compile_context>

<pallas_src>
import numpy as np
import jax
import jax.numpy as jnp
from jax import lax
from jax.experimental import pallas as pl
from jax.experimental.pallas import tpu as pltpu

S1 = 208            # 14x14 pooled-map raster (196) padded to a bf16-tile multiple
KX = S1 * 8         # stage-2 input lanes  (pooled1 rows * 8 channel lanes) = 1664
N2 = 4 * 512        # stage-2 dense-conv2 output lanes (4 pool offsets x 512)


# ----------------------------------------------------------------------------
# Small JAX-side helpers (tiny tensors; fused by XLA)
# ----------------------------------------------------------------------------
def _pad_to(a, shape):
    pads = [(0, t - s) for s, t in zip(a.shape, shape)]
    if all(p == (0, 0) for p in pads):
        return a
    return jnp.pad(a, pads)


def _conv1_patches(x_bf16):
    """im2col for conv1 as ONE identity grouped conv (NHWC out), regrouped so the
    rows are (pool-offset q=dy*2+dx, s=ph*14+pw) and padded to (B,4,208,128)."""
    B = x_bf16.shape[0]
    eye = jnp.eye(25, dtype=x_bf16.dtype).reshape(25, 1, 5, 5)
    eye = jnp.tile(eye, (3, 1, 1, 1))                       # (75,1,5,5): k=c*25+i*5+j
    pt = lax.conv_general_dilated(
        x_bf16, eye, (1, 1), "VALID",
        dimension_numbers=("NCHW", "OIHW", "NHWC"),
        feature_group_count=3)                              # (B, 28, 28, 75)
    pt = pt.reshape(B, 14, 2, 14, 2, 75)                    # (B, ph, dy, pw, dx, k)
    pt = jnp.transpose(pt, (0, 2, 4, 1, 3, 5))              # (B, dy, dx, ph, pw, k)
    pt = pt.reshape(B, 4, 196, 75)
    return jnp.pad(pt, ((0, 0), (0, 0), (0, 12), (0, 53)))  # (B, 4, 208, 128)


def _build_conv2_dense(w2):
    """Dense (1664, 2048) matrix = conv2 + 2x2-pool offsets + PyTorch flatten.

    Row f_in = (ph*14+pw)*8 + c_in of the flattened pooled1 map; column
    f_out = q*512 + c_out*25 + th*5 + tw, with q=dy*2+dx indexing the pool
    window of the conv2 output at spatial (2*th+dy, 2*tw+dx)."""
    a = np.arange(14)
    q = np.arange(4)
    t = np.arange(5)
    k = np.arange(5)
    sel_h = (a[:, None, None, None] ==
             2 * t[None, None, :, None] + (q[None, :, None, None] // 2)
             + k[None, None, None, :])                      # (ph, q, th, i)
    sel_w = (a[:, None, None, None] ==
             2 * t[None, None, :, None] + (q[None, :, None, None] % 2)
             + k[None, None, None, :])                      # (pw, q, tw, j)
    sel_h = jnp.asarray(sel_h, jnp.float32)
    sel_w = jnp.asarray(sel_w, jnp.float32)
    # D[ph, pw, c_in, q, c_out, th, tw] = sum_ij sel_h*sel_w*w2[c_out,c_in,i,j]
    dense = jnp.einsum("aqti,bquj,ocij->abcqotu", sel_h, sel_w, w2.astype(jnp.float32))
    dense = jnp.pad(dense, ((0, 0), (0, 0), (0, 2), (0, 0), (0, 0), (0, 0), (0, 0)))
    dense = dense.reshape(14 * 14 * 8, 4, 16 * 25)          # (1568, 4, 400)
    dense = jnp.pad(dense, ((0, KX - 1568), (0, 0), (0, 112)))
    return dense.reshape(KX, N2)                            # (1664, 2048)


# ----------------------------------------------------------------------------
# Pallas kernels
# ----------------------------------------------------------------------------
def _conv1_pool_kernel(p_ref, w_ref, b_ref, o_ref):
    """conv1-as-matmul + bias + ReLU + 2x2 maxpool for TB samples.

    p_ref: (TB, 4, 208, 128) bf16   conv1 patches, rows = (q, s)
    w_ref: (128, 128) bf16          conv1 weight (K=75, N=6 real)
    b_ref: (1, 128) f32
    o_ref: (TB, 208, 8) bf16        pooled 14x14 map, lanes 0..5 = channels
    """
    tb = p_ref.shape[0]
    p = p_ref[...].reshape(tb * 4 * S1, 128)                # free reshape (208%16==0)
    y = jnp.dot(p, w_ref[...], preferred_element_type=jnp.float32)
    y = jnp.maximum(y + b_ref[...], 0.0)
    y = y.reshape(tb, 4, S1, 128)
    pooled = jnp.maximum(jnp.maximum(y[:, 0], y[:, 1]),
                         jnp.maximum(y[:, 2], y[:, 3]))     # max over pool offsets
    o_ref[...] = pooled[:, :, 0:8].astype(o_ref.dtype)


def _conv2_pool_fc_kernel(x_ref, w2_ref, b2_ref, wf1_ref, bf1_ref,
                          wf2_ref, bf2_ref, wf3_ref, bf3_ref, o_ref):
    """conv2 (+im2col, as a dense matrix) + bias + ReLU + pool + fc1 + fc2 + fc3.

    x_ref:  (TB, 1664) bf16   flattened pooled1 maps (free bitcast of stage-1 out)
    w2_ref: (1664, 2048) bf16 dense conv2 matrix (pool offsets + flatten folded in)
    wf1:    (512, 128) bf16 ; wf2/wf3: (128, 128) bf16 ; biases f32
    o_ref:  (TB, 128) f32     logits in lanes 0..9
    """
    f32 = jnp.float32
    bf16 = jnp.bfloat16
    y = jnp.dot(x_ref[...], w2_ref[...], preferred_element_type=f32)   # (TB, 2048)
    y = jnp.maximum(y + b2_ref[...], 0.0)
    # 2x2 maxpool == max over the four 512-lane pool-offset chunks.
    p = jnp.maximum(jnp.maximum(y[:, 0:512], y[:, 512:1024]),
                    jnp.maximum(y[:, 1024:1536], y[:, 1536:2048]))     # (TB, 512)
    h = jnp.dot(p.astype(bf16), wf1_ref[...], preferred_element_type=f32)
    h = jnp.maximum(h + bf1_ref[...], 0.0)
    h = jnp.dot(h.astype(bf16), wf2_ref[...], preferred_element_type=f32)
    h = jnp.maximum(h + bf2_ref[...], 0.0)
    o = jnp.dot(h.astype(bf16), wf3_ref[...], preferred_element_type=f32)
    o_ref[...] = o + bf3_ref[...]


# ----------------------------------------------------------------------------
# Forward pass
# ----------------------------------------------------------------------------
def net_forward(params, x, *, block_b=16):
    f32, bf16 = jnp.float32, jnp.bfloat16
    B = x.shape[0]
    TB = B if B < block_b else block_b          # TB is a multiple of 8 (or == B)
    nb = -(-B // TB)
    Bp = nb * TB
    if Bp != B:
        x = jnp.pad(x, ((0, Bp - B), (0, 0), (0, 0), (0, 0)))

    # ---- padded / reordered weights (zero padding keeps pad lanes exactly 0) ----
    w1 = _pad_to(params["conv1_w"].reshape(6, 75).T, (128, 128)).astype(bf16)
    b1 = _pad_to(params["conv1_b"].reshape(1, 6).astype(f32), (1, 128))
    w2d = _build_conv2_dense(params["conv2_w"]).astype(bf16)            # (1664, 2048)
    b2d = jnp.tile(jnp.pad(jnp.repeat(params["conv2_b"].astype(f32), 25),
                           (0, 112)), 4).reshape(1, N2)
    wf1 = _pad_to(params["fc1_w"].T, (512, 128)).astype(bf16)           # flatten order = c*25+s
    bf1 = _pad_to(params["fc1_b"].reshape(1, 120).astype(f32), (1, 128))
    wf2 = _pad_to(params["fc2_w"].T, (128, 128)).astype(bf16)
    bf2 = _pad_to(params["fc2_b"].reshape(1, 84).astype(f32), (1, 128))
    wf3 = _pad_to(params["fc3_w"].T, (128, 128)).astype(bf16)
    bf3 = _pad_to(params["fc3_b"].reshape(1, 10).astype(f32), (1, 128))

    # ---- stage 1: conv1 + bias + ReLU + 2x2 maxpool ----
    p1 = _conv1_patches(x.astype(bf16))                                 # (Bp, 4, 208, 128)
    pooled1 = pl.pallas_call(
        _conv1_pool_kernel,
        out_shape=jax.ShapeDtypeStruct((Bp, S1, 8), bf16),
        grid=(nb,),
        in_specs=[
            pl.BlockSpec((TB, 4, S1, 128), lambda b: (b, 0, 0, 0)),
            pl.BlockSpec((128, 128), lambda b: (0, 0)),
            pl.BlockSpec((1, 128), lambda b: (0, 0)),
        ],
        out_specs=pl.BlockSpec((TB, S1, 8), lambda b: (b, 0, 0)),
        compiler_params=pltpu.CompilerParams(
            dimension_semantics=("parallel",),
            vmem_limit_bytes=32 * 1024 * 1024),
    )(p1, w1, b1)

    # free bitcast: (Bp, 208, 8) -> (Bp, 1664); no XLA glue between the kernels
    x1 = pooled1.reshape(Bp, KX)

    # ---- stage 2: conv2 + bias + ReLU + pool + fc1 + fc2 + fc3 ----
    logits = pl.pallas_call(
        _conv2_pool_fc_kernel,
        out_shape=jax.ShapeDtypeStruct((Bp, 128), f32),
        grid=(nb,),
        in_specs=[
            pl.BlockSpec((TB, KX), lambda b: (b, 0)),
            pl.BlockSpec((KX, N2), lambda b: (0, 0)),
            pl.BlockSpec((1, N2), lambda b: (0, 0)),
            pl.BlockSpec((512, 128), lambda b: (0, 0)),
            pl.BlockSpec((1, 128), lambda b: (0, 0)),
            pl.BlockSpec((128, 128), lambda b: (0, 0)),
            pl.BlockSpec((1, 128), lambda b: (0, 0)),
            pl.BlockSpec((128, 128), lambda b: (0, 0)),
            pl.BlockSpec((1, 128), lambda b: (0, 0)),
        ],
        out_specs=pl.BlockSpec((TB, 128), lambda b: (b, 0)),
        compiler_params=pltpu.CompilerParams(
            dimension_semantics=("parallel",),
            vmem_limit_bytes=32 * 1024 * 1024),
    )(x1, w2d, b2d, wf1, bf1, wf2, bf2, wf3, bf3)

    return logits[:B, :10]


# ----------------------------------------------------------------------------
# Pure-JAX reference (f32), params, main
# ----------------------------------------------------------------------------
def _reference_forward(params, x):
    f32 = jnp.float32
    y = lax.conv_general_dilated(x.astype(f32), params["conv1_w"].astype(f32),
                                 (1, 1), "VALID",
                                 dimension_numbers=("NCHW", "OIHW", "NCHW"))
    y = jnp.maximum(y + params["conv1_b"].reshape(1, 6, 1, 1), 0.0)
    y = lax.reduce_window(y, -jnp.inf, lax.max, (1, 1, 2, 2), (1, 1, 2, 2), "VALID")
    y = lax.conv_general_dilated(y, params["conv2_w"].astype(f32), (1, 1), "VALID",
                                 dimension_numbers=("NCHW", "OIHW", "NCHW"))
    y = jnp.maximum(y + params["conv2_b"].reshape(1, 16, 1, 1), 0.0)
    y = lax.reduce_window(y, -jnp.inf, lax.max, (1, 1, 2, 2), (1, 1, 2, 2), "VALID")
    y = y.reshape(x.shape[0], 400)
    y = jnp.maximum(y @ params["fc1_w"].T + params["fc1_b"], 0.0)
    y = jnp.maximum(y @ params["fc2_w"].T + params["fc2_b"], 0.0)
    return y @ params["fc3_w"].T + params["fc3_b"]


def init_params(key):
    ks = jax.random.split(key, 10)

    def u(k, shape, fan_in):
        bound = 1.0 / jnp.sqrt(fan_in)
        return jax.random.uniform(k, shape, jnp.float32, -bound, bound)

    return {
        "conv1_w": u(ks[0], (6, 3, 5, 5), 3 * 5 * 5),
        "conv1_b": u(ks[1], (6,), 3 * 5 * 5),
        "conv2_w": u(ks[2], (16, 6, 5, 5), 6 * 5 * 5),
        "conv2_b": u(ks[3], (16,), 6 * 5 * 5),
        "fc1_w": u(ks[4], (120, 16 * 5 * 5), 16 * 5 * 5),
        "fc1_b": u(ks[5], (120,), 16 * 5 * 5),
        "fc2_w": u(ks[6], (84, 120), 120),
        "fc2_b": u(ks[7], (84,), 120),
        "fc3_w": u(ks[8], (10, 84), 84),
        "fc3_b": u(ks[9], (10,), 84),
    }


if __name__ == "__main__":
    key = jax.random.PRNGKey(0)
    pkey, xkey = jax.random.split(key)
    params = init_params(pkey)
    # Net's fc1 expects 16*5*5 features => input must be (B, 3, 32, 32).
    x = jax.random.normal(xkey, (2, 3, 32, 32), dtype=jnp.float32)

    out = jax.block_until_ready(jax.jit(net_forward)(params, x))
    assert out.shape == (2, 10), out.shape

    ref = _reference_forward(params, x)
    err = float(jnp.max(jnp.abs(out - ref)))
    assert err < 5e-2, f"max abs err vs f32 reference: {err}"
    print("KERNEL_OK")
</pallas_src>

<mosaic_0001>
module attributes {stable_mosaic.version = 11 : i64} {
  func.func @_conv1_pool_kernel(%arg0: i32, %arg1: memref<2x4x208x128xbf16, #tpu.memory_space<vmem>>, %arg2: memref<128x128xbf16, #tpu.memory_space<vmem>>, %arg3: memref<1x128xf32, #tpu.memory_space<vmem>>, %arg4: memref<2x208x8xbf16, #tpu.memory_space<vmem>>) attributes {dimension_semantics = [#tpu.dimension_semantics<parallel>], iteration_bounds = array<i64: 1>, scalar_prefetch = 0 : i64, scratch_operands = 0 : i64, tpu.core_type = #tpu.core_type<tc>, window_params = [{transform_indices = @transform_0, window_bounds = array<i64: 2, 4, 208, 128>}, {pipeline_mode = #tpu.pipeline_mode<synchronous>, transform_indices = @transform_1, window_bounds = array<i64: 128, 128>}, {pipeline_mode = #tpu.pipeline_mode<synchronous>, transform_indices = @transform_2, window_bounds = array<i64: 1, 128>}, {transform_indices = @transform_3, window_bounds = array<i64: 2, 208, 8>}]} {
    %c0 = arith.constant 0 : index
    %c0_0 = arith.constant 0 : index
    %c0_1 = arith.constant 0 : index
    %c0_2 = arith.constant 0 : index
    %0 = vector.load %arg1[%c0, %c0_0, %c0_1, %c0_2] : memref<2x4x208x128xbf16, #tpu.memory_space<vmem>>, vector<2x4x208x128xbf16>
    %1 = vector.shape_cast %0 : vector<2x4x208x128xbf16> to vector<1664x128xbf16>
    %c0_3 = arith.constant 0 : index
    %c0_4 = arith.constant 0 : index
    %2 = vector.load %arg2[%c0_3, %c0_4] : memref<128x128xbf16, #tpu.memory_space<vmem>>, vector<128x128xbf16>
    %cst = arith.constant dense<0.000000e+00> : vector<1664x128xf32>
    %3 = tpu.matmul %1, %2, %cst {dimension_numbers = #tpu.dot_dimension_numbers<[1], [0], [0], [1], [0, 0, 1, 1], [], []>} : vector<1664x128xbf16>, vector<128x128xbf16>, vector<1664x128xf32> -> vector<1664x128xf32>
    %c0_5 = arith.constant 0 : index
    %c0_6 = arith.constant 0 : index
    %4 = vector.load %arg3[%c0_5, %c0_6] : memref<1x128xf32, #tpu.memory_space<vmem>>, vector<1x128xf32>
    %5 = vector.broadcast %4 : vector<1x128xf32> to vector<1664x128xf32>
    %6 = arith.addf %3, %5 : vector<1664x128xf32>
    %cst_7 = arith.constant 0.000000e+00 : f32
    %7 = vector.broadcast %cst_7 : f32 to vector<1664x128xf32>
    %8 = arith.maximumf %6, %7 : vector<1664x128xf32>
    %9 = vector.shape_cast %8 : vector<1664x128xf32> to vector<2x4x208x128xf32>
    %10 = vector.extract_strided_slice %9 {offsets = [0, 0, 0, 0], sizes = [2, 1, 208, 128], strides = [1, 1, 1, 1]} : vector<2x4x208x128xf32> to vector<2x1x208x128xf32>
    %11 = vector.shape_cast %10 : vector<2x1x208x128xf32> to vector<2x208x128xf32>
    %12 = vector.extract_strided_slice %9 {offsets = [0, 1, 0, 0], sizes = [2, 1, 208, 128], strides = [1, 1, 1, 1]} : vector<2x4x208x128xf32> to vector<2x1x208x128xf32>
    %13 = vector.shape_cast %12 : vector<2x1x208x128xf32> to vector<2x208x128xf32>
    %14 = arith.maximumf %11, %13 : vector<2x208x128xf32>
    %15 = vector.extract_strided_slice %9 {offsets = [0, 2, 0, 0], sizes = [2, 1, 208, 128], strides = [1, 1, 1, 1]} : vector<2x4x208x128xf32> to vector<2x1x208x128xf32>
    %16 = vector.shape_cast %15 : vector<2x1x208x128xf32> to vector<2x208x128xf32>
    %17 = vector.extract_strided_slice %9 {offsets = [0, 3, 0, 0], sizes = [2, 1, 208, 128], strides = [1, 1, 1, 1]} : vector<2x4x208x128xf32> to vector<2x1x208x128xf32>
    %18 = vector.shape_cast %17 : vector<2x1x208x128xf32> to vector<2x208x128xf32>
    %19 = arith.maximumf %16, %18 : vector<2x208x128xf32>
    %20 = arith.maximumf %14, %19 : vector<2x208x128xf32>
    %21 = vector.extract_strided_slice %20 {offsets = [0, 0, 0], sizes = [2, 208, 8], strides = [1, 1, 1]} : vector<2x208x128xf32> to vector<2x208x8xf32>
    %22 = arith.truncf %21 : vector<2x208x8xf32> to vector<2x208x8xbf16>
    %c0_8 = arith.constant 0 : index
    %c0_9 = arith.constant 0 : index
    %c0_10 = arith.constant 0 : index
    %23 = vector.load %arg4[%c0_8, %c0_9, %c0_10] : memref<2x208x8xbf16, #tpu.memory_space<vmem>>, vector<2x208x8xbf16>
    tpu.vector_store %arg4[%c0_8, %c0_9, %c0_10], %22 {strides = array<i32>} : memref<2x208x8xbf16, #tpu.memory_space<vmem>>, vector<2x208x8xbf16>,
    return
  }
  func.func @transform_0(%arg0: i32) -> (i32, i32, i32, i32) {
    %c0_i32 = arith.constant 0 : i32
    %c0_i32_0 = arith.constant 0 : i32
    %c0_i32_1 = arith.constant 0 : i32
    %c0_i32_2 = arith.constant 0 : i32
    return %arg0, %c0_i32, %c0_i32_0, %c0_i32_1 : i32, i32, i32, i32
  }
  func.func @transform_1(%arg0: i32) -> (i32, i32) {
    %c0_i32 = arith.constant 0 : i32
    %c0_i32_0 = arith.constant 0 : i32
    %c0_i32_1 = arith.constant 0 : i32
    return %c0_i32, %c0_i32_0 : i32, i32
  }
  func.func @transform_2(%arg0: i32) -> (i32, i32) {
    %c0_i32 = arith.constant 0 : i32
    %c0_i32_0 = arith.constant 0 : i32
    %c0_i32_1 = arith.constant 0 : i32
    return %c0_i32, %c0_i32_0 : i32, i32
  }
  func.func @transform_3(%arg0: i32) -> (i32, i32, i32) {
    %c0_i32 = arith.constant 0 : i32
    %c0_i32_0 = arith.constant 0 : i32
    %c0_i32_1 = arith.constant 0 : i32
    return %arg0, %c0_i32, %c0_i32_0 : i32, i32, i32
  }
}

module attributes {stable_mosaic.version = 11 : i64} {
  func.func @_conv2_pool_fc_kernel(%arg0: i32, %arg1: memref<2x1664xbf16, #tpu.memory_space<vmem>>, %arg2: memref<1664x2048xbf16, #tpu.memory_space<vmem>>, %arg3: memref<1x2048xf32, #tpu.memory_space<vmem>>, %arg4: memref<512x128xbf16, #tpu.memory_space<vmem>>, %arg5: memref<1x128xf32, #tpu.memory_space<vmem>>, %arg6: memref<128x128xbf16, #tpu.memory_space<vmem>>, %arg7: memref<1x128xf32, #tpu.memory_space<vmem>>, %arg8: memref<128x128xbf16, #tpu.memory_space<vmem>>, %arg9: memref<1x128xf32, #tpu.memory_space<vmem>>, %arg10: memref<2x128xf32, #tpu.memory_space<vmem>>) attributes {dimension_semantics = [#tpu.dimension_semantics<parallel>], iteration_bounds = array<i64: 1>, scalar_prefetch = 0 : i64, scratch_operands = 0 : i64, tpu.core_type = #tpu.core_type<tc>, window_params = [{transform_indices = @transform_0, window_bounds = array<i64: 2, 1664>}, {pipeline_mode = #tpu.pipeline_mode<synchronous>, transform_indices = @transform_1, window_bounds = array<i64: 1664, 2048>}, {pipeline_mode = #tpu.pipeline_mode<synchronous>, transform_indices = @transform_2, window_bounds = array<i64: 1, 2048>}, {pipeline_mode = #tpu.pipeline_mode<synchronous>, transform_indices = @transform_3, window_bounds = array<i64: 512, 128>}, {pipeline_mode = #tpu.pipeline_mode<synchronous>, transform_indices = @transform_4, window_bounds = array<i64: 1, 128>}, {pipeline_mode = #tpu.pipeline_mode<synchronous>, transform_indices = @transform_5, window_bounds = array<i64: 128, 128>}, {pipeline_mode = #tpu.pipeline_mode<synchronous>, transform_indices = @transform_6, window_bounds = array<i64: 1, 128>}, {pipeline_mode = #tpu.pipeline_mode<synchronous>, transform_indices = @transform_7, window_bounds = array<i64: 128, 128>}, {pipeline_mode = #tpu.pipeline_mode<synchronous>, transform_indices = @transform_8, window_bounds = array<i64: 1, 128>}, {transform_indices = @transform_9, window_bounds = array<i64: 2, 128>}]} {
    %c0 = arith.constant 0 : index
    %c0_0 = arith.constant 0 : index
    %0 = vector.load %arg1[%c0, %c0_0] : memref<2x1664xbf16, #tpu.memory_space<vmem>>, vector<2x1664xbf16>
    %c0_1 = arith.constant 0 : index
    %c0_2 = arith.constant 0 : index
    %1 = vector.load %arg2[%c0_1, %c0_2] : memref<1664x2048xbf16, #tpu.memory_space<vmem>>, vector<1664x2048xbf16>
    %cst = arith.constant dense<0.000000e+00> : vector<2x2048xf32>
    %2 = tpu.matmul %0, %1, %cst {dimension_numbers = #tpu.dot_dimension_numbers<[1], [0], [0], [1], [0, 0, 1, 1], [], []>} : vector<2x1664xbf16>, vector<1664x2048xbf16>, vector<2x2048xf32> -> vector<2x2048xf32>
    %c0_3 = arith.constant 0 : index
    %c0_4 = arith.constant 0 : index
    %3 = vector.load %arg3[%c0_3, %c0_4] : memref<1x2048xf32, #tpu.memory_space<vmem>>, vector<1x2048xf32>
    %4 = vector.broadcast %3 : vector<1x2048xf32> to vector<2x2048xf32>
    %5 = arith.addf %2, %4 : vector<2x2048xf32>
    %cst_5 = arith.constant 0.000000e+00 : f32
    %6 = vector.broadcast %cst_5 : f32 to vector<2x2048xf32>
    %7 = arith.maximumf %5, %6 : vector<2x2048xf32>
    %8 = vector.extract_strided_slice %7 {offsets = [0, 0], sizes = [2, 512], strides = [1, 1]} : vector<2x2048xf32> to vector<2x512xf32>
    %9 = vector.extract_strided_slice %7 {offsets = [0, 512], sizes = [2, 512], strides = [1, 1]} : vector<2x2048xf32> to vector<2x512xf32>
    %10 = arith.maximumf %8, %9 : vector<2x512xf32>
    %11 = vector.extract_strided_slice %7 {offsets = [0, 1024], sizes = [2, 512], strides = [1, 1]} : vector<2x2048xf32> to vector<2x512xf32>
    %12 = vector.extract_strided_slice %7 {offsets = [0, 1536], sizes = [2, 512], strides = [1, 1]} : vector<2x2048xf32> to vector<2x512xf32>
    %13 = arith.maximumf %11, %12 : vector<2x512xf32>
    %14 = arith.maximumf %10, %13 : vector<2x512xf32>
    %15 = arith.truncf %14 : vector<2x512xf32> to vector<2x512xbf16>
    %c0_6 = arith.constant 0 : index
    %c0_7 = arith.constant 0 : index
    %16 = vector.load %arg4[%c0_6, %c0_7] : memref<512x128xbf16, #tpu.memory_space<vmem>>, vector<512x128xbf16>
    %cst_8 = arith.constant dense<0.000000e+00> : vector<2x128xf32>
    %17 = tpu.matmul %15, %16, %cst_8 {dimension_numbers = #tpu.dot_dimension_numbers<[1], [0], [0], [1], [0, 0, 1, 1], [], []>} : vector<2x512xbf16>, vector<512x128xbf16>, vector<2x128xf32> -> vector<2x128xf32>
    %c0_9 = arith.constant 0 : index
    %c0_10 = arith.constant 0 : index
    %18 = vector.load %arg5[%c0_9, %c0_10] : memref<1x128xf32, #tpu.memory_space<vmem>>, vector<1x128xf32>
    %19 = vector.broadcast %18 : vector<1x128xf32> to vector<2x128xf32>
    %20 = arith.addf %17, %19 : vector<2x128xf32>
    %cst_11 = arith.constant 0.000000e+00 : f32
    %21 = vector.broadcast %cst_11 : f32 to vector<2x128xf32>
    %22 = arith.maximumf %20, %21 : vector<2x128xf32>
    %23 = arith.truncf %22 : vector<2x128xf32> to vector<2x128xbf16>
    %c0_12 = arith.constant 0 : index
    %c0_13 = arith.constant 0 : index
    %24 = vector.load %arg6[%c0_12, %c0_13] : memref<128x128xbf16, #tpu.memory_space<vmem>>, vector<128x128xbf16>
    %cst_14 = arith.constant dense<0.000000e+00> : vector<2x128xf32>
    %25 = tpu.matmul %23, %24, %cst_14 {dimension_numbers = #tpu.dot_dimension_numbers<[1], [0], [0], [1], [0, 0, 1, 1], [], []>} : vector<2x128xbf16>, vector<128x128xbf16>, vector<2x128xf32> -> vector<2x128xf32>
    %c0_15 = arith.constant 0 : index
    %c0_16 = arith.constant 0 : index
    %26 = vector.load %arg7[%c0_15, %c0_16] : memref<1x128xf32, #tpu.memory_space<vmem>>, vector<1x128xf32>
    %27 = vector.broadcast %26 : vector<1x128xf32> to vector<2x128xf32>
    %28 = arith.addf %25, %27 : vector<2x128xf32>
    %cst_17 = arith.constant 0.000000e+00 : f32
    %29 = vector.broadcast %cst_17 : f32 to vector<2x128xf32>
    %30 = arith.maximumf %28, %29 : vector<2x128xf32>
    %31 = arith.truncf %30 : vector<2x128xf32> to vector<2x128xbf16>
    %c0_18 = arith.constant 0 : index
    %c0_19 = arith.constant 0 : index
    %32 = vector.load %arg8[%c0_18, %c0_19] : memref<128x128xbf16, #tpu.memory_space<vmem>>, vector<128x128xbf16>
    %cst_20 = arith.constant dense<0.000000e+00> : vector<2x128xf32>
    %33 = tpu.matmul %31, %32, %cst_20 {dimension_numbers = #tpu.dot_dimension_numbers<[1], [0], [0], [1], [0, 0, 1, 1], [], []>} : vector<2x128xbf16>, vector<128x128xbf16>, vector<2x128xf32> -> vector<2x128xf32>
    %c0_21 = arith.constant 0 : index
    %c0_22 = arith.constant 0 : index
    %34 = vector.load %arg9[%c0_21, %c0_22] : memref<1x128xf32, #tpu.memory_space<vmem>>, vector<1x128xf32>
    %35 = vector.broadcast %34 : vector<1x128xf32> to vector<2x128xf32>
    %36 = arith.addf %33, %35 : vector<2x128xf32>
    %c0_23 = arith.constant 0 : index
    %c0_24 = arith.constant 0 : index
    %37 = vector.load %arg10[%c0_23, %c0_24] : memref<2x128xf32, #tpu.memory_space<vmem>>, vector<2x128xf32>
    tpu.vector_store %arg10[%c0_23, %c0_24], %36 {strides = array<i32>} : memref<2x128xf32, #tpu.memory_space<vmem>>, vector<2x128xf32>,
    return
  }
  func.func @transform_0(%arg0: i32) -> (i32, i32) {
    %c0_i32 = arith.constant 0 : i32
    %c0_i32_0 = arith.constant 0 : i32
    return %arg0, %c0_i32 : i32, i32
  }
  func.func @transform_1(%arg0: i32) -> (i32, i32) {
    %c0_i32 = arith.constant 0 : i32
    %c0_i32_0 = arith.constant 0 : i32
    %c0_i32_1 = arith.constant 0 : i32
    return %c0_i32, %c0_i32_0 : i32, i32
  }
  func.func @transform_2(%arg0: i32) -> (i32, i32) {
    %c0_i32 = arith.constant 0 : i32
    %c0_i32_0 = arith.constant 0 : i32
    %c0_i32_1 = arith.constant 0 : i32
    return %c0_i32, %c0_i32_0 : i32, i32
  }
  func.func @transform_3(%arg0: i32) -> (i32, i32) {
    %c0_i32 = arith.constant 0 : i32
    %c0_i32_0 = arith.constant 0 : i32
    %c0_i32_1 = arith.constant 0 : i32
    return %c0_i32, %c0_i32_0 : i32, i32
  }
  func.func @transform_4(%arg0: i32) -> (i32, i32) {
    %c0_i32 = arith.constant 0 : i32
    %c0_i32_0 = arith.constant 0 : i32
    %c0_i32_1 = arith.constant 0 : i32
    return %c0_i32, %c0_i32_0 : i32, i32
  }
  func.func @transform_5(%arg0: i32) -> (i32, i32) {
    %c0_i32 = arith.constant 0 : i32
    %c0_i32_0 = arith.constant 0 : i32
    %c0_i32_1 = arith.constant 0 : i32
    return %c0_i32, %c0_i32_0 : i32, i32
  }
  func.func @transform_6(%arg0: i32) -> (i32, i32) {
    %c0_i32 = arith.constant 0 : i32
    %c0_i32_0 = arith.constant 0 : i32
    %c0_i32_1 = arith.constant 0 : i32
    return %c0_i32, %c0_i32_0 : i32, i32
  }
  func.func @transform_7(%arg0: i32) -> (i32, i32) {
    %c0_i32 = arith.constant 0 : i32
    %c0_i32_0 = arith.constant 0 : i32
    %c0_i32_1 = arith.constant 0 : i32
    return %c0_i32, %c0_i32_0 : i32, i32
  }
  func.func @transform_8(%arg0: i32) -> (i32, i32) {
    %c0_i32 = arith.constant 0 : i32
    %c0_i32_0 = arith.constant 0 : i32
    %c0_i32_1 = arith.constant 0 : i32
    return %c0_i32, %c0_i32_0 : i32, i32
  }
  func.func @transform_9(%arg0: i32) -> (i32, i32) {
    %c0_i32 = arith.constant 0 : i32
    %c0_i32_0 = arith.constant 0 : i32
    return %arg0, %c0_i32 : i32, i32
  }
}

</mosaic_0001>

<llo_original>
// kernel: net_forward.2
$region0: #{net_forward.2}
  #allocation0 [shape = 'u32[]', space=smem, size = 0x4, offset = 0x4, fixed_abs, tag = 'smem constant byte address 0x4 - core index']
  #allocation1 [shape = 'u32[144,128]{1,0:T(1,128)}', space=vmem, size = 0x12000, scoped, tag = 'internal scratch']
  %s0 = inlined_call_operand.vmem [shape: bf16[2,4,208,128], index: 0, kind: input, shape index: {}]
  %s1 = inlined_call_operand.vmem [shape: bf16[128,128], index: 1, kind: input, shape index: {}]
  %s2 = inlined_call_operand.vmem [shape: f32[1,128], index: 2, kind: input, shape index: {}]
  %s3 = inlined_call_operand.vmem [shape: bf16[2,208,8], index: 3, kind: output, shape index: {}]
  %s4 = sld [smem:[#allocation0]]
  $region22: #{net_forward.2} parent=0
    _
  %s6 = ssub.s32 1, %s4
  %s7 = scalar_select 0, %s6, %s4
  // Predicated region
  $region2: #{net_forward.2} parent=0 // pred_check
    _
  $region3: #{net_forward.2} parent=0 // pred_check_branch
    %9 = sbr.rel (0) target = $region5
  $region4: #{net_forward.2} parent=0 // pred_region
    _
  $region5: #{net_forward.2} parent=0 // pred_fallthru
    _
  // Predicated region
  $region6: #{net_forward.2} parent=0 // pred_check
    _
  $region7: #{net_forward.2} parent=0 // pred_check_branch
    %11 = sbr.rel (0) target = $region9
  $region8: #{net_forward.2} parent=0 // pred_region
    _
  $region9: #{net_forward.2} parent=0 // pred_fallthru
    _
  // Predicated region
  $region10: #{net_forward.2} parent=0 // pred_check
    _
  $region11: #{net_forward.2} parent=0 // pred_check_branch
    %13 = sbr.rel (0) target = $region13
  $region12: #{net_forward.2} parent=0 // pred_region
    _
  $region13: #{net_forward.2} parent=0 // pred_fallthru
    _
  %v15 = vld [vmem:[%s0] sm:$0xf]
  %v16 = vld [vmem:[%s0 + $0x4] sm:$0xf]
  %v17 = vld [vmem:[%s0 + $0x8] sm:$0xf]
  %v18 = vld [vmem:[%s0 + $0xc] sm:$0xf]
  %v19 = vld [vmem:[%s0 + $0x10] sm:$0xf]
  %v20 = vld [vmem:[%s0 + $0x14] sm:$0xf]
  %v21 = vld [vmem:[%s0 + $0x18] sm:$0xf]
  %v22 = vld [vmem:[%s0 + $0x1c] sm:$0xf]
  %v23 = vld [vmem:[%s0 + $0x20] sm:$0xf]
  %v24 = vld [vmem:[%s0 + $0x24] sm:$0xf]
  %v25 = vld [vmem:[%s0 + $0x28] sm:$0xf]
  %v26 = vld [vmem:[%s0 + $0x2c] sm:$0xf]
  %v27 = vld [vmem:[%s0 + $0x30] sm:$0xf]
  %v28 = vld [vmem:[%s0 + $0x34] sm:$0xf]
  %v29 = vld [vmem:[%s0 + $0x38] sm:$0xf]
  %v30 = vld [vmem:[%s0 + $0x3c] sm:$0xf]
  %v31 = vld [vmem:[%s0 + $0x40] sm:$0xf]
  %v32 = vld [vmem:[%s0 + $0x44] sm:$0xf]
  %v33 = vld [vmem:[%s0 + $0x48] sm:$0xf]
  %v34 = vld [vmem:[%s0 + $0x4c] sm:$0xf]
  %v35 = vld [vmem:[%s0 + $0x50] sm:$0xf]
  %v36 = vld [vmem:[%s0 + $0x54] sm:$0xf]
  %v37 = vld [vmem:[%s0 + $0x58] sm:$0xf]
  %v38 = vld [vmem:[%s0 + $0x5c] sm:$0xf]
  %v39 = vld [vmem:[%s0 + $0x60] sm:$0xf]
  %v40 = vld [vmem:[%s0 + $0x64] sm:$0xf]
  %v41 = vld [vmem:[%s0 + $0x68] sm:$0xf]
  %v42 = vld [vmem:[%s0 + $0x6c] sm:$0xf]
  %v43 = vld [vmem:[%s0 + $0x70] sm:$0xf]
  %v44 = vld [vmem:[%s0 + $0x74] sm:$0xf]
  %v45 = vld [vmem:[%s0 + $0x78] sm:$0xf]
  %v46 = vld [vmem:[%s0 + $0x7c] sm:$0xf]
  %v47 = vld [vmem:[%s0 + $0x80] sm:$0xf]
  %v48 = vld [vmem:[%s0 + $0x84] sm:$0xf]
  %v49 = vld [vmem:[%s0 + $0x88] sm:$0xf]
  %v50 = vld [vmem:[%s0 + $0x8c] sm:$0xf]
  %v51 = vld [vmem:[%s0 + $0x90] sm:$0xf]
  %v52 = vld [vmem:[%s0 + $0x94] sm:$0xf]
  %v53 = vld [vmem:[%s0 + $0x98] sm:$0xf]
  %v54 = vld [vmem:[%s0 + $0x9c] sm:$0xf]
  %v55 = vld [vmem:[%s0 + $0xa0] sm:$0xf]
  %v56 = vld [vmem:[%s0 + $0xa4] sm:$0xf]
  %v57 = vld [vmem:[%s0 + $0xa8] sm:$0xf]
  %v58 = vld [vmem:[%s0 + $0xac] sm:$0xf]
  %v59 = vld [vmem:[%s0 + $0xb0] sm:$0xf]
  %v60 = vld [vmem:[%s0 + $0xb4] sm:$0xf]
  %v61 = vld [vmem:[%s0 + $0xb8] sm:$0xf]
  %v62 = vld [vmem:[%s0 + $0xbc] sm:$0xf]
  %v63 = vld [vmem:[%s0 + $0xc0] sm:$0xf]
  %v64 = vld [vmem:[%s0 + $0xc4] sm:$0xf]
  %v65 = vld [vmem:[%s0 + $0xc8] sm:$0xf]
  %v66 = vld [vmem:[%s0 + $0xcc] sm:$0xf]
  %v67 = vld [vmem:[%s0 + $0xd0] sm:$0xf]
  %v68 = vld [vmem:[%s0 + $0xd4] sm:$0xf]
  %v69 = vld [vmem:[%s0 + $0xd8] sm:$0xf]
  %v70 = vld [vmem:[%s0 + $0xdc] sm:$0xf]
  %v71 = vld [vmem:[%s0 + $0xe0] sm:$0xf]
  %v72 = vld [vmem:[%s0 + $0xe4] sm:$0xf]
  %v73 = vld [vmem:[%s0 + $0xe8] sm:$0xf]
  %v74 = vld [vmem:[%s0 + $0xec] sm:$0xf]
  %v75 = vld [vmem:[%s0 + $0xf0] sm:$0xf]
  %v76 = vld [vmem:[%s0 + $0xf4] sm:$0xf]
  %v77 = vld [vmem:[%s0 + $0xf8] sm:$0xf]
  %v78 = vld [vmem:[%s0 + $0xfc] sm:$0xf]
  %v79 = vld [vmem:[%s0 + $0x100] sm:$0xf]
  %v80 = vld [vmem:[%s0 + $0x104] sm:$0xf]
  %v81 = vld [vmem:[%s0 + $0x108] sm:$0xf]
  %v82 = vld [vmem:[%s0 + $0x10c] sm:$0xf]
  %v83 = vld [vmem:[%s0 + $0x110] sm:$0xf]
  %v84 = vld [vmem:[%s0 + $0x114] sm:$0xf]
  %v85 = vld [vmem:[%s0 + $0x118] sm:$0xf]
  %v86 = vld [vmem:[%s0 + $0x11c] sm:$0xf]
  %v87 = vld [vmem:[%s0 + $0x120] sm:$0xf]
  %v88 = vld [vmem:[%s0 + $0x124] sm:$0xf]
  %v89 = vld [vmem:[%s0 + $0x128] sm:$0xf]
  %v90 = vld [vmem:[%s0 + $0x12c] sm:$0xf]
  %v91 = vld [vmem:[%s0 + $0x130] sm:$0xf]
  %v92 = vld [vmem:[%s0 + $0x134] sm:$0xf]
  %v93 = vld [vmem:[%s0 + $0x138] sm:$0xf]
  %v94 = vld [vmem:[%s0 + $0x13c] sm:$0xf]
  %v95 = vld [vmem:[%s0 + $0x140] sm:$0xf]
  %v96 = vld [vmem:[%s0 + $0x144] sm:$0xf]
  %v97 = vld [vmem:[%s0 + $0x148] sm:$0xf]
  %v98 = vld [vmem:[%s0 + $0x14c] sm:$0xf]
  %v99 = vld [vmem:[%s0 + $0x150] sm:$0xf]
  %v100 = vld [vmem:[%s0 + $0x154] sm:$0xf]
  %v101 = vld [vmem:[%s0 + $0x158] sm:$0xf]
  %v102 = vld [vmem:[%s0 + $0x15c] sm:$0xf]
  %v103 = vld [vmem:[%s0 + $0x160] sm:$0xf]
  %v104 = vld [vmem:[%s0 + $0x164] sm:$0xf]
  %v105 = vld [vmem:[%s0 + $0x168] sm:$0xf]
  %v106 = vld [vmem:[%s0 + $0x16c] sm:$0xf]
  %v107 = vld [vmem:[%s0 + $0x170] sm:$0xf]
  %v108 = vld [vmem:[%s0 + $0x174] sm:$0xf]
  %v109 = vld [vmem:[%s0 + $0x178] sm:$0xf]
  %v110 = vld [vmem:[%s0 + $0x17c] sm:$0xf]
  %v111 = vld [vmem:[%s0 + $0x180] sm:$0xf]
  %v112 = vld [vmem:[%s0 + $0x184] sm:$0xf]
  %v113 = vld [vmem:[%s0 + $0x188] sm:$0xf]
  %v114 = vld [vmem:[%s0 + $0x18c] sm:$0xf]
  %v115 = vld [vmem:[%s0 + $0x190] sm:$0xf]
  %v116 = vld [vmem:[%s0 + $0x194] sm:$0xf]
  %v117 = vld [vmem:[%s0 + $0x198] sm:$0xf]
  %v118 = vld [vmem:[%s0 + $0x19c] sm:$0xf]
  %v119 = vld [vmem:[%s0 + $0x1a0] sm:$0xf]
  %v120 = vld [vmem:[%s0 + $0x1a4] sm:$0xf]
  %v121 = vld [vmem:[%s0 + $0x1a8] sm:$0xf]
  %v122 = vld [vmem:[%s0 + $0x1ac] sm:$0xf]
  %v123 = vld [vmem:[%s0 + $0x1b0] sm:$0xf]
  %v124 = vld [vmem:[%s0 + $0x1b4] sm:$0xf]
  %v125 = vld [vmem:[%s0 + $0x1b8] sm:$0xf]
  %v126 = vld [vmem:[%s0 + $0x1bc] sm:$0xf]
  %v127 = vld [vmem:[%s0 + $0x1c0] sm:$0xf]
  %v128 = vld [vmem:[%s0 + $0x1c4] sm:$0xf]
  %v129 = vld [vmem:[%s0 + $0x1c8] sm:$0xf]
  %v130 = vld [vmem:[%s0 + $0x1cc] sm:$0xf]
  %v131 = vld [vmem:[%s0 + $0x1d0] sm:$0xf]
  %v132 = vld [vmem:[%s0 + $0x1d4] sm:$0xf]
  %v133 = vld [vmem:[%s0 + $0x1d8] sm:$0xf]
  %v134 = vld [vmem:[%s0 + $0x1dc] sm:$0xf]
  %v135 = vld [vmem:[%s0 + $0x1e0] sm:$0xf]
  %v136 = vld [vmem:[%s0 + $0x1e4] sm:$0xf]
  %v137 = vld [vmem:[%s0 + $0x1e8] sm:$0xf]
  %v138 = vld [vmem:[%s0 + $0x1ec] sm:$0xf]
  %v139 = vld [vmem:[%s0 + $0x1f0] sm:$0xf]
  %v140 = vld [vmem:[%s0 + $0x1f4] sm:$0xf]
  %v141 = vld [vmem:[%s0 + $0x1f8] sm:$0xf]
  %v142 = vld [vmem:[%s0 + $0x1fc] sm:$0xf]
  %v143 = vld [vmem:[%s0 + $0x200] sm:$0xf]
  %v144 = vld [vmem:[%s0 + $0x204] sm:$0xf]
  %v145 = vld [vmem:[%s0 + $0x208] sm:$0xf]
  %v146 = vld [vmem:[%s0 + $0x20c] sm:$0xf]
  %v147 = vld [vmem:[%s0 + $0x210] sm:$0xf]
  %v148 = vld [vmem:[%s0 + $0x214] sm:$0xf]
  %v149 = vld [vmem:[%s0 + $0x218] sm:$0xf]
  %v150 = vld [vmem:[%s0 + $0x21c] sm:$0xf]
  %v151 = vld [vmem:[%s0 + $0x220] sm:$0xf]
  %v152 = vld [vmem:[%s0 + $0x224] sm:$0xf]
  %v153 = vld [vmem:[%s0 + $0x228] sm:$0xf]
  %v154 = vld [vmem:[%s0 + $0x22c] sm:$0xf]
  %v155 = vld [vmem:[%s0 + $0x230] sm:$0xf]
  %v156 = vld [vmem:[%s0 + $0x234] sm:$0xf]
  %v157 = vld [vmem:[%s0 + $0x238] sm:$0xf]
  %v158 = vld [vmem:[%s0 + $0x23c] sm:$0xf]
  %v159 = vld [vmem:[%s0 + $0x240] sm:$0xf]
  %v160 = vld [vmem:[%s0 + $0x244] sm:$0xf]
  %v161 = vld [vmem:[%s0 + $0x248] sm:$0xf]
  %v162 = vld [vmem:[%s0 + $0x24c] sm:$0xf]
  %v163 = vld [vmem:[%s0 + $0x250] sm:$0xf]
  %v164 = vld [vmem:[%s0 + $0x254] sm:$0xf]
  %v165 = vld [vmem:[%s0 + $0x258] sm:$0xf]
  %v166 = vld [vmem:[%s0 + $0x25c] sm:$0xf]
  %v167 = vld [vmem:[%s0 + $0x260] sm:$0xf]
  %v168 = vld [vmem:[%s0 + $0x264] sm:$0xf]
  %v169 = vld [vmem:[%s0 + $0x268] sm:$0xf]
  %v170 = vld [vmem:[%s0 + $0x26c] sm:$0xf]
  %v171 = vld [vmem:[%s0 + $0x270] sm:$0xf]
  %v172 = vld [vmem:[%s0 + $0x274] sm:$0xf]
  %v173 = vld [vmem:[%s0 + $0x278] sm:$0xf]
  %v174 = vld [vmem:[%s0 + $0x27c] sm:$0xf]
  %v175 = vld [vmem:[%s0 + $0x280] sm:$0xf]
  %v176 = vld [vmem:[%s0 + $0x284] sm:$0xf]
  %v177 = vld [vmem:[%s0 + $0x288] sm:$0xf]
  %v178 = vld [vmem:[%s0 + $0x28c] sm:$0xf]
  %v179 = vld [vmem:[%s0 + $0x290] sm:$0xf]
  %v180 = vld [vmem:[%s0 + $0x294] sm:$0xf]
  %v181 = vld [vmem:[%s0 + $0x298] sm:$0xf]
  %v182 = vld [vmem:[%s0 + $0x29c] sm:$0xf]
  %v183 = vld [vmem:[%s0 + $0x2a0] sm:$0xf]
  %v184 = vld [vmem:[%s0 + $0x2a4] sm:$0xf]
  %v185 = vld [vmem:[%s0 + $0x2a8] sm:$0xf]
  %v186 = vld [vmem:[%s0 + $0x2ac] sm:$0xf]
  %v187 = vld [vmem:[%s0 + $0x2b0] sm:$0xf]
  %v188 = vld [vmem:[%s0 + $0x2b4] sm:$0xf]
  %v189 = vld [vmem:[%s0 + $0x2b8] sm:$0xf]
  %v190 = vld [vmem:[%s0 + $0x2bc] sm:$0xf]
  %v191 = vld [vmem:[%s0 + $0x2c0] sm:$0xf]
  %v192 = vld [vmem:[%s0 + $0x2c4] sm:$0xf]
  %v193 = vld [vmem:[%s0 + $0x2c8] sm:$0xf]
  %v194 = vld [vmem:[%s0 + $0x2cc] sm:$0xf]
  %v195 = vld [vmem:[%s0 + $0x2d0] sm:$0xf]
  %v196 = vld [vmem:[%s0 + $0x2d4] sm:$0xf]
  %v197 = vld [vmem:[%s0 + $0x2d8] sm:$0xf]
  %v198 = vld [vmem:[%s0 + $0x2dc] sm:$0xf]
  %v199 = vld [vmem:[%s0 + $0x2e0] sm:$0xf]
  %v200 = vld [vmem:[%s0 + $0x2e4] sm:$0xf]
  %v201 = vld [vmem:[%s0 + $0x2e8] sm:$0xf]
  %v202 = vld [vmem:[%s0 + $0x2ec] sm:$0xf]
  %v203 = vld [vmem:[%s0 + $0x2f0] sm:$0xf]
  %v204 = vld [vmem:[%s0 + $0x2f4] sm:$0xf]
  %v205 = vld [vmem:[%s0 + $0x2f8] sm:$0xf]
  %v206 = vld [vmem:[%s0 + $0x2fc] sm:$0xf]
  %v207 = vld [vmem:[%s0 + $0x300] sm:$0xf]
  %v208 = vld [vmem:[%s0 + $0x304] sm:$0xf]
  %v209 = vld [vmem:[%s0 + $0x308] sm:$0xf]
  %v210 = vld [vmem:[%s0 + $0x30c] sm:$0xf]
  %v211 = vld [vmem:[%s0 + $0x310] sm:$0xf]
  %v212 = vld [vmem:[%s0 + $0x314] sm:$0xf]
  %v213 = vld [vmem:[%s0 + $0x318] sm:$0xf]
  %v214 = vld [vmem:[%s0 + $0x31c] sm:$0xf]
  %v215 = vld [vmem:[%s0 + $0x320] sm:$0xf]
  %v216 = vld [vmem:[%s0 + $0x324] sm:$0xf]
  %v217 = vld [vmem:[%s0 + $0x328] sm:$0xf]
  %v218 = vld [vmem:[%s0 + $0x32c] sm:$0xf]
  %v219 = vld [vmem:[%s0 + $0x330] sm:$0xf]
  %v220 = vld [vmem:[%s0 + $0x334] sm:$0xf]
  %v221 = vld [vmem:[%s0 + $0x338] sm:$0xf]
  %v222 = vld [vmem:[%s0 + $0x33c] sm:$0xf]
  %v223 = vld [vmem:[%s1] sm:$0xf]
  %v224 = vld [vmem:[%s1 + $0x4] sm:$0xf]
  %v225 = vld [vmem:[%s1 + $0x8] sm:$0xf]
  %v226 = vld [vmem:[%s1 + $0xc] sm:$0xf]
  %v227 = vld [vmem:[%s1 + $0x10] sm:$0xf]
  %v228 = vld [vmem:[%s1 + $0x14] sm:$0xf]
  %v229 = vld [vmem:[%s1 + $0x18] sm:$0xf]
  %v230 = vld [vmem:[%s1 + $0x1c] sm:$0xf]
  %v231 = vld [vmem:[%s1 + $0x20] sm:$0xf]
  %v232 = vld [vmem:[%s1 + $0x24] sm:$0xf]
  %v233 = vld [vmem:[%s1 + $0x28] sm:$0xf]
  %v234 = vld [vmem:[%s1 + $0x2c] sm:$0xf]
  %v235 = vld [vmem:[%s1 + $0x30] sm:$0xf]
  %v236 = vld [vmem:[%s1 + $0x34] sm:$0xf]
  %v237 = vld [vmem:[%s1 + $0x38] sm:$0xf]
  %v238 = vld [vmem:[%s1 + $0x3c] sm:$0xf]
  %v239 = vld [vmem:[%s2] sm:$0x1]
  %v241 = vlaneseq
  %v242 = vshrl.u32 %v241, 7
  %v243 = vsub.s32 0, %v242
  %v244 = vrot.slane %v239, %v243
  %v454 = vunpack.c.l.b16 %v15
  %v455 = vunpack.c.l.b16 %v16
  %v456 = vunpack.c.l.b16 %v17
  %v457 = vunpack.c.l.b16 %v18
  %v458 = vunpack.c.l.b16 %v19
  %v459 = vunpack.c.l.b16 %v20
  %v460 = vunpack.c.l.b16 %v21
  %v461 = vunpack.c.l.b16 %v22
  %v462 = vunpack.c.l.b16 %v23
  %v463 = vunpack.c.l.b16 %v24
  %v464 = vunpack.c.l.b16 %v25
  %v465 = vunpack.c.l.b16 %v26
  %v466 = vunpack.c.l.b16 %v27
  %v467 = vunpack.c.l.b16 %v28
  %v468 = vunpack.c.l.b16 %v29
  %v469 = vunpack.c.l.b16 %v30
  %v470 = vunpack.c.l.b16 %v31
  %v471 = vunpack.c.l.b16 %v32
  %v472 = vunpack.c.l.b16 %v33
  %v473 = vunpack.c.l.b16 %v34
  %v474 = vunpack.c.l.b16 %v35
  %v475 = vunpack.c.l.b16 %v36
  %v476 = vunpack.c.l.b16 %v37
  %v477 = vunpack.c.l.b16 %v38
  %v478 = vunpack.c.l.b16 %v39
  %v479 = vunpack.c.l.b16 %v40
  %v480 = vunpack.c.l.b16 %v41
  %v481 = vunpack.c.l.b16 %v42
  %v482 = vunpack.c.l.b16 %v43
  %v483 = vunpack.c.l.b16 %v44
  %v484 = vunpack.c.l.b16 %v45
  %v485 = vunpack.c.l.b16 %v46
  %v486 = vunpack.c.l.b16 %v47
  %v487 = vunpack.c.l.b16 %v48
  %v488 = vunpack.c.l.b16 %v49
  %v489 = vunpack.c.l.b16 %v50
  %v490 = vunpack.c.l.b16 %v51
  %v491 = vunpack.c.l.b16 %v52
  %v492 = vunpack.c.l.b16 %v53
  %v493 = vunpack.c.l.b16 %v54
  %v494 = vunpack.c.l.b16 %v55
  %v495 = vunpack.c.l.b16 %v56
  %v496 = vunpack.c.l.b16 %v57
  %v497 = vunpack.c.l.b16 %v58
  %v498 = vunpack.c.l.b16 %v59
  %v499 = vunpack.c.l.b16 %v60
  %v500 = vunpack.c.l.b16 %v61
  %v501 = vunpack.c.l.b16 %v62
  %v502 = vunpack.c.l.b16 %v63
  %v503 = vunpack.c.l.b16 %v64
  %v504 = vunpack.c.l.b16 %v65
  %v505 = vunpack.c.l.b16 %v66
  %v506 = vunpack.c.l.b16 %v67
  %v507 = vunpack.c.l.b16 %v68
  %v508 = vunpack.c.l.b16 %v69
  %v509 = vunpack.c.l.b16 %v70
  %v510 = vunpack.c.l.b16 %v71
  %v511 = vunpack.c.l.b16 %v72
  %v512 = vunpack.c.l.b16 %v73
  %v513 = vunpack.c.l.b16 %v74
  %v514 = vunpack.c.l.b16 %v75
  %v515 = vunpack.c.l.b16 %v76
  %v516 = vunpack.c.l.b16 %v77
  %v517 = vunpack.c.l.b16 %v78
  %v518 = vunpack.c.l.b16 %v79
  %v519 = vunpack.c.l.b16 %v80
  %v520 = vunpack.c.l.b16 %v81
  %v521 = vunpack.c.l.b16 %v82
  %v522 = vunpack.c.l.b16 %v83
  %v523 = vunpack.c.l.b16 %v84
  %v524 = vunpack.c.l.b16 %v85
  %v525 = vunpack.c.l.b16 %v86
  %v526 = vunpack.c.l.b16 %v87
  %v527 = vunpack.c.l.b16 %v88
  %v528 = vunpack.c.l.b16 %v89
  %v529 = vunpack.c.l.b16 %v90
  %v530 = vunpack.c.l.b16 %v91
  %v531 = vunpack.c.l.b16 %v92
  %v532 = vunpack.c.l.b16 %v93
  %v533 = vunpack.c.l.b16 %v94
  %v534 = vunpack.c.l.b16 %v95
  %v535 = vunpack.c.l.b16 %v96
  %v536 = vunpack.c.l.b16 %v97
  %v537 = vunpack.c.l.b16 %v98
  %v538 = vunpack.c.l.b16 %v99
  %v539 = vunpack.c.l.b16 %v100
  %v540 = vunpack.c.l.b16 %v101
  %v541 = vunpack.c.l.b16 %v102
  %v542 = vunpack.c.l.b16 %v103
  %v543 = vunpack.c.l.b16 %v104
  %v544 = vunpack.c.l.b16 %v105
  %v545 = vunpack.c.l.b16 %v106
  %v546 = vunpack.c.l.b16 %v107
  %v547 = vunpack.c.l.b16 %v108
  %v548 = vunpack.c.l.b16 %v109
  %v549 = vunpack.c.l.b16 %v110
  %v550 = vunpack.c.l.b16 %v111
  %v551 = vunpack.c.l.b16 %v112
  %v552 = vunpack.c.l.b16 %v113
  %v553 = vunpack.c.l.b16 %v114
  %v554 = vunpack.c.l.b16 %v115
  %v555 = vunpack.c.l.b16 %v116
  %v556 = vunpack.c.l.b16 %v117
  %v557 = vunpack.c.l.b16 %v118
  %v558 = vunpack.c.l.b16 %v119
  %v559 = vunpack.c.l.b16 %v120
  %v560 = vunpack.c.l.b16 %v121
  %v561 = vunpack.c.l.b16 %v122
  %v562 = vunpack.c.l.b16 %v123
  %v563 = vunpack.c.l.b16 %v124
  %v564 = vunpack.c.l.b16 %v125
  %v565 = vunpack.c.l.b16 %v126
  %v566 = vunpack.c.l.b16 %v127
  %v567 = vunpack.c.l.b16 %v128
  %v568 = vunpack.c.l.b16 %v129
  %v569 = vunpack.c.l.b16 %v130
  %v570 = vunpack.c.l.b16 %v131
  %v571 = vunpack.c.l.b16 %v132
  %v572 = vunpack.c.l.b16 %v133
  %v573 = vunpack.c.l.b16 %v134
  %v574 = vunpack.c.l.b16 %v135
  %v575 = vunpack.c.l.b16 %v136
  %v576 = vunpack.c.l.b16 %v137
  %v577 = vunpack.c.l.b16 %v138
  %v578 = vunpack.c.l.b16 %v139
  %v579 = vunpack.c.l.b16 %v140
  %v580 = vunpack.c.l.b16 %v141
  %v581 = vunpack.c.l.b16 %v142
  %v582 = vunpack.c.l.b16 %v143
  %v583 = vunpack.c.l.b16 %v144
  %v584 = vunpack.c.l.b16 %v145
  %v585 = vunpack.c.l.b16 %v146
  %v586 = vunpack.c.l.b16 %v147
  %v587 = vunpack.c.l.b16 %v148
  %v588 = vunpack.c.l.b16 %v149
  %v589 = vunpack.c.l.b16 %v150
  %v590 = vunpack.c.l.b16 %v151
  %v591 = vunpack.c.l.b16 %v152
  %v592 = vunpack.c.l.b16 %v153
  %v593 = vunpack.c.l.b16 %v154
  %v594 = vunpack.c.l.b16 %v155
  %v595 = vunpack.c.l.b16 %v156
  %v596 = vunpack.c.l.b16 %v157
  %v597 = vunpack.c.l.b16 %v158
  %v598 = vunpack.c.l.b16 %v159
  %v599 = vunpack.c.l.b16 %v160
  %v600 = vunpack.c.l.b16 %v161
  %v601 = vunpack.c.l.b16 %v162
  %v602 = vunpack.c.l.b16 %v163
  %v603 = vunpack.c.l.b16 %v164
  %v604 = vunpack.c.l.b16 %v165
  %v605 = vunpack.c.l.b16 %v166
  %v606 = vunpack.c.l.b16 %v167
  %v607 = vunpack.c.l.b16 %v168
  %v608 = vunpack.c.l.b16 %v169
  %v609 = vunpack.c.l.b16 %v170
  %v610 = vunpack.c.l.b16 %v171
  %v611 = vunpack.c.l.b16 %v172
  %v612 = vunpack.c.l.b16 %v173
  %v613 = vunpack.c.l.b16 %v174
  %v614 = vunpack.c.l.b16 %v175
  %v615 = vunpack.c.l.b16 %v176
  %v616 = vunpack.c.l.b16 %v177
  %v617 = vunpack.c.l.b16 %v178
  %v618 = vunpack.c.l.b16 %v179
  %v619 = vunpack.c.l.b16 %v180
  %v620 = vunpack.c.l.b16 %v181
  %v621 = vunpack.c.l.b16 %v182
  %v622 = vunpack.c.l.b16 %v183
  %v623 = vunpack.c.l.b16 %v184
  %v624 = vunpack.c.l.b16 %v185
  %v625 = vunpack.c.l.b16 %v186
  %v626 = vunpack.c.l.b16 %v187
  %v627 = vunpack.c.l.b16 %v188
  %v628 = vunpack.c.l.b16 %v189
  %v629 = vunpack.c.l.b16 %v190
  %v630 = vunpack.c.l.b16 %v191
  %v631 = vunpack.c.l.b16 %v192
  %v632 = vunpack.c.l.b16 %v193
  %v633 = vunpack.c.l.b16 %v194
  %v634 = vunpack.c.l.b16 %v195
  %v635 = vunpack.c.l.b16 %v196
  %v636 = vunpack.c.l.b16 %v197
  %v637 = vunpack.c.l.b16 %v198
  %v638 = vunpack.c.l.b16 %v199
  %v639 = vunpack.c.l.b16 %v200
  %v640 = vunpack.c.l.b16 %v201
  %v641 = vunpack.c.l.b16 %v202
  %v642 = vunpack.c.l.b16 %v203
  %v643 = vunpack.c.l.b16 %v204
  %v644 = vunpack.c.l.b16 %v205
  %v645 = vunpack.c.l.b16 %v206
  %v646 = vunpack.c.l.b16 %v207
  %v647 = vunpack.c.l.b16 %v208
  %v648 = vunpack.c.l.b16 %v209
  %v649 = vunpack.c.l.b16 %v210
  %v650 = vunpack.c.l.b16 %v211
  %v651 = vunpack.c.l.b16 %v212
  %v652 = vunpack.c.l.b16 %v213
  %v653 = vunpack.c.l.b16 %v214
  %v654 = vunpack.c.l.b16 %v215
  %v655 = vunpack.c.l.b16 %v216
  %v656 = vunpack.c.l.b16 %v217
  %v657 = vunpack.c.l.b16 %v218
  %v658 = vunpack.c.l.b16 %v219
  %v659 = vunpack.c.l.b16 %v220
  %v660 = vunpack.c.l.b16 %v221
  %v661 = vunpack.c.l.b16 %v222
  %v662 = vpack.c.b16 %v455, %v454
  %v663 = vpack.c.b16 %v457, %v456
  %v664 = vpack.c.b16 %v459, %v458
  %v665 = vpack.c.b16 %v461, %v460
  %v666 = vpack.c.b16 %v463, %v462
  %v667 = vpack.c.b16 %v465, %v464
  %v668 = vpack.c.b16 %v467, %v466
  %v669 = vpack.c.b16 %v469, %v468
  %v670 = vpack.c.b16 %v471, %v470
  %v671 = vpack.c.b16 %v473, %v472
  %v672 = vpack.c.b16 %v475, %v474
  %v673 = vpack.c.b16 %v477, %v476
  %v674 = vpack.c.b16 %v479, %v478
  %v675 = vpack.c.b16 %v481, %v480
  %v676 = vpack.c.b16 %v483, %v482
  %v677 = vpack.c.b16 %v485, %v484
  %v678 = vpack.c.b16 %v487, %v486
  %v679 = vpack.c.b16 %v489, %v488
  %v680 = vpack.c.b16 %v491, %v490
  %v681 = vpack.c.b16 %v493, %v492
  %v682 = vpack.c.b16 %v495, %v494
  %v683 = vpack.c.b16 %v497, %v496
  %v684 = vpack.c.b16 %v499, %v498
  %v685 = vpack.c.b16 %v501, %v500
  %v686 = vpack.c.b16 %v503, %v502
  %v687 = vpack.c.b16 %v505, %v504
  %v688 = vpack.c.b16 %v507, %v506
  %v689 = vpack.c.b16 %v509, %v508
  %v690 = vpack.c.b16 %v511, %v510
  %v691 = vpack.c.b16 %v513, %v512
  %v692 = vpack.c.b16 %v515, %v514
  %v693 = vpack.c.b16 %v517, %v516
  %v694 = vpack.c.b16 %v519, %v518
  %v695 = vpack.c.b16 %v521, %v520
  %v696 = vpack.c.b16 %v523, %v522
  %v697 = vpack.c.b16 %v525, %v524
  %v698 = vpack.c.b16 %v527, %v526
  %v699 = vpack.c.b16 %v529, %v528
  %v700 = vpack.c.b16 %v531, %v530
  %v701 = vpack.c.b16 %v533, %v532
  %v702 = vpack.c.b16 %v535, %v534
  %v703 = vpack.c.b16 %v537, %v536
  %v704 = vpack.c.b16 %v539, %v538
  %v705 = vpack.c.b16 %v541, %v540
  %v706 = vpack.c.b16 %v543, %v542
  %v707 = vpack.c.b16 %v545, %v544
  %v708 = vpack.c.b16 %v547, %v546
  %v709 = vpack.c.b16 %v549, %v548
  %v710 = vpack.c.b16 %v551, %v550
  %v711 = vpack.c.b16 %v553, %v552
  %v712 = vpack.c.b16 %v555, %v554
  %v713 = vpack.c.b16 %v557, %v556
  %v714 = vpack.c.b16 %v559, %v558
  %v715 = vpack.c.b16 %v561, %v560
  %v716 = vpack.c.b16 %v563, %v562
  %v717 = vpack.c.b16 %v565, %v564
  %v718 = vpack.c.b16 %v567, %v566
  %v719 = vpack.c.b16 %v569, %v568
  %v720 = vpack.c.b16 %v571, %v570
  %v721 = vpack.c.b16 %v573, %v572
  %v722 = vpack.c.b16 %v575, %v574
  %v723 = vpack.c.b16 %v577, %v576
  %v724 = vpack.c.b16 %v579, %v578
  %v725 = vpack.c.b16 %v581, %v580
  %v726 = vpack.c.b16 %v583, %v582
  %v727 = vpack.c.b16 %v585, %v584
  %v728 = vpack.c.b16 %v587, %v586
  %v729 = vpack.c.b16 %v589, %v588
  %v730 = vpack.c.b16 %v591, %v590
  %v731 = vpack.c.b16 %v593, %v592
  %v732 = vpack.c.b16 %v595, %v594
  %v733 = vpack.c.b16 %v597, %v596
  %v734 = vpack.c.b16 %v599, %v598
  %v735 = vpack.c.b16 %v601, %v600
  %v736 = vpack.c.b16 %v603, %v602
  %v737 = vpack.c.b16 %v605, %v604
  %v738 = vpack.c.b16 %v607, %v606
  %v739 = vpack.c.b16 %v609, %v608
  %v740 = vpack.c.b16 %v611, %v610
  %v741 = vpack.c.b16 %v613, %v612
  %v742 = vpack.c.b16 %v615, %v614
  %v743 = vpack.c.b16 %v617, %v616
  %v744 = vpack.c.b16 %v619, %v618
  %v745 = vpack.c.b16 %v621, %v620
  %v746 = vpack.c.b16 %v623, %v622
  %v747 = vpack.c.b16 %v625, %v624
  %v748 = vpack.c.b16 %v627, %v626
  %v749 = vpack.c.b16 %v629, %v628
  %v750 = vpack.c.b16 %v631, %v630
  %v751 = vpack.c.b16 %v633, %v632
  %v752 = vpack.c.b16 %v635, %v634
  %v753 = vpack.c.b16 %v637, %v636
  %v754 = vpack.c.b16 %v639, %v638
  %v755 = vpack.c.b16 %v641, %v640
  %v756 = vpack.c.b16 %v643, %v642
  %v757 = vpack.c.b16 %v645, %v644
  %v758 = vpack.c.b16 %v647, %v646
  %v759 = vpack.c.b16 %v649, %v648
  %v760 = vpack.c.b16 %v651, %v650
  %v761 = vpack.c.b16 %v653, %v652
  %v762 = vpack.c.b16 %v655, %v654
  %v763 = vpack.c.b16 %v657, %v656
  %v764 = vpack.c.b16 %v659, %v658
  %v765 = vpack.c.b16 %v661, %v660
  %v886 = vunpack.c.l.b16 %v223
  %v887 = vunpack.c.l.b16 %v224
  %v888 = vunpack.c.l.b16 %v225
  %v889 = vunpack.c.l.b16 %v226
  %v890 = vunpack.c.l.b16 %v227
  %v891 = vunpack.c.l.b16 %v228
  %v892 = vunpack.c.l.b16 %v229
  %v893 = vunpack.c.l.b16 %v230
  %v894 = vunpack.c.l.b16 %v231
  %v895 = vunpack.c.l.b16 %v232
  %v896 = vunpack.c.l.b16 %v233
  %v897 = vunpack.c.l.b16 %v234
  %v898 = vunpack.c.l.b16 %v235
  %v899 = vunpack.c.l.b16 %v236
  %v900 = vunpack.c.l.b16 %v237
  %v901 = vunpack.c.l.b16 %v238
  %v902 = vpack.c.b16 %v887, %v886
  %v903 = vpack.c.b16 %v889, %v888
  %v904 = vpack.c.b16 %v891, %v890
  %v905 = vpack.c.b16 %v893, %v892
  %v906 = vpack.c.b16 %v895, %v894
  %v907 = vpack.c.b16 %v897, %v896
  %v908 = vpack.c.b16 %v899, %v898
  %v909 = vpack.c.b16 %v901, %v900
  %918 = vmatprep.subr.bf16.mxu0 0
  %919 = vmatpush1.bf16.msra.mxu0 %v909
  %920 = vmatprep.subr.bf16.mxu0 0
  %921 = vmatpush1.bf16.msra.mxu0 %v908
  %922 = vmatprep.subr.bf16.mxu0 0
  %923 = vmatpush1.bf16.msra.mxu0 %v907
  %924 = vmatprep.subr.bf16.mxu0 0
  %925 = vmatpush1.bf16.msra.mxu0 %v906
  %926 = vmatprep.subr.bf16.mxu0 0
  %927 = vmatpush1.bf16.msra.mxu0 %v905
  %928 = vmatprep.subr.bf16.mxu0 0
  %929 = vmatpush1.bf16.msra.mxu0 %v904
  %930 = vmatprep.subr.bf16.mxu0 0
  %931 = vmatpush1.bf16.msra.mxu0 %v903
  %932 = vmatprep.subr.bf16.mxu0 0
  %933 = vmatpush1.bf16.msra.mxu0 %v902
  %934 = vmatprep.subr.bf16.mxu0 0
  %935 = vmatpush2.bf16.msra.mxu0 0
  %936 = vmatprep.subr.bf16.mxu0 0
  %937 = vmatpush2.bf16.msra.mxu0 0
  %938 = vmatprep.subr.bf16.mxu0 0
  %939 = vmatpush2.bf16.msra.mxu0 0
  %940 = vmatprep.subr.bf16.mxu0 0
  %941 = vmatpush2.bf16.msra.mxu0 0
  %942 = vmatprep.subr.bf16.mxu0 0
  %943 = vmatpush2.bf16.msra.mxu0 0
  %944 = vmatprep.subr.bf16.mxu0 0
  %945 = vmatpush2.bf16.msra.mxu0 0
  %946 = vmatprep.subr.bf16.mxu0 0
  %947 = vmatpush2.bf16.msra.mxu0 0
  %948 = vmatprep.subr.bf16.mxu0 0
  %949 = vmatpush2.bf16.msra.mxu0 0
  %950 = vmatprep.mubr.bf16.mxu0 0
  %951 = vmatmul.mubr.bf16.gmra.mxu0 %v662
  %v952 = vpop.f32.mrf.mxu0
  %v953 = vadd.f32 %v244, %v952
  %v954 = vpop.f32.mrf.mxu0
  %v955 = vpop.f32.mrf.mxu0
  %v956 = vadd.f32 %v244, %v955
  %v957 = vpop.f32.mrf.mxu0
  %958 = vmatprep.mubr.bf16.mxu0 0
  %959 = vmatmul.mubr.bf16.gmra.mxu0 %v663
  %v960 = vpop.f32.mrf.mxu0
  %v961 = vadd.f32 %v244, %v960
  %v962 = vpop.f32.mrf.mxu0
  %v963 = vpop.f32.mrf.mxu0
  %v964 = vadd.f32 %v244, %v963
  %v965 = vpop.f32.mrf.mxu0
  %966 = vmatprep.mubr.bf16.mxu0 0
  %967 = vmatmul.mubr.bf16.gmra.mxu0 %v664
  %v968 = vpop.f32.mrf.mxu0
  %v969 = vadd.f32 %v244, %v968
  %v970 = vpop.f32.mrf.mxu0
  %v971 = vpop.f32.mrf.mxu0
  %v972 = vadd.f32 %v244, %v971
  %v973 = vpop.f32.mrf.mxu0
  %974 = vmatprep.mubr.bf16.mxu0 0
  %975 = vmatmul.mubr.bf16.gmra.mxu0 %v665
  %v976 = vpop.f32.mrf.mxu0
  %v977 = vadd.f32 %v244, %v976
  %v978 = vpop.f32.mrf.mxu0
  %v979 = vpop.f32.mrf.mxu0
  %v980 = vadd.f32 %v244, %v979
  %v981 = vpop.f32.mrf.mxu0
  %982 = vmatprep.mubr.bf16.mxu0 0
  %983 = vmatmul.mubr.bf16.gmra.mxu0 %v666
  %v984 = vpop.f32.mrf.mxu0
  %v985 = vadd.f32 %v244, %v984
  %v986 = vpop.f32.mrf.mxu0
  %v987 = vpop.f32.mrf.mxu0
  %v988 = vadd.f32 %v244, %v987
  %v989 = vpop.f32.mrf.mxu0
  %990 = vmatprep.mubr.bf16.mxu0 0
  %991 = vmatmul.mubr.bf16.gmra.mxu0 %v667
  %v992 = vpop.f32.mrf.mxu0
  %v993 = vadd.f32 %v244, %v992
  %v994 = vpop.f32.mrf.mxu0
  %v995 = vpop.f32.mrf.mxu0
  %v996 = vadd.f32 %v244, %v995
  %v997 = vpop.f32.mrf.mxu0
  %998 = vmatprep.mubr.bf16.mxu0 0
  %999 = vmatmul.mubr.bf16.gmra.mxu0 %v668
  %v1000 = vpop.f32.mrf.mxu0
  %v1001 = vadd.f32 %v244, %v1000
  %v1002 = vpop.f32.mrf.mxu0
  %v1003 = vpop.f32.mrf.mxu0
  %v1004 = vadd.f32 %v244, %v1003
  %v1005 = vpop.f32.mrf.mxu0
  %1006 = vmatprep.mubr.bf16.mxu0 0
  %1007 = vmatmul.mubr.bf16.gmra.mxu0 %v669
  %v1008 = vpop.f32.mrf.mxu0
  %v1009 = vadd.f32 %v244, %v1008
  %v1010 = vpop.f32.mrf.mxu0
  %v1011 = vpop.f32.mrf.mxu0
  %v1012 = vadd.f32 %v244, %v1011
  %v1013 = vpop.f32.mrf.mxu0
  %1014 = vmatprep.mubr.bf16.mxu0 0
  %1015 = vmatmul.mubr.bf16.gmra.mxu0 %v670
  %v1016 = vpop.f32.mrf.mxu0
  %v1017 = vadd.f32 %v244, %v1016
  %v1018 = vpop.f32.mrf.mxu0
  %v1019 = vpop.f32.mrf.mxu0
  %v1020 = vadd.f32 %v244, %v1019
  %v1021 = vpop.f32.mrf.mxu0
  %1022 = vmatprep.mubr.bf16.mxu0 0
  %1023 = vmatmul.mubr.bf16.gmra.mxu0 %v671
  %v1024 = vpop.f32.mrf.mxu0
  %v1025 = vadd.f32 %v244, %v1024
  %v1026 = vpop.f32.mrf.mxu0
  %v1027 = vpop.f32.mrf.mxu0
  %v1028 = vadd.f32 %v244, %v1027
  %v1029 = vpop.f32.mrf.mxu0
  %1030 = vmatprep.mubr.bf16.mxu0 0
  %1031 = vmatmul.mubr.bf16.gmra.mxu0 %v672
  %v1032 = vpop.f32.mrf.mxu0
  %v1033 = vadd.f32 %v244, %v1032
  %v1034 = vpop.f32.mrf.mxu0
  %v1035 = vpop.f32.mrf.mxu0
  %v1036 = vadd.f32 %v244, %v1035
  %v1037 = vpop.f32.mrf.mxu0
  %1038 = vmatprep.mubr.bf16.mxu0 0
  %1039 = vmatmul.mubr.bf16.gmra.mxu0 %v673
  %v1040 = vpop.f32.mrf.mxu0
  %v1041 = vadd.f32 %v244, %v1040
  %v1042 = vpop.f32.mrf.mxu0
  %v1043 = vpop.f32.mrf.mxu0
  %v1044 = vadd.f32 %v244, %v1043
  %v1045 = vpop.f32.mrf.mxu0
  %1046 = vmatprep.mubr.bf16.mxu0 0
  %1047 = vmatmul.mubr.bf16.gmra.mxu0 %v674
  %v1048 = vpop.f32.mrf.mxu0
  %v1049 = vadd.f32 %v244, %v1048
  %v1050 = vpop.f32.mrf.mxu0
  %v1051 = vpop.f32.mrf.mxu0
  %v1052 = vadd.f32 %v244, %v1051
  %v1053 = vpop.f32.mrf.mxu0
  %1054 = vmatprep.mubr.bf16.mxu0 0
  %1055 = vmatmul.mubr.bf16.gmra.mxu0 %v675
  %v1056 = vpop.f32.mrf.mxu0
  %v1057 = vadd.f32 %v244, %v1056
  %v1058 = vpop.f32.mrf.mxu0
  %v1059 = vpop.f32.mrf.mxu0
  %v1060 = vadd.f32 %v244, %v1059
  %v1061 = vpop.f32.mrf.mxu0
  %1062 = vmatprep.mubr.bf16.mxu0 0
  %1063 = vmatmul.mubr.bf16.gmra.mxu0 %v676
  %v1064 = vpop.f32.mrf.mxu0
  %v1065 = vadd.f32 %v244, %v1064
  %v1066 = vpop.f32.mrf.mxu0
  %v1067 = vpop.f32.mrf.mxu0
  %v1068 = vadd.f32 %v244, %v1067
  %v1069 = vpop.f32.mrf.mxu0
  %1070 = vmatprep.mubr.bf16.mxu0 0
  %1071 = vmatmul.mubr.bf16.gmra.mxu0 %v677
  %v1072 = vpop.f32.mrf.mxu0
  %v1073 = vadd.f32 %v244, %v1072
  %v1074 = vpop.f32.mrf.mxu0
  %v1075 = vpop.f32.mrf.mxu0
  %v1076 = vadd.f32 %v244, %v1075
  %v1077 = vpop.f32.mrf.mxu0
  %1078 = vmatprep.mubr.bf16.mxu0 0
  %1079 = vmatmul.mubr.bf16.gmra.mxu0 %v678
  %v1080 = vpop.f32.mrf.mxu0
  %v1081 = vadd.f32 %v244, %v1080
  %v1082 = vpop.f32.mrf.mxu0
  %v1083 = vpop.f32.mrf.mxu0
  %v1084 = vadd.f32 %v244, %v1083
  %v1085 = vpop.f32.mrf.mxu0
  %1086 = vmatprep.mubr.bf16.mxu0 0
  %1087 = vmatmul.mubr.bf16.gmra.mxu0 %v679
  %v1088 = vpop.f32.mrf.mxu0
  %v1089 = vadd.f32 %v244, %v1088
  %v1090 = vpop.f32.mrf.mxu0
  %v1091 = vpop.f32.mrf.mxu0
  %v1092 = vadd.f32 %v244, %v1091
  %v1093 = vpop.f32.mrf.mxu0
  %1094 = vmatprep.mubr.bf16.mxu0 0
  %1095 = vmatmul.mubr.bf16.gmra.mxu0 %v680
  %v1096 = vpop.f32.mrf.mxu0
  %v1097 = vadd.f32 %v244, %v1096
  %v1098 = vpop.f32.mrf.mxu0
  %v1099 = vpop.f32.mrf.mxu0
  %v1100 = vadd.f32 %v244, %v1099
  %v1101 = vpop.f32.mrf.mxu0
  %1102 = vmatprep.mubr.bf16.mxu0 0
  %1103 = vmatmul.mubr.bf16.gmra.mxu0 %v681
  %v1104 = vpop.f32.mrf.mxu0
  %v1105 = vadd.f32 %v244, %v1104
  %v1106 = vpop.f32.mrf.mxu0
  %v1107 = vpop.f32.mrf.mxu0
  %v1108 = vadd.f32 %v244, %v1107
  %v1109 = vpop.f32.mrf.mxu0
  %1110 = vmatprep.mubr.bf16.mxu0 0
  %1111 = vmatmul.mubr.bf16.gmra.mxu0 %v682
  %v1112 = vpop.f32.mrf.mxu0
  %v1113 = vadd.f32 %v244, %v1112
  %v1114 = vpop.f32.mrf.mxu0
  %v1115 = vpop.f32.mrf.mxu0
  %v1116 = vadd.f32 %v244, %v1115
  %v1117 = vpop.f32.mrf.mxu0
  %1118 = vmatprep.mubr.bf16.mxu0 0
  %1119 = vmatmul.mubr.bf16.gmra.mxu0 %v683
  %v1120 = vpop.f32.mrf.mxu0
  %v1121 = vadd.f32 %v244, %v1120
  %v1122 = vpop.f32.mrf.mxu0
  %v1123 = vpop.f32.mrf.mxu0
  %v1124 = vadd.f32 %v244, %v1123
  %v1125 = vpop.f32.mrf.mxu0
  %1126 = vmatprep.mubr.bf16.mxu0 0
  %1127 = vmatmul.mubr.bf16.gmra.mxu0 %v684
  %v1128 = vpop.f32.mrf.mxu0
  %v1129 = vadd.f32 %v244, %v1128
  %v1130 = vpop.f32.mrf.mxu0
  %v1131 = vpop.f32.mrf.mxu0
  %v1132 = vadd.f32 %v244, %v1131
  %v1133 = vpop.f32.mrf.mxu0
  %1134 = vmatprep.mubr.bf16.mxu0 0
  %1135 = vmatmul.mubr.bf16.gmra.mxu0 %v685
  %v1136 = vpop.f32.mrf.mxu0
  %v1137 = vadd.f32 %v244, %v1136
  %v1138 = vpop.f32.mrf.mxu0
  %v1139 = vpop.f32.mrf.mxu0
  %v1140 = vadd.f32 %v244, %v1139
  %v1141 = vpop.f32.mrf.mxu0
  %1142 = vmatprep.mubr.bf16.mxu0 0
  %1143 = vmatmul.mubr.bf16.gmra.mxu0 %v686
  %v1144 = vpop.f32.mrf.mxu0
  %v1145 = vadd.f32 %v244, %v1144
  %v1146 = vpop.f32.mrf.mxu0
  %v1147 = vpop.f32.mrf.mxu0
  %v1148 = vadd.f32 %v244, %v1147
  %v1149 = vpop.f32.mrf.mxu0
  %1150 = vmatprep.mubr.bf16.mxu0 0
  %1151 = vmatmul.mubr.bf16.gmra.mxu0 %v687
  %v1152 = vpop.f32.mrf.mxu0
  %v1153 = vadd.f32 %v244, %v1152
  %v1154 = vpop.f32.mrf.mxu0
  %v1155 = vpop.f32.mrf.mxu0
  %v1156 = vadd.f32 %v244, %v1155
  %v1157 = vpop.f32.mrf.mxu0
  %1158 = vmatprep.mubr.bf16.mxu0 0
  %1159 = vmatmul.mubr.bf16.gmra.mxu0 %v688
  %v1160 = vpop.f32.mrf.mxu0
  %v1161 = vadd.f32 %v244, %v1160
  %v1162 = vpop.f32.mrf.mxu0
  %v1163 = vpop.f32.mrf.mxu0
  %v1164 = vadd.f32 %v244, %v1163
  %v1165 = vpop.f32.mrf.mxu0
  %1166 = vmatprep.mubr.bf16.mxu0 0
  %1167 = vmatmul.mubr.bf16.gmra.mxu0 %v689
  %v1168 = vpop.f32.mrf.mxu0
  %v1169 = vadd.f32 %v244, %v1168
  %v1170 = vpop.f32.mrf.mxu0
  %v1171 = vpop.f32.mrf.mxu0
  %v1172 = vadd.f32 %v244, %v1171
  %v1173 = vpop.f32.mrf.mxu0
  %1174 = vmatprep.mubr.bf16.mxu0 0
  %1175 = vmatmul.mubr.bf16.gmra.mxu0 %v690
  %v1176 = vpop.f32.mrf.mxu0
  %v1177 = vadd.f32 %v244, %v1176
  %v1178 = vpop.f32.mrf.mxu0
  %v1179 = vpop.f32.mrf.mxu0
  %v1180 = vadd.f32 %v244, %v1179
  %v1181 = vpop.f32.mrf.mxu0
  %1182 = vmatprep.mubr.bf16.mxu0 0
  %1183 = vmatmul.mubr.bf16.gmra.mxu0 %v691
  %v1184 = vpop.f32.mrf.mxu0
  %v1185 = vadd.f32 %v244, %v1184
  %v1186 = vpop.f32.mrf.mxu0
  %v1187 = vpop.f32.mrf.mxu0
  %v1188 = vadd.f32 %v244, %v1187
  %v1189 = vpop.f32.mrf.mxu0
  %1190 = vmatprep.mubr.bf16.mxu0 0
  %1191 = vmatmul.mubr.bf16.gmra.mxu0 %v692
  %v1192 = vpop.f32.mrf.mxu0
  %v1193 = vadd.f32 %v244, %v1192
  %v1194 = vpop.f32.mrf.mxu0
  %v1195 = vpop.f32.mrf.mxu0
  %v1196 = vadd.f32 %v244, %v1195
  %v1197 = vpop.f32.mrf.mxu0
  %1198 = vmatprep.mubr.bf16.mxu0 0
  %1199 = vmatmul.mubr.bf16.gmra.mxu0 %v693
  %v1200 = vpop.f32.mrf.mxu0
  %v1201 = vadd.f32 %v244, %v1200
  %v1202 = vpop.f32.mrf.mxu0
  %v1203 = vpop.f32.mrf.mxu0
  %v1204 = vadd.f32 %v244, %v1203
  %v1205 = vpop.f32.mrf.mxu0
  %1206 = vmatprep.mubr.bf16.mxu0 0
  %1207 = vmatmul.mubr.bf16.gmra.mxu0 %v694
  %v1208 = vpop.f32.mrf.mxu0
  %v1209 = vadd.f32 %v244, %v1208
  %v1210 = vpop.f32.mrf.mxu0
  %v1211 = vpop.f32.mrf.mxu0
  %v1212 = vadd.f32 %v244, %v1211
  %v1213 = vpop.f32.mrf.mxu0
  %1214 = vmatprep.mubr.bf16.mxu0 0
  %1215 = vmatmul.mubr.bf16.gmra.mxu0 %v695
  %v1216 = vpop.f32.mrf.mxu0
  %v1217 = vadd.f32 %v244, %v1216
  %v1218 = vpop.f32.mrf.mxu0
  %v1219 = vpop.f32.mrf.mxu0
  %v1220 = vadd.f32 %v244, %v1219
  %v1221 = vpop.f32.mrf.mxu0
  %1222 = vmatprep.mubr.bf16.mxu0 0
  %1223 = vmatmul.mubr.bf16.gmra.mxu0 %v696
  %v1224 = vpop.f32.mrf.mxu0
  %v1225 = vadd.f32 %v244, %v1224
  %v1226 = vpop.f32.mrf.mxu0
  %v1227 = vpop.f32.mrf.mxu0
  %v1228 = vadd.f32 %v244, %v1227
  %v1229 = vpop.f32.mrf.mxu0
  %1230 = vmatprep.mubr.bf16.mxu0 0
  %1231 = vmatmul.mubr.bf16.gmra.mxu0 %v697
  %v1232 = vpop.f32.mrf.mxu0
  %v1233 = vadd.f32 %v244, %v1232
  %v1234 = vpop.f32.mrf.mxu0
  %v1235 = vpop.f32.mrf.mxu0
  %v1236 = vadd.f32 %v244, %v1235
  %v1237 = vpop.f32.mrf.mxu0
  %1238 = vmatprep.mubr.bf16.mxu0 0
  %1239 = vmatmul.mubr.bf16.gmra.mxu0 %v698
  %v1240 = vpop.f32.mrf.mxu0
  %v1241 = vadd.f32 %v244, %v1240
  %v1242 = vpop.f32.mrf.mxu0
  %v1243 = vpop.f32.mrf.mxu0
  %v1244 = vadd.f32 %v244, %v1243
  %v1245 = vpop.f32.mrf.mxu0
  %1246 = vmatprep.mubr.bf16.mxu0 0
  %1247 = vmatmul.mubr.bf16.gmra.mxu0 %v699
  %v1248 = vpop.f32.mrf.mxu0
  %v1249 = vadd.f32 %v244, %v1248
  %v1250 = vpop.f32.mrf.mxu0
  %v1251 = vpop.f32.mrf.mxu0
  %v1252 = vadd.f32 %v244, %v1251
  %v1253 = vpop.f32.mrf.mxu0
  %1254 = vmatprep.mubr.bf16.mxu0 0
  %1255 = vmatmul.mubr.bf16.gmra.mxu0 %v700
  %v1256 = vpop.f32.mrf.mxu0
  %v1257 = vadd.f32 %v244, %v1256
  %v1258 = vpop.f32.mrf.mxu0
  %v1259 = vpop.f32.mrf.mxu0
  %v1260 = vadd.f32 %v244, %v1259
  %v1261 = vpop.f32.mrf.mxu0
  %1262 = vmatprep.mubr.bf16.mxu0 0
  %1263 = vmatmul.mubr.bf16.gmra.mxu0 %v701
  %v1264 = vpop.f32.mrf.mxu0
  %v1265 = vadd.f32 %v244, %v1264
  %v1266 = vpop.f32.mrf.mxu0
  %v1267 = vpop.f32.mrf.mxu0
  %v1268 = vadd.f32 %v244, %v1267
  %v1269 = vpop.f32.mrf.mxu0
  %1270 = vmatprep.mubr.bf16.mxu0 0
  %1271 = vmatmul.mubr.bf16.gmra.mxu0 %v702
  %v1272 = vpop.f32.mrf.mxu0
  %v1273 = vadd.f32 %v244, %v1272
  %v1274 = vpop.f32.mrf.mxu0
  %v1275 = vpop.f32.mrf.mxu0
  %v1276 = vadd.f32 %v244, %v1275
  %v1277 = vpop.f32.mrf.mxu0
  %1278 = vmatprep.mubr.bf16.mxu0 0
  %1279 = vmatmul.mubr.bf16.gmra.mxu0 %v703
  %v1280 = vpop.f32.mrf.mxu0
  %v1281 = vadd.f32 %v244, %v1280
  %v1282 = vpop.f32.mrf.mxu0
  %v1283 = vpop.f32.mrf.mxu0
  %v1284 = vadd.f32 %v244, %v1283
  %v1285 = vpop.f32.mrf.mxu0
  %1286 = vmatprep.mubr.bf16.mxu0 0
  %1287 = vmatmul.mubr.bf16.gmra.mxu0 %v704
  %v1288 = vpop.f32.mrf.mxu0
  %v1289 = vadd.f32 %v244, %v1288
  %v1290 = vpop.f32.mrf.mxu0
  %v1291 = vpop.f32.mrf.mxu0
  %v1292 = vadd.f32 %v244, %v1291
  %v1293 = vpop.f32.mrf.mxu0
  %1294 = vmatprep.mubr.bf16.mxu0 0
  %1295 = vmatmul.mubr.bf16.gmra.mxu0 %v705
  %v1296 = vpop.f32.mrf.mxu0
  %v1297 = vadd.f32 %v244, %v1296
  %v1298 = vpop.f32.mrf.mxu0
  %v1299 = vpop.f32.mrf.mxu0
  %v1300 = vadd.f32 %v244, %v1299
  %v1301 = vpop.f32.mrf.mxu0
  %1302 = vmatprep.mubr.bf16.mxu0 0
  %1303 = vmatmul.mubr.bf16.gmra.mxu0 %v706
  %v1304 = vpop.f32.mrf.mxu0
  %v1305 = vadd.f32 %v244, %v1304
  %v1306 = vpop.f32.mrf.mxu0
  %v1307 = vpop.f32.mrf.mxu0
  %v1308 = vadd.f32 %v244, %v1307
  %v1309 = vpop.f32.mrf.mxu0
  %1310 = vmatprep.mubr.bf16.mxu0 0
  %1311 = vmatmul.mubr.bf16.gmra.mxu0 %v707
  %v1312 = vpop.f32.mrf.mxu0
  %v1313 = vadd.f32 %v244, %v1312
  %v1314 = vpop.f32.mrf.mxu0
  %v1315 = vpop.f32.mrf.mxu0
  %v1316 = vadd.f32 %v244, %v1315
  %v1317 = vpop.f32.mrf.mxu0
  %1318 = vmatprep.mubr.bf16.mxu0 0
  %1319 = vmatmul.mubr.bf16.gmra.mxu0 %v708
  %v1320 = vpop.f32.mrf.mxu0
  %v1321 = vadd.f32 %v244, %v1320
  %v1322 = vpop.f32.mrf.mxu0
  %v1323 = vpop.f32.mrf.mxu0
  %v1324 = vadd.f32 %v244, %v1323
  %v1325 = vpop.f32.mrf.mxu0
  %1326 = vmatprep.mubr.bf16.mxu0 0
  %1327 = vmatmul.mubr.bf16.gmra.mxu0 %v709
  %v1328 = vpop.f32.mrf.mxu0
  %v1329 = vadd.f32 %v244, %v1328
  %v1330 = vpop.f32.mrf.mxu0
  %v1331 = vpop.f32.mrf.mxu0
  %v1332 = vadd.f32 %v244, %v1331
  %v1333 = vpop.f32.mrf.mxu0
  %1334 = vmatprep.mubr.bf16.mxu0 0
  %1335 = vmatmul.mubr.bf16.gmra.mxu0 %v710
  %v1336 = vpop.f32.mrf.mxu0
  %v1337 = vadd.f32 %v244, %v1336
  %v1338 = vpop.f32.mrf.mxu0
  %v1339 = vpop.f32.mrf.mxu0
  %v1340 = vadd.f32 %v244, %v1339
  %v1341 = vpop.f32.mrf.mxu0
  %1342 = vmatprep.mubr.bf16.mxu0 0
  %1343 = vmatmul.mubr.bf16.gmra.mxu0 %v711
  %v1344 = vpop.f32.mrf.mxu0
  %v1345 = vadd.f32 %v244, %v1344
  %v1346 = vpop.f32.mrf.mxu0
  %v1347 = vpop.f32.mrf.mxu0
  %v1348 = vadd.f32 %v244, %v1347
  %v1349 = vpop.f32.mrf.mxu0
  %1350 = vmatprep.mubr.bf16.mxu0 0
  %1351 = vmatmul.mubr.bf16.gmra.mxu0 %v712
  %v1352 = vpop.f32.mrf.mxu0
  %v1353 = vadd.f32 %v244, %v1352
  %v1354 = vpop.f32.mrf.mxu0
  %v1355 = vpop.f32.mrf.mxu0
  %v1356 = vadd.f32 %v244, %v1355
  %v1357 = vpop.f32.mrf.mxu0
  %1358 = vmatprep.mubr.bf16.mxu0 0
  %1359 = vmatmul.mubr.bf16.gmra.mxu0 %v713
  %v1360 = vpop.f32.mrf.mxu0
  %v1361 = vadd.f32 %v244, %v1360
  %v1362 = vpop.f32.mrf.mxu0
  %v1363 = vpop.f32.mrf.mxu0
  %v1364 = vadd.f32 %v244, %v1363
  %v1365 = vpop.f32.mrf.mxu0
  %1366 = vmatprep.mubr.bf16.mxu0 0
  %1367 = vmatmul.mubr.bf16.gmra.mxu0 %v714
  %v1368 = vpop.f32.mrf.mxu0
  %v1369 = vadd.f32 %v244, %v1368
  %v1370 = vpop.f32.mrf.mxu0
  %v1371 = vpop.f32.mrf.mxu0
  %v1372 = vadd.f32 %v244, %v1371
  %v1373 = vpop.f32.mrf.mxu0
  %1374 = vmatprep.mubr.bf16.mxu0 0
  %1375 = vmatmul.mubr.bf16.gmra.mxu0 %v715
  %v1376 = vpop.f32.mrf.mxu0
  %v1377 = vadd.f32 %v244, %v1376
  %v1378 = vpop.f32.mrf.mxu0
  %v1379 = vpop.f32.mrf.mxu0
  %v1380 = vadd.f32 %v244, %v1379
  %v1381 = vpop.f32.mrf.mxu0
  %1382 = vmatprep.mubr.bf16.mxu0 0
  %1383 = vmatmul.mubr.bf16.gmra.mxu0 %v716
  %v1384 = vpop.f32.mrf.mxu0
  %v1385 = vadd.f32 %v244, %v1384
  %v1386 = vpop.f32.mrf.mxu0
  %v1387 = vpop.f32.mrf.mxu0
  %v1388 = vadd.f32 %v244, %v1387
  %v1389 = vpop.f32.mrf.mxu0
  %1390 = vmatprep.mubr.bf16.mxu0 0
  %1391 = vmatmul.mubr.bf16.gmra.mxu0 %v717
  %v1392 = vpop.f32.mrf.mxu0
  %v1393 = vadd.f32 %v244, %v1392
  %v1394 = vpop.f32.mrf.mxu0
  %v1395 = vpop.f32.mrf.mxu0
  %v1396 = vadd.f32 %v244, %v1395
  %v1397 = vpop.f32.mrf.mxu0
  %1398 = vmatprep.mubr.bf16.mxu0 0
  %1399 = vmatmul.mubr.bf16.gmra.mxu0 %v718
  %v1400 = vpop.f32.mrf.mxu0
  %v1401 = vadd.f32 %v244, %v1400
  %v1402 = vpop.f32.mrf.mxu0
  %v1403 = vpop.f32.mrf.mxu0
  %v1404 = vadd.f32 %v244, %v1403
  %v1405 = vpop.f32.mrf.mxu0
  %1406 = vmatprep.mubr.bf16.mxu0 0
  %1407 = vmatmul.mubr.bf16.gmra.mxu0 %v719
  %v1408 = vpop.f32.mrf.mxu0
  %v1409 = vadd.f32 %v244, %v1408
  %v1410 = vpop.f32.mrf.mxu0
  %v1411 = vpop.f32.mrf.mxu0
  %v1412 = vadd.f32 %v244, %v1411
  %v1413 = vpop.f32.mrf.mxu0
  %1414 = vmatprep.mubr.bf16.mxu0 0
  %1415 = vmatmul.mubr.bf16.gmra.mxu0 %v720
  %v1416 = vpop.f32.mrf.mxu0
  %v1417 = vadd.f32 %v244, %v1416
  %v1418 = vpop.f32.mrf.mxu0
  %v1419 = vpop.f32.mrf.mxu0
  %v1420 = vadd.f32 %v244, %v1419
  %v1421 = vpop.f32.mrf.mxu0
  %1422 = vmatprep.mubr.bf16.mxu0 0
  %1423 = vmatmul.mubr.bf16.gmra.mxu0 %v721
  %v1424 = vpop.f32.mrf.mxu0
  %v1425 = vadd.f32 %v244, %v1424
  %v1426 = vpop.f32.mrf.mxu0
  %v1427 = vpop.f32.mrf.mxu0
  %v1428 = vadd.f32 %v244, %v1427
  %v1429 = vpop.f32.mrf.mxu0
  %1430 = vmatprep.mubr.bf16.mxu0 0
  %1431 = vmatmul.mubr.bf16.gmra.mxu0 %v722
  %v1432 = vpop.f32.mrf.mxu0
  %v1433 = vadd.f32 %v244, %v1432
  %v1434 = vpop.f32.mrf.mxu0
  %v1435 = vpop.f32.mrf.mxu0
  %v1436 = vadd.f32 %v244, %v1435
  %v1437 = vpop.f32.mrf.mxu0
  %1438 = vmatprep.mubr.bf16.mxu0 0
  %1439 = vmatmul.mubr.bf16.gmra.mxu0 %v723
  %v1440 = vpop.f32.mrf.mxu0
  %v1441 = vadd.f32 %v244, %v1440
  %v1442 = vpop.f32.mrf.mxu0
  %v1443 = vpop.f32.mrf.mxu0
  %v1444 = vadd.f32 %v244, %v1443
  %v1445 = vpop.f32.mrf.mxu0
  %1446 = vmatprep.mubr.bf16.mxu0 0
  %1447 = vmatmul.mubr.bf16.gmra.mxu0 %v724
  %v1448 = vpop.f32.mrf.mxu0
  %v1449 = vadd.f32 %v244, %v1448
  %v1450 = vpop.f32.mrf.mxu0
  %v1451 = vpop.f32.mrf.mxu0
  %v1452 = vadd.f32 %v244, %v1451
  %v1453 = vpop.f32.mrf.mxu0
  %1454 = vmatprep.mubr.bf16.mxu0 0
  %1455 = vmatmul.mubr.bf16.gmra.mxu0 %v725
  %v1456 = vpop.f32.mrf.mxu0
  %v1457 = vadd.f32 %v244, %v1456
  %v1458 = vpop.f32.mrf.mxu0
  %v1459 = vpop.f32.mrf.mxu0
  %v1460 = vadd.f32 %v244, %v1459
  %v1461 = vpop.f32.mrf.mxu0
  %1462 = vmatprep.mubr.bf16.mxu0 0
  %1463 = vmatmul.mubr.bf16.gmra.mxu0 %v726
  %v1464 = vpop.f32.mrf.mxu0
  %v1465 = vadd.f32 %v244, %v1464
  %v1466 = vpop.f32.mrf.mxu0
  %v1467 = vpop.f32.mrf.mxu0
  %v1468 = vadd.f32 %v244, %v1467
  %v1469 = vpop.f32.mrf.mxu0
  %1470 = vmatprep.mubr.bf16.mxu0 0
  %1471 = vmatmul.mubr.bf16.gmra.mxu0 %v727
  %v1472 = vpop.f32.mrf.mxu0
  %v1473 = vadd.f32 %v244, %v1472
  %v1474 = vpop.f32.mrf.mxu0
  %v1475 = vpop.f32.mrf.mxu0
  %v1476 = vadd.f32 %v244, %v1475
  %v1477 = vpop.f32.mrf.mxu0
  %1478 = vmatprep.mubr.bf16.mxu0 0
  %1479 = vmatmul.mubr.bf16.gmra.mxu0 %v728
  %v1480 = vpop.f32.mrf.mxu0
  %v1481 = vadd.f32 %v244, %v1480
  %v1482 = vpop.f32.mrf.mxu0
  %v1483 = vpop.f32.mrf.mxu0
  %v1484 = vadd.f32 %v244, %v1483
  %v1485 = vpop.f32.mrf.mxu0
  %1486 = vmatprep.mubr.bf16.mxu0 0
  %1487 = vmatmul.mubr.bf16.gmra.mxu0 %v729
  %v1488 = vpop.f32.mrf.mxu0
  %v1489 = vadd.f32 %v244, %v1488
  %v1490 = vpop.f32.mrf.mxu0
  %v1491 = vpop.f32.mrf.mxu0
  %v1492 = vadd.f32 %v244, %v1491
  %v1493 = vpop.f32.mrf.mxu0
  %1494 = vmatprep.mubr.bf16.mxu0 0
  %1495 = vmatmul.mubr.bf16.gmra.mxu0 %v730
  %v1496 = vpop.f32.mrf.mxu0
  %v1497 = vadd.f32 %v244, %v1496
  %v1498 = vpop.f32.mrf.mxu0
  %v1499 = vpop.f32.mrf.mxu0
  %v1500 = vadd.f32 %v244, %v1499
  %v1501 = vpop.f32.mrf.mxu0
  %1502 = vmatprep.mubr.bf16.mxu0 0
  %1503 = vmatmul.mubr.bf16.gmra.mxu0 %v731
  %v1504 = vpop.f32.mrf.mxu0
  %v1505 = vadd.f32 %v244, %v1504
  %v1506 = vpop.f32.mrf.mxu0
  %v1507 = vpop.f32.mrf.mxu0
  %v1508 = vadd.f32 %v244, %v1507
  %v1509 = vpop.f32.mrf.mxu0
  %1510 = vmatprep.mubr.bf16.mxu0 0
  %1511 = vmatmul.mubr.bf16.gmra.mxu0 %v732
  %v1512 = vpop.f32.mrf.mxu0
  %v1513 = vadd.f32 %v244, %v1512
  %v1514 = vpop.f32.mrf.mxu0
  %v1515 = vpop.f32.mrf.mxu0
  %v1516 = vadd.f32 %v244, %v1515
  %v1517 = vpop.f32.mrf.mxu0
  %1518 = vmatprep.mubr.bf16.mxu0 0
  %1519 = vmatmul.mubr.bf16.gmra.mxu0 %v733
  %v1520 = vpop.f32.mrf.mxu0
  %v1521 = vadd.f32 %v244, %v1520
  %v1522 = vpop.f32.mrf.mxu0
  %v1523 = vpop.f32.mrf.mxu0
  %v1524 = vadd.f32 %v244, %v1523
  %v1525 = vpop.f32.mrf.mxu0
  %1526 = vmatprep.mubr.bf16.mxu0 0
  %1527 = vmatmul.mubr.bf16.gmra.mxu0 %v734
  %v1528 = vpop.f32.mrf.mxu0
  %v1529 = vadd.f32 %v244, %v1528
  %v1530 = vpop.f32.mrf.mxu0
  %v1531 = vpop.f32.mrf.mxu0
  %v1532 = vadd.f32 %v244, %v1531
  %v1533 = vpop.f32.mrf.mxu0
  %1534 = vmatprep.mubr.bf16.mxu0 0
  %1535 = vmatmul.mubr.bf16.gmra.mxu0 %v735
  %v1536 = vpop.f32.mrf.mxu0
  %v1537 = vadd.f32 %v244, %v1536
  %v1538 = vpop.f32.mrf.mxu0
  %v1539 = vpop.f32.mrf.mxu0
  %v1540 = vadd.f32 %v244, %v1539
  %v1541 = vpop.f32.mrf.mxu0
  %1542 = vmatprep.mubr.bf16.mxu0 0
  %1543 = vmatmul.mubr.bf16.gmra.mxu0 %v736
  %v1544 = vpop.f32.mrf.mxu0
  %v1545 = vadd.f32 %v244, %v1544
  %v1546 = vpop.f32.mrf.mxu0
  %v1547 = vpop.f32.mrf.mxu0
  %v1548 = vadd.f32 %v244, %v1547
  %v1549 = vpop.f32.mrf.mxu0
  %1550 = vmatprep.mubr.bf16.mxu0 0
  %1551 = vmatmul.mubr.bf16.gmra.mxu0 %v737
  %v1552 = vpop.f32.mrf.mxu0
  %v1553 = vadd.f32 %v244, %v1552
  %v1554 = vpop.f32.mrf.mxu0
  %v1555 = vpop.f32.mrf.mxu0
  %v1556 = vadd.f32 %v244, %v1555
  %v1557 = vpop.f32.mrf.mxu0
  %1558 = vmatprep.mubr.bf16.mxu0 0
  %1559 = vmatmul.mubr.bf16.gmra.mxu0 %v738
  %v1560 = vpop.f32.mrf.mxu0
  %v1561 = vadd.f32 %v244, %v1560
  %v1562 = vpop.f32.mrf.mxu0
  %v1563 = vpop.f32.mrf.mxu0
  %v1564 = vadd.f32 %v244, %v1563
  %v1565 = vpop.f32.mrf.mxu0
  %1566 = vmatprep.mubr.bf16.mxu0 0
  %1567 = vmatmul.mubr.bf16.gmra.mxu0 %v739
  %v1568 = vpop.f32.mrf.mxu0
  %v1569 = vadd.f32 %v244, %v1568
  %v1570 = vpop.f32.mrf.mxu0
  %v1571 = vpop.f32.mrf.mxu0
  %v1572 = vadd.f32 %v244, %v1571
  %v1573 = vpop.f32.mrf.mxu0
  %1574 = vmatprep.mubr.bf16.mxu0 0
  %1575 = vmatmul.mubr.bf16.gmra.mxu0 %v740
  %v1576 = vpop.f32.mrf.mxu0
  %v1577 = vadd.f32 %v244, %v1576
  %v1578 = vpop.f32.mrf.mxu0
  %v1579 = vpop.f32.mrf.mxu0
  %v1580 = vadd.f32 %v244, %v1579
  %v1581 = vpop.f32.mrf.mxu0
  %1582 = vmatprep.mubr.bf16.mxu0 0
  %1583 = vmatmul.mubr.bf16.gmra.mxu0 %v741
  %v1584 = vpop.f32.mrf.mxu0
  %v1585 = vadd.f32 %v244, %v1584
  %v1586 = vpop.f32.mrf.mxu0
  %v1587 = vpop.f32.mrf.mxu0
  %v1588 = vadd.f32 %v244, %v1587
  %v1589 = vpop.f32.mrf.mxu0
  %1590 = vmatprep.mubr.bf16.mxu0 0
  %1591 = vmatmul.mubr.bf16.gmra.mxu0 %v742
  %v1592 = vpop.f32.mrf.mxu0
  %v1593 = vadd.f32 %v244, %v1592
  %v1594 = vpop.f32.mrf.mxu0
  %v1595 = vpop.f32.mrf.mxu0
  %v1596 = vadd.f32 %v244, %v1595
  %v1597 = vpop.f32.mrf.mxu0
  %1598 = vmatprep.mubr.bf16.mxu0 0
  %1599 = vmatmul.mubr.bf16.gmra.mxu0 %v743
  %v1600 = vpop.f32.mrf.mxu0
  %v1601 = vadd.f32 %v244, %v1600
  %v1602 = vpop.f32.mrf.mxu0
  %v1603 = vpop.f32.mrf.mxu0
  %v1604 = vadd.f32 %v244, %v1603
  %v1605 = vpop.f32.mrf.mxu0
  %1606 = vmatprep.mubr.bf16.mxu0 0
  %1607 = vmatmul.mubr.bf16.gmra.mxu0 %v744
  %v1608 = vpop.f32.mrf.mxu0
  %v1609 = vadd.f32 %v244, %v1608
  %v1610 = vpop.f32.mrf.mxu0
  %v1611 = vpop.f32.mrf.mxu0
  %v1612 = vadd.f32 %v244, %v1611
  %v1613 = vpop.f32.mrf.mxu0
  %1614 = vmatprep.mubr.bf16.mxu0 0
  %1615 = vmatmul.mubr.bf16.gmra.mxu0 %v745
  %v1616 = vpop.f32.mrf.mxu0
  %v1617 = vadd.f32 %v244, %v1616
  %v1618 = vpop.f32.mrf.mxu0
  %v1619 = vpop.f32.mrf.mxu0
  %v1620 = vadd.f32 %v244, %v1619
  %v1621 = vpop.f32.mrf.mxu0
  %1622 = vmatprep.mubr.bf16.mxu0 0
  %1623 = vmatmul.mubr.bf16.gmra.mxu0 %v746
  %v1624 = vpop.f32.mrf.mxu0
  %v1625 = vadd.f32 %v244, %v1624
  %v1626 = vpop.f32.mrf.mxu0
  %v1627 = vpop.f32.mrf.mxu0
  %v1628 = vadd.f32 %v244, %v1627
  %v1629 = vpop.f32.mrf.mxu0
  %1630 = vmatprep.mubr.bf16.mxu0 0
  %1631 = vmatmul.mubr.bf16.gmra.mxu0 %v747
  %v1632 = vpop.f32.mrf.mxu0
  %v1633 = vadd.f32 %v244, %v1632
  %v1634 = vpop.f32.mrf.mxu0
  %v1635 = vpop.f32.mrf.mxu0
  %v1636 = vadd.f32 %v244, %v1635
  %v1637 = vpop.f32.mrf.mxu0
  %1638 = vmatprep.mubr.bf16.mxu0 0
  %1639 = vmatmul.mubr.bf16.gmra.mxu0 %v748
  %v1640 = vpop.f32.mrf.mxu0
  %v1641 = vadd.f32 %v244, %v1640
  %v1642 = vpop.f32.mrf.mxu0
  %v1643 = vpop.f32.mrf.mxu0
  %v1644 = vadd.f32 %v244, %v1643
  %v1645 = vpop.f32.mrf.mxu0
  %1646 = vmatprep.mubr.bf16.mxu0 0
  %1647 = vmatmul.mubr.bf16.gmra.mxu0 %v749
  %v1648 = vpop.f32.mrf.mxu0
  %v1649 = vadd.f32 %v244, %v1648
  %v1650 = vpop.f32.mrf.mxu0
  %v1651 = vpop.f32.mrf.mxu0
  %v1652 = vadd.f32 %v244, %v1651
  %v1653 = vpop.f32.mrf.mxu0
  %1654 = vmatprep.mubr.bf16.mxu0 0
  %1655 = vmatmul.mubr.bf16.gmra.mxu0 %v750
  %v1656 = vpop.f32.mrf.mxu0
  %v1657 = vadd.f32 %v244, %v1656
  %v1658 = vpop.f32.mrf.mxu0
  %v1659 = vpop.f32.mrf.mxu0
  %v1660 = vadd.f32 %v244, %v1659
  %v1661 = vpop.f32.mrf.mxu0
  %1662 = vmatprep.mubr.bf16.mxu0 0
  %1663 = vmatmul.mubr.bf16.gmra.mxu0 %v751
  %v1664 = vpop.f32.mrf.mxu0
  %v1665 = vadd.f32 %v244, %v1664
  %v1666 = vpop.f32.mrf.mxu0
  %v1667 = vpop.f32.mrf.mxu0
  %v1668 = vadd.f32 %v244, %v1667
  %v1669 = vpop.f32.mrf.mxu0
  %1670 = vmatprep.mubr.bf16.mxu0 0
  %1671 = vmatmul.mubr.bf16.gmra.mxu0 %v752
  %v1672 = vpop.f32.mrf.mxu0
  %v1673 = vadd.f32 %v244, %v1672
  %v1674 = vpop.f32.mrf.mxu0
  %v1675 = vpop.f32.mrf.mxu0
  %v1676 = vadd.f32 %v244, %v1675
  %v1677 = vpop.f32.mrf.mxu0
  %1678 = vmatprep.mubr.bf16.mxu0 0
  %1679 = vmatmul.mubr.bf16.gmra.mxu0 %v753
  %v1680 = vpop.f32.mrf.mxu0
  %v1681 = vadd.f32 %v244, %v1680
  %v1682 = vpop.f32.mrf.mxu0
  %v1683 = vpop.f32.mrf.mxu0
  %v1684 = vadd.f32 %v244, %v1683
  %v1685 = vpop.f32.mrf.mxu0
  %1686 = vmatprep.mubr.bf16.mxu0 0
  %1687 = vmatmul.mubr.bf16.gmra.mxu0 %v754
  %v1688 = vpop.f32.mrf.mxu0
  %v1689 = vadd.f32 %v244, %v1688
  %v1690 = vpop.f32.mrf.mxu0
  %v1691 = vpop.f32.mrf.mxu0
  %v1692 = vadd.f32 %v244, %v1691
  %v1693 = vpop.f32.mrf.mxu0
  %1694 = vmatprep.mubr.bf16.mxu0 0
  %1695 = vmatmul.mubr.bf16.gmra.mxu0 %v755
  %v1696 = vpop.f32.mrf.mxu0
  %v1697 = vadd.f32 %v244, %v1696
  %v1698 = vpop.f32.mrf.mxu0
  %v1699 = vpop.f32.mrf.mxu0
  %v1700 = vadd.f32 %v244, %v1699
  %v1701 = vpop.f32.mrf.mxu0
  %1702 = vmatprep.mubr.bf16.mxu0 0
  %1703 = vmatmul.mubr.bf16.gmra.mxu0 %v756
  %v1704 = vpop.f32.mrf.mxu0
  %v1705 = vadd.f32 %v244, %v1704
  %v1706 = vpop.f32.mrf.mxu0
  %v1707 = vpop.f32.mrf.mxu0
  %v1708 = vadd.f32 %v244, %v1707
  %v1709 = vpop.f32.mrf.mxu0
  %1710 = vmatprep.mubr.bf16.mxu0 0
  %1711 = vmatmul.mubr.bf16.gmra.mxu0 %v757
  %v1712 = vpop.f32.mrf.mxu0
  %v1713 = vadd.f32 %v244, %v1712
  %v1714 = vpop.f32.mrf.mxu0
  %v1715 = vpop.f32.mrf.mxu0
  %v1716 = vadd.f32 %v244, %v1715
  %v1717 = vpop.f32.mrf.mxu0
  %1718 = vmatprep.mubr.bf16.mxu0 0
  %1719 = vmatmul.mubr.bf16.gmra.mxu0 %v758
  %v1720 = vpop.f32.mrf.mxu0
  %v1721 = vadd.f32 %v244, %v1720
  %v1722 = vpop.f32.mrf.mxu0
  %v1723 = vpop.f32.mrf.mxu0
  %v1724 = vadd.f32 %v244, %v1723
  %v1725 = vpop.f32.mrf.mxu0
  %1726 = vmatprep.mubr.bf16.mxu0 0
  %1727 = vmatmul.mubr.bf16.gmra.mxu0 %v759
  %v1728 = vpop.f32.mrf.mxu0
  %v1729 = vadd.f32 %v244, %v1728
  %v1730 = vpop.f32.mrf.mxu0
  %v1731 = vpop.f32.mrf.mxu0
  %v1732 = vadd.f32 %v244, %v1731
  %v1733 = vpop.f32.mrf.mxu0
  %1734 = vmatprep.mubr.bf16.mxu0 0
  %1735 = vmatmul.mubr.bf16.gmra.mxu0 %v760
  %v1736 = vpop.f32.mrf.mxu0
  %v1737 = vadd.f32 %v244, %v1736
  %v1738 = vpop.f32.mrf.mxu0
  %v1739 = vpop.f32.mrf.mxu0
  %v1740 = vadd.f32 %v244, %v1739
  %v1741 = vpop.f32.mrf.mxu0
  %1742 = vmatprep.mubr.bf16.mxu0 0
  %1743 = vmatmul.mubr.bf16.gmra.mxu0 %v761
  %v1744 = vpop.f32.mrf.mxu0
  %v1745 = vadd.f32 %v244, %v1744
  %v1746 = vpop.f32.mrf.mxu0
  %v1747 = vpop.f32.mrf.mxu0
  %v1748 = vadd.f32 %v244, %v1747
  %v1749 = vpop.f32.mrf.mxu0
  %1750 = vmatprep.mubr.bf16.mxu0 0
  %1751 = vmatmul.mubr.bf16.gmra.mxu0 %v762
  %v1752 = vpop.f32.mrf.mxu0
  %v1753 = vadd.f32 %v244, %v1752
  %v1754 = vpop.f32.mrf.mxu0
  %v1755 = vpop.f32.mrf.mxu0
  %v1756 = vadd.f32 %v244, %v1755
  %v1757 = vpop.f32.mrf.mxu0
  %1758 = vmatprep.mubr.bf16.mxu0 0
  %1759 = vmatmul.mubr.bf16.gmra.mxu0 %v763
  %v1760 = vpop.f32.mrf.mxu0
  %v1761 = vadd.f32 %v244, %v1760
  %v1762 = vpop.f32.mrf.mxu0
  %v1763 = vpop.f32.mrf.mxu0
  %v1764 = vadd.f32 %v244, %v1763
  %v1765 = vpop.f32.mrf.mxu0
  %1766 = vmatprep.mubr.bf16.mxu0 0
  %1767 = vmatmul.mubr.bf16.gmra.mxu0 %v764
  %v1768 = vpop.f32.mrf.mxu0
  %v1769 = vadd.f32 %v244, %v1768
  %v1770 = vpop.f32.mrf.mxu0
  %v1771 = vpop.f32.mrf.mxu0
  %v1772 = vadd.f32 %v244, %v1771
  %v1773 = vpop.f32.mrf.mxu0
  %1774 = vmatprep.mubr.bf16.mxu0 0
  %1775 = vmatmul.mubr.bf16.gmra.mxu0 %v765
  %v1776 = vpop.f32.mrf.mxu0
  %v1777 = vadd.f32 %v244, %v1776
  %v1778 = vpop.f32.mrf.mxu0
  %v1779 = vpop.f32.mrf.mxu0
  %v1780 = vadd.f32 %v244, %v1779
  %v1781 = vpop.f32.mrf.mxu0
  %1782 = vdwg.mxu0
  %v1783 = vmax.f32 %v953, 0.0
  %v1784 = vmax.f32 %v956, 0.0
  %v1785 = vmax.f32 %v961, 0.0
  %v1786 = vmax.f32 %v964, 0.0
  %v1787 = vmax.f32 %v969, 0.0
  %v1788 = vmax.f32 %v972, 0.0
  %v1789 = vmax.f32 %v977, 0.0
  %v1790 = vmax.f32 %v980, 0.0
  %v1791 = vmax.f32 %v985, 0.0
  %v1792 = vmax.f32 %v988, 0.0
  %v1793 = vmax.f32 %v993, 0.0
  %v1794 = vmax.f32 %v996, 0.0
  %v1795 = vmax.f32 %v1001, 0.0
  %v1796 = vmax.f32 %v1004, 0.0
  %v1797 = vmax.f32 %v1009, 0.0
  %v1798 = vmax.f32 %v1012, 0.0
  %v1799 = vmax.f32 %v1017, 0.0
  %v1800 = vmax.f32 %v1020, 0.0
  %v1801 = vmax.f32 %v1025, 0.0
  %v1802 = vmax.f32 %v1028, 0.0
  %v1803 = vmax.f32 %v1033, 0.0
  %v1804 = vmax.f32 %v1036, 0.0
  %v1805 = vmax.f32 %v1041, 0.0
  %v1806 = vmax.f32 %v1044, 0.0
  %v1807 = vmax.f32 %v1049, 0.0
  %v1808 = vmax.f32 %v1052, 0.0
  %v1809 = vmax.f32 %v1057, 0.0
  %v1810 = vmax.f32 %v1060, 0.0
  %v1811 = vmax.f32 %v1065, 0.0
  %v1812 = vmax.f32 %v1068, 0.0
  %v1813 = vmax.f32 %v1073, 0.0
  %v1814 = vmax.f32 %v1076, 0.0
  %v1815 = vmax.f32 %v1081, 0.0
  %v1816 = vmax.f32 %v1084, 0.0
  %v1817 = vmax.f32 %v1089, 0.0
  %v1818 = vmax.f32 %v1092, 0.0
  %v1819 = vmax.f32 %v1097, 0.0
  %v1820 = vmax.f32 %v1100, 0.0
  %v1821 = vmax.f32 %v1105, 0.0
  %v1822 = vmax.f32 %v1108, 0.0
  %v1823 = vmax.f32 %v1113, 0.0
  %v1824 = vmax.f32 %v1116, 0.0
  %v1825 = vmax.f32 %v1121, 0.0
  %v1826 = vmax.f32 %v1124, 0.0
  %v1827 = vmax.f32 %v1129, 0.0
  %v1828 = vmax.f32 %v1132, 0.0
  %v1829 = vmax.f32 %v1137, 0.0
  %v1830 = vmax.f32 %v1140, 0.0
  %v1831 = vmax.f32 %v1145, 0.0
  %v1832 = vmax.f32 %v1148, 0.0
  %v1833 = vmax.f32 %v1153, 0.0
  %v1834 = vmax.f32 %v1156, 0.0
  %v1835 = vmax.f32 %v1161, 0.0
  %v1836 = vmax.f32 %v1164, 0.0
  %v1837 = vmax.f32 %v1169, 0.0
  %v1838 = vmax.f32 %v1172, 0.0
  %v1839 = vmax.f32 %v1177, 0.0
  %v1840 = vmax.f32 %v1180, 0.0
  %v1841 = vmax.f32 %v1185, 0.0
  %v1842 = vmax.f32 %v1188, 0.0
  %v1843 = vmax.f32 %v1193, 0.0
  %v1844 = vmax.f32 %v1196, 0.0
  %v1845 = vmax.f32 %v1201, 0.0
  %v1846 = vmax.f32 %v1204, 0.0
  %v1847 = vmax.f32 %v1209, 0.0
  %v1848 = vmax.f32 %v1212, 0.0
  %v1849 = vmax.f32 %v1217, 0.0
  %v1850 = vmax.f32 %v1220, 0.0
  %v1851 = vmax.f32 %v1225, 0.0
  %v1852 = vmax.f32 %v1228, 0.0
  %v1853 = vmax.f32 %v1233, 0.0
  %v1854 = vmax.f32 %v1236, 0.0
  %v1855 = vmax.f32 %v1241, 0.0
  %v1856 = vmax.f32 %v1244, 0.0
  %v1857 = vmax.f32 %v1249, 0.0
  %v1858 = vmax.f32 %v1252, 0.0
  %v1859 = vmax.f32 %v1257, 0.0
  %v1860 = vmax.f32 %v1260, 0.0
  %v1861 = vmax.f32 %v1265, 0.0
  %v1862 = vmax.f32 %v1268, 0.0
  %v1863 = vmax.f32 %v1273, 0.0
  %v1864 = vmax.f32 %v1276, 0.0
  %v1865 = vmax.f32 %v1281, 0.0
  %v1866 = vmax.f32 %v1284, 0.0
  %v1867 = vmax.f32 %v1289, 0.0
  %v1868 = vmax.f32 %v1292, 0.0
  %v1869 = vmax.f32 %v1297, 0.0
  %v1870 = vmax.f32 %v1300, 0.0
  %v1871 = vmax.f32 %v1305, 0.0
  %v1872 = vmax.f32 %v1308, 0.0
  %v1873 = vmax.f32 %v1313, 0.0
  %v1874 = vmax.f32 %v1316, 0.0
  %v1875 = vmax.f32 %v1321, 0.0
  %v1876 = vmax.f32 %v1324, 0.0
  %v1877 = vmax.f32 %v1329, 0.0
  %v1878 = vmax.f32 %v1332, 0.0
  %v1879 = vmax.f32 %v1337, 0.0
  %v1880 = vmax.f32 %v1340, 0.0
  %v1881 = vmax.f32 %v1345, 0.0
  %v1882 = vmax.f32 %v1348, 0.0
  %v1883 = vmax.f32 %v1353, 0.0
  %v1884 = vmax.f32 %v1356, 0.0
  %v1885 = vmax.f32 %v1361, 0.0
  %v1886 = vmax.f32 %v1364, 0.0
  %v1887 = vmax.f32 %v1369, 0.0
  %v1888 = vmax.f32 %v1372, 0.0
  %v1889 = vmax.f32 %v1377, 0.0
  %v1890 = vmax.f32 %v1380, 0.0
  %v1891 = vmax.f32 %v1385, 0.0
  %v1892 = vmax.f32 %v1388, 0.0
  %v1893 = vmax.f32 %v1393, 0.0
  %v1894 = vmax.f32 %v1396, 0.0
  %v1895 = vmax.f32 %v1401, 0.0
  %v1896 = vmax.f32 %v1404, 0.0
  %v1897 = vmax.f32 %v1409, 0.0
  %v1898 = vmax.f32 %v1412, 0.0
  %v1899 = vmax.f32 %v1417, 0.0
  %v1900 = vmax.f32 %v1420, 0.0
  %v1901 = vmax.f32 %v1425, 0.0
  %v1902 = vmax.f32 %v1428, 0.0
  %v1903 = vmax.f32 %v1433, 0.0
  %v1904 = vmax.f32 %v1436, 0.0
  %v1905 = vmax.f32 %v1441, 0.0
  %v1906 = vmax.f32 %v1444, 0.0
  %v1907 = vmax.f32 %v1449, 0.0
  %v1908 = vmax.f32 %v1452, 0.0
  %v1909 = vmax.f32 %v1457, 0.0
  %v1910 = vmax.f32 %v1460, 0.0
  %v1911 = vmax.f32 %v1465, 0.0
  %v1912 = vmax.f32 %v1468, 0.0
  %v1913 = vmax.f32 %v1473, 0.0
  %v1914 = vmax.f32 %v1476, 0.0
  %v1915 = vmax.f32 %v1481, 0.0
  %v1916 = vmax.f32 %v1484, 0.0
  %v1917 = vmax.f32 %v1489, 0.0
  %v1918 = vmax.f32 %v1492, 0.0
  %v1919 = vmax.f32 %v1497, 0.0
  %v1920 = vmax.f32 %v1500, 0.0
  %v1921 = vmax.f32 %v1505, 0.0
  %v1922 = vmax.f32 %v1508, 0.0
  %v1923 = vmax.f32 %v1513, 0.0
  %v1924 = vmax.f32 %v1516, 0.0
  %v1925 = vmax.f32 %v1521, 0.0
  %v1926 = vmax.f32 %v1524, 0.0
  %v1927 = vmax.f32 %v1529, 0.0
  %v1928 = vmax.f32 %v1532, 0.0
  %v1929 = vmax.f32 %v1537, 0.0
  %v1930 = vmax.f32 %v1540, 0.0
  %v1931 = vmax.f32 %v1545, 0.0
  %v1932 = vmax.f32 %v1548, 0.0
  %v1933 = vmax.f32 %v1553, 0.0
  %v1934 = vmax.f32 %v1556, 0.0
  %v1935 = vmax.f32 %v1561, 0.0
  %v1936 = vmax.f32 %v1564, 0.0
  %v1937 = vmax.f32 %v1569, 0.0
  %v1938 = vmax.f32 %v1572, 0.0
  %v1939 = vmax.f32 %v1577, 0.0
  %v1940 = vmax.f32 %v1580, 0.0
  %v1941 = vmax.f32 %v1585, 0.0
  %v1942 = vmax.f32 %v1588, 0.0
  %v1943 = vmax.f32 %v1593, 0.0
  %v1944 = vmax.f32 %v1596, 0.0
  %v1945 = vmax.f32 %v1601, 0.0
  %v1946 = vmax.f32 %v1604, 0.0
  %v1947 = vmax.f32 %v1609, 0.0
  %v1948 = vmax.f32 %v1612, 0.0
  %v1949 = vmax.f32 %v1617, 0.0
  %v1950 = vmax.f32 %v1620, 0.0
  %v1951 = vmax.f32 %v1625, 0.0
  %v1952 = vmax.f32 %v1628, 0.0
  %v1953 = vmax.f32 %v1633, 0.0
  %v1954 = vmax.f32 %v1636, 0.0
  %v1955 = vmax.f32 %v1641, 0.0
  %v1956 = vmax.f32 %v1644, 0.0
  %v1957 = vmax.f32 %v1649, 0.0
  %v1958 = vmax.f32 %v1652, 0.0
  %v1959 = vmax.f32 %v1657, 0.0
  %v1960 = vmax.f32 %v1660, 0.0
  %v1961 = vmax.f32 %v1665, 0.0
  %v1962 = vmax.f32 %v1668, 0.0
  %v1963 = vmax.f32 %v1673, 0.0
  %v1964 = vmax.f32 %v1676, 0.0
  %v1965 = vmax.f32 %v1681, 0.0
  %v1966 = vmax.f32 %v1684, 0.0
  %v1967 = vmax.f32 %v1689, 0.0
  %v1968 = vmax.f32 %v1692, 0.0
  %v1969 = vmax.f32 %v1697, 0.0
  %v1970 = vmax.f32 %v1700, 0.0
  %v1971 = vmax.f32 %v1705, 0.0
  %v1972 = vmax.f32 %v1708, 0.0
  %v1973 = vmax.f32 %v1713, 0.0
  %v1974 = vmax.f32 %v1716, 0.0
  %v1975 = vmax.f32 %v1721, 0.0
  %v1976 = vmax.f32 %v1724, 0.0
  %v1977 = vmax.f32 %v1729, 0.0
  %v1978 = vmax.f32 %v1732, 0.0
  %v1979 = vmax.f32 %v1737, 0.0
  %v1980 = vmax.f32 %v1740, 0.0
  %v1981 = vmax.f32 %v1745, 0.0
  %v1982 = vmax.f32 %v1748, 0.0
  %v1983 = vmax.f32 %v1753, 0.0
  %v1984 = vmax.f32 %v1756, 0.0
  %v1985 = vmax.f32 %v1761, 0.0
  %v1986 = vmax.f32 %v1764, 0.0
  %v1987 = vmax.f32 %v1769, 0.0
  %v1988 = vmax.f32 %v1772, 0.0
  %v1989 = vmax.f32 %v1777, 0.0
  %v1990 = vmax.f32 %v1780, 0.0
  %v1991 = vmax.f32 %v1783, %v1809
  %v1992 = vmax.f32 %v1784, %v1810
  %v1993 = vmax.f32 %v1785, %v1811
  %v1994 = vmax.f32 %v1786, %v1812
  %v1995 = vmax.f32 %v1787, %v1813
  %v1996 = vmax.f32 %v1788, %v1814
  %v1997 = vmax.f32 %v1789, %v1815
  %v1998 = vmax.f32 %v1790, %v1816
  %v1999 = vmax.f32 %v1791, %v1817
  %v2000 = vmax.f32 %v1792, %v1818
  %v2001 = vmax.f32 %v1793, %v1819
  %v2002 = vmax.f32 %v1794, %v1820
  %v2003 = vmax.f32 %v1795, %v1821
  %v2004 = vmax.f32 %v1796, %v1822
  %v2005 = vmax.f32 %v1797, %v1823
  %v2006 = vmax.f32 %v1798, %v1824
  %v2007 = vmax.f32 %v1799, %v1825
  %v2008 = vmax.f32 %v1800, %v1826
  %v2009 = vmax.f32 %v1801, %v1827
  %v2010 = vmax.f32 %v1802, %v1828
  %v2011 = vmax.f32 %v1803, %v1829
  %v2012 = vmax.f32 %v1804, %v1830
  %v2013 = vmax.f32 %v1805, %v1831
  %v2014 = vmax.f32 %v1806, %v1832
  %v2015 = vmax.f32 %v1807, %v1833
  %v2016 = vmax.f32 %v1808, %v1834
  %v2017 = vmax.f32 %v1887, %v1913
  %v2018 = vmax.f32 %v1888, %v1914
  %v2019 = vmax.f32 %v1889, %v1915
  %v2020 = vmax.f32 %v1890, %v1916
  %v2021 = vmax.f32 %v1891, %v1917
  %v2022 = vmax.f32 %v1892, %v1918
  %v2023 = vmax.f32 %v1893, %v1919
  %v2024 = vmax.f32 %v1894, %v1920
  %v2025 = vmax.f32 %v1895, %v1921
  %v2026 = vmax.f32 %v1896, %v1922
  %v2027 = vmax.f32 %v1897, %v1923
  %v2028 = vmax.f32 %v1898, %v1924
  %v2029 = vmax.f32 %v1899, %v1925
  %v2030 = vmax.f32 %v1900, %v1926
  %v2031 = vmax.f32 %v1901, %v1927
  %v2032 = vmax.f32 %v1902, %v1928
  %v2033 = vmax.f32 %v1903, %v1929
  %v2034 = vmax.f32 %v1904, %v1930
  %v2035 = vmax.f32 %v1905, %v1931
  %v2036 = vmax.f32 %v1906, %v1932
  %v2037 = vmax.f32 %v1907, %v1933
  %v2038 = vmax.f32 %v1908, %v1934
  %v2039 = vmax.f32 %v1909, %v1935
  %v2040 = vmax.f32 %v1910, %v1936
  %v2041 = vmax.f32 %v1911, %v1937
  %v2042 = vmax.f32 %v1912, %v1938
  %v2043 = vmax.f32 %v1835, %v1861
  %v2044 = vmax.f32 %v1836, %v1862
  %v2045 = vmax.f32 %v1837, %v1863
  %v2046 = vmax.f32 %v1838, %v1864
  %v2047 = vmax.f32 %v1839, %v1865
  %v2048 = vmax.f32 %v1840, %v1866
  %v2049 = vmax.f32 %v1841, %v1867
  %v2050 = vmax.f32 %v1842, %v1868
  %v2051 = vmax.f32 %v1843, %v1869
  %v2052 = vmax.f32 %v1844, %v1870
  %v2053 = vmax.f32 %v1845, %v1871
  %v2054 = vmax.f32 %v1846, %v1872
  %v2055 = vmax.f32 %v1847, %v1873
  %v2056 = vmax.f32 %v1848, %v1874
  %v2057 = vmax.f32 %v1849, %v1875
  %v2058 = vmax.f32 %v1850, %v1876
  %v2059 = vmax.f32 %v1851, %v1877
  %v2060 = vmax.f32 %v1852, %v1878
  %v2061 = vmax.f32 %v1853, %v1879
  %v2062 = vmax.f32 %v1854, %v1880
  %v2063 = vmax.f32 %v1855, %v1881
  %v2064 = vmax.f32 %v1856, %v1882
  %v2065 = vmax.f32 %v1857, %v1883
  %v2066 = vmax.f32 %v1858, %v1884
  %v2067 = vmax.f32 %v1859, %v1885
  %v2068 = vmax.f32 %v1860, %v1886
  %v2069 = vmax.f32 %v1939, %v1965
  %v2070 = vmax.f32 %v1940, %v1966
  %v2071 = vmax.f32 %v1941, %v1967
  %v2072 = vmax.f32 %v1942, %v1968
  %v2073 = vmax.f32 %v1943, %v1969
  %v2074 = vmax.f32 %v1944, %v1970
  %v2075 = vmax.f32 %v1945, %v1971
  %v2076 = vmax.f32 %v1946, %v1972
  %v2077 = vmax.f32 %v1947, %v1973
  %v2078 = vmax.f32 %v1948, %v1974
  %v2079 = vmax.f32 %v1949, %v1975
  %v2080 = vmax.f32 %v1950, %v1976
  %v2081 = vmax.f32 %v1951, %v1977
  %v2082 = vmax.f32 %v1952, %v1978
  %v2083 = vmax.f32 %v1953, %v1979
  %v2084 = vmax.f32 %v1954, %v1980
  %v2085 = vmax.f32 %v1955, %v1981
  %v2086 = vmax.f32 %v1956, %v1982
  %v2087 = vmax.f32 %v1957, %v1983
  %v2088 = vmax.f32 %v1958, %v1984
  %v2089 = vmax.f32 %v1959, %v1985
  %v2090 = vmax.f32 %v1960, %v1986
  %v2091 = vmax.f32 %v1961, %v1987
  %v2092 = vmax.f32 %v1962, %v1988
  %v2093 = vmax.f32 %v1963, %v1989
  %v2094 = vmax.f32 %v1964, %v1990
  %v2095 = vmax.f32 %v1991, %v2043
  %v2096 = vmax.f32 %v1992, %v2044
  %v2097 = vmax.f32 %v1993, %v2045
  %v2098 = vmax.f32 %v1994, %v2046
  %v2099 = vmax.f32 %v1995, %v2047
  %v2100 = vmax.f32 %v1996, %v2048
  %v2101 = vmax.f32 %v1997, %v2049
  %v2102 = vmax.f32 %v1998, %v2050
  %v2103 = vmax.f32 %v1999, %v2051
  %v2104 = vmax.f32 %v2000, %v2052
  %v2105 = vmax.f32 %v2001, %v2053
  %v2106 = vmax.f32 %v2002, %v2054
  %v2107 = vmax.f32 %v2003, %v2055
  %v2108 = vmax.f32 %v2004, %v2056
  %v2109 = vmax.f32 %v2005, %v2057
  %v2110 = vmax.f32 %v2006, %v2058
  %v2111 = vmax.f32 %v2007, %v2059
  %v2112 = vmax.f32 %v2008, %v2060
  %v2113 = vmax.f32 %v2009, %v2061
  %v2114 = vmax.f32 %v2010, %v2062
  %v2115 = vmax.f32 %v2011, %v2063
  %v2116 = vmax.f32 %v2012, %v2064
  %v2117 = vmax.f32 %v2013, %v2065
  %v2118 = vmax.f32 %v2014, %v2066
  %v2119 = vmax.f32 %v2015, %v2067
  %v2120 = vmax.f32 %v2016, %v2068
  %v2121 = vmax.f32 %v2017, %v2069
  %v2122 = vmax.f32 %v2018, %v2070
  %v2123 = vmax.f32 %v2019, %v2071
  %v2124 = vmax.f32 %v2020, %v2072
  %v2125 = vmax.f32 %v2021, %v2073
  %v2126 = vmax.f32 %v2022, %v2074
  %v2127 = vmax.f32 %v2023, %v2075
  %v2128 = vmax.f32 %v2024, %v2076
  %v2129 = vmax.f32 %v2025, %v2077
  %v2130 = vmax.f32 %v2026, %v2078
  %v2131 = vmax.f32 %v2027, %v2079
  %v2132 = vmax.f32 %v2028, %v2080
  %v2133 = vmax.f32 %v2029, %v2081
  %v2134 = vmax.f32 %v2030, %v2082
  %v2135 = vmax.f32 %v2031, %v2083
  %v2136 = vmax.f32 %v2032, %v2084
  %v2137 = vmax.f32 %v2033, %v2085
  %v2138 = vmax.f32 %v2034, %v2086
  %v2139 = vmax.f32 %v2035, %v2087
  %v2140 = vmax.f32 %v2036, %v2088
  %v2141 = vmax.f32 %v2037, %v2089
  %v2142 = vmax.f32 %v2038, %v2090
  %v2143 = vmax.f32 %v2039, %v2091
  %v2144 = vmax.f32 %v2040, %v2092
  %v2145 = vmax.f32 %v2041, %v2093
  %v2146 = vmax.f32 %v2042, %v2094
  %v2147 = vpack.c.bf16 %v2096, %v2095
  %v2148 = vpack.c.bf16 %v2098, %v2097
  %v2149 = vpack.c.bf16 %v2100, %v2099
  %v2150 = vpack.c.bf16 %v2102, %v2101
  %v2151 = vpack.c.bf16 %v2104, %v2103
  %v2152 = vpack.c.bf16 %v2106, %v2105
  %v2153 = vpack.c.bf16 %v2108, %v2107
  %v2154 = vpack.c.bf16 %v2110, %v2109
  %v2155 = vpack.c.bf16 %v2112, %v2111
  %v2156 = vpack.c.bf16 %v2114, %v2113
  %v2157 = vpack.c.bf16 %v2116, %v2115
  %v2158 = vpack.c.bf16 %v2118, %v2117
  %v2159 = vpack.c.bf16 %v2120, %v2119
  %v2160 = vpack.c.bf16 %v2122, %v2121
  %v2161 = vpack.c.bf16 %v2124, %v2123
  %v2162 = vpack.c.bf16 %v2126, %v2125
  %v2163 = vpack.c.bf16 %v2128, %v2127
  %v2164 = vpack.c.bf16 %v2130, %v2129
  %v2165 = vpack.c.bf16 %v2132, %v2131
  %v2166 = vpack.c.bf16 %v2134, %v2133
  %v2167 = vpack.c.bf16 %v2136, %v2135
  %v2168 = vpack.c.bf16 %v2138, %v2137
  %v2169 = vpack.c.bf16 %v2140, %v2139
  %v2170 = vpack.c.bf16 %v2142, %v2141
  %v2171 = vpack.c.bf16 %v2144, %v2143
  %v2172 = vpack.c.bf16 %v2146, %v2145
  %v2199 = vunpack.c.l.b16 %v2147
  %v2200 = vunpack.c.h.b16 %v2147
  %v2201 = vunpack.c.l.b16 %v2148
  %v2202 = vunpack.c.h.b16 %v2148
  %v2203 = vunpack.c.l.b16 %v2149
  %v2204 = vunpack.c.h.b16 %v2149
  %v2205 = vunpack.c.l.b16 %v2150
  %v2206 = vunpack.c.h.b16 %v2150
  %v2207 = vunpack.c.l.b16 %v2151
  %v2208 = vunpack.c.h.b16 %v2151
  %v2209 = vunpack.c.l.b16 %v2152
  %v2210 = vunpack.c.h.b16 %v2152
  %v2211 = vunpack.c.l.b16 %v2153
  %v2212 = vunpack.c.h.b16 %v2153
  %v2213 = vunpack.c.l.b16 %v2154
  %v2214 = vunpack.c.h.b16 %v2154
  %v2215 = vunpack.c.l.b16 %v2155
  %v2216 = vunpack.c.h.b16 %v2155
  %v2217 = vunpack.c.l.b16 %v2156
  %v2218 = vunpack.c.h.b16 %v2156
  %v2219 = vunpack.c.l.b16 %v2157
  %v2220 = vunpack.c.h.b16 %v2157
  %v2221 = vunpack.c.l.b16 %v2158
  %v2222 = vunpack.c.h.b16 %v2158
  %v2223 = vunpack.c.l.b16 %v2159
  %v2224 = vunpack.c.h.b16 %v2159
  %v2225 = vunpack.c.l.b16 %v2160
  %v2226 = vunpack.c.h.b16 %v2160
  %v2227 = vunpack.c.l.b16 %v2161
  %v2228 = vunpack.c.h.b16 %v2161
  %v2229 = vunpack.c.l.b16 %v2162
  %v2230 = vunpack.c.h.b16 %v2162
  %v2231 = vunpack.c.l.b16 %v2163
  %v2232 = vunpack.c.h.b16 %v2163
  %v2233 = vunpack.c.l.b16 %v2164
  %v2234 = vunpack.c.h.b16 %v2164
  %v2235 = vunpack.c.l.b16 %v2165
  %v2236 = vunpack.c.h.b16 %v2165
  %v2237 = vunpack.c.l.b16 %v2166
  %v2238 = vunpack.c.h.b16 %v2166
  %v2239 = vunpack.c.l.b16 %v2167
  %v2240 = vunpack.c.h.b16 %v2167
  %v2241 = vunpack.c.l.b16 %v2168
  %v2242 = vunpack.c.h.b16 %v2168
  %v2243 = vunpack.c.l.b16 %v2169
  %v2244 = vunpack.c.h.b16 %v2169
  %v2245 = vunpack.c.l.b16 %v2170
  %v2246 = vunpack.c.h.b16 %v2170
  %v2247 = vunpack.c.l.b16 %v2171
  %v2248 = vunpack.c.h.b16 %v2171
  %v2249 = vunpack.c.l.b16 %v2172
  %v2250 = vunpack.c.h.b16 %v2172
  %v2251 = vpack.c.b16 %v2199, %v2199
  %v2252 = vpack.c.b16 %v2200, %v2200
  %v2253 = vpack.c.b16 %v2201, %v2201
  %v2254 = vpack.c.b16 %v2202, %v2202
  %v2255 = vpack.c.b16 %v2203, %v2203
  %v2256 = vpack.c.b16 %v2204, %v2204
  %v2257 = vpack.c.b16 %v2205, %v2205
  %v2258 = vpack.c.b16 %v2206, %v2206
  %v2259 = vpack.c.b16 %v2207, %v2207
  %v2260 = vpack.c.b16 %v2208, %v2208
  %v2261 = vpack.c.b16 %v2209, %v2209
  %v2262 = vpack.c.b16 %v2210, %v2210
  %v2263 = vpack.c.b16 %v2211, %v2211
  %v2264 = vpack.c.b16 %v2212, %v2212
  %v2265 = vpack.c.b16 %v2213, %v2213
  %v2266 = vpack.c.b16 %v2214, %v2214
  %v2267 = vpack.c.b16 %v2215, %v2215
  %v2268 = vpack.c.b16 %v2216, %v2216
  %v2269 = vpack.c.b16 %v2217, %v2217
  %v2270 = vpack.c.b16 %v2218, %v2218
  %v2271 = vpack.c.b16 %v2219, %v2219
  %v2272 = vpack.c.b16 %v2220, %v2220
  %v2273 = vpack.c.b16 %v2221, %v2221
  %v2274 = vpack.c.b16 %v2222, %v2222
  %v2275 = vpack.c.b16 %v2223, %v2223
  %v2276 = vpack.c.b16 %v2224, %v2224
  %v2277 = vpack.c.b16 %v2225, %v2225
  %v2278 = vpack.c.b16 %v2226, %v2226
  %v2279 = vpack.c.b16 %v2227, %v2227
  %v2280 = vpack.c.b16 %v2228, %v2228
  %v2281 = vpack.c.b16 %v2229, %v2229
  %v2282 = vpack.c.b16 %v2230, %v2230
  %v2283 = vpack.c.b16 %v2231, %v2231
  %v2284 = vpack.c.b16 %v2232, %v2232
  %v2285 = vpack.c.b16 %v2233, %v2233
  %v2286 = vpack.c.b16 %v2234, %v2234
  %v2287 = vpack.c.b16 %v2235, %v2235
  %v2288 = vpack.c.b16 %v2236, %v2236
  %v2289 = vpack.c.b16 %v2237, %v2237
  %v2290 = vpack.c.b16 %v2238, %v2238
  %v2291 = vpack.c.b16 %v2239, %v2239
  %v2292 = vpack.c.b16 %v2240, %v2240
  %v2293 = vpack.c.b16 %v2241, %v2241
  %v2294 = vpack.c.b16 %v2242, %v2242
  %v2295 = vpack.c.b16 %v2243, %v2243
  %v2296 = vpack.c.b16 %v2244, %v2244
  %v2297 = vpack.c.b16 %v2245, %v2245
  %v2298 = vpack.c.b16 %v2246, %v2246
  %v2299 = vpack.c.b16 %v2247, %v2247
  %v2300 = vpack.c.b16 %v2248, %v2248
  %v2301 = vpack.c.b16 %v2249, %v2249
  %v2302 = vpack.c.b16 %v2250, %v2250
  %vm2355 = vcmask 60416
  %2356 = vst.msk [vmem:[%s3] sm:$0xf] %vm2355, %v2251
  %2357 = vst.msk [vmem:[%s3 + $0x4] sm:$0xf] %vm2355, %v2252
  %2358 = vst.msk [vmem:[%s3 + $0x8] sm:$0xf] %vm2355, %v2253
  %2359 = vst.msk [vmem:[%s3 + $0xc] sm:$0xf] %vm2355, %v2254
  %2360 = vst.msk [vmem:[%s3 + $0x10] sm:$0xf] %vm2355, %v2255
  %2361 = vst.msk [vmem:[%s3 + $0x14] sm:$0xf] %vm2355, %v2256
  %2362 = vst.msk [vmem:[%s3 + $0x18] sm:$0xf] %vm2355, %v2257
  %2363 = vst.msk [vmem:[%s3 + $0x1c] sm:$0xf] %vm2355, %v2258
  %2364 = vst.msk [vmem:[%s3 + $0x20] sm:$0xf] %vm2355, %v2259
  %2365 = vst.msk [vmem:[%s3 + $0x24] sm:$0xf] %vm2355, %v2260
  %2366 = vst.msk [vmem:[%s3 + $0x28] sm:$0xf] %vm2355, %v2261
  %2367 = vst.msk [vmem:[%s3 + $0x2c] sm:$0xf] %vm2355, %v2262
  %2368 = vst.msk [vmem:[%s3 + $0x30] sm:$0xf] %vm2355, %v2263
  %2369 = vst.msk [vmem:[%s3 + $0x34] sm:$0xf] %vm2355, %v2264
  %2370 = vst.msk [vmem:[%s3 + $0x38] sm:$0xf] %vm2355, %v2265
  %2371 = vst.msk [vmem:[%s3 + $0x3c] sm:$0xf] %vm2355, %v2266
  %2372 = vst.msk [vmem:[%s3 + $0x40] sm:$0xf] %vm2355, %v2267
  %2373 = vst.msk [vmem:[%s3 + $0x44] sm:$0xf] %vm2355, %v2268
  %2374 = vst.msk [vmem:[%s3 + $0x48] sm:$0xf] %vm2355, %v2269
  %2375 = vst.msk [vmem:[%s3 + $0x4c] sm:$0xf] %vm2355, %v2270
  %2376 = vst.msk [vmem:[%s3 + $0x50] sm:$0xf] %vm2355, %v2271
  %2377 = vst.msk [vmem:[%s3 + $0x54] sm:$0xf] %vm2355, %v2272
  %2378 = vst.msk [vmem:[%s3 + $0x58] sm:$0xf] %vm2355, %v2273
  %2379 = vst.msk [vmem:[%s3 + $0x5c] sm:$0xf] %vm2355, %v2274
  %2380 = vst.msk [vmem:[%s3 + $0x60] sm:$0xf] %vm2355, %v2275
  %2381 = vst.msk [vmem:[%s3 + $0x64] sm:$0xf] %vm2355, %v2276
  %2382 = vst.msk [vmem:[%s3 + $0x68] sm:$0xf] %vm2355, %v2277
  %2383 = vst.msk [vmem:[%s3 + $0x6c] sm:$0xf] %vm2355, %v2278
  %2384 = vst.msk [vmem:[%s3 + $0x70] sm:$0xf] %vm2355, %v2279
  %2385 = vst.msk [vmem:[%s3 + $0x74] sm:$0xf] %vm2355, %v2280
  %2386 = vst.msk [vmem:[%s3 + $0x78] sm:$0xf] %vm2355, %v2281
  %2387 = vst.msk [vmem:[%s3 + $0x7c] sm:$0xf] %vm2355, %v2282
  %2388 = vst.msk [vmem:[%s3 + $0x80] sm:$0xf] %vm2355, %v2283
  %2389 = vst.msk [vmem:[%s3 + $0x84] sm:$0xf] %vm2355, %v2284
  %2390 = vst.msk [vmem:[%s3 + $0x88] sm:$0xf] %vm2355, %v2285
  %2391 = vst.msk [vmem:[%s3 + $0x8c] sm:$0xf] %vm2355, %v2286
  %2392 = vst.msk [vmem:[%s3 + $0x90] sm:$0xf] %vm2355, %v2287
  %2393 = vst.msk [vmem:[%s3 + $0x94] sm:$0xf] %vm2355, %v2288
  %2394 = vst.msk [vmem:[%s3 + $0x98] sm:$0xf] %vm2355, %v2289
  %2395 = vst.msk [vmem:[%s3 + $0x9c] sm:$0xf] %vm2355, %v2290
  %2396 = vst.msk [vmem:[%s3 + $0xa0] sm:$0xf] %vm2355, %v2291
  %2397 = vst.msk [vmem:[%s3 + $0xa4] sm:$0xf] %vm2355, %v2292
  %2398 = vst.msk [vmem:[%s3 + $0xa8] sm:$0xf] %vm2355, %v2293
  %2399 = vst.msk [vmem:[%s3 + $0xac] sm:$0xf] %vm2355, %v2294
  %2400 = vst.msk [vmem:[%s3 + $0xb0] sm:$0xf] %vm2355, %v2295
  %2401 = vst.msk [vmem:[%s3 + $0xb4] sm:$0xf] %vm2355, %v2296
  %2402 = vst.msk [vmem:[%s3 + $0xb8] sm:$0xf] %vm2355, %v2297
  %2403 = vst.msk [vmem:[%s3 + $0xbc] sm:$0xf] %vm2355, %v2298
  %2404 = vst.msk [vmem:[%s3 + $0xc0] sm:$0xf] %vm2355, %v2299
  %2405 = vst.msk [vmem:[%s3 + $0xc4] sm:$0xf] %vm2355, %v2300
  %2406 = vst.msk [vmem:[%s3 + $0xc8] sm:$0xf] %vm2355, %v2301
  %2407 = vst.msk [vmem:[%s3 + $0xcc] sm:$0xf] %vm2355, %v2302
  // Predicated region
  $region14: #{net_forward.2} parent=0 // pred_check
    _
  $region15: #{net_forward.2} parent=0 // pred_check_branch
    %2409 = sbr.rel (0) target = $region17
  $region16: #{net_forward.2} parent=0 // pred_region
    _
  $region17: #{net_forward.2} parent=0 // pred_fallthru
    _
  // Predicated region
  $region18: #{net_forward.2} parent=0 // pred_check
    _
  $region19: #{net_forward.2} parent=0 // pred_check_branch
    %2411 = sbr.rel (0) target = $region21
  $region20: #{net_forward.2} parent=0 // pred_region
    _
  $region21: #{net_forward.2} parent=0 // pred_fallthru
    _

// kernel: net_forward.3
$region0: #{net_forward.3}
  #allocation0 [shape = 'u32[]', space=smem, size = 0x4, offset = 0x4, fixed_abs, tag = 'smem constant byte address 0x4 - core index']
  #allocation1 [shape = 'u32[144,128]{1,0:T(1,128)}', space=vmem, size = 0x12000, scoped, tag = 'internal scratch']
  %s0 = inlined_call_operand.vmem [shape: bf16[2,1664], index: 0, kind: input, shape index: {}]
  %s1 = inlined_call_operand.vmem [shape: bf16[1664,2048], index: 1, kind: input, shape index: {}]
  %s2 = inlined_call_operand.vmem [shape: f32[1,2048], index: 2, kind: input, shape index: {}]
  %s3 = inlined_call_operand.vmem [shape: bf16[512,128], index: 3, kind: input, shape index: {}]
  %s4 = inlined_call_operand.vmem [shape: f32[1,128], index: 4, kind: input, shape index: {}]
  %s5 = inlined_call_operand.vmem [shape: bf16[128,128], index: 5, kind: input, shape index: {}]
  %s6 = inlined_call_operand.vmem [shape: f32[1,128], index: 6, kind: input, shape index: {}]
  %s7 = inlined_call_operand.vmem [shape: bf16[128,128], index: 7, kind: input, shape index: {}]
  %s8 = inlined_call_operand.vmem [shape: f32[1,128], index: 8, kind: input, shape index: {}]
  %s9 = inlined_call_operand.hbm [shape: f32[2,128], index: 9, kind: output, shape index: {}]
  %s10 = sld [smem:[#allocation0]]
  $region46: #{net_forward.3} parent=0
    _
  %s12 = ssub.s32 1, %s10
  %s13 = scalar_select 0, %s12, %s10
  $region1: #{net_forward.3} parent=0
    #allocation2 [shape = 'u8[1024]{0}', space=vmem, size = 0x400, scoped, tag = 'output window, operand 0, single buffered']
    #allocation3 [shape = 's32[1]{0}', space=sflag, size = 0x4, scoped, tag = 'scoped memory for net_forward.3']
    %14 = vsyncpa [#allocation3], 0
    // Predicated region
    $region2: #{net_forward.3} parent=1 // pred_check
      _
    $region3: #{net_forward.3} parent=1 // pred_check_branch
      %16 = sbr.rel (0) target = $region5
    $region4: #{net_forward.3} parent=1 // pred_region
      _
    $region5: #{net_forward.3} parent=1 // pred_fallthru
      _
    // Predicated region
    $region6: #{net_forward.3} parent=1 // pred_check
      _
    $region7: #{net_forward.3} parent=1 // pred_check_branch
      %18 = sbr.rel (0) target = $region9
    $region8: #{net_forward.3} parent=1 // pred_region
      _
    $region9: #{net_forward.3} parent=1 // pred_fallthru
      _
    // Predicated region
    $region10: #{net_forward.3} parent=1 // pred_check
      _
    $region11: #{net_forward.3} parent=1 // pred_check_branch
      %20 = sbr.rel (0) target = $region13
    $region12: #{net_forward.3} parent=1 // pred_region
      _
    $region13: #{net_forward.3} parent=1 // pred_fallthru
      _
    // Predicated region
    $region14: #{net_forward.3} parent=1 // pred_check
      _
    $region15: #{net_forward.3} parent=1 // pred_check_branch
      %22 = sbr.rel (0) target = $region17
    $region16: #{net_forward.3} parent=1 // pred_region
      _
    $region17: #{net_forward.3} parent=1 // pred_fallthru
      _
    // Predicated region
    $region18: #{net_forward.3} parent=1 // pred_check
      _
    $region19: #{net_forward.3} parent=1 // pred_check_branch
      %24 = sbr.rel (0) target = $region21
    $region20: #{net_forward.3} parent=1 // pred_region
      _
    $region21: #{net_forward.3} parent=1 // pred_fallthru
      _
    // Predicated region
    $region22: #{net_forward.3} parent=1 // pred_check
      _
    $region23: #{net_forward.3} parent=1 // pred_check_branch
      %26 = sbr.rel (0) target = $region25
    $region24: #{net_forward.3} parent=1 // pred_region
      _
    $region25: #{net_forward.3} parent=1 // pred_fallthru
      _
    // Predicated region
    $region26: #{net_forward.3} parent=1 // pred_check
      _
    $region27: #{net_forward.3} parent=1 // pred_check_branch
      %28 = sbr.rel (0) target = $region29
    $region28: #{net_forward.3} parent=1 // pred_region
      _
    $region29: #{net_forward.3} parent=1 // pred_fallthru
      _
    // Predicated region
    $region30: #{net_forward.3} parent=1 // pred_check
      _
    $region31: #{net_forward.3} parent=1 // pred_check_branch
      %30 = sbr.rel (0) target = $region33
    $region32: #{net_forward.3} parent=1 // pred_region
      _
    $region33: #{net_forward.3} parent=1 // pred_fallthru
      _
    // Predicated region
    $region34: #{net_forward.3} parent=1 // pred_check
      _
    $region35: #{net_forward.3} parent=1 // pred_check_branch
      %32 = sbr.rel (0) target = $region37
    $region36: #{net_forward.3} parent=1 // pred_region
      _
    $region37: #{net_forward.3} parent=1 // pred_fallthru
      _
    %v34 = vld [vmem:[%s0] sm:$0xff]
    %v35 = vld [vmem:[%s0 + $0x8] sm:$0x1f]
    %v36 = vld [vmem:[%s1] sm:$0xff]
    %v37 = vld [vmem:[%s1 + $0x8] sm:$0xff]
    %v38 = vld [vmem:[%s1 + $0x10] sm:$0xff]
    %v39 = vld [vmem:[%s1 + $0x18] sm:$0xff]
    %v40 = vld [vmem:[%s1 + $0x20] sm:$0xff]
    %v41 = vld [vmem:[%s1 + $0x28] sm:$0xff]
    %v42 = vld [vmem:[%s1 + $0x30] sm:$0xff]
    %v43 = vld [vmem:[%s1 + $0x38] sm:$0xff]
    %v44 = vld [vmem:[%s1 + $0x40] sm:$0xff]
    %v45 = vld [vmem:[%s1 + $0x48] sm:$0xff]
    %v46 = vld [vmem:[%s1 + $0x50] sm:$0xff]
    %v47 = vld [vmem:[%s1 + $0x58] sm:$0xff]
    %v48 = vld [vmem:[%s1 + $0x60] sm:$0xff]
    %v49 = vld [vmem:[%s1 + $0x68] sm:$0xff]
    %v50 = vld [vmem:[%s1 + $0x70] sm:$0xff]
    %v51 = vld [vmem:[%s1 + $0x78] sm:$0xff]
    %v52 = vld [vmem:[%s1 + $0x80] sm:$0xff]
    %v53 = vld [vmem:[%s1 + $0x88] sm:$0xff]
    %v54 = vld [vmem:[%s1 + $0x90] sm:$0xff]
    %v55 = vld [vmem:[%s1 + $0x98] sm:$0xff]
    %v56 = vld [vmem:[%s1 + $0xa0] sm:$0xff]
    %v57 = vld [vmem:[%s1 + $0xa8] sm:$0xff]
    %v58 = vld [vmem:[%s1 + $0xb0] sm:$0xff]
    %v59 = vld [vmem:[%s1 + $0xb8] sm:$0xff]
    %v60 = vld [vmem:[%s1 + $0xc0] sm:$0xff]
    %v61 = vld [vmem:[%s1 + $0xc8] sm:$0xff]
    %v62 = vld [vmem:[%s1 + $0xd0] sm:$0xff]
    %v63 = vld [vmem:[%s1 + $0xd8] sm:$0xff]
    %v64 = vld [vmem:[%s1 + $0xe0] sm:$0xff]
    %v65 = vld [vmem:[%s1 + $0xe8] sm:$0xff]
    %v66 = vld [vmem:[%s1 + $0xf0] sm:$0xff]
    %v67 = vld [vmem:[%s1 + $0xf8] sm:$0xff]
    %v68 = vld [vmem:[%s1 + $0x100] sm:$0xff]
    %v69 = vld [vmem:[%s1 + $0x108] sm:$0xff]
    %v70 = vld [vmem:[%s1 + $0x110] sm:$0xff]
    %v71 = vld [vmem:[%s1 + $0x118] sm:$0xff]
    %v72 = vld [vmem:[%s1 + $0x120] sm:$0xff]
    %v73 = vld [vmem:[%s1 + $0x128] sm:$0xff]
    %v74 = vld [vmem:[%s1 + $0x130] sm:$0xff]
    %v75 = vld [vmem:[%s1 + $0x138] sm:$0xff]
    %v76 = vld [vmem:[%s1 + $0x140] sm:$0xff]
    %v77 = vld [vmem:[%s1 + $0x148] sm:$0xff]
    %v78 = vld [vmem:[%s1 + $0x150] sm:$0xff]
    %v79 = vld [vmem:[%s1 + $0x158] sm:$0xff]
    %v80 = vld [vmem:[%s1 + $0x160] sm:$0xff]
    %v81 = vld [vmem:[%s1 + $0x168] sm:$0xff]
    %v82 = vld [vmem:[%s1 + $0x170] sm:$0xff]
    %v83 = vld [vmem:[%s1 + $0x178] sm:$0xff]
    %v84 = vld [vmem:[%s1 + $0x180] sm:$0xff]
    %v85 = vld [vmem:[%s1 + $0x188] sm:$0xff]
    %v86 = vld [vmem:[%s1 + $0x190] sm:$0xff]
    %v87 = vld [vmem:[%s1 + $0x198] sm:$0xff]
    %v88 = vld [vmem:[%s1 + $0x1a0] sm:$0xff]
    %v89 = vld [vmem:[%s1 + $0x1a8] sm:$0xff]
    %v90 = vld [vmem:[%s1 + $0x1b0] sm:$0xff]
    %v91 = vld [vmem:[%s1 + $0x1b8] sm:$0xff]
    %v92 = vld [vmem:[%s1 + $0x1c0] sm:$0xff]
    %v93 = vld [vmem:[%s1 + $0x1c8] sm:$0xff]
    %v94 = vld [vmem:[%s1 + $0x1d0] sm:$0xff]
    %v95 = vld [vmem:[%s1 + $0x1d8] sm:$0xff]
    %v96 = vld [vmem:[%s1 + $0x1e0] sm:$0xff]
    %v97 = vld [vmem:[%s1 + $0x1e8] sm:$0xff]
    %v98 = vld [vmem:[%s1 + $0x1f0] sm:$0xff]
    %v99 = vld [vmem:[%s1 + $0x1f8] sm:$0xff]
    %v100 = vld [vmem:[%s1 + $0x200] sm:$0xff]
    %v101 = vld [vmem:[%s1 + $0x208] sm:$0xff]
    %v102 = vld [vmem:[%s1 + $0x210] sm:$0xff]
    %v103 = vld [vmem:[%s1 + $0x218] sm:$0xff]
    %v104 = vld [vmem:[%s1 + $0x220] sm:$0xff]
    %v105 = vld [vmem:[%s1 + $0x228] sm:$0xff]
    %v106 = vld [vmem:[%s1 + $0x230] sm:$0xff]
    %v107 = vld [vmem:[%s1 + $0x238] sm:$0xff]
    %v108 = vld [vmem:[%s1 + $0x240] sm:$0xff]
    %v109 = vld [vmem:[%s1 + $0x248] sm:$0xff]
    %v110 = vld [vmem:[%s1 + $0x250] sm:$0xff]
    %v111 = vld [vmem:[%s1 + $0x258] sm:$0xff]
    %v112 = vld [vmem:[%s1 + $0x260] sm:$0xff]
    %v113 = vld [vmem:[%s1 + $0x268] sm:$0xff]
    %v114 = vld [vmem:[%s1 + $0x270] sm:$0xff]
    %v115 = vld [vmem:[%s1 + $0x278] sm:$0xff]
    %v116 = vld [vmem:[%s1 + $0x280] sm:$0xff]
    %v117 = vld [vmem:[%s1 + $0x288] sm:$0xff]
    %v118 = vld [vmem:[%s1 + $0x290] sm:$0xff]
    %v119 = vld [vmem:[%s1 + $0x298] sm:$0xff]
    %v120 = vld [vmem:[%s1 + $0x2a0] sm:$0xff]
    %v121 = vld [vmem:[%s1 + $0x2a8] sm:$0xff]
    %v122 = vld [vmem:[%s1 + $0x2b0] sm:$0xff]
    %v123 = vld [vmem:[%s1 + $0x2b8] sm:$0xff]
    %v124 = vld [vmem:[%s1 + $0x2c0] sm:$0xff]
    %v125 = vld [vmem:[%s1 + $0x2c8] sm:$0xff]
    %v126 = vld [vmem:[%s1 + $0x2d0] sm:$0xff]
    %v127 = vld [vmem:[%s1 + $0x2d8] sm:$0xff]
    %v128 = vld [vmem:[%s1 + $0x2e0] sm:$0xff]
    %v129 = vld [vmem:[%s1 + $0x2e8] sm:$0xff]
    %v130 = vld [vmem:[%s1 + $0x2f0] sm:$0xff]
    %v131 = vld [vmem:[%s1 + $0x2f8] sm:$0xff]
    %v132 = vld [vmem:[%s1 + $0x300] sm:$0xff]
    %v133 = vld [vmem:[%s1 + $0x308] sm:$0xff]
    %v134 = vld [vmem:[%s1 + $0x310] sm:$0xff]
    %v135 = vld [vmem:[%s1 + $0x318] sm:$0xff]
    %v136 = vld [vmem:[%s1 + $0x320] sm:$0xff]
    %v137 = vld [vmem:[%s1 + $0x328] sm:$0xff]
    %v138 = vld [vmem:[%s1 + $0x330] sm:$0xff]
    %v139 = vld [vmem:[%s1 + $0x338] sm:$0xff]
    %v140 = vld [vmem:[%s1 + $0x340] sm:$0xff]
    %v141 = vld [vmem:[%s1 + $0x348] sm:$0xff]
    %v142 = vld [vmem:[%s1 + $0x350] sm:$0xff]
    %v143 = vld [vmem:[%s1 + $0x358] sm:$0xff]
    %v144 = vld [vmem:[%s1 + $0x360] sm:$0xff]
    %v145 = vld [vmem:[%s1 + $0x368] sm:$0xff]
    %v146 = vld [vmem:[%s1 + $0x370] sm:$0xff]
    %v147 = vld [vmem:[%s1 + $0x378] sm:$0xff]
    %v148 = vld [vmem:[%s1 + $0x380] sm:$0xff]
    %v149 = vld [vmem:[%s1 + $0x388] sm:$0xff]
    %v150 = vld [vmem:[%s1 + $0x390] sm:$0xff]
    %v151 = vld [vmem:[%s1 + $0x398] sm:$0xff]
    %v152 = vld [vmem:[%s1 + $0x3a0] sm:$0xff]
    %v153 = vld [vmem:[%s1 + $0x3a8] sm:$0xff]
    %v154 = vld [vmem:[%s1 + $0x3b0] sm:$0xff]
    %v155 = vld [vmem:[%s1 + $0x3b8] sm:$0xff]
    %v156 = vld [vmem:[%s1 + $0x3c0] sm:$0xff]
    %v157 = vld [vmem:[%s1 + $0x3c8] sm:$0xff]
    %v158 = vld [vmem:[%s1 + $0x3d0] sm:$0xff]
    %v159 = vld [vmem:[%s1 + $0x3d8] sm:$0xff]
    %v160 = vld [vmem:[%s1 + $0x3e0] sm:$0xff]
    %v161 = vld [vmem:[%s1 + $0x3e8] sm:$0xff]
    %v162 = vld [vmem:[%s1 + $0x3f0] sm:$0xff]
    %v163 = vld [vmem:[%s1 + $0x3f8] sm:$0xff]
    %v164 = vld [vmem:[%s1 + $0x400] sm:$0xff]
    %v165 = vld [vmem:[%s1 + $0x408] sm:$0xff]
    %v166 = vld [vmem:[%s1 + $0x410] sm:$0xff]
    %v167 = vld [vmem:[%s1 + $0x418] sm:$0xff]
    %v168 = vld [vmem:[%s1 + $0x420] sm:$0xff]
    %v169 = vld [vmem:[%s1 + $0x428] sm:$0xff]
    %v170 = vld [vmem:[%s1 + $0x430] sm:$0xff]
    %v171 = vld [vmem:[%s1 + $0x438] sm:$0xff]
    %v172 = vld [vmem:[%s1 + $0x440] sm:$0xff]
    %v173 = vld [vmem:[%s1 + $0x448] sm:$0xff]
    %v174 = vld [vmem:[%s1 + $0x450] sm:$0xff]
    %v175 = vld [vmem:[%s1 + $0x458] sm:$0xff]
    %v176 = vld [vmem:[%s1 + $0x460] sm:$0xff]
    %v177 = vld [vmem:[%s1 + $0x468] sm:$0xff]
    %v178 = vld [vmem:[%s1 + $0x470] sm:$0xff]
    %v179 = vld [vmem:[%s1 + $0x478] sm:$0xff]
    %v180 = vld [vmem:[%s1 + $0x480] sm:$0xff]
    %v181 = vld [vmem:[%s1 + $0x488] sm:$0xff]
    %v182 = vld [vmem:[%s1 + $0x490] sm:$0xff]
    %v183 = vld [vmem:[%s1 + $0x498] sm:$0xff]
    %v184 = vld [vmem:[%s1 + $0x4a0] sm:$0xff]
    %v185 = vld [vmem:[%s1 + $0x4a8] sm:$0xff]
    %v186 = vld [vmem:[%s1 + $0x4b0] sm:$0xff]
    %v187 = vld [vmem:[%s1 + $0x4b8] sm:$0xff]
    %v188 = vld [vmem:[%s1 + $0x4c0] sm:$0xff]
    %v189 = vld [vmem:[%s1 + $0x4c8] sm:$0xff]
    %v190 = vld [vmem:[%s1 + $0x4d0] sm:$0xff]
    %v191 = vld [vmem:[%s1 + $0x4d8] sm:$0xff]
    %v192 = vld [vmem:[%s1 + $0x4e0] sm:$0xff]
    %v193 = vld [vmem:[%s1 + $0x4e8] sm:$0xff]
    %v194 = vld [vmem:[%s1 + $0x4f0] sm:$0xff]
    %v195 = vld [vmem:[%s1 + $0x4f8] sm:$0xff]
    %v196 = vld [vmem:[%s1 + $0x500] sm:$0xff]
    %v197 = vld [vmem:[%s1 + $0x508] sm:$0xff]
    %v198 = vld [vmem:[%s1 + $0x510] sm:$0xff]
    %v199 = vld [vmem:[%s1 + $0x518] sm:$0xff]
    %v200 = vld [vmem:[%s1 + $0x520] sm:$0xff]
    %v201 = vld [vmem:[%s1 + $0x528] sm:$0xff]
    %v202 = vld [vmem:[%s1 + $0x530] sm:$0xff]
    %v203 = vld [vmem:[%s1 + $0x538] sm:$0xff]
    %v204 = vld [vmem:[%s1 + $0x540] sm:$0xff]
    %v205 = vld [vmem:[%s1 + $0x548] sm:$0xff]
    %v206 = vld [vmem:[%s1 + $0x550] sm:$0xff]
    %v207 = vld [vmem:[%s1 + $0x558] sm:$0xff]
    %v208 = vld [vmem:[%s1 + $0x560] sm:$0xff]
    %v209 = vld [vmem:[%s1 + $0x568] sm:$0xff]
    %v210 = vld [vmem:[%s1 + $0x570] sm:$0xff]
    %v211 = vld [vmem:[%s1 + $0x578] sm:$0xff]
    %v212 = vld [vmem:[%s1 + $0x580] sm:$0xff]
    %v213 = vld [vmem:[%s1 + $0x588] sm:$0xff]
    %v214 = vld [vmem:[%s1 + $0x590] sm:$0xff]
    %v215 = vld [vmem:[%s1 + $0x598] sm:$0xff]
    %v216 = vld [vmem:[%s1 + $0x5a0] sm:$0xff]
    %v217 = vld [vmem:[%s1 + $0x5a8] sm:$0xff]
    %v218 = vld [vmem:[%s1 + $0x5b0] sm:$0xff]
    %v219 = vld [vmem:[%s1 + $0x5b8] sm:$0xff]
    %v220 = vld [vmem:[%s1 + $0x5c0] sm:$0xff]
    %v221 = vld [vmem:[%s1 + $0x5c8] sm:$0xff]
    %v222 = vld [vmem:[%s1 + $0x5d0] sm:$0xff]
    %v223 = vld [vmem:[%s1 + $0x5d8] sm:$0xff]
    %v224 = vld [vmem:[%s1 + $0x5e0] sm:$0xff]
    %v225 = vld [vmem:[%s1 + $0x5e8] sm:$0xff]
    %v226 = vld [vmem:[%s1 + $0x5f0] sm:$0xff]
    %v227 = vld [vmem:[%s1 + $0x5f8] sm:$0xff]
    %v228 = vld [vmem:[%s1 + $0x600] sm:$0xff]
    %v229 = vld [vmem:[%s1 + $0x608] sm:$0xff]
    %v230 = vld [vmem:[%s1 + $0x610] sm:$0xff]
    %v231 = vld [vmem:[%s1 + $0x618] sm:$0xff]
    %v232 = vld [vmem:[%s1 + $0x620] sm:$0xff]
    %v233 = vld [vmem:[%s1 + $0x628] sm:$0xff]
    %v234 = vld [vmem:[%s1 + $0x630] sm:$0xff]
    %v235 = vld [vmem:[%s1 + $0x638] sm:$0xff]
    %v236 = vld [vmem:[%s1 + $0x640] sm:$0xff]
    %v237 = vld [vmem:[%s1 + $0x648] sm:$0xff]
    %v238 = vld [vmem:[%s1 + $0x650] sm:$0xff]
    %v239 = vld [vmem:[%s1 + $0x658] sm:$0xff]
    %v240 = vld [vmem:[%s1 + $0x660] sm:$0xff]
    %v241 = vld [vmem:[%s1 + $0x668] sm:$0xff]
    %v242 = vld [vmem:[%s1 + $0x670] sm:$0xff]
    %v243 = vld [vmem:[%s1 + $0x678] sm:$0xff]
    %v244 = vld [vmem:[%s1 + $0x680] sm:$0xff]
    %v245 = vld [vmem:[%s1 + $0x688] sm:$0xff]
    %v246 = vld [vmem:[%s1 + $0x690] sm:$0xff]
    %v247 = vld [vmem:[%s1 + $0x698] sm:$0xff]
    %v248 = vld [vmem:[%s1 + $0x6a0] sm:$0xff]
    %v249 = vld [vmem:[%s1 + $0x6a8] sm:$0xff]
    %v250 = vld [vmem:[%s1 + $0x6b0] sm:$0xff]
    %v251 = vld [vmem:[%s1 + $0x6b8] sm:$0xff]
    %v252 = vld [vmem:[%s1 + $0x6c0] sm:$0xff]
    %v253 = vld [vmem:[%s1 + $0x6c8] sm:$0xff]
    %v254 = vld [vmem:[%s1 + $0x6d0] sm:$0xff]
    %v255 = vld [vmem:[%s1 + $0x6d8] sm:$0xff]
    %v256 = vld [vmem:[%s1 + $0x6e0] sm:$0xff]
    %v257 = vld [vmem:[%s1 + $0x6e8] sm:$0xff]
    %v258 = vld [vmem:[%s1 + $0x6f0] sm:$0xff]
    %v259 = vld [vmem:[%s1 + $0x6f8] sm:$0xff]
    %v260 = vld [vmem:[%s1 + $0x700] sm:$0xff]
    %v261 = vld [vmem:[%s1 + $0x708] sm:$0xff]
    %v262 = vld [vmem:[%s1 + $0x710] sm:$0xff]
    %v263 = vld [vmem:[%s1 + $0x718] sm:$0xff]
    %v264 = vld [vmem:[%s1 + $0x720] sm:$0xff]
    %v265 = vld [vmem:[%s1 + $0x728] sm:$0xff]
    %v266 = vld [vmem:[%s1 + $0x730] sm:$0xff]
    %v267 = vld [vmem:[%s1 + $0x738] sm:$0xff]
    %v268 = vld [vmem:[%s1 + $0x740] sm:$0xff]
    %v269 = vld [vmem:[%s1 + $0x748] sm:$0xff]
    %v270 = vld [vmem:[%s1 + $0x750] sm:$0xff]
    %v271 = vld [vmem:[%s1 + $0x758] sm:$0xff]
    %v272 = vld [vmem:[%s1 + $0x760] sm:$0xff]
    %v273 = vld [vmem:[%s1 + $0x768] sm:$0xff]
    %v274 = vld [vmem:[%s1 + $0x770] sm:$0xff]
    %v275 = vld [vmem:[%s1 + $0x778] sm:$0xff]
    %v276 = vld [vmem:[%s1 + $0x780] sm:$0xff]
    %v277 = vld [vmem:[%s1 + $0x788] sm:$0xff]
    %v278 = vld [vmem:[%s1 + $0x790] sm:$0xff]
    %v279 = vld [vmem:[%s1 + $0x798] sm:$0xff]
    %v280 = vld [vmem:[%s1 + $0x7a0] sm:$0xff]
    %v281 = vld [vmem:[%s1 + $0x7a8] sm:$0xff]
    %v282 = vld [vmem:[%s1 + $0x7b0] sm:$0xff]
    %v283 = vld [vmem:[%s1 + $0x7b8] sm:$0xff]
    %v284 = vld [vmem:[%s1 + $0x7c0] sm:$0xff]
    %v285 = vld [vmem:[%s1 + $0x7c8] sm:$0xff]
    %v286 = vld [vmem:[%s1 + $0x7d0] sm:$0xff]
    %v287 = vld [vmem:[%s1 + $0x7d8] sm:$0xff]
    %v288 = vld [vmem:[%s1 + $0x7e0] sm:$0xff]
    %v289 = vld [vmem:[%s1 + $0x7e8] sm:$0xff]
    %v290 = vld [vmem:[%s1 + $0x7f0] sm:$0xff]
    %v291 = vld [vmem:[%s1 + $0x7f8] sm:$0xff]
    %v292 = vld [vmem:[%s1 + $0x800] sm:$0xff]
    %v293 = vld [vmem:[%s1 + $0x808] sm:$0xff]
    %v294 = vld [vmem:[%s1 + $0x810] sm:$0xff]
    %v295 = vld [vmem:[%s1 + $0x818] sm:$0xff]
    %v296 = vld [vmem:[%s1 + $0x820] sm:$0xff]
    %v297 = vld [vmem:[%s1 + $0x828] sm:$0xff]
    %v298 = vld [vmem:[%s1 + $0x830] sm:$0xff]
    %v299 = vld [vmem:[%s1 + $0x838] sm:$0xff]
    %v300 = vld [vmem:[%s1 + $0x840] sm:$0xff]
    %v301 = vld [vmem:[%s1 + $0x848] sm:$0xff]
    %v302 = vld [vmem:[%s1 + $0x850] sm:$0xff]
    %v303 = vld [vmem:[%s1 + $0x858] sm:$0xff]
    %v304 = vld [vmem:[%s1 + $0x860] sm:$0xff]
    %v305 = vld [vmem:[%s1 + $0x868] sm:$0xff]
    %v306 = vld [vmem:[%s1 + $0x870] sm:$0xff]
    %v307 = vld [vmem:[%s1 + $0x878] sm:$0xff]
    %v308 = vld [vmem:[%s1 + $0x880] sm:$0xff]
    %v309 = vld [vmem:[%s1 + $0x888] sm:$0xff]
    %v310 = vld [vmem:[%s1 + $0x890] sm:$0xff]
    %v311 = vld [vmem:[%s1 + $0x898] sm:$0xff]
    %v312 = vld [vmem:[%s1 + $0x8a0] sm:$0xff]
    %v313 = vld [vmem:[%s1 + $0x8a8] sm:$0xff]
    %v314 = vld [vmem:[%s1 + $0x8b0] sm:$0xff]
    %v315 = vld [vmem:[%s1 + $0x8b8] sm:$0xff]
    %v316 = vld [vmem:[%s1 + $0x8c0] sm:$0xff]
    %v317 = vld [vmem:[%s1 + $0x8c8] sm:$0xff]
    %v318 = vld [vmem:[%s1 + $0x8d0] sm:$0xff]
    %v319 = vld [vmem:[%s1 + $0x8d8] sm:$0xff]
    %v320 = vld [vmem:[%s1 + $0x8e0] sm:$0xff]
    %v321 = vld [vmem:[%s1 + $0x8e8] sm:$0xff]
    %v322 = vld [vmem:[%s1 + $0x8f0] sm:$0xff]
    %v323 = vld [vmem:[%s1 + $0x8f8] sm:$0xff]
    %v324 = vld [vmem:[%s1 + $0x900] sm:$0xff]
    %v325 = vld [vmem:[%s1 + $0x908] sm:$0xff]
    %v326 = vld [vmem:[%s1 + $0x910] sm:$0xff]
    %v327 = vld [vmem:[%s1 + $0x918] sm:$0xff]
    %v328 = vld [vmem:[%s1 + $0x920] sm:$0xff]
    %v329 = vld [vmem:[%s1 + $0x928] sm:$0xff]
    %v330 = vld [vmem:[%s1 + $0x930] sm:$0xff]
    %v331 = vld [vmem:[%s1 + $0x938] sm:$0xff]
    %v332 = vld [vmem:[%s1 + $0x940] sm:$0xff]
    %v333 = vld [vmem:[%s1 + $0x948] sm:$0xff]
    %v334 = vld [vmem:[%s1 + $0x950] sm:$0xff]
    %v335 = vld [vmem:[%s1 + $0x958] sm:$0xff]
    %v336 = vld [vmem:[%s1 + $0x960] sm:$0xff]
    %v337 = vld [vmem:[%s1 + $0x968] sm:$0xff]
    %v338 = vld [vmem:[%s1 + $0x970] sm:$0xff]
    %v339 = vld [vmem:[%s1 + $0x978] sm:$0xff]
    %v340 = vld [vmem:[%s1 + $0x980] sm:$0xff]
    %v341 = vld [vmem:[%s1 + $0x988] sm:$0xff]
    %v342 = vld [vmem:[%s1 + $0x990] sm:$0xff]
    %v343 = vld [vmem:[%s1 + $0x998] sm:$0xff]
    %v344 = vld [vmem:[%s1 + $0x9a0] sm:$0xff]
    %v345 = vld [vmem:[%s1 + $0x9a8] sm:$0xff]
    %v346 = vld [vmem:[%s1 + $0x9b0] sm:$0xff]
    %v347 = vld [vmem:[%s1 + $0x9b8] sm:$0xff]
    %v348 = vld [vmem:[%s1 + $0x9c0] sm:$0xff]
    %v349 = vld [vmem:[%s1 + $0x9c8] sm:$0xff]
    %v350 = vld [vmem:[%s1 + $0x9d0] sm:$0xff]
    %v351 = vld [vmem:[%s1 + $0x9d8] sm:$0xff]
    %v352 = vld [vmem:[%s1 + $0x9e0] sm:$0xff]
    %v353 = vld [vmem:[%s1 + $0x9e8] sm:$0xff]
    %v354 = vld [vmem:[%s1 + $0x9f0] sm:$0xff]
    %v355 = vld [vmem:[%s1 + $0x9f8] sm:$0xff]
    %v356 = vld [vmem:[%s1 + $0xa00] sm:$0xff]
    %v357 = vld [vmem:[%s1 + $0xa08] sm:$0xff]
    %v358 = vld [vmem:[%s1 + $0xa10] sm:$0xff]
    %v359 = vld [vmem:[%s1 + $0xa18] sm:$0xff]
    %v360 = vld [vmem:[%s1 + $0xa20] sm:$0xff]
    %v361 = vld [vmem:[%s1 + $0xa28] sm:$0xff]
    %v362 = vld [vmem:[%s1 + $0xa30] sm:$0xff]
    %v363 = vld [vmem:[%s1 + $0xa38] sm:$0xff]
    %v364 = vld [vmem:[%s1 + $0xa40] sm:$0xff]
    %v365 = vld [vmem:[%s1 + $0xa48] sm:$0xff]
    %v366 = vld [vmem:[%s1 + $0xa50] sm:$0xff]
    %v367 = vld [vmem:[%s1 + $0xa58] sm:$0xff]
    %v368 = vld [vmem:[%s1 + $0xa60] sm:$0xff]
    %v369 = vld [vmem:[%s1 + $0xa68] sm:$0xff]
    %v370 = vld [vmem:[%s1 + $0xa70] sm:$0xff]
    %v371 = vld [vmem:[%s1 + $0xa78] sm:$0xff]
    %v372 = vld [vmem:[%s1 + $0xa80] sm:$0xff]
    %v373 = vld [vmem:[%s1 + $0xa88] sm:$0xff]
    %v374 = vld [vmem:[%s1 + $0xa90] sm:$0xff]
    %v375 = vld [vmem:[%s1 + $0xa98] sm:$0xff]
    %v376 = vld [vmem:[%s1 + $0xaa0] sm:$0xff]
    %v377 = vld [vmem:[%s1 + $0xaa8] sm:$0xff]
    %v378 = vld [vmem:[%s1 + $0xab0] sm:$0xff]
    %v379 = vld [vmem:[%s1 + $0xab8] sm:$0xff]
    %v380 = vld [vmem:[%s1 + $0xac0] sm:$0xff]
    %v381 = vld [vmem:[%s1 + $0xac8] sm:$0xff]
    %v382 = vld [vmem:[%s1 + $0xad0] sm:$0xff]
    %v383 = vld [vmem:[%s1 + $0xad8] sm:$0xff]
    %v384 = vld [vmem:[%s1 + $0xae0] sm:$0xff]
    %v385 = vld [vmem:[%s1 + $0xae8] sm:$0xff]
    %v386 = vld [vmem:[%s1 + $0xaf0] sm:$0xff]
    %v387 = vld [vmem:[%s1 + $0xaf8] sm:$0xff]
    %v388 = vld [vmem:[%s1 + $0xb00] sm:$0xff]
    %v389 = vld [vmem:[%s1 + $0xb08] sm:$0xff]
    %v390 = vld [vmem:[%s1 + $0xb10] sm:$0xff]
    %v391 = vld [vmem:[%s1 + $0xb18] sm:$0xff]
    %v392 = vld [vmem:[%s1 + $0xb20] sm:$0xff]
    %v393 = vld [vmem:[%s1 + $0xb28] sm:$0xff]
    %v394 = vld [vmem:[%s1 + $0xb30] sm:$0xff]
    %v395 = vld [vmem:[%s1 + $0xb38] sm:$0xff]
    %v396 = vld [vmem:[%s1 + $0xb40] sm:$0xff]
    %v397 = vld [vmem:[%s1 + $0xb48] sm:$0xff]
    %v398 = vld [vmem:[%s1 + $0xb50] sm:$0xff]
    %v399 = vld [vmem:[%s1 + $0xb58] sm:$0xff]
    %v400 = vld [vmem:[%s1 + $0xb60] sm:$0xff]
    %v401 = vld [vmem:[%s1 + $0xb68] sm:$0xff]
    %v402 = vld [vmem:[%s1 + $0xb70] sm:$0xff]
    %v403 = vld [vmem:[%s1 + $0xb78] sm:$0xff]
    %v404 = vld [vmem:[%s1 + $0xb80] sm:$0xff]
    %v405 = vld [vmem:[%s1 + $0xb88] sm:$0xff]
    %v406 = vld [vmem:[%s1 + $0xb90] sm:$0xff]
    %v407 = vld [vmem:[%s1 + $0xb98] sm:$0xff]
    %v408 = vld [vmem:[%s1 + $0xba0] sm:$0xff]
    %v409 = vld [vmem:[%s1 + $0xba8] sm:$0xff]
    %v410 = vld [vmem:[%s1 + $0xbb0] sm:$0xff]
    %v411 = vld [vmem:[%s1 + $0xbb8] sm:$0xff]
    %v412 = vld [vmem:[%s1 + $0xbc0] sm:$0xff]
    %v413 = vld [vmem:[%s1 + $0xbc8] sm:$0xff]
    %v414 = vld [vmem:[%s1 + $0xbd0] sm:$0xff]
    %v415 = vld [vmem:[%s1 + $0xbd8] sm:$0xff]
    %v416 = vld [vmem:[%s1 + $0xbe0] sm:$0xff]
    %v417 = vld [vmem:[%s1 + $0xbe8] sm:$0xff]
    %v418 = vld [vmem:[%s1 + $0xbf0] sm:$0xff]
    %v419 = vld [vmem:[%s1 + $0xbf8] sm:$0xff]
    %v420 = vld [vmem:[%s1 + $0xc00] sm:$0xff]
    %v421 = vld [vmem:[%s1 + $0xc08] sm:$0xff]
    %v422 = vld [vmem:[%s1 + $0xc10] sm:$0xff]
    %v423 = vld [vmem:[%s1 + $0xc18] sm:$0xff]
    %v424 = vld [vmem:[%s1 + $0xc20] sm:$0xff]
    %v425 = vld [vmem:[%s1 + $0xc28] sm:$0xff]
    %v426 = vld [vmem:[%s1 + $0xc30] sm:$0xff]
    %v427 = vld [vmem:[%s1 + $0xc38] sm:$0xff]
    %v428 = vld [vmem:[%s1 + $0xc40] sm:$0xff]
    %v429 = vld [vmem:[%s1 + $0xc48] sm:$0xff]
    %v430 = vld [vmem:[%s1 + $0xc50] sm:$0xff]
    %v431 = vld [vmem:[%s1 + $0xc58] sm:$0xff]
    %v432 = vld [vmem:[%s1 + $0xc60] sm:$0xff]
    %v433 = vld [vmem:[%s1 + $0xc68] sm:$0xff]
    %v434 = vld [vmem:[%s1 + $0xc70] sm:$0xff]
    %v435 = vld [vmem:[%s1 + $0xc78] sm:$0xff]
    %v436 = vld [vmem:[%s1 + $0xc80] sm:$0xff]
    %v437 = vld [vmem:[%s1 + $0xc88] sm:$0xff]
    %v438 = vld [vmem:[%s1 + $0xc90] sm:$0xff]
    %v439 = vld [vmem:[%s1 + $0xc98] sm:$0xff]
    %v440 = vld [vmem:[%s1 + $0xca0] sm:$0xff]
    %v441 = vld [vmem:[%s1 + $0xca8] sm:$0xff]
    %v442 = vld [vmem:[%s1 + $0xcb0] sm:$0xff]
    %v443 = vld [vmem:[%s1 + $0xcb8] sm:$0xff]
    %v444 = vld [vmem:[%s1 + $0xcc0] sm:$0xff]
    %v445 = vld [vmem:[%s1 + $0xcc8] sm:$0xff]
    %v446 = vld [vmem:[%s1 + $0xcd0] sm:$0xff]
    %v447 = vld [vmem:[%s1 + $0xcd8] sm:$0xff]
    %v448 = vld [vmem:[%s1 + $0xce0] sm:$0xff]
    %v449 = vld [vmem:[%s1 + $0xce8] sm:$0xff]
    %v450 = vld [vmem:[%s1 + $0xcf0] sm:$0xff]
    %v451 = vld [vmem:[%s1 + $0xcf8] sm:$0xff]
    %v452 = vld [vmem:[%s1 + $0xd00] sm:$0xff]
    %v453 = vld [vmem:[%s1 + $0xd08] sm:$0xff]
    %v454 = vld [vmem:[%s1 + $0xd10] sm:$0xff]
    %v455 = vld [vmem:[%s1 + $0xd18] sm:$0xff]
    %v456 = vld [vmem:[%s1 + $0xd20] sm:$0xff]
    %v457 = vld [vmem:[%s1 + $0xd28] sm:$0xff]
    %v458 = vld [vmem:[%s1 + $0xd30] sm:$0xff]
    %v459 = vld [vmem:[%s1 + $0xd38] sm:$0xff]
    %v460 = vld [vmem:[%s1 + $0xd40] sm:$0xff]
    %v461 = vld [vmem:[%s1 + $0xd48] sm:$0xff]
    %v462 = vld [vmem:[%s1 + $0xd50] sm:$0xff]
    %v463 = vld [vmem:[%s1 + $0xd58] sm:$0xff]
    %v464 = vld [vmem:[%s1 + $0xd60] sm:$0xff]
    %v465 = vld [vmem:[%s1 + $0xd68] sm:$0xff]
    %v466 = vld [vmem:[%s1 + $0xd70] sm:$0xff]
    %v467 = vld [vmem:[%s1 + $0xd78] sm:$0xff]
    %v468 = vld [vmem:[%s1 + $0xd80] sm:$0xff]
    %v469 = vld [vmem:[%s1 + $0xd88] sm:$0xff]
    %v470 = vld [vmem:[%s1 + $0xd90] sm:$0xff]
    %v471 = vld [vmem:[%s1 + $0xd98] sm:$0xff]
    %v472 = vld [vmem:[%s1 + $0xda0] sm:$0xff]
    %v473 = vld [vmem:[%s1 + $0xda8] sm:$0xff]
    %v474 = vld [vmem:[%s1 + $0xdb0] sm:$0xff]
    %v475 = vld [vmem:[%s1 + $0xdb8] sm:$0xff]
    %v476 = vld [vmem:[%s1 + $0xdc0] sm:$0xff]
    %v477 = vld [vmem:[%s1 + $0xdc8] sm:$0xff]
    %v478 = vld [vmem:[%s1 + $0xdd0] sm:$0xff]
    %v479 = vld [vmem:[%s1 + $0xdd8] sm:$0xff]
    %v480 = vld [vmem:[%s1 + $0xde0] sm:$0xff]
    %v481 = vld [vmem:[%s1 + $0xde8] sm:$0xff]
    %v482 = vld [vmem:[%s1 + $0xdf0] sm:$0xff]
    %v483 = vld [vmem:[%s1 + $0xdf8] sm:$0xff]
    %v484 = vld [vmem:[%s1 + $0xe00] sm:$0xff]
    %v485 = vld [vmem:[%s1 + $0xe08] sm:$0xff]
    %v486 = vld [vmem:[%s1 + $0xe10] sm:$0xff]
    %v487 = vld [vmem:[%s1 + $0xe18] sm:$0xff]
    %v488 = vld [vmem:[%s1 + $0xe20] sm:$0xff]
    %v489 = vld [vmem:[%s1 + $0xe28] sm:$0xff]
    %v490 = vld [vmem:[%s1 + $0xe30] sm:$0xff]
    %v491 = vld [vmem:[%s1 + $0xe38] sm:$0xff]
    %v492 = vld [vmem:[%s1 + $0xe40] sm:$0xff]
    %v493 = vld [vmem:[%s1 + $0xe48] sm:$0xff]
    %v494 = vld [vmem:[%s1 + $0xe50] sm:$0xff]
    %v495 = vld [vmem:[%s1 + $0xe58] sm:$0xff]
    %v496 = vld [vmem:[%s1 + $0xe60] sm:$0xff]
    %v497 = vld [vmem:[%s1 + $0xe68] sm:$0xff]
    %v498 = vld [vmem:[%s1 + $0xe70] sm:$0xff]
    %v499 = vld [vmem:[%s1 + $0xe78] sm:$0xff]
    %v500 = vld [vmem:[%s1 + $0xe80] sm:$0xff]
    %v501 = vld [vmem:[%s1 + $0xe88] sm:$0xff]
    %v502 = vld [vmem:[%s1 + $0xe90] sm:$0xff]
    %v503 = vld [vmem:[%s1 + $0xe98] sm:$0xff]
    %v504 = vld [vmem:[%s1 + $0xea0] sm:$0xff]
    %v505 = vld [vmem:[%s1 + $0xea8] sm:$0xff]
    %v506 = vld [vmem:[%s1 + $0xeb0] sm:$0xff]
    %v507 = vld [vmem:[%s1 + $0xeb8] sm:$0xff]
    %v508 = vld [vmem:[%s1 + $0xec0] sm:$0xff]
    %v509 = vld [vmem:[%s1 + $0xec8] sm:$0xff]
    %v510 = vld [vmem:[%s1 + $0xed0] sm:$0xff]
    %v511 = vld [vmem:[%s1 + $0xed8] sm:$0xff]
    %v512 = vld [vmem:[%s1 + $0xee0] sm:$0xff]
    %v513 = vld [vmem:[%s1 + $0xee8] sm:$0xff]
    %v514 = vld [vmem:[%s1 + $0xef0] sm:$0xff]
    %v515 = vld [vmem:[%s1 + $0xef8] sm:$0xff]
    %v516 = vld [vmem:[%s1 + $0xf00] sm:$0xff]
    %v517 = vld [vmem:[%s1 + $0xf08] sm:$0xff]
    %v518 = vld [vmem:[%s1 + $0xf10] sm:$0xff]
    %v519 = vld [vmem:[%s1 + $0xf18] sm:$0xff]
    %v520 = vld [vmem:[%s1 + $0xf20] sm:$0xff]
    %v521 = vld [vmem:[%s1 + $0xf28] sm:$0xff]
    %v522 = vld [vmem:[%s1 + $0xf30] sm:$0xff]
    %v523 = vld [vmem:[%s1 + $0xf38] sm:$0xff]
    %v524 = vld [vmem:[%s1 + $0xf40] sm:$0xff]
    %v525 = vld [vmem:[%s1 + $0xf48] sm:$0xff]
    %v526 = vld [vmem:[%s1 + $0xf50] sm:$0xff]
    %v527 = vld [vmem:[%s1 + $0xf58] sm:$0xff]
    %v528 = vld [vmem:[%s1 + $0xf60] sm:$0xff]
    %v529 = vld [vmem:[%s1 + $0xf68] sm:$0xff]
    %v530 = vld [vmem:[%s1 + $0xf70] sm:$0xff]
    %v531 = vld [vmem:[%s1 + $0xf78] sm:$0xff]
    %v532 = vld [vmem:[%s1 + $0xf80] sm:$0xff]
    %v533 = vld [vmem:[%s1 + $0xf88] sm:$0xff]
    %v534 = vld [vmem:[%s1 + $0xf90] sm:$0xff]
    %v535 = vld [vmem:[%s1 + $0xf98] sm:$0xff]
    %v536 = vld [vmem:[%s1 + $0xfa0] sm:$0xff]
    %v537 = vld [vmem:[%s1 + $0xfa8] sm:$0xff]
    %v538 = vld [vmem:[%s1 + $0xfb0] sm:$0xff]
    %v539 = vld [vmem:[%s1 + $0xfb8] sm:$0xff]
    %v540 = vld [vmem:[%s1 + $0xfc0] sm:$0xff]
    %v541 = vld [vmem:[%s1 + $0xfc8] sm:$0xff]
    %v542 = vld [vmem:[%s1 + $0xfd0] sm:$0xff]
    %v543 = vld [vmem:[%s1 + $0xfd8] sm:$0xff]
    %v544 = vld [vmem:[%s1 + $0xfe0] sm:$0xff]
    %v545 = vld [vmem:[%s1 + $0xfe8] sm:$0xff]
    %v546 = vld [vmem:[%s1 + $0xff0] sm:$0xff]
    %v547 = vld [vmem:[%s1 + $0xff8] sm:$0xff]
    %v548 = vld [vmem:[%s1 + $0x1000] sm:$0xff]
    %v549 = vld [vmem:[%s1 + $0x1008] sm:$0xff]
    %v550 = vld [vmem:[%s1 + $0x1010] sm:$0xff]
    %v551 = vld [vmem:[%s1 + $0x1018] sm:$0xff]
    %v552 = vld [vmem:[%s1 + $0x1020] sm:$0xff]
    %v553 = vld [vmem:[%s1 + $0x1028] sm:$0xff]
    %v554 = vld [vmem:[%s1 + $0x1030] sm:$0xff]
    %v555 = vld [vmem:[%s1 + $0x1038] sm:$0xff]
    %v556 = vld [vmem:[%s1 + $0x1040] sm:$0xff]
    %v557 = vld [vmem:[%s1 + $0x1048] sm:$0xff]
    %v558 = vld [vmem:[%s1 + $0x1050] sm:$0xff]
    %v559 = vld [vmem:[%s1 + $0x1058] sm:$0xff]
    %v560 = vld [vmem:[%s1 + $0x1060] sm:$0xff]
    %v561 = vld [vmem:[%s1 + $0x1068] sm:$0xff]
    %v562 = vld [vmem:[%s1 + $0x1070] sm:$0xff]
    %v563 = vld [vmem:[%s1 + $0x1078] sm:$0xff]
    %v564 = vld [vmem:[%s1 + $0x1080] sm:$0xff]
    %v565 = vld [vmem:[%s1 + $0x1088] sm:$0xff]
    %v566 = vld [vmem:[%s1 + $0x1090] sm:$0xff]
    %v567 = vld [vmem:[%s1 + $0x1098] sm:$0xff]
    %v568 = vld [vmem:[%s1 + $0x10a0] sm:$0xff]
    %v569 = vld [vmem:[%s1 + $0x10a8] sm:$0xff]
    %v570 = vld [vmem:[%s1 + $0x10b0] sm:$0xff]
    %v571 = vld [vmem:[%s1 + $0x10b8] sm:$0xff]
    %v572 = vld [vmem:[%s1 + $0x10c0] sm:$0xff]
    %v573 = vld [vmem:[%s1 + $0x10c8] sm:$0xff]
    %v574 = vld [vmem:[%s1 + $0x10d0] sm:$0xff]
    %v575 = vld [vmem:[%s1 + $0x10d8] sm:$0xff]
    %v576 = vld [vmem:[%s1 + $0x10e0] sm:$0xff]
    %v577 = vld [vmem:[%s1 + $0x10e8] sm:$0xff]
    %v578 = vld [vmem:[%s1 + $0x10f0] sm:$0xff]
    %v579 = vld [vmem:[%s1 + $0x10f8] sm:$0xff]
    %v580 = vld [vmem:[%s1 + $0x1100] sm:$0xff]
    %v581 = vld [vmem:[%s1 + $0x1108] sm:$0xff]
    %v582 = vld [vmem:[%s1 + $0x1110] sm:$0xff]
    %v583 = vld [vmem:[%s1 + $0x1118] sm:$0xff]
    %v584 = vld [vmem:[%s1 + $0x1120] sm:$0xff]
    %v585 = vld [vmem:[%s1 + $0x1128] sm:$0xff]
    %v586 = vld [vmem:[%s1 + $0x1130] sm:$0xff]
    %v587 = vld [vmem:[%s1 + $0x1138] sm:$0xff]
    %v588 = vld [vmem:[%s1 + $0x1140] sm:$0xff]
    %v589 = vld [vmem:[%s1 + $0x1148] sm:$0xff]
    %v590 = vld [vmem:[%s1 + $0x1150] sm:$0xff]
    %v591 = vld [vmem:[%s1 + $0x1158] sm:$0xff]
    %v592 = vld [vmem:[%s1 + $0x1160] sm:$0xff]
    %v593 = vld [vmem:[%s1 + $0x1168] sm:$0xff]
    %v594 = vld [vmem:[%s1 + $0x1170] sm:$0xff]
    %v595 = vld [vmem:[%s1 + $0x1178] sm:$0xff]
    %v596 = vld [vmem:[%s1 + $0x1180] sm:$0xff]
    %v597 = vld [vmem:[%s1 + $0x1188] sm:$0xff]
    %v598 = vld [vmem:[%s1 + $0x1190] sm:$0xff]
    %v599 = vld [vmem:[%s1 + $0x1198] sm:$0xff]
    %v600 = vld [vmem:[%s1 + $0x11a0] sm:$0xff]
    %v601 = vld [vmem:[%s1 + $0x11a8] sm:$0xff]
    %v602 = vld [vmem:[%s1 + $0x11b0] sm:$0xff]
    %v603 = vld [vmem:[%s1 + $0x11b8] sm:$0xff]
    %v604 = vld [vmem:[%s1 + $0x11c0] sm:$0xff]
    %v605 = vld [vmem:[%s1 + $0x11c8] sm:$0xff]
    %v606 = vld [vmem:[%s1 + $0x11d0] sm:$0xff]
    %v607 = vld [vmem:[%s1 + $0x11d8] sm:$0xff]
    %v608 = vld [vmem:[%s1 + $0x11e0] sm:$0xff]
    %v609 = vld [vmem:[%s1 + $0x11e8] sm:$0xff]
    %v610 = vld [vmem:[%s1 + $0x11f0] sm:$0xff]
    %v611 = vld [vmem:[%s1 + $0x11f8] sm:$0xff]
    %v612 = vld [vmem:[%s1 + $0x1200] sm:$0xff]
    %v613 = vld [vmem:[%s1 + $0x1208] sm:$0xff]
    %v614 = vld [vmem:[%s1 + $0x1210] sm:$0xff]
    %v615 = vld [vmem:[%s1 + $0x1218] sm:$0xff]
    %v616 = vld [vmem:[%s1 + $0x1220] sm:$0xff]
    %v617 = vld [vmem:[%s1 + $0x1228] sm:$0xff]
    %v618 = vld [vmem:[%s1 + $0x1230] sm:$0xff]
    %v619 = vld [vmem:[%s1 + $0x1238] sm:$0xff]
    %v620 = vld [vmem:[%s1 + $0x1240] sm:$0xff]
    %v621 = vld [vmem:[%s1 + $0x1248] sm:$0xff]
    %v622 = vld [vmem:[%s1 + $0x1250] sm:$0xff]
    %v623 = vld [vmem:[%s1 + $0x1258] sm:$0xff]
    %v624 = vld [vmem:[%s1 + $0x1260] sm:$0xff]
    %v625 = vld [vmem:[%s1 + $0x1268] sm:$0xff]
    %v626 = vld [vmem:[%s1 + $0x1270] sm:$0xff]
    %v627 = vld [vmem:[%s1 + $0x1278] sm:$0xff]
    %v628 = vld [vmem:[%s1 + $0x1280] sm:$0xff]
    %v629 = vld [vmem:[%s1 + $0x1288] sm:$0xff]
    %v630 = vld [vmem:[%s1 + $0x1290] sm:$0xff]
    %v631 = vld [vmem:[%s1 + $0x1298] sm:$0xff]
    %v632 = vld [vmem:[%s1 + $0x12a0] sm:$0xff]
    %v633 = vld [vmem:[%s1 + $0x12a8] sm:$0xff]
    %v634 = vld [vmem:[%s1 + $0x12b0] sm:$0xff]
    %v635 = vld [vmem:[%s1 + $0x12b8] sm:$0xff]
    %v636 = vld [vmem:[%s1 + $0x12c0] sm:$0xff]
    %v637 = vld [vmem:[%s1 + $0x12c8] sm:$0xff]
    %v638 = vld [vmem:[%s1 + $0x12d0] sm:$0xff]
    %v639 = vld [vmem:[%s1 + $0x12d8] sm:$0xff]
    %v640 = vld [vmem:[%s1 + $0x12e0] sm:$0xff]
    %v641 = vld [vmem:[%s1 + $0x12e8] sm:$0xff]
    %v642 = vld [vmem:[%s1 + $0x12f0] sm:$0xff]
    %v643 = vld [vmem:[%s1 + $0x12f8] sm:$0xff]
    %v644 = vld [vmem:[%s1 + $0x1300] sm:$0xff]
    %v645 = vld [vmem:[%s1 + $0x1308] sm:$0xff]
    %v646 = vld [vmem:[%s1 + $0x1310] sm:$0xff]
    %v647 = vld [vmem:[%s1 + $0x1318] sm:$0xff]
    %v648 = vld [vmem:[%s1 + $0x1320] sm:$0xff]
    %v649 = vld [vmem:[%s1 + $0x1328] sm:$0xff]
    %v650 = vld [vmem:[%s1 + $0x1330] sm:$0xff]
    %v651 = vld [vmem:[%s1 + $0x1338] sm:$0xff]
    %v652 = vld [vmem:[%s1 + $0x1340] sm:$0xff]
    %v653 = vld [vmem:[%s1 + $0x1348] sm:$0xff]
    %v654 = vld [vmem:[%s1 + $0x1350] sm:$0xff]
    %v655 = vld [vmem:[%s1 + $0x1358] sm:$0xff]
    %v656 = vld [vmem:[%s1 + $0x1360] sm:$0xff]
    %v657 = vld [vmem:[%s1 + $0x1368] sm:$0xff]
    %v658 = vld [vmem:[%s1 + $0x1370] sm:$0xff]
    %v659 = vld [vmem:[%s1 + $0x1378] sm:$0xff]
    %v660 = vld [vmem:[%s1 + $0x1380] sm:$0xff]
    %v661 = vld [vmem:[%s1 + $0x1388] sm:$0xff]
    %v662 = vld [vmem:[%s1 + $0x1390] sm:$0xff]
    %v663 = vld [vmem:[%s1 + $0x1398] sm:$0xff]
    %v664 = vld [vmem:[%s1 + $0x13a0] sm:$0xff]
    %v665 = vld [vmem:[%s1 + $0x13a8] sm:$0xff]
    %v666 = vld [vmem:[%s1 + $0x13b0] sm:$0xff]
    %v667 = vld [vmem:[%s1 + $0x13b8] sm:$0xff]
    %v668 = vld [vmem:[%s1 + $0x13c0] sm:$0xff]
    %v669 = vld [vmem:[%s1 + $0x13c8] sm:$0xff]
    %v670 = vld [vmem:[%s1 + $0x13d0] sm:$0xff]
    %v671 = vld [vmem:[%s1 + $0x13d8] sm:$0xff]
    %v672 = vld [vmem:[%s1 + $0x13e0] sm:$0xff]
    %v673 = vld [vmem:[%s1 + $0x13e8] sm:$0xff]
    %v674 = vld [vmem:[%s1 + $0x13f0] sm:$0xff]
    %v675 = vld [vmem:[%s1 + $0x13f8] sm:$0xff]
    %v676 = vld [vmem:[%s1 + $0x1400] sm:$0xff]
    %v677 = vld [vmem:[%s1 + $0x1408] sm:$0xff]
    %v678 = vld [vmem:[%s1 + $0x1410] sm:$0xff]
    %v679 = vld [vmem:[%s1 + $0x1418] sm:$0xff]
    %v680 = vld [vmem:[%s1 + $0x1420] sm:$0xff]
    %v681 = vld [vmem:[%s1 + $0x1428] sm:$0xff]
    %v682 = vld [vmem:[%s1 + $0x1430] sm:$0xff]
    %v683 = vld [vmem:[%s1 + $0x1438] sm:$0xff]
    %v684 = vld [vmem:[%s1 + $0x1440] sm:$0xff]
    %v685 = vld [vmem:[%s1 + $0x1448] sm:$0xff]
    %v686 = vld [vmem:[%s1 + $0x1450] sm:$0xff]
    %v687 = vld [vmem:[%s1 + $0x1458] sm:$0xff]
    %v688 = vld [vmem:[%s1 + $0x1460] sm:$0xff]
    %v689 = vld [vmem:[%s1 + $0x1468] sm:$0xff]
    %v690 = vld [vmem:[%s1 + $0x1470] sm:$0xff]
    %v691 = vld [vmem:[%s1 + $0x1478] sm:$0xff]
    %v692 = vld [vmem:[%s1 + $0x1480] sm:$0xff]
    %v693 = vld [vmem:[%s1 + $0x1488] sm:$0xff]
    %v694 = vld [vmem:[%s1 + $0x1490] sm:$0xff]
    %v695 = vld [vmem:[%s1 + $0x1498] sm:$0xff]
    %v696 = vld [vmem:[%s1 + $0x14a0] sm:$0xff]
    %v697 = vld [vmem:[%s1 + $0x14a8] sm:$0xff]
    %v698 = vld [vmem:[%s1 + $0x14b0] sm:$0xff]
    %v699 = vld [vmem:[%s1 + $0x14b8] sm:$0xff]
    %v700 = vld [vmem:[%s1 + $0x14c0] sm:$0xff]
    %v701 = vld [vmem:[%s1 + $0x14c8] sm:$0xff]
    %v702 = vld [vmem:[%s1 + $0x14d0] sm:$0xff]
    %v703 = vld [vmem:[%s1 + $0x14d8] sm:$0xff]
    %v704 = vld [vmem:[%s1 + $0x14e0] sm:$0xff]
    %v705 = vld [vmem:[%s1 + $0x14e8] sm:$0xff]
    %v706 = vld [vmem:[%s1 + $0x14f0] sm:$0xff]
    %v707 = vld [vmem:[%s1 + $0x14f8] sm:$0xff]
    %v708 = vld [vmem:[%s1 + $0x1500] sm:$0xff]
    %v709 = vld [vmem:[%s1 + $0x1508] sm:$0xff]
    %v710 = vld [vmem:[%s1 + $0x1510] sm:$0xff]
    %v711 = vld [vmem:[%s1 + $0x1518] sm:$0xff]
    %v712 = vld [vmem:[%s1 + $0x1520] sm:$0xff]
    %v713 = vld [vmem:[%s1 + $0x1528] sm:$0xff]
    %v714 = vld [vmem:[%s1 + $0x1530] sm:$0xff]
    %v715 = vld [vmem:[%s1 + $0x1538] sm:$0xff]
    %v716 = vld [vmem:[%s1 + $0x1540] sm:$0xff]
    %v717 = vld [vmem:[%s1 + $0x1548] sm:$0xff]
    %v718 = vld [vmem:[%s1 + $0x1550] sm:$0xff]
    %v719 = vld [vmem:[%s1 + $0x1558] sm:$0xff]
    %v720 = vld [vmem:[%s1 + $0x1560] sm:$0xff]
    %v721 = vld [vmem:[%s1 + $0x1568] sm:$0xff]
    %v722 = vld [vmem:[%s1 + $0x1570] sm:$0xff]
    %v723 = vld [vmem:[%s1 + $0x1578] sm:$0xff]
    %v724 = vld [vmem:[%s1 + $0x1580] sm:$0xff]
    %v725 = vld [vmem:[%s1 + $0x1588] sm:$0xff]
    %v726 = vld [vmem:[%s1 + $0x1590] sm:$0xff]
    %v727 = vld [vmem:[%s1 + $0x1598] sm:$0xff]
    %v728 = vld [vmem:[%s1 + $0x15a0] sm:$0xff]
    %v729 = vld [vmem:[%s1 + $0x15a8] sm:$0xff]
    %v730 = vld [vmem:[%s1 + $0x15b0] sm:$0xff]
    %v731 = vld [vmem:[%s1 + $0x15b8] sm:$0xff]
    %v732 = vld [vmem:[%s1 + $0x15c0] sm:$0xff]
    %v733 = vld [vmem:[%s1 + $0x15c8] sm:$0xff]
    %v734 = vld [vmem:[%s1 + $0x15d0] sm:$0xff]
    %v735 = vld [vmem:[%s1 + $0x15d8] sm:$0xff]
    %v736 = vld [vmem:[%s1 + $0x15e0] sm:$0xff]
    %v737 = vld [vmem:[%s1 + $0x15e8] sm:$0xff]
    %v738 = vld [vmem:[%s1 + $0x15f0] sm:$0xff]
    %v739 = vld [vmem:[%s1 + $0x15f8] sm:$0xff]
    %v740 = vld [vmem:[%s1 + $0x1600] sm:$0xff]
    %v741 = vld [vmem:[%s1 + $0x1608] sm:$0xff]
    %v742 = vld [vmem:[%s1 + $0x1610] sm:$0xff]
    %v743 = vld [vmem:[%s1 + $0x1618] sm:$0xff]
    %v744 = vld [vmem:[%s1 + $0x1620] sm:$0xff]
    %v745 = vld [vmem:[%s1 + $0x1628] sm:$0xff]
    %v746 = vld [vmem:[%s1 + $0x1630] sm:$0xff]
    %v747 = vld [vmem:[%s1 + $0x1638] sm:$0xff]
    %v748 = vld [vmem:[%s1 + $0x1640] sm:$0xff]
    %v749 = vld [vmem:[%s1 + $0x1648] sm:$0xff]
    %v750 = vld [vmem:[%s1 + $0x1650] sm:$0xff]
    %v751 = vld [vmem:[%s1 + $0x1658] sm:$0xff]
    %v752 = vld [vmem:[%s1 + $0x1660] sm:$0xff]
    %v753 = vld [vmem:[%s1 + $0x1668] sm:$0xff]
    %v754 = vld [vmem:[%s1 + $0x1670] sm:$0xff]
    %v755 = vld [vmem:[%s1 + $0x1678] sm:$0xff]
    %v756 = vld [vmem:[%s1 + $0x1680] sm:$0xff]
    %v757 = vld [vmem:[%s1 + $0x1688] sm:$0xff]
    %v758 = vld [vmem:[%s1 + $0x1690] sm:$0xff]
    %v759 = vld [vmem:[%s1 + $0x1698] sm:$0xff]
    %v760 = vld [vmem:[%s1 + $0x16a0] sm:$0xff]
    %v761 = vld [vmem:[%s1 + $0x16a8] sm:$0xff]
    %v762 = vld [vmem:[%s1 + $0x16b0] sm:$0xff]
    %v763 = vld [vmem:[%s1 + $0x16b8] sm:$0xff]
    %v764 = vld [vmem:[%s1 + $0x16c0] sm:$0xff]
    %v765 = vld [vmem:[%s1 + $0x16c8] sm:$0xff]
    %v766 = vld [vmem:[%s1 + $0x16d0] sm:$0xff]
    %v767 = vld [vmem:[%s1 + $0x16d8] sm:$0xff]
    %v768 = vld [vmem:[%s1 + $0x16e0] sm:$0xff]
    %v769 = vld [vmem:[%s1 + $0x16e8] sm:$0xff]
    %v770 = vld [vmem:[%s1 + $0x16f0] sm:$0xff]
    %v771 = vld [vmem:[%s1 + $0x16f8] sm:$0xff]
    %v772 = vld [vmem:[%s1 + $0x1700] sm:$0xff]
    %v773 = vld [vmem:[%s1 + $0x1708] sm:$0xff]
    %v774 = vld [vmem:[%s1 + $0x1710] sm:$0xff]
    %v775 = vld [vmem:[%s1 + $0x1718] sm:$0xff]
    %v776 = vld [vmem:[%s1 + $0x1720] sm:$0xff]
    %v777 = vld [vmem:[%s1 + $0x1728] sm:$0xff]
    %v778 = vld [vmem:[%s1 + $0x1730] sm:$0xff]
    %v779 = vld [vmem:[%s1 + $0x1738] sm:$0xff]
    %v780 = vld [vmem:[%s1 + $0x1740] sm:$0xff]
    %v781 = vld [vmem:[%s1 + $0x1748] sm:$0xff]
    %v782 = vld [vmem:[%s1 + $0x1750] sm:$0xff]
    %v783 = vld [vmem:[%s1 + $0x1758] sm:$0xff]
    %v784 = vld [vmem:[%s1 + $0x1760] sm:$0xff]
    %v785 = vld [vmem:[%s1 + $0x1768] sm:$0xff]
    %v786 = vld [vmem:[%s1 + $0x1770] sm:$0xff]
    %v787 = vld [vmem:[%s1 + $0x1778] sm:$0xff]
    %v788 = vld [vmem:[%s1 + $0x1780] sm:$0xff]
    %v789 = vld [vmem:[%s1 + $0x1788] sm:$0xff]
    %v790 = vld [vmem:[%s1 + $0x1790] sm:$0xff]
    %v791 = vld [vmem:[%s1 + $0x1798] sm:$0xff]
    %v792 = vld [vmem:[%s1 + $0x17a0] sm:$0xff]
    %v793 = vld [vmem:[%s1 + $0x17a8] sm:$0xff]
    %v794 = vld [vmem:[%s1 + $0x17b0] sm:$0xff]
    %v795 = vld [vmem:[%s1 + $0x17b8] sm:$0xff]
    %v796 = vld [vmem:[%s1 + $0x17c0] sm:$0xff]
    %v797 = vld [vmem:[%s1 + $0x17c8] sm:$0xff]
    %v798 = vld [vmem:[%s1 + $0x17d0] sm:$0xff]
    %v799 = vld [vmem:[%s1 + $0x17d8] sm:$0xff]
    %v800 = vld [vmem:[%s1 + $0x17e0] sm:$0xff]
    %v801 = vld [vmem:[%s1 + $0x17e8] sm:$0xff]
    %v802 = vld [vmem:[%s1 + $0x17f0] sm:$0xff]
    %v803 = vld [vmem:[%s1 + $0x17f8] sm:$0xff]
    %v804 = vld [vmem:[%s1 + $0x1800] sm:$0xff]
    %v805 = vld [vmem:[%s1 + $0x1808] sm:$0xff]
    %v806 = vld [vmem:[%s1 + $0x1810] sm:$0xff]
    %v807 = vld [vmem:[%s1 + $0x1818] sm:$0xff]
    %v808 = vld [vmem:[%s1 + $0x1820] sm:$0xff]
    %v809 = vld [vmem:[%s1 + $0x1828] sm:$0xff]
    %v810 = vld [vmem:[%s1 + $0x1830] sm:$0xff]
    %v811 = vld [vmem:[%s1 + $0x1838] sm:$0xff]
    %v812 = vld [vmem:[%s1 + $0x1840] sm:$0xff]
    %v813 = vld [vmem:[%s1 + $0x1848] sm:$0xff]
    %v814 = vld [vmem:[%s1 + $0x1850] sm:$0xff]
    %v815 = vld [vmem:[%s1 + $0x1858] sm:$0xff]
    %v816 = vld [vmem:[%s1 + $0x1860] sm:$0xff]
    %v817 = vld [vmem:[%s1 + $0x1868] sm:$0xff]
    %v818 = vld [vmem:[%s1 + $0x1870] sm:$0xff]
    %v819 = vld [vmem:[%s1 + $0x1878] sm:$0xff]
    %v820 = vld [vmem:[%s1 + $0x1880] sm:$0xff]
    %v821 = vld [vmem:[%s1 + $0x1888] sm:$0xff]
    %v822 = vld [vmem:[%s1 + $0x1890] sm:$0xff]
    %v823 = vld [vmem:[%s1 + $0x1898] sm:$0xff]
    %v824 = vld [vmem:[%s1 + $0x18a0] sm:$0xff]
    %v825 = vld [vmem:[%s1 + $0x18a8] sm:$0xff]
    %v826 = vld [vmem:[%s1 + $0x18b0] sm:$0xff]
    %v827 = vld [vmem:[%s1 + $0x18b8] sm:$0xff]
    %v828 = vld [vmem:[%s1 + $0x18c0] sm:$0xff]
    %v829 = vld [vmem:[%s1 + $0x18c8] sm:$0xff]
    %v830 = vld [vmem:[%s1 + $0x18d0] sm:$0xff]
    %v831 = vld [vmem:[%s1 + $0x18d8] sm:$0xff]
    %v832 = vld [vmem:[%s1 + $0x18e0] sm:$0xff]
    %v833 = vld [vmem:[%s1 + $0x18e8] sm:$0xff]
    %v834 = vld [vmem:[%s1 + $0x18f0] sm:$0xff]
    %v835 = vld [vmem:[%s1 + $0x18f8] sm:$0xff]
    %v836 = vld [vmem:[%s1 + $0x1900] sm:$0xff]
    %v837 = vld [vmem:[%s1 + $0x1908] sm:$0xff]
    %v838 = vld [vmem:[%s1 + $0x1910] sm:$0xff]
    %v839 = vld [vmem:[%s1 + $0x1918] sm:$0xff]
    %v840 = vld [vmem:[%s1 + $0x1920] sm:$0xff]
    %v841 = vld [vmem:[%s1 + $0x1928] sm:$0xff]
    %v842 = vld [vmem:[%s1 + $0x1930] sm:$0xff]
    %v843 = vld [vmem:[%s1 + $0x1938] sm:$0xff]
    %v844 = vld [vmem:[%s1 + $0x1940] sm:$0xff]
    %v845 = vld [vmem:[%s1 + $0x1948] sm:$0xff]
    %v846 = vld [vmem:[%s1 + $0x1950] sm:$0xff]
    %v847 = vld [vmem:[%s1 + $0x1958] sm:$0xff]
    %v848 = vld [vmem:[%s1 + $0x1960] sm:$0xff]
    %v849 = vld [vmem:[%s1 + $0x1968] sm:$0xff]
    %v850 = vld [vmem:[%s1 + $0x1970] sm:$0xff]
    %v851 = vld [vmem:[%s1 + $0x1978] sm:$0xff]
    %v852 = vld [vmem:[%s1 + $0x1980] sm:$0xff]
    %v853 = vld [vmem:[%s1 + $0x1988] sm:$0xff]
    %v854 = vld [vmem:[%s1 + $0x1990] sm:$0xff]
    %v855 = vld [vmem:[%s1 + $0x1998] sm:$0xff]
    %v856 = vld [vmem:[%s1 + $0x19a0] sm:$0xff]
    %v857 = vld [vmem:[%s1 + $0x19a8] sm:$0xff]
    %v858 = vld [vmem:[%s1 + $0x19b0] sm:$0xff]
    %v859 = vld [vmem:[%s1 + $0x19b8] sm:$0xff]
    %v860 = vld [vmem:[%s1 + $0x19c0] sm:$0xff]
    %v861 = vld [vmem:[%s1 + $0x19c8] sm:$0xff]
    %v862 = vld [vmem:[%s1 + $0x19d0] sm:$0xff]
    %v863 = vld [vmem:[%s1 + $0x19d8] sm:$0xff]
    %v864 = vld [vmem:[%s1 + $0x19e0] sm:$0xff]
    %v865 = vld [vmem:[%s1 + $0x19e8] sm:$0xff]
    %v866 = vld [vmem:[%s1 + $0x19f0] sm:$0xff]
    %v867 = vld [vmem:[%s1 + $0x19f8] sm:$0xff]
    %v868 = vld [vmem:[%s1 + $0x1a00] sm:$0xff]
    %v869 = vld [vmem:[%s1 + $0x1a08] sm:$0xff]
    %v870 = vld [vmem:[%s1 + $0x1a10] sm:$0xff]
    %v871 = vld [vmem:[%s1 + $0x1a18] sm:$0xff]
    %v872 = vld [vmem:[%s1 + $0x1a20] sm:$0xff]
    %v873 = vld [vmem:[%s1 + $0x1a28] sm:$0xff]
    %v874 = vld [vmem:[%s1 + $0x1a30] sm:$0xff]
    %v875 = vld [vmem:[%s1 + $0x1a38] sm:$0xff]
    %v876 = vld [vmem:[%s1 + $0x1a40] sm:$0xff]
    %v877 = vld [vmem:[%s1 + $0x1a48] sm:$0xff]
    %v878 = vld [vmem:[%s1 + $0x1a50] sm:$0xff]
    %v879 = vld [vmem:[%s1 + $0x1a58] sm:$0xff]
    %v880 = vld [vmem:[%s1 + $0x1a60] sm:$0xff]
    %v881 = vld [vmem:[%s1 + $0x1a68] sm:$0xff]
    %v882 = vld [vmem:[%s1 + $0x1a70] sm:$0xff]
    %v883 = vld [vmem:[%s1 + $0x1a78] sm:$0xff]
    %v884 = vld [vmem:[%s1 + $0x1a80] sm:$0xff]
    %v885 = vld [vmem:[%s1 + $0x1a88] sm:$0xff]
    %v886 = vld [vmem:[%s1 + $0x1a90] sm:$0xff]
    %v887 = vld [vmem:[%s1 + $0x1a98] sm:$0xff]
    %v888 = vld [vmem:[%s1 + $0x1aa0] sm:$0xff]
    %v889 = vld [vmem:[%s1 + $0x1aa8] sm:$0xff]
    %v890 = vld [vmem:[%s1 + $0x1ab0] sm:$0xff]
    %v891 = vld [vmem:[%s1 + $0x1ab8] sm:$0xff]
    %v892 = vld [vmem:[%s1 + $0x1ac0] sm:$0xff]
    %v893 = vld [vmem:[%s1 + $0x1ac8] sm:$0xff]
    %v894 = vld [vmem:[%s1 + $0x1ad0] sm:$0xff]
    %v895 = vld [vmem:[%s1 + $0x1ad8] sm:$0xff]
    %v896 = vld [vmem:[%s1 + $0x1ae0] sm:$0xff]
    %v897 = vld [vmem:[%s1 + $0x1ae8] sm:$0xff]
    %v898 = vld [vmem:[%s1 + $0x1af0] sm:$0xff]
    %v899 = vld [vmem:[%s1 + $0x1af8] sm:$0xff]
    %v900 = vld [vmem:[%s1 + $0x1b00] sm:$0xff]
    %v901 = vld [vmem:[%s1 + $0x1b08] sm:$0xff]
    %v902 = vld [vmem:[%s1 + $0x1b10] sm:$0xff]
    %v903 = vld [vmem:[%s1 + $0x1b18] sm:$0xff]
    %v904 = vld [vmem:[%s1 + $0x1b20] sm:$0xff]
    %v905 = vld [vmem:[%s1 + $0x1b28] sm:$0xff]
    %v906 = vld [vmem:[%s1 + $0x1b30] sm:$0xff]
    %v907 = vld [vmem:[%s1 + $0x1b38] sm:$0xff]
    %v908 = vld [vmem:[%s1 + $0x1b40] sm:$0xff]
    %v909 = vld [vmem:[%s1 + $0x1b48] sm:$0xff]
    %v910 = vld [vmem:[%s1 + $0x1b50] sm:$0xff]
    %v911 = vld [vmem:[%s1 + $0x1b58] sm:$0xff]
    %v912 = vld [vmem:[%s1 + $0x1b60] sm:$0xff]
    %v913 = vld [vmem:[%s1 + $0x1b68] sm:$0xff]
    %v914 = vld [vmem:[%s1 + $0x1b70] sm:$0xff]
    %v915 = vld [vmem:[%s1 + $0x1b78] sm:$0xff]
    %v916 = vld [vmem:[%s1 + $0x1b80] sm:$0xff]
    %v917 = vld [vmem:[%s1 + $0x1b88] sm:$0xff]
    %v918 = vld [vmem:[%s1 + $0x1b90] sm:$0xff]
    %v919 = vld [vmem:[%s1 + $0x1b98] sm:$0xff]
    %v920 = vld [vmem:[%s1 + $0x1ba0] sm:$0xff]
    %v921 = vld [vmem:[%s1 + $0x1ba8] sm:$0xff]
    %v922 = vld [vmem:[%s1 + $0x1bb0] sm:$0xff]
    %v923 = vld [vmem:[%s1 + $0x1bb8] sm:$0xff]
    %v924 = vld [vmem:[%s1 + $0x1bc0] sm:$0xff]
    %v925 = vld [vmem:[%s1 + $0x1bc8] sm:$0xff]
    %v926 = vld [vmem:[%s1 + $0x1bd0] sm:$0xff]
    %v927 = vld [vmem:[%s1 + $0x1bd8] sm:$0xff]
    %v928 = vld [vmem:[%s1 + $0x1be0] sm:$0xff]
    %v929 = vld [vmem:[%s1 + $0x1be8] sm:$0xff]
    %v930 = vld [vmem:[%s1 + $0x1bf0] sm:$0xff]
    %v931 = vld [vmem:[%s1 + $0x1bf8] sm:$0xff]
    %v932 = vld [vmem:[%s1 + $0x1c00] sm:$0xff]
    %v933 = vld [vmem:[%s1 + $0x1c08] sm:$0xff]
    %v934 = vld [vmem:[%s1 + $0x1c10] sm:$0xff]
    %v935 = vld [vmem:[%s1 + $0x1c18] sm:$0xff]
    %v936 = vld [vmem:[%s1 + $0x1c20] sm:$0xff]
    %v937 = vld [vmem:[%s1 + $0x1c28] sm:$0xff]
    %v938 = vld [vmem:[%s1 + $0x1c30] sm:$0xff]
    %v939 = vld [vmem:[%s1 + $0x1c38] sm:$0xff]
    %v940 = vld [vmem:[%s1 + $0x1c40] sm:$0xff]
    %v941 = vld [vmem:[%s1 + $0x1c48] sm:$0xff]
    %v942 = vld [vmem:[%s1 + $0x1c50] sm:$0xff]
    %v943 = vld [vmem:[%s1 + $0x1c58] sm:$0xff]
    %v944 = vld [vmem:[%s1 + $0x1c60] sm:$0xff]
    %v945 = vld [vmem:[%s1 + $0x1c68] sm:$0xff]
    %v946 = vld [vmem:[%s1 + $0x1c70] sm:$0xff]
    %v947 = vld [vmem:[%s1 + $0x1c78] sm:$0xff]
    %v948 = vld [vmem:[%s1 + $0x1c80] sm:$0xff]
    %v949 = vld [vmem:[%s1 + $0x1c88] sm:$0xff]
    %v950 = vld [vmem:[%s1 + $0x1c90] sm:$0xff]
    %v951 = vld [vmem:[%s1 + $0x1c98] sm:$0xff]
    %v952 = vld [vmem:[%s1 + $0x1ca0] sm:$0xff]
    %v953 = vld [vmem:[%s1 + $0x1ca8] sm:$0xff]
    %v954 = vld [vmem:[%s1 + $0x1cb0] sm:$0xff]
    %v955 = vld [vmem:[%s1 + $0x1cb8] sm:$0xff]
    %v956 = vld [vmem:[%s1 + $0x1cc0] sm:$0xff]
    %v957 = vld [vmem:[%s1 + $0x1cc8] sm:$0xff]
    %v958 = vld [vmem:[%s1 + $0x1cd0] sm:$0xff]
    %v959 = vld [vmem:[%s1 + $0x1cd8] sm:$0xff]
    %v960 = vld [vmem:[%s1 + $0x1ce0] sm:$0xff]
    %v961 = vld [vmem:[%s1 + $0x1ce8] sm:$0xff]
    %v962 = vld [vmem:[%s1 + $0x1cf0] sm:$0xff]
    %v963 = vld [vmem:[%s1 + $0x1cf8] sm:$0xff]
    %v964 = vld [vmem:[%s1 + $0x1d00] sm:$0xff]
    %v965 = vld [vmem:[%s1 + $0x1d08] sm:$0xff]
    %v966 = vld [vmem:[%s1 + $0x1d10] sm:$0xff]
    %v967 = vld [vmem:[%s1 + $0x1d18] sm:$0xff]
    %v968 = vld [vmem:[%s1 + $0x1d20] sm:$0xff]
    %v969 = vld [vmem:[%s1 + $0x1d28] sm:$0xff]
    %v970 = vld [vmem:[%s1 + $0x1d30] sm:$0xff]
    %v971 = vld [vmem:[%s1 + $0x1d38] sm:$0xff]
    %v972 = vld [vmem:[%s1 + $0x1d40] sm:$0xff]
    %v973 = vld [vmem:[%s1 + $0x1d48] sm:$0xff]
    %v974 = vld [vmem:[%s1 + $0x1d50] sm:$0xff]
    %v975 = vld [vmem:[%s1 + $0x1d58] sm:$0xff]
    %v976 = vld [vmem:[%s1 + $0x1d60] sm:$0xff]
    %v977 = vld [vmem:[%s1 + $0x1d68] sm:$0xff]
    %v978 = vld [vmem:[%s1 + $0x1d70] sm:$0xff]
    %v979 = vld [vmem:[%s1 + $0x1d78] sm:$0xff]
    %v980 = vld [vmem:[%s1 + $0x1d80] sm:$0xff]
    %v981 = vld [vmem:[%s1 + $0x1d88] sm:$0xff]
    %v982 = vld [vmem:[%s1 + $0x1d90] sm:$0xff]
    %v983 = vld [vmem:[%s1 + $0x1d98] sm:$0xff]
    %v984 = vld [vmem:[%s1 + $0x1da0] sm:$0xff]
    %v985 = vld [vmem:[%s1 + $0x1da8] sm:$0xff]
    %v986 = vld [vmem:[%s1 + $0x1db0] sm:$0xff]
    %v987 = vld [vmem:[%s1 + $0x1db8] sm:$0xff]
    %v988 = vld [vmem:[%s1 + $0x1dc0] sm:$0xff]
    %v989 = vld [vmem:[%s1 + $0x1dc8] sm:$0xff]
    %v990 = vld [vmem:[%s1 + $0x1dd0] sm:$0xff]
    %v991 = vld [vmem:[%s1 + $0x1dd8] sm:$0xff]
    %v992 = vld [vmem:[%s1 + $0x1de0] sm:$0xff]
    %v993 = vld [vmem:[%s1 + $0x1de8] sm:$0xff]
    %v994 = vld [vmem:[%s1 + $0x1df0] sm:$0xff]
    %v995 = vld [vmem:[%s1 + $0x1df8] sm:$0xff]
    %v996 = vld [vmem:[%s1 + $0x1e00] sm:$0xff]
    %v997 = vld [vmem:[%s1 + $0x1e08] sm:$0xff]
    %v998 = vld [vmem:[%s1 + $0x1e10] sm:$0xff]
    %v999 = vld [vmem:[%s1 + $0x1e18] sm:$0xff]
    %v1000 = vld [vmem:[%s1 + $0x1e20] sm:$0xff]
    %v1001 = vld [vmem:[%s1 + $0x1e28] sm:$0xff]
    %v1002 = vld [vmem:[%s1 + $0x1e30] sm:$0xff]
    %v1003 = vld [vmem:[%s1 + $0x1e38] sm:$0xff]
    %v1004 = vld [vmem:[%s1 + $0x1e40] sm:$0xff]
    %v1005 = vld [vmem:[%s1 + $0x1e48] sm:$0xff]
    %v1006 = vld [vmem:[%s1 + $0x1e50] sm:$0xff]
    %v1007 = vld [vmem:[%s1 + $0x1e58] sm:$0xff]
    %v1008 = vld [vmem:[%s1 + $0x1e60] sm:$0xff]
    %v1009 = vld [vmem:[%s1 + $0x1e68] sm:$0xff]
    %v1010 = vld [vmem:[%s1 + $0x1e70] sm:$0xff]
    %v1011 = vld [vmem:[%s1 + $0x1e78] sm:$0xff]
    %v1012 = vld [vmem:[%s1 + $0x1e80] sm:$0xff]
    %v1013 = vld [vmem:[%s1 + $0x1e88] sm:$0xff]
    %v1014 = vld [vmem:[%s1 + $0x1e90] sm:$0xff]
    %v1015 = vld [vmem:[%s1 + $0x1e98] sm:$0xff]
    %v1016 = vld [vmem:[%s1 + $0x1ea0] sm:$0xff]
    %v1017 = vld [vmem:[%s1 + $0x1ea8] sm:$0xff]
    %v1018 = vld [vmem:[%s1 + $0x1eb0] sm:$0xff]
    %v1019 = vld [vmem:[%s1 + $0x1eb8] sm:$0xff]
    %v1020 = vld [vmem:[%s1 + $0x1ec0] sm:$0xff]
    %v1021 = vld [vmem:[%s1 + $0x1ec8] sm:$0xff]
    %v1022 = vld [vmem:[%s1 + $0x1ed0] sm:$0xff]
    %v1023 = vld [vmem:[%s1 + $0x1ed8] sm:$0xff]
    %v1024 = vld [vmem:[%s1 + $0x1ee0] sm:$0xff]
    %v1025 = vld [vmem:[%s1 + $0x1ee8] sm:$0xff]
    %v1026 = vld [vmem:[%s1 + $0x1ef0] sm:$0xff]
    %v1027 = vld [vmem:[%s1 + $0x1ef8] sm:$0xff]
    %v1028 = vld [vmem:[%s1 + $0x1f00] sm:$0xff]
    %v1029 = vld [vmem:[%s1 + $0x1f08] sm:$0xff]
    %v1030 = vld [vmem:[%s1 + $0x1f10] sm:$0xff]
    %v1031 = vld [vmem:[%s1 + $0x1f18] sm:$0xff]
    %v1032 = vld [vmem:[%s1 + $0x1f20] sm:$0xff]
    %v1033 = vld [vmem:[%s1 + $0x1f28] sm:$0xff]
    %v1034 = vld [vmem:[%s1 + $0x1f30] sm:$0xff]
    %v1035 = vld [vmem:[%s1 + $0x1f38] sm:$0xff]
    %v1036 = vld [vmem:[%s1 + $0x1f40] sm:$0xff]
    %v1037 = vld [vmem:[%s1 + $0x1f48] sm:$0xff]
    %v1038 = vld [vmem:[%s1 + $0x1f50] sm:$0xff]
    %v1039 = vld [vmem:[%s1 + $0x1f58] sm:$0xff]
    %v1040 = vld [vmem:[%s1 + $0x1f60] sm:$0xff]
    %v1041 = vld [vmem:[%s1 + $0x1f68] sm:$0xff]
    %v1042 = vld [vmem:[%s1 + $0x1f70] sm:$0xff]
    %v1043 = vld [vmem:[%s1 + $0x1f78] sm:$0xff]
    %v1044 = vld [vmem:[%s1 + $0x1f80] sm:$0xff]
    %v1045 = vld [vmem:[%s1 + $0x1f88] sm:$0xff]
    %v1046 = vld [vmem:[%s1 + $0x1f90] sm:$0xff]
    %v1047 = vld [vmem:[%s1 + $0x1f98] sm:$0xff]
    %v1048 = vld [vmem:[%s1 + $0x1fa0] sm:$0xff]
    %v1049 = vld [vmem:[%s1 + $0x1fa8] sm:$0xff]
    %v1050 = vld [vmem:[%s1 + $0x1fb0] sm:$0xff]
    %v1051 = vld [vmem:[%s1 + $0x1fb8] sm:$0xff]
    %v1052 = vld [vmem:[%s1 + $0x1fc0] sm:$0xff]
    %v1053 = vld [vmem:[%s1 + $0x1fc8] sm:$0xff]
    %v1054 = vld [vmem:[%s1 + $0x1fd0] sm:$0xff]
    %v1055 = vld [vmem:[%s1 + $0x1fd8] sm:$0xff]
    %v1056 = vld [vmem:[%s1 + $0x1fe0] sm:$0xff]
    %v1057 = vld [vmem:[%s1 + $0x1fe8] sm:$0xff]
    %v1058 = vld [vmem:[%s1 + $0x1ff0] sm:$0xff]
    %v1059 = vld [vmem:[%s1 + $0x1ff8] sm:$0xff]
    %v1060 = vld [vmem:[%s1 + $0x2000] sm:$0xff]
    %v1061 = vld [vmem:[%s1 + $0x2008] sm:$0xff]
    %v1062 = vld [vmem:[%s1 + $0x2010] sm:$0xff]
    %v1063 = vld [vmem:[%s1 + $0x2018] sm:$0xff]
    %v1064 = vld [vmem:[%s1 + $0x2020] sm:$0xff]
    %v1065 = vld [vmem:[%s1 + $0x2028] sm:$0xff]
    %v1066 = vld [vmem:[%s1 + $0x2030] sm:$0xff]
    %v1067 = vld [vmem:[%s1 + $0x2038] sm:$0xff]
    %v1068 = vld [vmem:[%s1 + $0x2040] sm:$0xff]
    %v1069 = vld [vmem:[%s1 + $0x2048] sm:$0xff]
    %v1070 = vld [vmem:[%s1 + $0x2050] sm:$0xff]
    %v1071 = vld [vmem:[%s1 + $0x2058] sm:$0xff]
    %v1072 = vld [vmem:[%s1 + $0x2060] sm:$0xff]
    %v1073 = vld [vmem:[%s1 + $0x2068] sm:$0xff]
    %v1074 = vld [vmem:[%s1 + $0x2070] sm:$0xff]
    %v1075 = vld [vmem:[%s1 + $0x2078] sm:$0xff]
    %v1076 = vld [vmem:[%s1 + $0x2080] sm:$0xff]
    %v1077 = vld [vmem:[%s1 + $0x2088] sm:$0xff]
    %v1078 = vld [vmem:[%s1 + $0x2090] sm:$0xff]
    %v1079 = vld [vmem:[%s1 + $0x2098] sm:$0xff]
    %v1080 = vld [vmem:[%s1 + $0x20a0] sm:$0xff]
    %v1081 = vld [vmem:[%s1 + $0x20a8] sm:$0xff]
    %v1082 = vld [vmem:[%s1 + $0x20b0] sm:$0xff]
    %v1083 = vld [vmem:[%s1 + $0x20b8] sm:$0xff]
    %v1084 = vld [vmem:[%s1 + $0x20c0] sm:$0xff]
    %v1085 = vld [vmem:[%s1 + $0x20c8] sm:$0xff]
    %v1086 = vld [vmem:[%s1 + $0x20d0] sm:$0xff]
    %v1087 = vld [vmem:[%s1 + $0x20d8] sm:$0xff]
    %v1088 = vld [vmem:[%s1 + $0x20e0] sm:$0xff]
    %v1089 = vld [vmem:[%s1 + $0x20e8] sm:$0xff]
    %v1090 = vld [vmem:[%s1 + $0x20f0] sm:$0xff]
    %v1091 = vld [vmem:[%s1 + $0x20f8] sm:$0xff]
    %v1092 = vld [vmem:[%s1 + $0x2100] sm:$0xff]
    %v1093 = vld [vmem:[%s1 + $0x2108] sm:$0xff]
    %v1094 = vld [vmem:[%s1 + $0x2110] sm:$0xff]
    %v1095 = vld [vmem:[%s1 + $0x2118] sm:$0xff]
    %v1096 = vld [vmem:[%s1 + $0x2120] sm:$0xff]
    %v1097 = vld [vmem:[%s1 + $0x2128] sm:$0xff]
    %v1098 = vld [vmem:[%s1 + $0x2130] sm:$0xff]
    %v1099 = vld [vmem:[%s1 + $0x2138] sm:$0xff]
    %v1100 = vld [vmem:[%s1 + $0x2140] sm:$0xff]
    %v1101 = vld [vmem:[%s1 + $0x2148] sm:$0xff]
    %v1102 = vld [vmem:[%s1 + $0x2150] sm:$0xff]
    %v1103 = vld [vmem:[%s1 + $0x2158] sm:$0xff]
    %v1104 = vld [vmem:[%s1 + $0x2160] sm:$0xff]
    %v1105 = vld [vmem:[%s1 + $0x2168] sm:$0xff]
    %v1106 = vld [vmem:[%s1 + $0x2170] sm:$0xff]
    %v1107 = vld [vmem:[%s1 + $0x2178] sm:$0xff]
    %v1108 = vld [vmem:[%s1 + $0x2180] sm:$0xff]
    %v1109 = vld [vmem:[%s1 + $0x2188] sm:$0xff]
    %v1110 = vld [vmem:[%s1 + $0x2190] sm:$0xff]
    %v1111 = vld [vmem:[%s1 + $0x2198] sm:$0xff]
    %v1112 = vld [vmem:[%s1 + $0x21a0] sm:$0xff]
    %v1113 = vld [vmem:[%s1 + $0x21a8] sm:$0xff]
    %v1114 = vld [vmem:[%s1 + $0x21b0] sm:$0xff]
    %v1115 = vld [vmem:[%s1 + $0x21b8] sm:$0xff]
    %v1116 = vld [vmem:[%s1 + $0x21c0] sm:$0xff]
    %v1117 = vld [vmem:[%s1 + $0x21c8] sm:$0xff]
    %v1118 = vld [vmem:[%s1 + $0x21d0] sm:$0xff]
    %v1119 = vld [vmem:[%s1 + $0x21d8] sm:$0xff]
    %v1120 = vld [vmem:[%s1 + $0x21e0] sm:$0xff]
    %v1121 = vld [vmem:[%s1 + $0x21e8] sm:$0xff]
    %v1122 = vld [vmem:[%s1 + $0x21f0] sm:$0xff]
    %v1123 = vld [vmem:[%s1 + $0x21f8] sm:$0xff]
    %v1124 = vld [vmem:[%s1 + $0x2200] sm:$0xff]
    %v1125 = vld [vmem:[%s1 + $0x2208] sm:$0xff]
    %v1126 = vld [vmem:[%s1 + $0x2210] sm:$0xff]
    %v1127 = vld [vmem:[%s1 + $0x2218] sm:$0xff]
    %v1128 = vld [vmem:[%s1 + $0x2220] sm:$0xff]
    %v1129 = vld [vmem:[%s1 + $0x2228] sm:$0xff]
    %v1130 = vld [vmem:[%s1 + $0x2230] sm:$0xff]
    %v1131 = vld [vmem:[%s1 + $0x2238] sm:$0xff]
    %v1132 = vld [vmem:[%s1 + $0x2240] sm:$0xff]
    %v1133 = vld [vmem:[%s1 + $0x2248] sm:$0xff]
    %v1134 = vld [vmem:[%s1 + $0x2250] sm:$0xff]
    %v1135 = vld [vmem:[%s1 + $0x2258] sm:$0xff]
    %v1136 = vld [vmem:[%s1 + $0x2260] sm:$0xff]
    %v1137 = vld [vmem:[%s1 + $0x2268] sm:$0xff]
    %v1138 = vld [vmem:[%s1 + $0x2270] sm:$0xff]
    %v1139 = vld [vmem:[%s1 + $0x2278] sm:$0xff]
    %v1140 = vld [vmem:[%s1 + $0x2280] sm:$0xff]
    %v1141 = vld [vmem:[%s1 + $0x2288] sm:$0xff]
    %v1142 = vld [vmem:[%s1 + $0x2290] sm:$0xff]
    %v1143 = vld [vmem:[%s1 + $0x2298] sm:$0xff]
    %v1144 = vld [vmem:[%s1 + $0x22a0] sm:$0xff]
    %v1145 = vld [vmem:[%s1 + $0x22a8] sm:$0xff]
    %v1146 = vld [vmem:[%s1 + $0x22b0] sm:$0xff]
    %v1147 = vld [vmem:[%s1 + $0x22b8] sm:$0xff]
    %v1148 = vld [vmem:[%s1 + $0x22c0] sm:$0xff]
    %v1149 = vld [vmem:[%s1 + $0x22c8] sm:$0xff]
    %v1150 = vld [vmem:[%s1 + $0x22d0] sm:$0xff]
    %v1151 = vld [vmem:[%s1 + $0x22d8] sm:$0xff]
    %v1152 = vld [vmem:[%s1 + $0x22e0] sm:$0xff]
    %v1153 = vld [vmem:[%s1 + $0x22e8] sm:$0xff]
    %v1154 = vld [vmem:[%s1 + $0x22f0] sm:$0xff]
    %v1155 = vld [vmem:[%s1 + $0x22f8] sm:$0xff]
    %v1156 = vld [vmem:[%s1 + $0x2300] sm:$0xff]
    %v1157 = vld [vmem:[%s1 + $0x2308] sm:$0xff]
    %v1158 = vld [vmem:[%s1 + $0x2310] sm:$0xff]
    %v1159 = vld [vmem:[%s1 + $0x2318] sm:$0xff]
    %v1160 = vld [vmem:[%s1 + $0x2320] sm:$0xff]
    %v1161 = vld [vmem:[%s1 + $0x2328] sm:$0xff]
    %v1162 = vld [vmem:[%s1 + $0x2330] sm:$0xff]
    %v1163 = vld [vmem:[%s1 + $0x2338] sm:$0xff]
    %v1164 = vld [vmem:[%s1 + $0x2340] sm:$0xff]
    %v1165 = vld [vmem:[%s1 + $0x2348] sm:$0xff]
    %v1166 = vld [vmem:[%s1 + $0x2350] sm:$0xff]
    %v1167 = vld [vmem:[%s1 + $0x2358] sm:$0xff]
    %v1168 = vld [vmem:[%s1 + $0x2360] sm:$0xff]
    %v1169 = vld [vmem:[%s1 + $0x2368] sm:$0xff]
    %v1170 = vld [vmem:[%s1 + $0x2370] sm:$0xff]
    %v1171 = vld [vmem:[%s1 + $0x2378] sm:$0xff]
    %v1172 = vld [vmem:[%s1 + $0x2380] sm:$0xff]
    %v1173 = vld [vmem:[%s1 + $0x2388] sm:$0xff]
    %v1174 = vld [vmem:[%s1 + $0x2390] sm:$0xff]
    %v1175 = vld [vmem:[%s1 + $0x2398] sm:$0xff]
    %v1176 = vld [vmem:[%s1 + $0x23a0] sm:$0xff]
    %v1177 = vld [vmem:[%s1 + $0x23a8] sm:$0xff]
    %v1178 = vld [vmem:[%s1 + $0x23b0] sm:$0xff]
    %v1179 = vld [vmem:[%s1 + $0x23b8] sm:$0xff]
    %v1180 = vld [vmem:[%s1 + $0x23c0] sm:$0xff]
    %v1181 = vld [vmem:[%s1 + $0x23c8] sm:$0xff]
    %v1182 = vld [vmem:[%s1 + $0x23d0] sm:$0xff]
    %v1183 = vld [vmem:[%s1 + $0x23d8] sm:$0xff]
    %v1184 = vld [vmem:[%s1 + $0x23e0] sm:$0xff]
    %v1185 = vld [vmem:[%s1 + $0x23e8] sm:$0xff]
    %v1186 = vld [vmem:[%s1 + $0x23f0] sm:$0xff]
    %v1187 = vld [vmem:[%s1 + $0x23f8] sm:$0xff]
    %v1188 = vld [vmem:[%s1 + $0x2400] sm:$0xff]
    %v1189 = vld [vmem:[%s1 + $0x2408] sm:$0xff]
    %v1190 = vld [vmem:[%s1 + $0x2410] sm:$0xff]
    %v1191 = vld [vmem:[%s1 + $0x2418] sm:$0xff]
    %v1192 = vld [vmem:[%s1 + $0x2420] sm:$0xff]
    %v1193 = vld [vmem:[%s1 + $0x2428] sm:$0xff]
    %v1194 = vld [vmem:[%s1 + $0x2430] sm:$0xff]
    %v1195 = vld [vmem:[%s1 + $0x2438] sm:$0xff]
    %v1196 = vld [vmem:[%s1 + $0x2440] sm:$0xff]
    %v1197 = vld [vmem:[%s1 + $0x2448] sm:$0xff]
    %v1198 = vld [vmem:[%s1 + $0x2450] sm:$0xff]
    %v1199 = vld [vmem:[%s1 + $0x2458] sm:$0xff]
    %v1200 = vld [vmem:[%s1 + $0x2460] sm:$0xff]
    %v1201 = vld [vmem:[%s1 + $0x2468] sm:$0xff]
    %v1202 = vld [vmem:[%s1 + $0x2470] sm:$0xff]
    %v1203 = vld [vmem:[%s1 + $0x2478] sm:$0xff]
    %v1204 = vld [vmem:[%s1 + $0x2480] sm:$0xff]
    %v1205 = vld [vmem:[%s1 + $0x2488] sm:$0xff]
    %v1206 = vld [vmem:[%s1 + $0x2490] sm:$0xff]
    %v1207 = vld [vmem:[%s1 + $0x2498] sm:$0xff]
    %v1208 = vld [vmem:[%s1 + $0x24a0] sm:$0xff]
    %v1209 = vld [vmem:[%s1 + $0x24a8] sm:$0xff]
    %v1210 = vld [vmem:[%s1 + $0x24b0] sm:$0xff]
    %v1211 = vld [vmem:[%s1 + $0x24b8] sm:$0xff]
    %v1212 = vld [vmem:[%s1 + $0x24c0] sm:$0xff]
    %v1213 = vld [vmem:[%s1 + $0x24c8] sm:$0xff]
    %v1214 = vld [vmem:[%s1 + $0x24d0] sm:$0xff]
    %v1215 = vld [vmem:[%s1 + $0x24d8] sm:$0xff]
    %v1216 = vld [vmem:[%s1 + $0x24e0] sm:$0xff]
    %v1217 = vld [vmem:[%s1 + $0x24e8] sm:$0xff]
    %v1218 = vld [vmem:[%s1 + $0x24f0] sm:$0xff]
    %v1219 = vld [vmem:[%s1 + $0x24f8] sm:$0xff]
    %v1220 = vld [vmem:[%s1 + $0x2500] sm:$0xff]
    %v1221 = vld [vmem:[%s1 + $0x2508] sm:$0xff]
    %v1222 = vld [vmem:[%s1 + $0x2510] sm:$0xff]
    %v1223 = vld [vmem:[%s1 + $0x2518] sm:$0xff]
    %v1224 = vld [vmem:[%s1 + $0x2520] sm:$0xff]
    %v1225 = vld [vmem:[%s1 + $0x2528] sm:$0xff]
    %v1226 = vld [vmem:[%s1 + $0x2530] sm:$0xff]
    %v1227 = vld [vmem:[%s1 + $0x2538] sm:$0xff]
    %v1228 = vld [vmem:[%s1 + $0x2540] sm:$0xff]
    %v1229 = vld [vmem:[%s1 + $0x2548] sm:$0xff]
    %v1230 = vld [vmem:[%s1 + $0x2550] sm:$0xff]
    %v1231 = vld [vmem:[%s1 + $0x2558] sm:$0xff]
    %v1232 = vld [vmem:[%s1 + $0x2560] sm:$0xff]
    %v1233 = vld [vmem:[%s1 + $0x2568] sm:$0xff]
    %v1234 = vld [vmem:[%s1 + $0x2570] sm:$0xff]
    %v1235 = vld [vmem:[%s1 + $0x2578] sm:$0xff]
    %v1236 = vld [vmem:[%s1 + $0x2580] sm:$0xff]
    %v1237 = vld [vmem:[%s1 + $0x2588] sm:$0xff]
    %v1238 = vld [vmem:[%s1 + $0x2590] sm:$0xff]
    %v1239 = vld [vmem:[%s1 + $0x2598] sm:$0xff]
    %v1240 = vld [vmem:[%s1 + $0x25a0] sm:$0xff]
    %v1241 = vld [vmem:[%s1 + $0x25a8] sm:$0xff]
    %v1242 = vld [vmem:[%s1 + $0x25b0] sm:$0xff]
    %v1243 = vld [vmem:[%s1 + $0x25b8] sm:$0xff]
    %v1244 = vld [vmem:[%s1 + $0x25c0] sm:$0xff]
    %v1245 = vld [vmem:[%s1 + $0x25c8] sm:$0xff]
    %v1246 = vld [vmem:[%s1 + $0x25d0] sm:$0xff]
    %v1247 = vld [vmem:[%s1 + $0x25d8] sm:$0xff]
    %v1248 = vld [vmem:[%s1 + $0x25e0] sm:$0xff]
    %v1249 = vld [vmem:[%s1 + $0x25e8] sm:$0xff]
    %v1250 = vld [vmem:[%s1 + $0x25f0] sm:$0xff]
    %v1251 = vld [vmem:[%s1 + $0x25f8] sm:$0xff]
    %v1252 = vld [vmem:[%s1 + $0x2600] sm:$0xff]
    %v1253 = vld [vmem:[%s1 + $0x2608] sm:$0xff]
    %v1254 = vld [vmem:[%s1 + $0x2610] sm:$0xff]
    %v1255 = vld [vmem:[%s1 + $0x2618] sm:$0xff]
    %v1256 = vld [vmem:[%s1 + $0x2620] sm:$0xff]
    %v1257 = vld [vmem:[%s1 + $0x2628] sm:$0xff]
    %v1258 = vld [vmem:[%s1 + $0x2630] sm:$0xff]
    %v1259 = vld [vmem:[%s1 + $0x2638] sm:$0xff]
    %v1260 = vld [vmem:[%s1 + $0x2640] sm:$0xff]
    %v1261 = vld [vmem:[%s1 + $0x2648] sm:$0xff]
    %v1262 = vld [vmem:[%s1 + $0x2650] sm:$0xff]
    %v1263 = vld [vmem:[%s1 + $0x2658] sm:$0xff]
    %v1264 = vld [vmem:[%s1 + $0x2660] sm:$0xff]
    %v1265 = vld [vmem:[%s1 + $0x2668] sm:$0xff]
    %v1266 = vld [vmem:[%s1 + $0x2670] sm:$0xff]
    %v1267 = vld [vmem:[%s1 + $0x2678] sm:$0xff]
    %v1268 = vld [vmem:[%s1 + $0x2680] sm:$0xff]
    %v1269 = vld [vmem:[%s1 + $0x2688] sm:$0xff]
    %v1270 = vld [vmem:[%s1 + $0x2690] sm:$0xff]
    %v1271 = vld [vmem:[%s1 + $0x2698] sm:$0xff]
    %v1272 = vld [vmem:[%s1 + $0x26a0] sm:$0xff]
    %v1273 = vld [vmem:[%s1 + $0x26a8] sm:$0xff]
    %v1274 = vld [vmem:[%s1 + $0x26b0] sm:$0xff]
    %v1275 = vld [vmem:[%s1 + $0x26b8] sm:$0xff]
    %v1276 = vld [vmem:[%s1 + $0x26c0] sm:$0xff]
    %v1277 = vld [vmem:[%s1 + $0x26c8] sm:$0xff]
    %v1278 = vld [vmem:[%s1 + $0x26d0] sm:$0xff]
    %v1279 = vld [vmem:[%s1 + $0x26d8] sm:$0xff]
    %v1280 = vld [vmem:[%s1 + $0x26e0] sm:$0xff]
    %v1281 = vld [vmem:[%s1 + $0x26e8] sm:$0xff]
    %v1282 = vld [vmem:[%s1 + $0x26f0] sm:$0xff]
    %v1283 = vld [vmem:[%s1 + $0x26f8] sm:$0xff]
    %v1284 = vld [vmem:[%s1 + $0x2700] sm:$0xff]
    %v1285 = vld [vmem:[%s1 + $0x2708] sm:$0xff]
    %v1286 = vld [vmem:[%s1 + $0x2710] sm:$0xff]
    %v1287 = vld [vmem:[%s1 + $0x2718] sm:$0xff]
    %v1288 = vld [vmem:[%s1 + $0x2720] sm:$0xff]
    %v1289 = vld [vmem:[%s1 + $0x2728] sm:$0xff]
    %v1290 = vld [vmem:[%s1 + $0x2730] sm:$0xff]
    %v1291 = vld [vmem:[%s1 + $0x2738] sm:$0xff]
    %v1292 = vld [vmem:[%s1 + $0x2740] sm:$0xff]
    %v1293 = vld [vmem:[%s1 + $0x2748] sm:$0xff]
    %v1294 = vld [vmem:[%s1 + $0x2750] sm:$0xff]
    %v1295 = vld [vmem:[%s1 + $0x2758] sm:$0xff]
    %v1296 = vld [vmem:[%s1 + $0x2760] sm:$0xff]
    %v1297 = vld [vmem:[%s1 + $0x2768] sm:$0xff]
    %v1298 = vld [vmem:[%s1 + $0x2770] sm:$0xff]
    %v1299 = vld [vmem:[%s1 + $0x2778] sm:$0xff]
    %v1300 = vld [vmem:[%s1 + $0x2780] sm:$0xff]
    %v1301 = vld [vmem:[%s1 + $0x2788] sm:$0xff]
    %v1302 = vld [vmem:[%s1 + $0x2790] sm:$0xff]
    %v1303 = vld [vmem:[%s1 + $0x2798] sm:$0xff]
    %v1304 = vld [vmem:[%s1 + $0x27a0] sm:$0xff]
    %v1305 = vld [vmem:[%s1 + $0x27a8] sm:$0xff]
    %v1306 = vld [vmem:[%s1 + $0x27b0] sm:$0xff]
    %v1307 = vld [vmem:[%s1 + $0x27b8] sm:$0xff]
    %v1308 = vld [vmem:[%s1 + $0x27c0] sm:$0xff]
    %v1309 = vld [vmem:[%s1 + $0x27c8] sm:$0xff]
    %v1310 = vld [vmem:[%s1 + $0x27d0] sm:$0xff]
    %v1311 = vld [vmem:[%s1 + $0x27d8] sm:$0xff]
    %v1312 = vld [vmem:[%s1 + $0x27e0] sm:$0xff]
    %v1313 = vld [vmem:[%s1 + $0x27e8] sm:$0xff]
    %v1314 = vld [vmem:[%s1 + $0x27f0] sm:$0xff]
    %v1315 = vld [vmem:[%s1 + $0x27f8] sm:$0xff]
    %v1316 = vld [vmem:[%s1 + $0x2800] sm:$0xff]
    %v1317 = vld [vmem:[%s1 + $0x2808] sm:$0xff]
    %v1318 = vld [vmem:[%s1 + $0x2810] sm:$0xff]
    %v1319 = vld [vmem:[%s1 + $0x2818] sm:$0xff]
    %v1320 = vld [vmem:[%s1 + $0x2820] sm:$0xff]
    %v1321 = vld [vmem:[%s1 + $0x2828] sm:$0xff]
    %v1322 = vld [vmem:[%s1 + $0x2830] sm:$0xff]
    %v1323 = vld [vmem:[%s1 + $0x2838] sm:$0xff]
    %v1324 = vld [vmem:[%s1 + $0x2840] sm:$0xff]
    %v1325 = vld [vmem:[%s1 + $0x2848] sm:$0xff]
    %v1326 = vld [vmem:[%s1 + $0x2850] sm:$0xff]
    %v1327 = vld [vmem:[%s1 + $0x2858] sm:$0xff]
    %v1328 = vld [vmem:[%s1 + $0x2860] sm:$0xff]
    %v1329 = vld [vmem:[%s1 + $0x2868] sm:$0xff]
    %v1330 = vld [vmem:[%s1 + $0x2870] sm:$0xff]
    %v1331 = vld [vmem:[%s1 + $0x2878] sm:$0xff]
    %v1332 = vld [vmem:[%s1 + $0x2880] sm:$0xff]
    %v1333 = vld [vmem:[%s1 + $0x2888] sm:$0xff]
    %v1334 = vld [vmem:[%s1 + $0x2890] sm:$0xff]
    %v1335 = vld [vmem:[%s1 + $0x2898] sm:$0xff]
    %v1336 = vld [vmem:[%s1 + $0x28a0] sm:$0xff]
    %v1337 = vld [vmem:[%s1 + $0x28a8] sm:$0xff]
    %v1338 = vld [vmem:[%s1 + $0x28b0] sm:$0xff]
    %v1339 = vld [vmem:[%s1 + $0x28b8] sm:$0xff]
    %v1340 = vld [vmem:[%s1 + $0x28c0] sm:$0xff]
    %v1341 = vld [vmem:[%s1 + $0x28c8] sm:$0xff]
    %v1342 = vld [vmem:[%s1 + $0x28d0] sm:$0xff]
    %v1343 = vld [vmem:[%s1 + $0x28d8] sm:$0xff]
    %v1344 = vld [vmem:[%s1 + $0x28e0] sm:$0xff]
    %v1345 = vld [vmem:[%s1 + $0x28e8] sm:$0xff]
    %v1346 = vld [vmem:[%s1 + $0x28f0] sm:$0xff]
    %v1347 = vld [vmem:[%s1 + $0x28f8] sm:$0xff]
    %v1348 = vld [vmem:[%s1 + $0x2900] sm:$0xff]
    %v1349 = vld [vmem:[%s1 + $0x2908] sm:$0xff]
    %v1350 = vld [vmem:[%s1 + $0x2910] sm:$0xff]
    %v1351 = vld [vmem:[%s1 + $0x2918] sm:$0xff]
    %v1352 = vld [vmem:[%s1 + $0x2920] sm:$0xff]
    %v1353 = vld [vmem:[%s1 + $0x2928] sm:$0xff]
    %v1354 = vld [vmem:[%s1 + $0x2930] sm:$0xff]
    %v1355 = vld [vmem:[%s1 + $0x2938] sm:$0xff]
    %v1356 = vld [vmem:[%s1 + $0x2940] sm:$0xff]
    %v1357 = vld [vmem:[%s1 + $0x2948] sm:$0xff]
    %v1358 = vld [vmem:[%s1 + $0x2950] sm:$0xff]
    %v1359 = vld [vmem:[%s1 + $0x2958] sm:$0xff]
    %v1360 = vld [vmem:[%s1 + $0x2960] sm:$0xff]
    %v1361 = vld [vmem:[%s1 + $0x2968] sm:$0xff]
    %v1362 = vld [vmem:[%s1 + $0x2970] sm:$0xff]
    %v1363 = vld [vmem:[%s1 + $0x2978] sm:$0xff]
    %v1364 = vld [vmem:[%s1 + $0x2980] sm:$0xff]
    %v1365 = vld [vmem:[%s1 + $0x2988] sm:$0xff]
    %v1366 = vld [vmem:[%s1 + $0x2990] sm:$0xff]
    %v1367 = vld [vmem:[%s1 + $0x2998] sm:$0xff]
    %v1368 = vld [vmem:[%s1 + $0x29a0] sm:$0xff]
    %v1369 = vld [vmem:[%s1 + $0x29a8] sm:$0xff]
    %v1370 = vld [vmem:[%s1 + $0x29b0] sm:$0xff]
    %v1371 = vld [vmem:[%s1 + $0x29b8] sm:$0xff]
    %v1372 = vld [vmem:[%s1 + $0x29c0] sm:$0xff]
    %v1373 = vld [vmem:[%s1 + $0x29c8] sm:$0xff]
    %v1374 = vld [vmem:[%s1 + $0x29d0] sm:$0xff]
    %v1375 = vld [vmem:[%s1 + $0x29d8] sm:$0xff]
    %v1376 = vld [vmem:[%s1 + $0x29e0] sm:$0xff]
    %v1377 = vld [vmem:[%s1 + $0x29e8] sm:$0xff]
    %v1378 = vld [vmem:[%s1 + $0x29f0] sm:$0xff]
    %v1379 = vld [vmem:[%s1 + $0x29f8] sm:$0xff]
    %v1380 = vld [vmem:[%s1 + $0x2a00] sm:$0xff]
    %v1381 = vld [vmem:[%s1 + $0x2a08] sm:$0xff]
    %v1382 = vld [vmem:[%s1 + $0x2a10] sm:$0xff]
    %v1383 = vld [vmem:[%s1 + $0x2a18] sm:$0xff]
    %v1384 = vld [vmem:[%s1 + $0x2a20] sm:$0xff]
    %v1385 = vld [vmem:[%s1 + $0x2a28] sm:$0xff]
    %v1386 = vld [vmem:[%s1 + $0x2a30] sm:$0xff]
    %v1387 = vld [vmem:[%s1 + $0x2a38] sm:$0xff]
    %v1388 = vld [vmem:[%s1 + $0x2a40] sm:$0xff]
    %v1389 = vld [vmem:[%s1 + $0x2a48] sm:$0xff]
    %v1390 = vld [vmem:[%s1 + $0x2a50] sm:$0xff]
    %v1391 = vld [vmem:[%s1 + $0x2a58] sm:$0xff]
    %v1392 = vld [vmem:[%s1 + $0x2a60] sm:$0xff]
    %v1393 = vld [vmem:[%s1 + $0x2a68] sm:$0xff]
    %v1394 = vld [vmem:[%s1 + $0x2a70] sm:$0xff]
    %v1395 = vld [vmem:[%s1 + $0x2a78] sm:$0xff]
    %v1396 = vld [vmem:[%s1 + $0x2a80] sm:$0xff]
    %v1397 = vld [vmem:[%s1 + $0x2a88] sm:$0xff]
    %v1398 = vld [vmem:[%s1 + $0x2a90] sm:$0xff]
    %v1399 = vld [vmem:[%s1 + $0x2a98] sm:$0xff]
    %v1400 = vld [vmem:[%s1 + $0x2aa0] sm:$0xff]
    %v1401 = vld [vmem:[%s1 + $0x2aa8] sm:$0xff]
    %v1402 = vld [vmem:[%s1 + $0x2ab0] sm:$0xff]
    %v1403 = vld [vmem:[%s1 + $0x2ab8] sm:$0xff]
    %v1404 = vld [vmem:[%s1 + $0x2ac0] sm:$0xff]
    %v1405 = vld [vmem:[%s1 + $0x2ac8] sm:$0xff]
    %v1406 = vld [vmem:[%s1 + $0x2ad0] sm:$0xff]
    %v1407 = vld [vmem:[%s1 + $0x2ad8] sm:$0xff]
    %v1408 = vld [vmem:[%s1 + $0x2ae0] sm:$0xff]
    %v1409 = vld [vmem:[%s1 + $0x2ae8] sm:$0xff]
    %v1410 = vld [vmem:[%s1 + $0x2af0] sm:$0xff]
    %v1411 = vld [vmem:[%s1 + $0x2af8] sm:$0xff]
    %v1412 = vld [vmem:[%s1 + $0x2b00] sm:$0xff]
    %v1413 = vld [vmem:[%s1 + $0x2b08] sm:$0xff]
    %v1414 = vld [vmem:[%s1 + $0x2b10] sm:$0xff]
    %v1415 = vld [vmem:[%s1 + $0x2b18] sm:$0xff]
    %v1416 = vld [vmem:[%s1 + $0x2b20] sm:$0xff]
    %v1417 = vld [vmem:[%s1 + $0x2b28] sm:$0xff]
    %v1418 = vld [vmem:[%s1 + $0x2b30] sm:$0xff]
    %v1419 = vld [vmem:[%s1 + $0x2b38] sm:$0xff]
    %v1420 = vld [vmem:[%s1 + $0x2b40] sm:$0xff]
    %v1421 = vld [vmem:[%s1 + $0x2b48] sm:$0xff]
    %v1422 = vld [vmem:[%s1 + $0x2b50] sm:$0xff]
    %v1423 = vld [vmem:[%s1 + $0x2b58] sm:$0xff]
    %v1424 = vld [vmem:[%s1 + $0x2b60] sm:$0xff]
    %v1425 = vld [vmem:[%s1 + $0x2b68] sm:$0xff]
    %v1426 = vld [vmem:[%s1 + $0x2b70] sm:$0xff]
    %v1427 = vld [vmem:[%s1 + $0x2b78] sm:$0xff]
    %v1428 = vld [vmem:[%s1 + $0x2b80] sm:$0xff]
    %v1429 = vld [vmem:[%s1 + $0x2b88] sm:$0xff]
    %v1430 = vld [vmem:[%s1 + $0x2b90] sm:$0xff]
    %v1431 = vld [vmem:[%s1 + $0x2b98] sm:$0xff]
    %v1432 = vld [vmem:[%s1 + $0x2ba0] sm:$0xff]
    %v1433 = vld [vmem:[%s1 + $0x2ba8] sm:$0xff]
    %v1434 = vld [vmem:[%s1 + $0x2bb0] sm:$0xff]
    %v1435 = vld [vmem:[%s1 + $0x2bb8] sm:$0xff]
    %v1436 = vld [vmem:[%s1 + $0x2bc0] sm:$0xff]
    %v1437 = vld [vmem:[%s1 + $0x2bc8] sm:$0xff]
    %v1438 = vld [vmem:[%s1 + $0x2bd0] sm:$0xff]
    %v1439 = vld [vmem:[%s1 + $0x2bd8] sm:$0xff]
    %v1440 = vld [vmem:[%s1 + $0x2be0] sm:$0xff]
    %v1441 = vld [vmem:[%s1 + $0x2be8] sm:$0xff]
    %v1442 = vld [vmem:[%s1 + $0x2bf0] sm:$0xff]
    %v1443 = vld [vmem:[%s1 + $0x2bf8] sm:$0xff]
    %v1444 = vld [vmem:[%s1 + $0x2c00] sm:$0xff]
    %v1445 = vld [vmem:[%s1 + $0x2c08] sm:$0xff]
    %v1446 = vld [vmem:[%s1 + $0x2c10] sm:$0xff]
    %v1447 = vld [vmem:[%s1 + $0x2c18] sm:$0xff]
    %v1448 = vld [vmem:[%s1 + $0x2c20] sm:$0xff]
    %v1449 = vld [vmem:[%s1 + $0x2c28] sm:$0xff]
    %v1450 = vld [vmem:[%s1 + $0x2c30] sm:$0xff]
    %v1451 = vld [vmem:[%s1 + $0x2c38] sm:$0xff]
    %v1452 = vld [vmem:[%s1 + $0x2c40] sm:$0xff]
    %v1453 = vld [vmem:[%s1 + $0x2c48] sm:$0xff]
    %v1454 = vld [vmem:[%s1 + $0x2c50] sm:$0xff]
    %v1455 = vld [vmem:[%s1 + $0x2c58] sm:$0xff]
    %v1456 = vld [vmem:[%s1 + $0x2c60] sm:$0xff]
    %v1457 = vld [vmem:[%s1 + $0x2c68] sm:$0xff]
    %v1458 = vld [vmem:[%s1 + $0x2c70] sm:$0xff]
    %v1459 = vld [vmem:[%s1 + $0x2c78] sm:$0xff]
    %v1460 = vld [vmem:[%s1 + $0x2c80] sm:$0xff]
    %v1461 = vld [vmem:[%s1 + $0x2c88] sm:$0xff]
    %v1462 = vld [vmem:[%s1 + $0x2c90] sm:$0xff]
    %v1463 = vld [vmem:[%s1 + $0x2c98] sm:$0xff]
    %v1464 = vld [vmem:[%s1 + $0x2ca0] sm:$0xff]
    %v1465 = vld [vmem:[%s1 + $0x2ca8] sm:$0xff]
    %v1466 = vld [vmem:[%s1 + $0x2cb0] sm:$0xff]
    %v1467 = vld [vmem:[%s1 + $0x2cb8] sm:$0xff]
    %v1468 = vld [vmem:[%s1 + $0x2cc0] sm:$0xff]
    %v1469 = vld [vmem:[%s1 + $0x2cc8] sm:$0xff]
    %v1470 = vld [vmem:[%s1 + $0x2cd0] sm:$0xff]
    %v1471 = vld [vmem:[%s1 + $0x2cd8] sm:$0xff]
    %v1472 = vld [vmem:[%s1 + $0x2ce0] sm:$0xff]
    %v1473 = vld [vmem:[%s1 + $0x2ce8] sm:$0xff]
    %v1474 = vld [vmem:[%s1 + $0x2cf0] sm:$0xff]
    %v1475 = vld [vmem:[%s1 + $0x2cf8] sm:$0xff]
    %v1476 = vld [vmem:[%s1 + $0x2d00] sm:$0xff]
    %v1477 = vld [vmem:[%s1 + $0x2d08] sm:$0xff]
    %v1478 = vld [vmem:[%s1 + $0x2d10] sm:$0xff]
    %v1479 = vld [vmem:[%s1 + $0x2d18] sm:$0xff]
    %v1480 = vld [vmem:[%s1 + $0x2d20] sm:$0xff]
    %v1481 = vld [vmem:[%s1 + $0x2d28] sm:$0xff]
    %v1482 = vld [vmem:[%s1 + $0x2d30] sm:$0xff]
    %v1483 = vld [vmem:[%s1 + $0x2d38] sm:$0xff]
    %v1484 = vld [vmem:[%s1 + $0x2d40] sm:$0xff]
    %v1485 = vld [vmem:[%s1 + $0x2d48] sm:$0xff]
    %v1486 = vld [vmem:[%s1 + $0x2d50] sm:$0xff]
    %v1487 = vld [vmem:[%s1 + $0x2d58] sm:$0xff]
    %v1488 = vld [vmem:[%s1 + $0x2d60] sm:$0xff]
    %v1489 = vld [vmem:[%s1 + $0x2d68] sm:$0xff]
    %v1490 = vld [vmem:[%s1 + $0x2d70] sm:$0xff]
    %v1491 = vld [vmem:[%s1 + $0x2d78] sm:$0xff]
    %v1492 = vld [vmem:[%s1 + $0x2d80] sm:$0xff]
    %v1493 = vld [vmem:[%s1 + $0x2d88] sm:$0xff]
    %v1494 = vld [vmem:[%s1 + $0x2d90] sm:$0xff]
    %v1495 = vld [vmem:[%s1 + $0x2d98] sm:$0xff]
    %v1496 = vld [vmem:[%s1 + $0x2da0] sm:$0xff]
    %v1497 = vld [vmem:[%s1 + $0x2da8] sm:$0xff]
    %v1498 = vld [vmem:[%s1 + $0x2db0] sm:$0xff]
    %v1499 = vld [vmem:[%s1 + $0x2db8] sm:$0xff]
    %v1500 = vld [vmem:[%s1 + $0x2dc0] sm:$0xff]
    %v1501 = vld [vmem:[%s1 + $0x2dc8] sm:$0xff]
    %v1502 = vld [vmem:[%s1 + $0x2dd0] sm:$0xff]
    %v1503 = vld [vmem:[%s1 + $0x2dd8] sm:$0xff]
    %v1504 = vld [vmem:[%s1 + $0x2de0] sm:$0xff]
    %v1505 = vld [vmem:[%s1 + $0x2de8] sm:$0xff]
    %v1506 = vld [vmem:[%s1 + $0x2df0] sm:$0xff]
    %v1507 = vld [vmem:[%s1 + $0x2df8] sm:$0xff]
    %v1508 = vld [vmem:[%s1 + $0x2e00] sm:$0xff]
    %v1509 = vld [vmem:[%s1 + $0x2e08] sm:$0xff]
    %v1510 = vld [vmem:[%s1 + $0x2e10] sm:$0xff]
    %v1511 = vld [vmem:[%s1 + $0x2e18] sm:$0xff]
    %v1512 = vld [vmem:[%s1 + $0x2e20] sm:$0xff]
    %v1513 = vld [vmem:[%s1 + $0x2e28] sm:$0xff]
    %v1514 = vld [vmem:[%s1 + $0x2e30] sm:$0xff]
    %v1515 = vld [vmem:[%s1 + $0x2e38] sm:$0xff]
    %v1516 = vld [vmem:[%s1 + $0x2e40] sm:$0xff]
    %v1517 = vld [vmem:[%s1 + $0x2e48] sm:$0xff]
    %v1518 = vld [vmem:[%s1 + $0x2e50] sm:$0xff]
    %v1519 = vld [vmem:[%s1 + $0x2e58] sm:$0xff]
    %v1520 = vld [vmem:[%s1 + $0x2e60] sm:$0xff]
    %v1521 = vld [vmem:[%s1 + $0x2e68] sm:$0xff]
    %v1522 = vld [vmem:[%s1 + $0x2e70] sm:$0xff]
    %v1523 = vld [vmem:[%s1 + $0x2e78] sm:$0xff]
    %v1524 = vld [vmem:[%s1 + $0x2e80] sm:$0xff]
    %v1525 = vld [vmem:[%s1 + $0x2e88] sm:$0xff]
    %v1526 = vld [vmem:[%s1 + $0x2e90] sm:$0xff]
    %v1527 = vld [vmem:[%s1 + $0x2e98] sm:$0xff]
    %v1528 = vld [vmem:[%s1 + $0x2ea0] sm:$0xff]
    %v1529 = vld [vmem:[%s1 + $0x2ea8] sm:$0xff]
    %v1530 = vld [vmem:[%s1 + $0x2eb0] sm:$0xff]
    %v1531 = vld [vmem:[%s1 + $0x2eb8] sm:$0xff]
    %v1532 = vld [vmem:[%s1 + $0x2ec0] sm:$0xff]
    %v1533 = vld [vmem:[%s1 + $0x2ec8] sm:$0xff]
    %v1534 = vld [vmem:[%s1 + $0x2ed0] sm:$0xff]
    %v1535 = vld [vmem:[%s1 + $0x2ed8] sm:$0xff]
    %v1536 = vld [vmem:[%s1 + $0x2ee0] sm:$0xff]
    %v1537 = vld [vmem:[%s1 + $0x2ee8] sm:$0xff]
    %v1538 = vld [vmem:[%s1 + $0x2ef0] sm:$0xff]
    %v1539 = vld [vmem:[%s1 + $0x2ef8] sm:$0xff]
    %v1540 = vld [vmem:[%s1 + $0x2f00] sm:$0xff]
    %v1541 = vld [vmem:[%s1 + $0x2f08] sm:$0xff]
    %v1542 = vld [vmem:[%s1 + $0x2f10] sm:$0xff]
    %v1543 = vld [vmem:[%s1 + $0x2f18] sm:$0xff]
    %v1544 = vld [vmem:[%s1 + $0x2f20] sm:$0xff]
    %v1545 = vld [vmem:[%s1 + $0x2f28] sm:$0xff]
    %v1546 = vld [vmem:[%s1 + $0x2f30] sm:$0xff]
    %v1547 = vld [vmem:[%s1 + $0x2f38] sm:$0xff]
    %v1548 = vld [vmem:[%s1 + $0x2f40] sm:$0xff]
    %v1549 = vld [vmem:[%s1 + $0x2f48] sm:$0xff]
    %v1550 = vld [vmem:[%s1 + $0x2f50] sm:$0xff]
    %v1551 = vld [vmem:[%s1 + $0x2f58] sm:$0xff]
    %v1552 = vld [vmem:[%s1 + $0x2f60] sm:$0xff]
    %v1553 = vld [vmem:[%s1 + $0x2f68] sm:$0xff]
    %v1554 = vld [vmem:[%s1 + $0x2f70] sm:$0xff]
    %v1555 = vld [vmem:[%s1 + $0x2f78] sm:$0xff]
    %v1556 = vld [vmem:[%s1 + $0x2f80] sm:$0xff]
    %v1557 = vld [vmem:[%s1 + $0x2f88] sm:$0xff]
    %v1558 = vld [vmem:[%s1 + $0x2f90] sm:$0xff]
    %v1559 = vld [vmem:[%s1 + $0x2f98] sm:$0xff]
    %v1560 = vld [vmem:[%s1 + $0x2fa0] sm:$0xff]
    %v1561 = vld [vmem:[%s1 + $0x2fa8] sm:$0xff]
    %v1562 = vld [vmem:[%s1 + $0x2fb0] sm:$0xff]
    %v1563 = vld [vmem:[%s1 + $0x2fb8] sm:$0xff]
    %v1564 = vld [vmem:[%s1 + $0x2fc0] sm:$0xff]
    %v1565 = vld [vmem:[%s1 + $0x2fc8] sm:$0xff]
    %v1566 = vld [vmem:[%s1 + $0x2fd0] sm:$0xff]
    %v1567 = vld [vmem:[%s1 + $0x2fd8] sm:$0xff]
    %v1568 = vld [vmem:[%s1 + $0x2fe0] sm:$0xff]
    %v1569 = vld [vmem:[%s1 + $0x2fe8] sm:$0xff]
    %v1570 = vld [vmem:[%s1 + $0x2ff0] sm:$0xff]
    %v1571 = vld [vmem:[%s1 + $0x2ff8] sm:$0xff]
    %v1572 = vld [vmem:[%s1 + $0x3000] sm:$0xff]
    %v1573 = vld [vmem:[%s1 + $0x3008] sm:$0xff]
    %v1574 = vld [vmem:[%s1 + $0x3010] sm:$0xff]
    %v1575 = vld [vmem:[%s1 + $0x3018] sm:$0xff]
    %v1576 = vld [vmem:[%s1 + $0x3020] sm:$0xff]
    %v1577 = vld [vmem:[%s1 + $0x3028] sm:$0xff]
    %v1578 = vld [vmem:[%s1 + $0x3030] sm:$0xff]
    %v1579 = vld [vmem:[%s1 + $0x3038] sm:$0xff]
    %v1580 = vld [vmem:[%s1 + $0x3040] sm:$0xff]
    %v1581 = vld [vmem:[%s1 + $0x3048] sm:$0xff]
    %v1582 = vld [vmem:[%s1 + $0x3050] sm:$0xff]
    %v1583 = vld [vmem:[%s1 + $0x3058] sm:$0xff]
    %v1584 = vld [vmem:[%s1 + $0x3060] sm:$0xff]
    %v1585 = vld [vmem:[%s1 + $0x3068] sm:$0xff]
    %v1586 = vld [vmem:[%s1 + $0x3070] sm:$0xff]
    %v1587 = vld [vmem:[%s1 + $0x3078] sm:$0xff]
    %v1588 = vld [vmem:[%s1 + $0x3080] sm:$0xff]
    %v1589 = vld [vmem:[%s1 + $0x3088] sm:$0xff]
    %v1590 = vld [vmem:[%s1 + $0x3090] sm:$0xff]
    %v1591 = vld [vmem:[%s1 + $0x3098] sm:$0xff]
    %v1592 = vld [vmem:[%s1 + $0x30a0] sm:$0xff]
    %v1593 = vld [vmem:[%s1 + $0x30a8] sm:$0xff]
    %v1594 = vld [vmem:[%s1 + $0x30b0] sm:$0xff]
    %v1595 = vld [vmem:[%s1 + $0x30b8] sm:$0xff]
    %v1596 = vld [vmem:[%s1 + $0x30c0] sm:$0xff]
    %v1597 = vld [vmem:[%s1 + $0x30c8] sm:$0xff]
    %v1598 = vld [vmem:[%s1 + $0x30d0] sm:$0xff]
    %v1599 = vld [vmem:[%s1 + $0x30d8] sm:$0xff]
    %v1600 = vld [vmem:[%s1 + $0x30e0] sm:$0xff]
    %v1601 = vld [vmem:[%s1 + $0x30e8] sm:$0xff]
    %v1602 = vld [vmem:[%s1 + $0x30f0] sm:$0xff]
    %v1603 = vld [vmem:[%s1 + $0x30f8] sm:$0xff]
    %v1604 = vld [vmem:[%s1 + $0x3100] sm:$0xff]
    %v1605 = vld [vmem:[%s1 + $0x3108] sm:$0xff]
    %v1606 = vld [vmem:[%s1 + $0x3110] sm:$0xff]
    %v1607 = vld [vmem:[%s1 + $0x3118] sm:$0xff]
    %v1608 = vld [vmem:[%s1 + $0x3120] sm:$0xff]
    %v1609 = vld [vmem:[%s1 + $0x3128] sm:$0xff]
    %v1610 = vld [vmem:[%s1 + $0x3130] sm:$0xff]
    %v1611 = vld [vmem:[%s1 + $0x3138] sm:$0xff]
    %v1612 = vld [vmem:[%s1 + $0x3140] sm:$0xff]
    %v1613 = vld [vmem:[%s1 + $0x3148] sm:$0xff]
    %v1614 = vld [vmem:[%s1 + $0x3150] sm:$0xff]
    %v1615 = vld [vmem:[%s1 + $0x3158] sm:$0xff]
    %v1616 = vld [vmem:[%s1 + $0x3160] sm:$0xff]
    %v1617 = vld [vmem:[%s1 + $0x3168] sm:$0xff]
    %v1618 = vld [vmem:[%s1 + $0x3170] sm:$0xff]
    %v1619 = vld [vmem:[%s1 + $0x3178] sm:$0xff]
    %v1620 = vld [vmem:[%s1 + $0x3180] sm:$0xff]
    %v1621 = vld [vmem:[%s1 + $0x3188] sm:$0xff]
    %v1622 = vld [vmem:[%s1 + $0x3190] sm:$0xff]
    %v1623 = vld [vmem:[%s1 + $0x3198] sm:$0xff]
    %v1624 = vld [vmem:[%s1 + $0x31a0] sm:$0xff]
    %v1625 = vld [vmem:[%s1 + $0x31a8] sm:$0xff]
    %v1626 = vld [vmem:[%s1 + $0x31b0] sm:$0xff]
    %v1627 = vld [vmem:[%s1 + $0x31b8] sm:$0xff]
    %v1628 = vld [vmem:[%s1 + $0x31c0] sm:$0xff]
    %v1629 = vld [vmem:[%s1 + $0x31c8] sm:$0xff]
    %v1630 = vld [vmem:[%s1 + $0x31d0] sm:$0xff]
    %v1631 = vld [vmem:[%s1 + $0x31d8] sm:$0xff]
    %v1632 = vld [vmem:[%s1 + $0x31e0] sm:$0xff]
    %v1633 = vld [vmem:[%s1 + $0x31e8] sm:$0xff]
    %v1634 = vld [vmem:[%s1 + $0x31f0] sm:$0xff]
    %v1635 = vld [vmem:[%s1 + $0x31f8] sm:$0xff]
    %v1636 = vld [vmem:[%s1 + $0x3200] sm:$0xff]
    %v1637 = vld [vmem:[%s1 + $0x3208] sm:$0xff]
    %v1638 = vld [vmem:[%s1 + $0x3210] sm:$0xff]
    %v1639 = vld [vmem:[%s1 + $0x3218] sm:$0xff]
    %v1640 = vld [vmem:[%s1 + $0x3220] sm:$0xff]
    %v1641 = vld [vmem:[%s1 + $0x3228] sm:$0xff]
    %v1642 = vld [vmem:[%s1 + $0x3230] sm:$0xff]
    %v1643 = vld [vmem:[%s1 + $0x3238] sm:$0xff]
    %v1644 = vld [vmem:[%s1 + $0x3240] sm:$0xff]
    %v1645 = vld [vmem:[%s1 + $0x3248] sm:$0xff]
    %v1646 = vld [vmem:[%s1 + $0x3250] sm:$0xff]
    %v1647 = vld [vmem:[%s1 + $0x3258] sm:$0xff]
    %v1648 = vld [vmem:[%s1 + $0x3260] sm:$0xff]
    %v1649 = vld [vmem:[%s1 + $0x3268] sm:$0xff]
    %v1650 = vld [vmem:[%s1 + $0x3270] sm:$0xff]
    %v1651 = vld [vmem:[%s1 + $0x3278] sm:$0xff]
    %v1652 = vld [vmem:[%s1 + $0x3280] sm:$0xff]
    %v1653 = vld [vmem:[%s1 + $0x3288] sm:$0xff]
    %v1654 = vld [vmem:[%s1 + $0x3290] sm:$0xff]
    %v1655 = vld [vmem:[%s1 + $0x3298] sm:$0xff]
    %v1656 = vld [vmem:[%s1 + $0x32a0] sm:$0xff]
    %v1657 = vld [vmem:[%s1 + $0x32a8] sm:$0xff]
    %v1658 = vld [vmem:[%s1 + $0x32b0] sm:$0xff]
    %v1659 = vld [vmem:[%s1 + $0x32b8] sm:$0xff]
    %v1660 = vld [vmem:[%s1 + $0x32c0] sm:$0xff]
    %v1661 = vld [vmem:[%s1 + $0x32c8] sm:$0xff]
    %v1662 = vld [vmem:[%s1 + $0x32d0] sm:$0xff]
    %v1663 = vld [vmem:[%s1 + $0x32d8] sm:$0xff]
    %v1664 = vld [vmem:[%s1 + $0x32e0] sm:$0xff]
    %v1665 = vld [vmem:[%s1 + $0x32e8] sm:$0xff]
    %v1666 = vld [vmem:[%s1 + $0x32f0] sm:$0xff]
    %v1667 = vld [vmem:[%s1 + $0x32f8] sm:$0xff]
    %v1668 = vld [vmem:[%s1 + $0x3300] sm:$0xff]
    %v1669 = vld [vmem:[%s1 + $0x3308] sm:$0xff]
    %v1670 = vld [vmem:[%s1 + $0x3310] sm:$0xff]
    %v1671 = vld [vmem:[%s1 + $0x3318] sm:$0xff]
    %v1672 = vld [vmem:[%s1 + $0x3320] sm:$0xff]
    %v1673 = vld [vmem:[%s1 + $0x3328] sm:$0xff]
    %v1674 = vld [vmem:[%s1 + $0x3330] sm:$0xff]
    %v1675 = vld [vmem:[%s1 + $0x3338] sm:$0xff]
    %v1676 = vld [vmem:[%s1 + $0x3340] sm:$0xff]
    %v1677 = vld [vmem:[%s1 + $0x3348] sm:$0xff]
    %v1678 = vld [vmem:[%s1 + $0x3350] sm:$0xff]
    %v1679 = vld [vmem:[%s1 + $0x3358] sm:$0xff]
    %v1680 = vld [vmem:[%s1 + $0x3360] sm:$0xff]
    %v1681 = vld [vmem:[%s1 + $0x3368] sm:$0xff]
    %v1682 = vld [vmem:[%s1 + $0x3370] sm:$0xff]
    %v1683 = vld [vmem:[%s1 + $0x3378] sm:$0xff]
    %v1684 = vld [vmem:[%s1 + $0x3380] sm:$0xff]
    %v1685 = vld [vmem:[%s1 + $0x3388] sm:$0xff]
    %v1686 = vld [vmem:[%s1 + $0x3390] sm:$0xff]
    %v1687 = vld [vmem:[%s1 + $0x3398] sm:$0xff]
    %v1688 = vld [vmem:[%s1 + $0x33a0] sm:$0xff]
    %v1689 = vld [vmem:[%s1 + $0x33a8] sm:$0xff]
    %v1690 = vld [vmem:[%s1 + $0x33b0] sm:$0xff]
    %v1691 = vld [vmem:[%s1 + $0x33b8] sm:$0xff]
    %v1692 = vld [vmem:[%s1 + $0x33c0] sm:$0xff]
    %v1693 = vld [vmem:[%s1 + $0x33c8] sm:$0xff]
    %v1694 = vld [vmem:[%s1 + $0x33d0] sm:$0xff]
    %v1695 = vld [vmem:[%s1 + $0x33d8] sm:$0xff]
    %v1696 = vld [vmem:[%s1 + $0x33e0] sm:$0xff]
    %v1697 = vld [vmem:[%s1 + $0x33e8] sm:$0xff]
    %v1698 = vld [vmem:[%s1 + $0x33f0] sm:$0xff]
    %v1699 = vld [vmem:[%s1 + $0x33f8] sm:$0xff]
    %v1700 = vld [vmem:[%s2] sm:$0xff]
    %v1701 = vld [vmem:[%s2 + $0x8] sm:$0xff]
    %v1704 = vlaneseq
    %v1705 = vshrl.u32 %v1704, 7
    %v1706 = vsub.s32 0, %v1705
    %v1707 = vrot.slane %v1700, %v1706
    %v1708 = vlaneseq
    %v1709 = vshrl.u32 %v1708, 7
    %v1710 = vsub.s32 1, %v1709
    %v1711 = vrot.slane %v1700, %v1710
    %v1712 = vlaneseq
    %v1713 = vshrl.u32 %v1712, 7
    %v1714 = vsub.s32 2, %v1713
    %v1715 = vrot.slane %v1700, %v1714
    %v1716 = vlaneseq
    %v1717 = vshrl.u32 %v1716, 7
    %v1718 = vsub.s32 3, %v1717
    %v1719 = vrot.slane %v1700, %v1718
    %v1720 = vlaneseq
    %v1721 = vshrl.u32 %v1720, 7
    %v1722 = vsub.s32 4, %v1721
    %v1723 = vrot.slane %v1700, %v1722
    %v1724 = vlaneseq
    %v1725 = vshrl.u32 %v1724, 7
    %v1726 = vsub.s32 5, %v1725
    %v1727 = vrot.slane %v1700, %v1726
    %v1728 = vlaneseq
    %v1729 = vshrl.u32 %v1728, 7
    %v1730 = vsub.s32 6, %v1729
    %v1731 = vrot.slane %v1700, %v1730
    %v1732 = vlaneseq
    %v1733 = vshrl.u32 %v1732, 7
    %v1734 = vsub.s32 7, %v1733
    %v1735 = vrot.slane %v1700, %v1734
    %v1736 = vlaneseq
    %v1737 = vshrl.u32 %v1736, 7
    %v1738 = vsub.s32 0, %v1737
    %v1739 = vrot.slane %v1701, %v1738
    %v1740 = vlaneseq
    %v1741 = vshrl.u32 %v1740, 7
    %v1742 = vsub.s32 1, %v1741
    %v1743 = vrot.slane %v1701, %v1742
    %v1744 = vlaneseq
    %v1745 = vshrl.u32 %v1744, 7
    %v1746 = vsub.s32 2, %v1745
    %v1747 = vrot.slane %v1701, %v1746
    %v1748 = vlaneseq
    %v1749 = vshrl.u32 %v1748, 7
    %v1750 = vsub.s32 3, %v1749
    %v1751 = vrot.slane %v1701, %v1750
    %v1752 = vlaneseq
    %v1753 = vshrl.u32 %v1752, 7
    %v1754 = vsub.s32 4, %v1753
    %v1755 = vrot.slane %v1701, %v1754
    %v1756 = vlaneseq
    %v1757 = vshrl.u32 %v1756, 7
    %v1758 = vsub.s32 5, %v1757
    %v1759 = vrot.slane %v1701, %v1758
    %v1760 = vlaneseq
    %v1761 = vshrl.u32 %v1760, 7
    %v1762 = vsub.s32 6, %v1761
    %v1763 = vrot.slane %v1701, %v1762
    %v1764 = vlaneseq
    %v1765 = vshrl.u32 %v1764, 7
    %v1766 = vsub.s32 7, %v1765
    %v1767 = vrot.slane %v1701, %v1766
    %v1786 = vcombine.high %v34, %v34
    %v1788 = vunpack.c.l.s4 1966171168
    %v1789 = vunpack.c.0.s8 %v1788
    %v1790 = vlaneseq
    %v1791 = vshrl.u32 %v1790, 7
    %v1792 = vsub.s32 %v1789, %v1791
    %v1793 = vrot.slane %v34, %v1792
    %v1795 = vunpack.c.l.s4 1966171168
    %v1796 = vunpack.c.0.s8 %v1795
    %v1797 = vlaneseq
    %v1798 = vshrl.u32 %v1797, 7
    %v1799 = vsub.s32 %v1796, %v1798
    %v1800 = vrot.slane %v1786, %v1799
    %v1801 = vcombine.high %v1793, %v1793
    %v1802 = vcombine.high %v1800, %v1800
    %v1804 = vunpack.c.l.s4 1966171168
    %v1805 = vunpack.c.0.s8 %v1804
    %v1806 = vlaneseq
    %v1807 = vshrl.u32 %v1806, 7
    %v1808 = vsub.s32 %v1805, %v1807
    %v1809 = vrot.slane %v1793, %v1808
    %v1811 = vunpack.c.l.s4 1966171168
    %v1812 = vunpack.c.0.s8 %v1811
    %v1813 = vlaneseq
    %v1814 = vshrl.u32 %v1813, 7
    %v1815 = vsub.s32 %v1812, %v1814
    %v1816 = vrot.slane %v1800, %v1815
    %v1818 = vunpack.c.l.s4 1966171168
    %v1819 = vunpack.c.0.s8 %v1818
    %v1820 = vlaneseq
    %v1821 = vshrl.u32 %v1820, 7
    %v1822 = vsub.s32 %v1819, %v1821
    %v1823 = vrot.slane %v1801, %v1822
    %v1825 = vunpack.c.l.s4 1966171168
    %v1826 = vunpack.c.0.s8 %v1825
    %v1827 = vlaneseq
    %v1828 = vshrl.u32 %v1827, 7
    %v1829 = vsub.s32 %v1826, %v1828
    %v1830 = vrot.slane %v1802, %v1829
    %v1831 = vcombine.high %v1809, %v1809
    %v1832 = vcombine.high %v1816, %v1816
    %v1833 = vcombine.high %v1823, %v1823
    %v1834 = vcombine.high %v1830, %v1830
    %v1835 = vcombine.high %v35, %v35
    %v1837 = vunpack.c.l.s4 1966171168
    %v1838 = vunpack.c.0.s8 %v1837
    %v1839 = vlaneseq
    %v1840 = vshrl.u32 %v1839, 7
    %v1841 = vsub.s32 %v1838, %v1840
    %v1842 = vrot.slane %v35, %v1841
    %v1844 = vunpack.c.l.s4 1966171168
    %v1845 = vunpack.c.0.s8 %v1844
    %v1846 = vlaneseq
    %v1847 = vshrl.u32 %v1846, 7
    %v1848 = vsub.s32 %v1845, %v1847
    %v1849 = vrot.slane %v1835, %v1848
    %v1850 = vcombine.high %v1842, %v1842
    %v1852 = vunpack.c.l.s4 1966171168
    %v1853 = vunpack.c.0.s8 %v1852
    %v1854 = vlaneseq
    %v1855 = vshrl.u32 %v1854, 7
    %v1856 = vsub.s32 %v1853, %v1855
    %v1857 = vrot.slane %v1842, %v1856
    %v1859 = vunpack.c.l.s4 1966171168
    %v1860 = vunpack.c.0.s8 %v1859
    %v1861 = vlaneseq
    %v1862 = vshrl.u32 %v1861, 7
    %v1863 = vsub.s32 %v1860, %v1862
    %v1864 = vrot.slane %v1849, %v1863
    %v1866 = vunpack.c.l.s4 1966171168
    %v1867 = vunpack.c.0.s8 %v1866
    %v1868 = vlaneseq
    %v1869 = vshrl.u32 %v1868, 7
    %v1870 = vsub.s32 %v1867, %v1869
    %v1871 = vrot.slane %v1850, %v1870
    %v1872 = vcombine.high %v1857, %v1857
    %v1873 = vcombine.high %v1871, %v1871
    %v3551 = vunpack.c.l.b16 %v36
    %v3552 = vunpack.c.h.b16 %v36
    %v3553 = vunpack.c.l.b16 %v37
    %v3554 = vunpack.c.h.b16 %v37
    %v3555 = vunpack.c.l.b16 %v38
    %v3556 = vunpack.c.h.b16 %v38
    %v3557 = vunpack.c.l.b16 %v39
    %v3558 = vunpack.c.h.b16 %v39
    %v3559 = vunpack.c.l.b16 %v40
    %v3560 = vunpack.c.h.b16 %v40
    %v3561 = vunpack.c.l.b16 %v41
    %v3562 = vunpack.c.h.b16 %v41
    %v3563 = vunpack.c.l.b16 %v42
    %v3564 = vunpack.c.h.b16 %v42
    %v3565 = vunpack.c.l.b16 %v43
    %v3566 = vunpack.c.h.b16 %v43
    %v3567 = vunpack.c.l.b16 %v44
    %v3568 = vunpack.c.h.b16 %v44
    %v3569 = vunpack.c.l.b16 %v45
    %v3570 = vunpack.c.h.b16 %v45
    %v3571 = vunpack.c.l.b16 %v46
    %v3572 = vunpack.c.h.b16 %v46
    %v3573 = vunpack.c.l.b16 %v47
    %v3574 = vunpack.c.h.b16 %v47
    %v3575 = vunpack.c.l.b16 %v48
    %v3576 = vunpack.c.h.b16 %v48
    %v3577 = vunpack.c.l.b16 %v49
    %v3578 = vunpack.c.h.b16 %v49
    %v3579 = vunpack.c.l.b16 %v50
    %v3580 = vunpack.c.h.b16 %v50
    %v3581 = vunpack.c.l.b16 %v51
    %v3582 = vunpack.c.h.b16 %v51
    %v3583 = vunpack.c.l.b16 %v52
    %v3584 = vunpack.c.h.b16 %v52
    %v3585 = vunpack.c.l.b16 %v53
    %v3586 = vunpack.c.h.b16 %v53
    %v3587 = vunpack.c.l.b16 %v54
    %v3588 = vunpack.c.h.b16 %v54
    %v3589 = vunpack.c.l.b16 %v55
    %v3590 = vunpack.c.h.b16 %v55
    %v3591 = vunpack.c.l.b16 %v56
    %v3592 = vunpack.c.h.b16 %v56
    %v3593 = vunpack.c.l.b16 %v57
    %v3594 = vunpack.c.h.b16 %v57
    %v3595 = vunpack.c.l.b16 %v58
    %v3596 = vunpack.c.h.b16 %v58
    %v3597 = vunpack.c.l.b16 %v59
    %v3598 = vunpack.c.h.b16 %v59
    %v3599 = vunpack.c.l.b16 %v60
    %v3600 = vunpack.c.h.b16 %v60
    %v3601 = vunpack.c.l.b16 %v61
    %v3602 = vunpack.c.h.b16 %v61
    %v3603 = vunpack.c.l.b16 %v62
    %v3604 = vunpack.c.h.b16 %v62
    %v3605 = vunpack.c.l.b16 %v63
    %v3606 = vunpack.c.h.b16 %v63
    %v3607 = vunpack.c.l.b16 %v64
    %v3608 = vunpack.c.h.b16 %v64
    %v3609 = vunpack.c.l.b16 %v65
    %v3610 = vunpack.c.h.b16 %v65
    %v3611 = vunpack.c.l.b16 %v66
    %v3612 = vunpack.c.h.b16 %v66
    %v3613 = vunpack.c.l.b16 %v67
    %v3614 = vunpack.c.h.b16 %v67
    %v3615 = vunpack.c.l.b16 %v68
    %v3616 = vunpack.c.h.b16 %v68
    %v3617 = vunpack.c.l.b16 %v69
    %v3618 = vunpack.c.h.b16 %v69
    %v3619 = vunpack.c.l.b16 %v70
    %v3620 = vunpack.c.h.b16 %v70
    %v3621 = vunpack.c.l.b16 %v71
    %v3622 = vunpack.c.h.b16 %v71
    %v3623 = vunpack.c.l.b16 %v72
    %v3624 = vunpack.c.h.b16 %v72
    %v3625 = vunpack.c.l.b16 %v73
    %v3626 = vunpack.c.h.b16 %v73
    %v3627 = vunpack.c.l.b16 %v74
    %v3628 = vunpack.c.h.b16 %v74
    %v3629 = vunpack.c.l.b16 %v75
    %v3630 = vunpack.c.h.b16 %v75
    %v3631 = vunpack.c.l.b16 %v76
    %v3632 = vunpack.c.h.b16 %v76
    %v3633 = vunpack.c.l.b16 %v77
    %v3634 = vunpack.c.h.b16 %v77
    %v3635 = vunpack.c.l.b16 %v78
    %v3636 = vunpack.c.h.b16 %v78
    %v3637 = vunpack.c.l.b16 %v79
    %v3638 = vunpack.c.h.b16 %v79
    %v3639 = vunpack.c.l.b16 %v80
    %v3640 = vunpack.c.h.b16 %v80
    %v3641 = vunpack.c.l.b16 %v81
    %v3642 = vunpack.c.h.b16 %v81
    %v3643 = vunpack.c.l.b16 %v82
    %v3644 = vunpack.c.h.b16 %v82
    %v3645 = vunpack.c.l.b16 %v83
    %v3646 = vunpack.c.h.b16 %v83
    %v3647 = vunpack.c.l.b16 %v84
    %v3648 = vunpack.c.h.b16 %v84
    %v3649 = vunpack.c.l.b16 %v85
    %v3650 = vunpack.c.h.b16 %v85
    %v3651 = vunpack.c.l.b16 %v86
    %v3652 = vunpack.c.h.b16 %v86
    %v3653 = vunpack.c.l.b16 %v87
    %v3654 = vunpack.c.h.b16 %v87
    %v3655 = vunpack.c.l.b16 %v88
    %v3656 = vunpack.c.h.b16 %v88
    %v3657 = vunpack.c.l.b16 %v89
    %v3658 = vunpack.c.h.b16 %v89
    %v3659 = vunpack.c.l.b16 %v90
    %v3660 = vunpack.c.h.b16 %v90
    %v3661 = vunpack.c.l.b16 %v91
    %v3662 = vunpack.c.h.b16 %v91
    %v3663 = vunpack.c.l.b16 %v92
    %v3664 = vunpack.c.h.b16 %v92
    %v3665 = vunpack.c.l.b16 %v93
    %v3666 = vunpack.c.h.b16 %v93
    %v3667 = vunpack.c.l.b16 %v94
    %v3668 = vunpack.c.h.b16 %v94
    %v3669 = vunpack.c.l.b16 %v95
    %v3670 = vunpack.c.h.b16 %v95
    %v3671 = vunpack.c.l.b16 %v96
    %v3672 = vunpack.c.h.b16 %v96
    %v3673 = vunpack.c.l.b16 %v97
    %v3674 = vunpack.c.h.b16 %v97
    %v3675 = vunpack.c.l.b16 %v98
    %v3676 = vunpack.c.h.b16 %v98
    %v3677 = vunpack.c.l.b16 %v99
    %v3678 = vunpack.c.h.b16 %v99
    %v3679 = vunpack.c.l.b16 %v100
    %v3680 = vunpack.c.h.b16 %v100
    %v3681 = vunpack.c.l.b16 %v101
    %v3682 = vunpack.c.h.b16 %v101
    %v3683 = vunpack.c.l.b16 %v102
    %v3684 = vunpack.c.h.b16 %v102
    %v3685 = vunpack.c.l.b16 %v103
    %v3686 = vunpack.c.h.b16 %v103
    %v3687 = vunpack.c.l.b16 %v104
    %v3688 = vunpack.c.h.b16 %v104
    %v3689 = vunpack.c.l.b16 %v105
    %v3690 = vunpack.c.h.b16 %v105
    %v3691 = vunpack.c.l.b16 %v106
    %v3692 = vunpack.c.h.b16 %v106
    %v3693 = vunpack.c.l.b16 %v107
    %v3694 = vunpack.c.h.b16 %v107
    %v3695 = vunpack.c.l.b16 %v108
    %v3696 = vunpack.c.h.b16 %v108
    %v3697 = vunpack.c.l.b16 %v109
    %v3698 = vunpack.c.h.b16 %v109
    %v3699 = vunpack.c.l.b16 %v110
    %v3700 = vunpack.c.h.b16 %v110
    %v3701 = vunpack.c.l.b16 %v111
    %v3702 = vunpack.c.h.b16 %v111
    %v3703 = vunpack.c.l.b16 %v112
    %v3704 = vunpack.c.h.b16 %v112
    %v3705 = vunpack.c.l.b16 %v113
    %v3706 = vunpack.c.h.b16 %v113
    %v3707 = vunpack.c.l.b16 %v114
    %v3708 = vunpack.c.h.b16 %v114
    %v3709 = vunpack.c.l.b16 %v115
    %v3710 = vunpack.c.h.b16 %v115
    %v3711 = vunpack.c.l.b16 %v116
    %v3712 = vunpack.c.h.b16 %v116
    %v3713 = vunpack.c.l.b16 %v117
    %v3714 = vunpack.c.h.b16 %v117
    %v3715 = vunpack.c.l.b16 %v118
    %v3716 = vunpack.c.h.b16 %v118
    %v3717 = vunpack.c.l.b16 %v119
    %v3718 = vunpack.c.h.b16 %v119
    %v3719 = vunpack.c.l.b16 %v120
    %v3720 = vunpack.c.h.b16 %v120
    %v3721 = vunpack.c.l.b16 %v121
    %v3722 = vunpack.c.h.b16 %v121
    %v3723 = vunpack.c.l.b16 %v122
    %v3724 = vunpack.c.h.b16 %v122
    %v3725 = vunpack.c.l.b16 %v123
    %v3726 = vunpack.c.h.b16 %v123
    %v3727 = vunpack.c.l.b16 %v124
    %v3728 = vunpack.c.h.b16 %v124
    %v3729 = vunpack.c.l.b16 %v125
    %v3730 = vunpack.c.h.b16 %v125
    %v3731 = vunpack.c.l.b16 %v126
    %v3732 = vunpack.c.h.b16 %v126
    %v3733 = vunpack.c.l.b16 %v127
    %v3734 = vunpack.c.h.b16 %v127
    %v3735 = vunpack.c.l.b16 %v128
    %v3736 = vunpack.c.h.b16 %v128
    %v3737 = vunpack.c.l.b16 %v129
    %v3738 = vunpack.c.h.b16 %v129
    %v3739 = vunpack.c.l.b16 %v130
    %v3740 = vunpack.c.h.b16 %v130
    %v3741 = vunpack.c.l.b16 %v131
    %v3742 = vunpack.c.h.b16 %v131
    %v3743 = vunpack.c.l.b16 %v132
    %v3744 = vunpack.c.h.b16 %v132
    %v3745 = vunpack.c.l.b16 %v133
    %v3746 = vunpack.c.h.b16 %v133
    %v3747 = vunpack.c.l.b16 %v134
    %v3748 = vunpack.c.h.b16 %v134
    %v3749 = vunpack.c.l.b16 %v135
    %v3750 = vunpack.c.h.b16 %v135
    %v3751 = vunpack.c.l.b16 %v136
    %v3752 = vunpack.c.h.b16 %v136
    %v3753 = vunpack.c.l.b16 %v137
    %v3754 = vunpack.c.h.b16 %v137
    %v3755 = vunpack.c.l.b16 %v138
    %v3756 = vunpack.c.h.b16 %v138
    %v3757 = vunpack.c.l.b16 %v139
    %v3758 = vunpack.c.h.b16 %v139
    %v3759 = vunpack.c.l.b16 %v140
    %v3760 = vunpack.c.h.b16 %v140
    %v3761 = vunpack.c.l.b16 %v141
    %v3762 = vunpack.c.h.b16 %v141
    %v3763 = vunpack.c.l.b16 %v142
    %v3764 = vunpack.c.h.b16 %v142
    %v3765 = vunpack.c.l.b16 %v143
    %v3766 = vunpack.c.h.b16 %v143
    %v3767 = vunpack.c.l.b16 %v144
    %v3768 = vunpack.c.h.b16 %v144
    %v3769 = vunpack.c.l.b16 %v145
    %v3770 = vunpack.c.h.b16 %v145
    %v3771 = vunpack.c.l.b16 %v146
    %v3772 = vunpack.c.h.b16 %v146
    %v3773 = vunpack.c.l.b16 %v147
    %v3774 = vunpack.c.h.b16 %v147
    %v3775 = vunpack.c.l.b16 %v148
    %v3776 = vunpack.c.h.b16 %v148
    %v3777 = vunpack.c.l.b16 %v149
    %v3778 = vunpack.c.h.b16 %v149
    %v3779 = vunpack.c.l.b16 %v150
    %v3780 = vunpack.c.h.b16 %v150
    %v3781 = vunpack.c.l.b16 %v151
    %v3782 = vunpack.c.h.b16 %v151
    %v3783 = vunpack.c.l.b16 %v152
    %v3784 = vunpack.c.h.b16 %v152
    %v3785 = vunpack.c.l.b16 %v153
    %v3786 = vunpack.c.h.b16 %v153
    %v3787 = vunpack.c.l.b16 %v154
    %v3788 = vunpack.c.h.b16 %v154
    %v3789 = vunpack.c.l.b16 %v155
    %v3790 = vunpack.c.h.b16 %v155
    %v3791 = vunpack.c.l.b16 %v156
    %v3792 = vunpack.c.h.b16 %v156
    %v3793 = vunpack.c.l.b16 %v157
    %v3794 = vunpack.c.h.b16 %v157
    %v3795 = vunpack.c.l.b16 %v158
    %v3796 = vunpack.c.h.b16 %v158
    %v3797 = vunpack.c.l.b16 %v159
    %v3798 = vunpack.c.h.b16 %v159
    %v3799 = vunpack.c.l.b16 %v160
    %v3800 = vunpack.c.h.b16 %v160
    %v3801 = vunpack.c.l.b16 %v161
    %v3802 = vunpack.c.h.b16 %v161
    %v3803 = vunpack.c.l.b16 %v162
    %v3804 = vunpack.c.h.b16 %v162
    %v3805 = vunpack.c.l.b16 %v163
    %v3806 = vunpack.c.h.b16 %v163
    %v3807 = vunpack.c.l.b16 %v164
    %v3808 = vunpack.c.h.b16 %v164
    %v3809 = vunpack.c.l.b16 %v165
    %v3810 = vunpack.c.h.b16 %v165
    %v3811 = vunpack.c.l.b16 %v166
    %v3812 = vunpack.c.h.b16 %v166
    %v3813 = vunpack.c.l.b16 %v167
    %v3814 = vunpack.c.h.b16 %v167
    %v3815 = vunpack.c.l.b16 %v168
    %v3816 = vunpack.c.h.b16 %v168
    %v3817 = vunpack.c.l.b16 %v169
    %v3818 = vunpack.c.h.b16 %v169
    %v3819 = vunpack.c.l.b16 %v170
    %v3820 = vunpack.c.h.b16 %v170
    %v3821 = vunpack.c.l.b16 %v171
    %v3822 = vunpack.c.h.b16 %v171
    %v3823 = vunpack.c.l.b16 %v172
    %v3824 = vunpack.c.h.b16 %v172
    %v3825 = vunpack.c.l.b16 %v173
    %v3826 = vunpack.c.h.b16 %v173
    %v3827 = vunpack.c.l.b16 %v174
    %v3828 = vunpack.c.h.b16 %v174
    %v3829 = vunpack.c.l.b16 %v175
    %v3830 = vunpack.c.h.b16 %v175
    %v3831 = vunpack.c.l.b16 %v176
    %v3832 = vunpack.c.h.b16 %v176
    %v3833 = vunpack.c.l.b16 %v177
    %v3834 = vunpack.c.h.b16 %v177
    %v3835 = vunpack.c.l.b16 %v178
    %v3836 = vunpack.c.h.b16 %v178
    %v3837 = vunpack.c.l.b16 %v179
    %v3838 = vunpack.c.h.b16 %v179
    %v3839 = vunpack.c.l.b16 %v180
    %v3840 = vunpack.c.h.b16 %v180
    %v3841 = vunpack.c.l.b16 %v181
    %v3842 = vunpack.c.h.b16 %v181
    %v3843 = vunpack.c.l.b16 %v182
    %v3844 = vunpack.c.h.b16 %v182
    %v3845 = vunpack.c.l.b16 %v183
    %v3846 = vunpack.c.h.b16 %v183
    %v3847 = vunpack.c.l.b16 %v184
    %v3848 = vunpack.c.h.b16 %v184
    %v3849 = vunpack.c.l.b16 %v185
    %v3850 = vunpack.c.h.b16 %v185
    %v3851 = vunpack.c.l.b16 %v186
    %v3852 = vunpack.c.h.b16 %v186
    %v3853 = vunpack.c.l.b16 %v187
    %v3854 = vunpack.c.h.b16 %v187
    %v3855 = vunpack.c.l.b16 %v188
    %v3856 = vunpack.c.h.b16 %v188
    %v3857 = vunpack.c.l.b16 %v189
    %v3858 = vunpack.c.h.b16 %v189
    %v3859 = vunpack.c.l.b16 %v190
    %v3860 = vunpack.c.h.b16 %v190
    %v3861 = vunpack.c.l.b16 %v191
    %v3862 = vunpack.c.h.b16 %v191
    %v3863 = vunpack.c.l.b16 %v192
    %v3864 = vunpack.c.h.b16 %v192
    %v3865 = vunpack.c.l.b16 %v193
    %v3866 = vunpack.c.h.b16 %v193
    %v3867 = vunpack.c.l.b16 %v194
    %v3868 = vunpack.c.h.b16 %v194
    %v3869 = vunpack.c.l.b16 %v195
    %v3870 = vunpack.c.h.b16 %v195
    %v3871 = vunpack.c.l.b16 %v196
    %v3872 = vunpack.c.h.b16 %v196
    %v3873 = vunpack.c.l.b16 %v197
    %v3874 = vunpack.c.h.b16 %v197
    %v3875 = vunpack.c.l.b16 %v198
    %v3876 = vunpack.c.h.b16 %v198
    %v3877 = vunpack.c.l.b16 %v199
    %v3878 = vunpack.c.h.b16 %v199
    %v3879 = vunpack.c.l.b16 %v200
    %v3880 = vunpack.c.h.b16 %v200
    %v3881 = vunpack.c.l.b16 %v201
    %v3882 = vunpack.c.h.b16 %v201
    %v3883 = vunpack.c.l.b16 %v202
    %v3884 = vunpack.c.h.b16 %v202
    %v3885 = vunpack.c.l.b16 %v203
    %v3886 = vunpack.c.h.b16 %v203
    %v3887 = vunpack.c.l.b16 %v204
    %v3888 = vunpack.c.h.b16 %v204
    %v3889 = vunpack.c.l.b16 %v205
    %v3890 = vunpack.c.h.b16 %v205
    %v3891 = vunpack.c.l.b16 %v206
    %v3892 = vunpack.c.h.b16 %v206
    %v3893 = vunpack.c.l.b16 %v207
    %v3894 = vunpack.c.h.b16 %v207
    %v3895 = vunpack.c.l.b16 %v208
    %v3896 = vunpack.c.h.b16 %v208
    %v3897 = vunpack.c.l.b16 %v209
    %v3898 = vunpack.c.h.b16 %v209
    %v3899 = vunpack.c.l.b16 %v210
    %v3900 = vunpack.c.h.b16 %v210
    %v3901 = vunpack.c.l.b16 %v211
    %v3902 = vunpack.c.h.b16 %v211
    %v3903 = vunpack.c.l.b16 %v212
    %v3904 = vunpack.c.h.b16 %v212
    %v3905 = vunpack.c.l.b16 %v213
    %v3906 = vunpack.c.h.b16 %v213
    %v3907 = vunpack.c.l.b16 %v214
    %v3908 = vunpack.c.h.b16 %v214
    %v3909 = vunpack.c.l.b16 %v215
    %v3910 = vunpack.c.h.b16 %v215
    %v3911 = vunpack.c.l.b16 %v216
    %v3912 = vunpack.c.h.b16 %v216
    %v3913 = vunpack.c.l.b16 %v217
    %v3914 = vunpack.c.h.b16 %v217
    %v3915 = vunpack.c.l.b16 %v218
    %v3916 = vunpack.c.h.b16 %v218
    %v3917 = vunpack.c.l.b16 %v219
    %v3918 = vunpack.c.h.b16 %v219
    %v3919 = vunpack.c.l.b16 %v220
    %v3920 = vunpack.c.h.b16 %v220
    %v3921 = vunpack.c.l.b16 %v221
    %v3922 = vunpack.c.h.b16 %v221
    %v3923 = vunpack.c.l.b16 %v222
    %v3924 = vunpack.c.h.b16 %v222
    %v3925 = vunpack.c.l.b16 %v223
    %v3926 = vunpack.c.h.b16 %v223
    %v3927 = vunpack.c.l.b16 %v224
    %v3928 = vunpack.c.h.b16 %v224
    %v3929 = vunpack.c.l.b16 %v225
    %v3930 = vunpack.c.h.b16 %v225
    %v3931 = vunpack.c.l.b16 %v226
    %v3932 = vunpack.c.h.b16 %v226
    %v3933 = vunpack.c.l.b16 %v227
    %v3934 = vunpack.c.h.b16 %v227
    %v3935 = vunpack.c.l.b16 %v228
    %v3936 = vunpack.c.h.b16 %v228
    %v3937 = vunpack.c.l.b16 %v229
    %v3938 = vunpack.c.h.b16 %v229
    %v3939 = vunpack.c.l.b16 %v230
    %v3940 = vunpack.c.h.b16 %v230
    %v3941 = vunpack.c.l.b16 %v231
    %v3942 = vunpack.c.h.b16 %v231
    %v3943 = vunpack.c.l.b16 %v232
    %v3944 = vunpack.c.h.b16 %v232
    %v3945 = vunpack.c.l.b16 %v233
    %v3946 = vunpack.c.h.b16 %v233
    %v3947 = vunpack.c.l.b16 %v234
    %v3948 = vunpack.c.h.b16 %v234
    %v3949 = vunpack.c.l.b16 %v235
    %v3950 = vunpack.c.h.b16 %v235
    %v3951 = vunpack.c.l.b16 %v236
    %v3952 = vunpack.c.h.b16 %v236
    %v3953 = vunpack.c.l.b16 %v237
    %v3954 = vunpack.c.h.b16 %v237
    %v3955 = vunpack.c.l.b16 %v238
    %v3956 = vunpack.c.h.b16 %v238
    %v3957 = vunpack.c.l.b16 %v239
    %v3958 = vunpack.c.h.b16 %v239
    %v3959 = vunpack.c.l.b16 %v240
    %v3960 = vunpack.c.h.b16 %v240
    %v3961 = vunpack.c.l.b16 %v241
    %v3962 = vunpack.c.h.b16 %v241
    %v3963 = vunpack.c.l.b16 %v242
    %v3964 = vunpack.c.h.b16 %v242
    %v3965 = vunpack.c.l.b16 %v243
    %v3966 = vunpack.c.h.b16 %v243
    %v3967 = vunpack.c.l.b16 %v244
    %v3968 = vunpack.c.h.b16 %v244
    %v3969 = vunpack.c.l.b16 %v245
    %v3970 = vunpack.c.h.b16 %v245
    %v3971 = vunpack.c.l.b16 %v246
    %v3972 = vunpack.c.h.b16 %v246
    %v3973 = vunpack.c.l.b16 %v247
    %v3974 = vunpack.c.h.b16 %v247
    %v3975 = vunpack.c.l.b16 %v248
    %v3976 = vunpack.c.h.b16 %v248
    %v3977 = vunpack.c.l.b16 %v249
    %v3978 = vunpack.c.h.b16 %v249
    %v3979 = vunpack.c.l.b16 %v250
    %v3980 = vunpack.c.h.b16 %v250
    %v3981 = vunpack.c.l.b16 %v251
    %v3982 = vunpack.c.h.b16 %v251
    %v3983 = vunpack.c.l.b16 %v252
    %v3984 = vunpack.c.h.b16 %v252
    %v3985 = vunpack.c.l.b16 %v253
    %v3986 = vunpack.c.h.b16 %v253
    %v3987 = vunpack.c.l.b16 %v254
    %v3988 = vunpack.c.h.b16 %v254
    %v3989 = vunpack.c.l.b16 %v255
    %v3990 = vunpack.c.h.b16 %v255
    %v3991 = vunpack.c.l.b16 %v256
    %v3992 = vunpack.c.h.b16 %v256
    %v3993 = vunpack.c.l.b16 %v257
    %v3994 = vunpack.c.h.b16 %v257
    %v3995 = vunpack.c.l.b16 %v258
    %v3996 = vunpack.c.h.b16 %v258
    %v3997 = vunpack.c.l.b16 %v259
    %v3998 = vunpack.c.h.b16 %v259
    %v3999 = vunpack.c.l.b16 %v260
    %v4000 = vunpack.c.h.b16 %v260
    %v4001 = vunpack.c.l.b16 %v261
    %v4002 = vunpack.c.h.b16 %v261
    %v4003 = vunpack.c.l.b16 %v262
    %v4004 = vunpack.c.h.b16 %v262
    %v4005 = vunpack.c.l.b16 %v263
    %v4006 = vunpack.c.h.b16 %v263
    %v4007 = vunpack.c.l.b16 %v264
    %v4008 = vunpack.c.h.b16 %v264
    %v4009 = vunpack.c.l.b16 %v265
    %v4010 = vunpack.c.h.b16 %v265
    %v4011 = vunpack.c.l.b16 %v266
    %v4012 = vunpack.c.h.b16 %v266
    %v4013 = vunpack.c.l.b16 %v267
    %v4014 = vunpack.c.h.b16 %v267
    %v4015 = vunpack.c.l.b16 %v268
    %v4016 = vunpack.c.h.b16 %v268
    %v4017 = vunpack.c.l.b16 %v269
    %v4018 = vunpack.c.h.b16 %v269
    %v4019 = vunpack.c.l.b16 %v270
    %v4020 = vunpack.c.h.b16 %v270
    %v4021 = vunpack.c.l.b16 %v271
    %v4022 = vunpack.c.h.b16 %v271
    %v4023 = vunpack.c.l.b16 %v272
    %v4024 = vunpack.c.h.b16 %v272
    %v4025 = vunpack.c.l.b16 %v273
    %v4026 = vunpack.c.h.b16 %v273
    %v4027 = vunpack.c.l.b16 %v274
    %v4028 = vunpack.c.h.b16 %v274
    %v4029 = vunpack.c.l.b16 %v275
    %v4030 = vunpack.c.h.b16 %v275
    %v4031 = vunpack.c.l.b16 %v276
    %v4032 = vunpack.c.h.b16 %v276
    %v4033 = vunpack.c.l.b16 %v277
    %v4034 = vunpack.c.h.b16 %v277
    %v4035 = vunpack.c.l.b16 %v278
    %v4036 = vunpack.c.h.b16 %v278
    %v4037 = vunpack.c.l.b16 %v279
    %v4038 = vunpack.c.h.b16 %v279
    %v4039 = vunpack.c.l.b16 %v280
    %v4040 = vunpack.c.h.b16 %v280
    %v4041 = vunpack.c.l.b16 %v281
    %v4042 = vunpack.c.h.b16 %v281
    %v4043 = vunpack.c.l.b16 %v282
    %v4044 = vunpack.c.h.b16 %v282
    %v4045 = vunpack.c.l.b16 %v283
    %v4046 = vunpack.c.h.b16 %v283
    %v4047 = vunpack.c.l.b16 %v284
    %v4048 = vunpack.c.h.b16 %v284
    %v4049 = vunpack.c.l.b16 %v285
    %v4050 = vunpack.c.h.b16 %v285
    %v4051 = vunpack.c.l.b16 %v286
    %v4052 = vunpack.c.h.b16 %v286
    %v4053 = vunpack.c.l.b16 %v287
    %v4054 = vunpack.c.h.b16 %v287
    %v4055 = vunpack.c.l.b16 %v288
    %v4056 = vunpack.c.h.b16 %v288
    %v4057 = vunpack.c.l.b16 %v289
    %v4058 = vunpack.c.h.b16 %v289
    %v4059 = vunpack.c.l.b16 %v290
    %v4060 = vunpack.c.h.b16 %v290
    %v4061 = vunpack.c.l.b16 %v291
    %v4062 = vunpack.c.h.b16 %v291
    %v4063 = vunpack.c.l.b16 %v292
    %v4064 = vunpack.c.h.b16 %v292
    %v4065 = vunpack.c.l.b16 %v293
    %v4066 = vunpack.c.h.b16 %v293
    %v4067 = vunpack.c.l.b16 %v294
    %v4068 = vunpack.c.h.b16 %v294
    %v4069 = vunpack.c.l.b16 %v295
    %v4070 = vunpack.c.h.b16 %v295
    %v4071 = vunpack.c.l.b16 %v296
    %v4072 = vunpack.c.h.b16 %v296
    %v4073 = vunpack.c.l.b16 %v297
    %v4074 = vunpack.c.h.b16 %v297
    %v4075 = vunpack.c.l.b16 %v298
    %v4076 = vunpack.c.h.b16 %v298
    %v4077 = vunpack.c.l.b16 %v299
    %v4078 = vunpack.c.h.b16 %v299
    %v4079 = vunpack.c.l.b16 %v300
    %v4080 = vunpack.c.h.b16 %v300
    %v4081 = vunpack.c.l.b16 %v301
    %v4082 = vunpack.c.h.b16 %v301
    %v4083 = vunpack.c.l.b16 %v302
    %v4084 = vunpack.c.h.b16 %v302
    %v4085 = vunpack.c.l.b16 %v303
    %v4086 = vunpack.c.h.b16 %v303
    %v4087 = vunpack.c.l.b16 %v304
    %v4088 = vunpack.c.h.b16 %v304
    %v4089 = vunpack.c.l.b16 %v305
    %v4090 = vunpack.c.h.b16 %v305
    %v4091 = vunpack.c.l.b16 %v306
    %v4092 = vunpack.c.h.b16 %v306
    %v4093 = vunpack.c.l.b16 %v307
    %v4094 = vunpack.c.h.b16 %v307
    %v4095 = vunpack.c.l.b16 %v308
    %v4096 = vunpack.c.h.b16 %v308
    %v4097 = vunpack.c.l.b16 %v309
    %v4098 = vunpack.c.h.b16 %v309
    %v4099 = vunpack.c.l.b16 %v310
    %v4100 = vunpack.c.h.b16 %v310
    %v4101 = vunpack.c.l.b16 %v311
    %v4102 = vunpack.c.h.b16 %v311
    %v4103 = vunpack.c.l.b16 %v312
    %v4104 = vunpack.c.h.b16 %v312
    %v4105 = vunpack.c.l.b16 %v313
    %v4106 = vunpack.c.h.b16 %v313
    %v4107 = vunpack.c.l.b16 %v314
    %v4108 = vunpack.c.h.b16 %v314
    %v4109 = vunpack.c.l.b16 %v315
    %v4110 = vunpack.c.h.b16 %v315
    %v4111 = vunpack.c.l.b16 %v316
    %v4112 = vunpack.c.h.b16 %v316
    %v4113 = vunpack.c.l.b16 %v317
    %v4114 = vunpack.c.h.b16 %v317
    %v4115 = vunpack.c.l.b16 %v318
    %v4116 = vunpack.c.h.b16 %v318
    %v4117 = vunpack.c.l.b16 %v319
    %v4118 = vunpack.c.h.b16 %v319
    %v4119 = vunpack.c.l.b16 %v320
    %v4120 = vunpack.c.h.b16 %v320
    %v4121 = vunpack.c.l.b16 %v321
    %v4122 = vunpack.c.h.b16 %v321
    %v4123 = vunpack.c.l.b16 %v322
    %v4124 = vunpack.c.h.b16 %v322
    %v4125 = vunpack.c.l.b16 %v323
    %v4126 = vunpack.c.h.b16 %v323
    %v4127 = vunpack.c.l.b16 %v324
    %v4128 = vunpack.c.h.b16 %v324
    %v4129 = vunpack.c.l.b16 %v325
    %v4130 = vunpack.c.h.b16 %v325
    %v4131 = vunpack.c.l.b16 %v326
    %v4132 = vunpack.c.h.b16 %v326
    %v4133 = vunpack.c.l.b16 %v327
    %v4134 = vunpack.c.h.b16 %v327
    %v4135 = vunpack.c.l.b16 %v328
    %v4136 = vunpack.c.h.b16 %v328
    %v4137 = vunpack.c.l.b16 %v329
    %v4138 = vunpack.c.h.b16 %v329
    %v4139 = vunpack.c.l.b16 %v330
    %v4140 = vunpack.c.h.b16 %v330
    %v4141 = vunpack.c.l.b16 %v331
    %v4142 = vunpack.c.h.b16 %v331
    %v4143 = vunpack.c.l.b16 %v332
    %v4144 = vunpack.c.h.b16 %v332
    %v4145 = vunpack.c.l.b16 %v333
    %v4146 = vunpack.c.h.b16 %v333
    %v4147 = vunpack.c.l.b16 %v334
    %v4148 = vunpack.c.h.b16 %v334
    %v4149 = vunpack.c.l.b16 %v335
    %v4150 = vunpack.c.h.b16 %v335
    %v4151 = vunpack.c.l.b16 %v336
    %v4152 = vunpack.c.h.b16 %v336
    %v4153 = vunpack.c.l.b16 %v337
    %v4154 = vunpack.c.h.b16 %v337
    %v4155 = vunpack.c.l.b16 %v338
    %v4156 = vunpack.c.h.b16 %v338
    %v4157 = vunpack.c.l.b16 %v339
    %v4158 = vunpack.c.h.b16 %v339
    %v4159 = vunpack.c.l.b16 %v340
    %v4160 = vunpack.c.h.b16 %v340
    %v4161 = vunpack.c.l.b16 %v341
    %v4162 = vunpack.c.h.b16 %v341
    %v4163 = vunpack.c.l.b16 %v342
    %v4164 = vunpack.c.h.b16 %v342
    %v4165 = vunpack.c.l.b16 %v343
    %v4166 = vunpack.c.h.b16 %v343
    %v4167 = vunpack.c.l.b16 %v344
    %v4168 = vunpack.c.h.b16 %v344
    %v4169 = vunpack.c.l.b16 %v345
    %v4170 = vunpack.c.h.b16 %v345
    %v4171 = vunpack.c.l.b16 %v346
    %v4172 = vunpack.c.h.b16 %v346
    %v4173 = vunpack.c.l.b16 %v347
    %v4174 = vunpack.c.h.b16 %v347
    %v4175 = vunpack.c.l.b16 %v348
    %v4176 = vunpack.c.h.b16 %v348
    %v4177 = vunpack.c.l.b16 %v349
    %v4178 = vunpack.c.h.b16 %v349
    %v4179 = vunpack.c.l.b16 %v350
    %v4180 = vunpack.c.h.b16 %v350
    %v4181 = vunpack.c.l.b16 %v351
    %v4182 = vunpack.c.h.b16 %v351
    %v4183 = vunpack.c.l.b16 %v352
    %v4184 = vunpack.c.h.b16 %v352
    %v4185 = vunpack.c.l.b16 %v353
    %v4186 = vunpack.c.h.b16 %v353
    %v4187 = vunpack.c.l.b16 %v354
    %v4188 = vunpack.c.h.b16 %v354
    %v4189 = vunpack.c.l.b16 %v355
    %v4190 = vunpack.c.h.b16 %v355
    %v4191 = vunpack.c.l.b16 %v356
    %v4192 = vunpack.c.h.b16 %v356
    %v4193 = vunpack.c.l.b16 %v357
    %v4194 = vunpack.c.h.b16 %v357
    %v4195 = vunpack.c.l.b16 %v358
    %v4196 = vunpack.c.h.b16 %v358
    %v4197 = vunpack.c.l.b16 %v359
    %v4198 = vunpack.c.h.b16 %v359
    %v4199 = vunpack.c.l.b16 %v360
    %v4200 = vunpack.c.h.b16 %v360
    %v4201 = vunpack.c.l.b16 %v361
    %v4202 = vunpack.c.h.b16 %v361
    %v4203 = vunpack.c.l.b16 %v362
    %v4204 = vunpack.c.h.b16 %v362
    %v4205 = vunpack.c.l.b16 %v363
    %v4206 = vunpack.c.h.b16 %v363
    %v4207 = vunpack.c.l.b16 %v364
    %v4208 = vunpack.c.h.b16 %v364
    %v4209 = vunpack.c.l.b16 %v365
    %v4210 = vunpack.c.h.b16 %v365
    %v4211 = vunpack.c.l.b16 %v366
    %v4212 = vunpack.c.h.b16 %v366
    %v4213 = vunpack.c.l.b16 %v367
    %v4214 = vunpack.c.h.b16 %v367
    %v4215 = vunpack.c.l.b16 %v368
    %v4216 = vunpack.c.h.b16 %v368
    %v4217 = vunpack.c.l.b16 %v369
    %v4218 = vunpack.c.h.b16 %v369
    %v4219 = vunpack.c.l.b16 %v370
    %v4220 = vunpack.c.h.b16 %v370
    %v4221 = vunpack.c.l.b16 %v371
    %v4222 = vunpack.c.h.b16 %v371
    %v4223 = vunpack.c.l.b16 %v372
    %v4224 = vunpack.c.h.b16 %v372
    %v4225 = vunpack.c.l.b16 %v373
    %v4226 = vunpack.c.h.b16 %v373
    %v4227 = vunpack.c.l.b16 %v374
    %v4228 = vunpack.c.h.b16 %v374
    %v4229 = vunpack.c.l.b16 %v375
    %v4230 = vunpack.c.h.b16 %v375
    %v4231 = vunpack.c.l.b16 %v376
    %v4232 = vunpack.c.h.b16 %v376
    %v4233 = vunpack.c.l.b16 %v377
    %v4234 = vunpack.c.h.b16 %v377
    %v4235 = vunpack.c.l.b16 %v378
    %v4236 = vunpack.c.h.b16 %v378
    %v4237 = vunpack.c.l.b16 %v379
    %v4238 = vunpack.c.h.b16 %v379
    %v4239 = vunpack.c.l.b16 %v380
    %v4240 = vunpack.c.h.b16 %v380
    %v4241 = vunpack.c.l.b16 %v381
    %v4242 = vunpack.c.h.b16 %v381
    %v4243 = vunpack.c.l.b16 %v382
    %v4244 = vunpack.c.h.b16 %v382
    %v4245 = vunpack.c.l.b16 %v383
    %v4246 = vunpack.c.h.b16 %v383
    %v4247 = vunpack.c.l.b16 %v384
    %v4248 = vunpack.c.h.b16 %v384
    %v4249 = vunpack.c.l.b16 %v385
    %v4250 = vunpack.c.h.b16 %v385
    %v4251 = vunpack.c.l.b16 %v386
    %v4252 = vunpack.c.h.b16 %v386
    %v4253 = vunpack.c.l.b16 %v387
    %v4254 = vunpack.c.h.b16 %v387
    %v4255 = vunpack.c.l.b16 %v388
    %v4256 = vunpack.c.h.b16 %v388
    %v4257 = vunpack.c.l.b16 %v389
    %v4258 = vunpack.c.h.b16 %v389
    %v4259 = vunpack.c.l.b16 %v390
    %v4260 = vunpack.c.h.b16 %v390
    %v4261 = vunpack.c.l.b16 %v391
    %v4262 = vunpack.c.h.b16 %v391
    %v4263 = vunpack.c.l.b16 %v392
    %v4264 = vunpack.c.h.b16 %v392
    %v4265 = vunpack.c.l.b16 %v393
    %v4266 = vunpack.c.h.b16 %v393
    %v4267 = vunpack.c.l.b16 %v394
    %v4268 = vunpack.c.h.b16 %v394
    %v4269 = vunpack.c.l.b16 %v395
    %v4270 = vunpack.c.h.b16 %v395
    %v4271 = vunpack.c.l.b16 %v396
    %v4272 = vunpack.c.h.b16 %v396
    %v4273 = vunpack.c.l.b16 %v397
    %v4274 = vunpack.c.h.b16 %v397
    %v4275 = vunpack.c.l.b16 %v398
    %v4276 = vunpack.c.h.b16 %v398
    %v4277 = vunpack.c.l.b16 %v399
    %v4278 = vunpack.c.h.b16 %v399
    %v4279 = vunpack.c.l.b16 %v400
    %v4280 = vunpack.c.h.b16 %v400
    %v4281 = vunpack.c.l.b16 %v401
    %v4282 = vunpack.c.h.b16 %v401
    %v4283 = vunpack.c.l.b16 %v402
    %v4284 = vunpack.c.h.b16 %v402
    %v4285 = vunpack.c.l.b16 %v403
    %v4286 = vunpack.c.h.b16 %v403
    %v4287 = vunpack.c.l.b16 %v404
    %v4288 = vunpack.c.h.b16 %v404
    %v4289 = vunpack.c.l.b16 %v405
    %v4290 = vunpack.c.h.b16 %v405
    %v4291 = vunpack.c.l.b16 %v406
    %v4292 = vunpack.c.h.b16 %v406
    %v4293 = vunpack.c.l.b16 %v407
    %v4294 = vunpack.c.h.b16 %v407
    %v4295 = vunpack.c.l.b16 %v408
    %v4296 = vunpack.c.h.b16 %v408
    %v4297 = vunpack.c.l.b16 %v409
    %v4298 = vunpack.c.h.b16 %v409
    %v4299 = vunpack.c.l.b16 %v410
    %v4300 = vunpack.c.h.b16 %v410
    %v4301 = vunpack.c.l.b16 %v411
    %v4302 = vunpack.c.h.b16 %v411
    %v4303 = vunpack.c.l.b16 %v412
    %v4304 = vunpack.c.h.b16 %v412
    %v4305 = vunpack.c.l.b16 %v413
    %v4306 = vunpack.c.h.b16 %v413
    %v4307 = vunpack.c.l.b16 %v414
    %v4308 = vunpack.c.h.b16 %v414
    %v4309 = vunpack.c.l.b16 %v415
    %v4310 = vunpack.c.h.b16 %v415
    %v4311 = vunpack.c.l.b16 %v416
    %v4312 = vunpack.c.h.b16 %v416
    %v4313 = vunpack.c.l.b16 %v417
    %v4314 = vunpack.c.h.b16 %v417
    %v4315 = vunpack.c.l.b16 %v418
    %v4316 = vunpack.c.h.b16 %v418
    %v4317 = vunpack.c.l.b16 %v419
    %v4318 = vunpack.c.h.b16 %v419
    %v4319 = vunpack.c.l.b16 %v420
    %v4320 = vunpack.c.h.b16 %v420
    %v4321 = vunpack.c.l.b16 %v421
    %v4322 = vunpack.c.h.b16 %v421
    %v4323 = vunpack.c.l.b16 %v422
    %v4324 = vunpack.c.h.b16 %v422
    %v4325 = vunpack.c.l.b16 %v423
    %v4326 = vunpack.c.h.b16 %v423
    %v4327 = vunpack.c.l.b16 %v424
    %v4328 = vunpack.c.h.b16 %v424
    %v4329 = vunpack.c.l.b16 %v425
    %v4330 = vunpack.c.h.b16 %v425
    %v4331 = vunpack.c.l.b16 %v426
    %v4332 = vunpack.c.h.b16 %v426
    %v4333 = vunpack.c.l.b16 %v427
    %v4334 = vunpack.c.h.b16 %v427
    %v4335 = vunpack.c.l.b16 %v428
    %v4336 = vunpack.c.h.b16 %v428
    %v4337 = vunpack.c.l.b16 %v429
    %v4338 = vunpack.c.h.b16 %v429
    %v4339 = vunpack.c.l.b16 %v430
    %v4340 = vunpack.c.h.b16 %v430
    %v4341 = vunpack.c.l.b16 %v431
    %v4342 = vunpack.c.h.b16 %v431
    %v4343 = vunpack.c.l.b16 %v432
    %v4344 = vunpack.c.h.b16 %v432
    %v4345 = vunpack.c.l.b16 %v433
    %v4346 = vunpack.c.h.b16 %v433
    %v4347 = vunpack.c.l.b16 %v434
    %v4348 = vunpack.c.h.b16 %v434
    %v4349 = vunpack.c.l.b16 %v435
    %v4350 = vunpack.c.h.b16 %v435
    %v4351 = vunpack.c.l.b16 %v436
    %v4352 = vunpack.c.h.b16 %v436
    %v4353 = vunpack.c.l.b16 %v437
    %v4354 = vunpack.c.h.b16 %v437
    %v4355 = vunpack.c.l.b16 %v438
    %v4356 = vunpack.c.h.b16 %v438
    %v4357 = vunpack.c.l.b16 %v439
    %v4358 = vunpack.c.h.b16 %v439
    %v4359 = vunpack.c.l.b16 %v440
    %v4360 = vunpack.c.h.b16 %v440
    %v4361 = vunpack.c.l.b16 %v441
    %v4362 = vunpack.c.h.b16 %v441
    %v4363 = vunpack.c.l.b16 %v442
    %v4364 = vunpack.c.h.b16 %v442
    %v4365 = vunpack.c.l.b16 %v443
    %v4366 = vunpack.c.h.b16 %v443
    %v4367 = vunpack.c.l.b16 %v444
    %v4368 = vunpack.c.h.b16 %v444
    %v4369 = vunpack.c.l.b16 %v445
    %v4370 = vunpack.c.h.b16 %v445
    %v4371 = vunpack.c.l.b16 %v446
    %v4372 = vunpack.c.h.b16 %v446
    %v4373 = vunpack.c.l.b16 %v447
    %v4374 = vunpack.c.h.b16 %v447
    %v4375 = vunpack.c.l.b16 %v448
    %v4376 = vunpack.c.h.b16 %v448
    %v4377 = vunpack.c.l.b16 %v449
    %v4378 = vunpack.c.h.b16 %v449
    %v4379 = vunpack.c.l.b16 %v450
    %v4380 = vunpack.c.h.b16 %v450
    %v4381 = vunpack.c.l.b16 %v451
    %v4382 = vunpack.c.h.b16 %v451
    %v4383 = vunpack.c.l.b16 %v452
    %v4384 = vunpack.c.h.b16 %v452
    %v4385 = vunpack.c.l.b16 %v453
    %v4386 = vunpack.c.h.b16 %v453
    %v4387 = vunpack.c.l.b16 %v454
    %v4388 = vunpack.c.h.b16 %v454
    %v4389 = vunpack.c.l.b16 %v455
    %v4390 = vunpack.c.h.b16 %v455
    %v4391 = vunpack.c.l.b16 %v456
    %v4392 = vunpack.c.h.b16 %v456
    %v4393 = vunpack.c.l.b16 %v457
    %v4394 = vunpack.c.h.b16 %v457
    %v4395 = vunpack.c.l.b16 %v458
    %v4396 = vunpack.c.h.b16 %v458
    %v4397 = vunpack.c.l.b16 %v459
    %v4398 = vunpack.c.h.b16 %v459
    %v4399 = vunpack.c.l.b16 %v460
    %v4400 = vunpack.c.h.b16 %v460
    %v4401 = vunpack.c.l.b16 %v461
    %v4402 = vunpack.c.h.b16 %v461
    %v4403 = vunpack.c.l.b16 %v462
    %v4404 = vunpack.c.h.b16 %v462
    %v4405 = vunpack.c.l.b16 %v463
    %v4406 = vunpack.c.h.b16 %v463
    %v4407 = vunpack.c.l.b16 %v464
    %v4408 = vunpack.c.h.b16 %v464
    %v4409 = vunpack.c.l.b16 %v465
    %v4410 = vunpack.c.h.b16 %v465
    %v4411 = vunpack.c.l.b16 %v466
    %v4412 = vunpack.c.h.b16 %v466
    %v4413 = vunpack.c.l.b16 %v467
    %v4414 = vunpack.c.h.b16 %v467
    %v4415 = vunpack.c.l.b16 %v468
    %v4416 = vunpack.c.h.b16 %v468
    %v4417 = vunpack.c.l.b16 %v469
    %v4418 = vunpack.c.h.b16 %v469
    %v4419 = vunpack.c.l.b16 %v470
    %v4420 = vunpack.c.h.b16 %v470
    %v4421 = vunpack.c.l.b16 %v471
    %v4422 = vunpack.c.h.b16 %v471
    %v4423 = vunpack.c.l.b16 %v472
    %v4424 = vunpack.c.h.b16 %v472
    %v4425 = vunpack.c.l.b16 %v473
    %v4426 = vunpack.c.h.b16 %v473
    %v4427 = vunpack.c.l.b16 %v474
    %v4428 = vunpack.c.h.b16 %v474
    %v4429 = vunpack.c.l.b16 %v475
    %v4430 = vunpack.c.h.b16 %v475
    %v4431 = vunpack.c.l.b16 %v476
    %v4432 = vunpack.c.h.b16 %v476
    %v4433 = vunpack.c.l.b16 %v477
    %v4434 = vunpack.c.h.b16 %v477
    %v4435 = vunpack.c.l.b16 %v478
    %v4436 = vunpack.c.h.b16 %v478
    %v4437 = vunpack.c.l.b16 %v479
    %v4438 = vunpack.c.h.b16 %v479
    %v4439 = vunpack.c.l.b16 %v480
    %v4440 = vunpack.c.h.b16 %v480
    %v4441 = vunpack.c.l.b16 %v481
    %v4442 = vunpack.c.h.b16 %v481
    %v4443 = vunpack.c.l.b16 %v482
    %v4444 = vunpack.c.h.b16 %v482
    %v4445 = vunpack.c.l.b16 %v483
    %v4446 = vunpack.c.h.b16 %v483
    %v4447 = vunpack.c.l.b16 %v484
    %v4448 = vunpack.c.h.b16 %v484
    %v4449 = vunpack.c.l.b16 %v485
    %v4450 = vunpack.c.h.b16 %v485
    %v4451 = vunpack.c.l.b16 %v486
    %v4452 = vunpack.c.h.b16 %v486
    %v4453 = vunpack.c.l.b16 %v487
    %v4454 = vunpack.c.h.b16 %v487
    %v4455 = vunpack.c.l.b16 %v488
    %v4456 = vunpack.c.h.b16 %v488
    %v4457 = vunpack.c.l.b16 %v489
    %v4458 = vunpack.c.h.b16 %v489
    %v4459 = vunpack.c.l.b16 %v490
    %v4460 = vunpack.c.h.b16 %v490
    %v4461 = vunpack.c.l.b16 %v491
    %v4462 = vunpack.c.h.b16 %v491
    %v4463 = vunpack.c.l.b16 %v492
    %v4464 = vunpack.c.h.b16 %v492
    %v4465 = vunpack.c.l.b16 %v493
    %v4466 = vunpack.c.h.b16 %v493
    %v4467 = vunpack.c.l.b16 %v494
    %v4468 = vunpack.c.h.b16 %v494
    %v4469 = vunpack.c.l.b16 %v495
    %v4470 = vunpack.c.h.b16 %v495
    %v4471 = vunpack.c.l.b16 %v496
    %v4472 = vunpack.c.h.b16 %v496
    %v4473 = vunpack.c.l.b16 %v497
    %v4474 = vunpack.c.h.b16 %v497
    %v4475 = vunpack.c.l.b16 %v498
    %v4476 = vunpack.c.h.b16 %v498
    %v4477 = vunpack.c.l.b16 %v499
    %v4478 = vunpack.c.h.b16 %v499
    %v4479 = vunpack.c.l.b16 %v500
    %v4480 = vunpack.c.h.b16 %v500
    %v4481 = vunpack.c.l.b16 %v501
    %v4482 = vunpack.c.h.b16 %v501
    %v4483 = vunpack.c.l.b16 %v502
    %v4484 = vunpack.c.h.b16 %v502
    %v4485 = vunpack.c.l.b16 %v503
    %v4486 = vunpack.c.h.b16 %v503
    %v4487 = vunpack.c.l.b16 %v504
    %v4488 = vunpack.c.h.b16 %v504
    %v4489 = vunpack.c.l.b16 %v505
    %v4490 = vunpack.c.h.b16 %v505
    %v4491 = vunpack.c.l.b16 %v506
    %v4492 = vunpack.c.h.b16 %v506
    %v4493 = vunpack.c.l.b16 %v507
    %v4494 = vunpack.c.h.b16 %v507
    %v4495 = vunpack.c.l.b16 %v508
    %v4496 = vunpack.c.h.b16 %v508
    %v4497 = vunpack.c.l.b16 %v509
    %v4498 = vunpack.c.h.b16 %v509
    %v4499 = vunpack.c.l.b16 %v510
    %v4500 = vunpack.c.h.b16 %v510
    %v4501 = vunpack.c.l.b16 %v511
    %v4502 = vunpack.c.h.b16 %v511
    %v4503 = vunpack.c.l.b16 %v512
    %v4504 = vunpack.c.h.b16 %v512
    %v4505 = vunpack.c.l.b16 %v513
    %v4506 = vunpack.c.h.b16 %v513
    %v4507 = vunpack.c.l.b16 %v514
    %v4508 = vunpack.c.h.b16 %v514
    %v4509 = vunpack.c.l.b16 %v515
    %v4510 = vunpack.c.h.b16 %v515
    %v4511 = vunpack.c.l.b16 %v516
    %v4512 = vunpack.c.h.b16 %v516
    %v4513 = vunpack.c.l.b16 %v517
    %v4514 = vunpack.c.h.b16 %v517
    %v4515 = vunpack.c.l.b16 %v518
    %v4516 = vunpack.c.h.b16 %v518
    %v4517 = vunpack.c.l.b16 %v519
    %v4518 = vunpack.c.h.b16 %v519
    %v4519 = vunpack.c.l.b16 %v520
    %v4520 = vunpack.c.h.b16 %v520
    %v4521 = vunpack.c.l.b16 %v521
    %v4522 = vunpack.c.h.b16 %v521
    %v4523 = vunpack.c.l.b16 %v522
    %v4524 = vunpack.c.h.b16 %v522
    %v4525 = vunpack.c.l.b16 %v523
    %v4526 = vunpack.c.h.b16 %v523
    %v4527 = vunpack.c.l.b16 %v524
    %v4528 = vunpack.c.h.b16 %v524
    %v4529 = vunpack.c.l.b16 %v525
    %v4530 = vunpack.c.h.b16 %v525
    %v4531 = vunpack.c.l.b16 %v526
    %v4532 = vunpack.c.h.b16 %v526
    %v4533 = vunpack.c.l.b16 %v527
    %v4534 = vunpack.c.h.b16 %v527
    %v4535 = vunpack.c.l.b16 %v528
    %v4536 = vunpack.c.h.b16 %v528
    %v4537 = vunpack.c.l.b16 %v529
    %v4538 = vunpack.c.h.b16 %v529
    %v4539 = vunpack.c.l.b16 %v530
    %v4540 = vunpack.c.h.b16 %v530
    %v4541 = vunpack.c.l.b16 %v531
    %v4542 = vunpack.c.h.b16 %v531
    %v4543 = vunpack.c.l.b16 %v532
    %v4544 = vunpack.c.h.b16 %v532
    %v4545 = vunpack.c.l.b16 %v533
    %v4546 = vunpack.c.h.b16 %v533
    %v4547 = vunpack.c.l.b16 %v534
    %v4548 = vunpack.c.h.b16 %v534
    %v4549 = vunpack.c.l.b16 %v535
    %v4550 = vunpack.c.h.b16 %v535
    %v4551 = vunpack.c.l.b16 %v536
    %v4552 = vunpack.c.h.b16 %v536
    %v4553 = vunpack.c.l.b16 %v537
    %v4554 = vunpack.c.h.b16 %v537
    %v4555 = vunpack.c.l.b16 %v538
    %v4556 = vunpack.c.h.b16 %v538
    %v4557 = vunpack.c.l.b16 %v539
    %v4558 = vunpack.c.h.b16 %v539
    %v4559 = vunpack.c.l.b16 %v540
    %v4560 = vunpack.c.h.b16 %v540
    %v4561 = vunpack.c.l.b16 %v541
    %v4562 = vunpack.c.h.b16 %v541
    %v4563 = vunpack.c.l.b16 %v542
    %v4564 = vunpack.c.h.b16 %v542
    %v4565 = vunpack.c.l.b16 %v543
    %v4566 = vunpack.c.h.b16 %v543
    %v4567 = vunpack.c.l.b16 %v544
    %v4568 = vunpack.c.h.b16 %v544
    %v4569 = vunpack.c.l.b16 %v545
    %v4570 = vunpack.c.h.b16 %v545
    %v4571 = vunpack.c.l.b16 %v546
    %v4572 = vunpack.c.h.b16 %v546
    %v4573 = vunpack.c.l.b16 %v547
    %v4574 = vunpack.c.h.b16 %v547
    %v4575 = vunpack.c.l.b16 %v548
    %v4576 = vunpack.c.h.b16 %v548
    %v4577 = vunpack.c.l.b16 %v549
    %v4578 = vunpack.c.h.b16 %v549
    %v4579 = vunpack.c.l.b16 %v550
    %v4580 = vunpack.c.h.b16 %v550
    %v4581 = vunpack.c.l.b16 %v551
    %v4582 = vunpack.c.h.b16 %v551
    %v4583 = vunpack.c.l.b16 %v552
    %v4584 = vunpack.c.h.b16 %v552
    %v4585 = vunpack.c.l.b16 %v553
    %v4586 = vunpack.c.h.b16 %v553
    %v4587 = vunpack.c.l.b16 %v554
    %v4588 = vunpack.c.h.b16 %v554
    %v4589 = vunpack.c.l.b16 %v555
    %v4590 = vunpack.c.h.b16 %v555
    %v4591 = vunpack.c.l.b16 %v556
    %v4592 = vunpack.c.h.b16 %v556
    %v4593 = vunpack.c.l.b16 %v557
    %v4594 = vunpack.c.h.b16 %v557
    %v4595 = vunpack.c.l.b16 %v558
    %v4596 = vunpack.c.h.b16 %v558
    %v4597 = vunpack.c.l.b16 %v559
    %v4598 = vunpack.c.h.b16 %v559
    %v4599 = vunpack.c.l.b16 %v560
    %v4600 = vunpack.c.h.b16 %v560
    %v4601 = vunpack.c.l.b16 %v561
    %v4602 = vunpack.c.h.b16 %v561
    %v4603 = vunpack.c.l.b16 %v562
    %v4604 = vunpack.c.h.b16 %v562
    %v4605 = vunpack.c.l.b16 %v563
    %v4606 = vunpack.c.h.b16 %v563
    %v4607 = vunpack.c.l.b16 %v564
    %v4608 = vunpack.c.h.b16 %v564
    %v4609 = vunpack.c.l.b16 %v565
    %v4610 = vunpack.c.h.b16 %v565
    %v4611 = vunpack.c.l.b16 %v566
    %v4612 = vunpack.c.h.b16 %v566
    %v4613 = vunpack.c.l.b16 %v567
    %v4614 = vunpack.c.h.b16 %v567
    %v4615 = vunpack.c.l.b16 %v568
    %v4616 = vunpack.c.h.b16 %v568
    %v4617 = vunpack.c.l.b16 %v569
    %v4618 = vunpack.c.h.b16 %v569
    %v4619 = vunpack.c.l.b16 %v570
    %v4620 = vunpack.c.h.b16 %v570
    %v4621 = vunpack.c.l.b16 %v571
    %v4622 = vunpack.c.h.b16 %v571
    %v4623 = vunpack.c.l.b16 %v572
    %v4624 = vunpack.c.h.b16 %v572
    %v4625 = vunpack.c.l.b16 %v573
    %v4626 = vunpack.c.h.b16 %v573
    %v4627 = vunpack.c.l.b16 %v574
    %v4628 = vunpack.c.h.b16 %v574
    %v4629 = vunpack.c.l.b16 %v575
    %v4630 = vunpack.c.h.b16 %v575
    %v4631 = vunpack.c.l.b16 %v576
    %v4632 = vunpack.c.h.b16 %v576
    %v4633 = vunpack.c.l.b16 %v577
    %v4634 = vunpack.c.h.b16 %v577
    %v4635 = vunpack.c.l.b16 %v578
    %v4636 = vunpack.c.h.b16 %v578
    %v4637 = vunpack.c.l.b16 %v579
    %v4638 = vunpack.c.h.b16 %v579
    %v4639 = vunpack.c.l.b16 %v580
    %v4640 = vunpack.c.h.b16 %v580
    %v4641 = vunpack.c.l.b16 %v581
    %v4642 = vunpack.c.h.b16 %v581
    %v4643 = vunpack.c.l.b16 %v582
    %v4644 = vunpack.c.h.b16 %v582
    %v4645 = vunpack.c.l.b16 %v583
    %v4646 = vunpack.c.h.b16 %v583
    %v4647 = vunpack.c.l.b16 %v584
    %v4648 = vunpack.c.h.b16 %v584
    %v4649 = vunpack.c.l.b16 %v585
    %v4650 = vunpack.c.h.b16 %v585
    %v4651 = vunpack.c.l.b16 %v586
    %v4652 = vunpack.c.h.b16 %v586
    %v4653 = vunpack.c.l.b16 %v587
    %v4654 = vunpack.c.h.b16 %v587
    %v4655 = vunpack.c.l.b16 %v588
    %v4656 = vunpack.c.h.b16 %v588
    %v4657 = vunpack.c.l.b16 %v589
    %v4658 = vunpack.c.h.b16 %v589
    %v4659 = vunpack.c.l.b16 %v590
    %v4660 = vunpack.c.h.b16 %v590
    %v4661 = vunpack.c.l.b16 %v591
    %v4662 = vunpack.c.h.b16 %v591
    %v4663 = vunpack.c.l.b16 %v592
    %v4664 = vunpack.c.h.b16 %v592
    %v4665 = vunpack.c.l.b16 %v593
    %v4666 = vunpack.c.h.b16 %v593
    %v4667 = vunpack.c.l.b16 %v594
    %v4668 = vunpack.c.h.b16 %v594
    %v4669 = vunpack.c.l.b16 %v595
    %v4670 = vunpack.c.h.b16 %v595
    %v4671 = vunpack.c.l.b16 %v596
    %v4672 = vunpack.c.h.b16 %v596
    %v4673 = vunpack.c.l.b16 %v597
    %v4674 = vunpack.c.h.b16 %v597
    %v4675 = vunpack.c.l.b16 %v598
    %v4676 = vunpack.c.h.b16 %v598
    %v4677 = vunpack.c.l.b16 %v599
    %v4678 = vunpack.c.h.b16 %v599
    %v4679 = vunpack.c.l.b16 %v600
    %v4680 = vunpack.c.h.b16 %v600
    %v4681 = vunpack.c.l.b16 %v601
    %v4682 = vunpack.c.h.b16 %v601
    %v4683 = vunpack.c.l.b16 %v602
    %v4684 = vunpack.c.h.b16 %v602
    %v4685 = vunpack.c.l.b16 %v603
    %v4686 = vunpack.c.h.b16 %v603
    %v4687 = vunpack.c.l.b16 %v604
    %v4688 = vunpack.c.h.b16 %v604
    %v4689 = vunpack.c.l.b16 %v605
    %v4690 = vunpack.c.h.b16 %v605
    %v4691 = vunpack.c.l.b16 %v606
    %v4692 = vunpack.c.h.b16 %v606
    %v4693 = vunpack.c.l.b16 %v607
    %v4694 = vunpack.c.h.b16 %v607
    %v4695 = vunpack.c.l.b16 %v608
    %v4696 = vunpack.c.h.b16 %v608
    %v4697 = vunpack.c.l.b16 %v609
    %v4698 = vunpack.c.h.b16 %v609
    %v4699 = vunpack.c.l.b16 %v610
    %v4700 = vunpack.c.h.b16 %v610
    %v4701 = vunpack.c.l.b16 %v611
    %v4702 = vunpack.c.h.b16 %v611
    %v4703 = vunpack.c.l.b16 %v612
    %v4704 = vunpack.c.h.b16 %v612
    %v4705 = vunpack.c.l.b16 %v613
    %v4706 = vunpack.c.h.b16 %v613
    %v4707 = vunpack.c.l.b16 %v614
    %v4708 = vunpack.c.h.b16 %v614
    %v4709 = vunpack.c.l.b16 %v615
    %v4710 = vunpack.c.h.b16 %v615
    %v4711 = vunpack.c.l.b16 %v616
    %v4712 = vunpack.c.h.b16 %v616
    %v4713 = vunpack.c.l.b16 %v617
    %v4714 = vunpack.c.h.b16 %v617
    %v4715 = vunpack.c.l.b16 %v618
    %v4716 = vunpack.c.h.b16 %v618
    %v4717 = vunpack.c.l.b16 %v619
    %v4718 = vunpack.c.h.b16 %v619
    %v4719 = vunpack.c.l.b16 %v620
    %v4720 = vunpack.c.h.b16 %v620
    %v4721 = vunpack.c.l.b16 %v621
    %v4722 = vunpack.c.h.b16 %v621
    %v4723 = vunpack.c.l.b16 %v622
    %v4724 = vunpack.c.h.b16 %v622
    %v4725 = vunpack.c.l.b16 %v623
    %v4726 = vunpack.c.h.b16 %v623
    %v4727 = vunpack.c.l.b16 %v624
    %v4728 = vunpack.c.h.b16 %v624
    %v4729 = vunpack.c.l.b16 %v625
    %v4730 = vunpack.c.h.b16 %v625
    %v4731 = vunpack.c.l.b16 %v626
    %v4732 = vunpack.c.h.b16 %v626
    %v4733 = vunpack.c.l.b16 %v627
    %v4734 = vunpack.c.h.b16 %v627
    %v4735 = vunpack.c.l.b16 %v628
    %v4736 = vunpack.c.h.b16 %v628
    %v4737 = vunpack.c.l.b16 %v629
    %v4738 = vunpack.c.h.b16 %v629
    %v4739 = vunpack.c.l.b16 %v630
    %v4740 = vunpack.c.h.b16 %v630
    %v4741 = vunpack.c.l.b16 %v631
    %v4742 = vunpack.c.h.b16 %v631
    %v4743 = vunpack.c.l.b16 %v632
    %v4744 = vunpack.c.h.b16 %v632
    %v4745 = vunpack.c.l.b16 %v633
    %v4746 = vunpack.c.h.b16 %v633
    %v4747 = vunpack.c.l.b16 %v634
    %v4748 = vunpack.c.h.b16 %v634
    %v4749 = vunpack.c.l.b16 %v635
    %v4750 = vunpack.c.h.b16 %v635
    %v4751 = vunpack.c.l.b16 %v636
    %v4752 = vunpack.c.h.b16 %v636
    %v4753 = vunpack.c.l.b16 %v637
    %v4754 = vunpack.c.h.b16 %v637
    %v4755 = vunpack.c.l.b16 %v638
    %v4756 = vunpack.c.h.b16 %v638
    %v4757 = vunpack.c.l.b16 %v639
    %v4758 = vunpack.c.h.b16 %v639
    %v4759 = vunpack.c.l.b16 %v640
    %v4760 = vunpack.c.h.b16 %v640
    %v4761 = vunpack.c.l.b16 %v641
    %v4762 = vunpack.c.h.b16 %v641
    %v4763 = vunpack.c.l.b16 %v642
    %v4764 = vunpack.c.h.b16 %v642
    %v4765 = vunpack.c.l.b16 %v643
    %v4766 = vunpack.c.h.b16 %v643
    %v4767 = vunpack.c.l.b16 %v644
    %v4768 = vunpack.c.h.b16 %v644
    %v4769 = vunpack.c.l.b16 %v645
    %v4770 = vunpack.c.h.b16 %v645
    %v4771 = vunpack.c.l.b16 %v646
    %v4772 = vunpack.c.h.b16 %v646
    %v4773 = vunpack.c.l.b16 %v647
    %v4774 = vunpack.c.h.b16 %v647
    %v4775 = vunpack.c.l.b16 %v648
    %v4776 = vunpack.c.h.b16 %v648
    %v4777 = vunpack.c.l.b16 %v649
    %v4778 = vunpack.c.h.b16 %v649
    %v4779 = vunpack.c.l.b16 %v650
    %v4780 = vunpack.c.h.b16 %v650
    %v4781 = vunpack.c.l.b16 %v651
    %v4782 = vunpack.c.h.b16 %v651
    %v4783 = vunpack.c.l.b16 %v652
    %v4784 = vunpack.c.h.b16 %v652
    %v4785 = vunpack.c.l.b16 %v653
    %v4786 = vunpack.c.h.b16 %v653
    %v4787 = vunpack.c.l.b16 %v654
    %v4788 = vunpack.c.h.b16 %v654
    %v4789 = vunpack.c.l.b16 %v655
    %v4790 = vunpack.c.h.b16 %v655
    %v4791 = vunpack.c.l.b16 %v656
    %v4792 = vunpack.c.h.b16 %v656
    %v4793 = vunpack.c.l.b16 %v657
    %v4794 = vunpack.c.h.b16 %v657
    %v4795 = vunpack.c.l.b16 %v658
    %v4796 = vunpack.c.h.b16 %v658
    %v4797 = vunpack.c.l.b16 %v659
    %v4798 = vunpack.c.h.b16 %v659
    %v4799 = vunpack.c.l.b16 %v660
    %v4800 = vunpack.c.h.b16 %v660
    %v4801 = vunpack.c.l.b16 %v661
    %v4802 = vunpack.c.h.b16 %v661
    %v4803 = vunpack.c.l.b16 %v662
    %v4804 = vunpack.c.h.b16 %v662
    %v4805 = vunpack.c.l.b16 %v663
    %v4806 = vunpack.c.h.b16 %v663
    %v4807 = vunpack.c.l.b16 %v664
    %v4808 = vunpack.c.h.b16 %v664
    %v4809 = vunpack.c.l.b16 %v665
    %v4810 = vunpack.c.h.b16 %v665
    %v4811 = vunpack.c.l.b16 %v666
    %v4812 = vunpack.c.h.b16 %v666
    %v4813 = vunpack.c.l.b16 %v667
    %v4814 = vunpack.c.h.b16 %v667
    %v4815 = vunpack.c.l.b16 %v668
    %v4816 = vunpack.c.h.b16 %v668
    %v4817 = vunpack.c.l.b16 %v669
    %v4818 = vunpack.c.h.b16 %v669
    %v4819 = vunpack.c.l.b16 %v670
    %v4820 = vunpack.c.h.b16 %v670
    %v4821 = vunpack.c.l.b16 %v671
    %v4822 = vunpack.c.h.b16 %v671
    %v4823 = vunpack.c.l.b16 %v672
    %v4824 = vunpack.c.h.b16 %v672
    %v4825 = vunpack.c.l.b16 %v673
    %v4826 = vunpack.c.h.b16 %v673
    %v4827 = vunpack.c.l.b16 %v674
    %v4828 = vunpack.c.h.b16 %v674
    %v4829 = vunpack.c.l.b16 %v675
    %v4830 = vunpack.c.h.b16 %v675
    %v4831 = vunpack.c.l.b16 %v676
    %v4832 = vunpack.c.h.b16 %v676
    %v4833 = vunpack.c.l.b16 %v677
    %v4834 = vunpack.c.h.b16 %v677
    %v4835 = vunpack.c.l.b16 %v678
    %v4836 = vunpack.c.h.b16 %v678
    %v4837 = vunpack.c.l.b16 %v679
    %v4838 = vunpack.c.h.b16 %v679
    %v4839 = vunpack.c.l.b16 %v680
    %v4840 = vunpack.c.h.b16 %v680
    %v4841 = vunpack.c.l.b16 %v681
    %v4842 = vunpack.c.h.b16 %v681
    %v4843 = vunpack.c.l.b16 %v682
    %v4844 = vunpack.c.h.b16 %v682
    %v4845 = vunpack.c.l.b16 %v683
    %v4846 = vunpack.c.h.b16 %v683
    %v4847 = vunpack.c.l.b16 %v684
    %v4848 = vunpack.c.h.b16 %v684
    %v4849 = vunpack.c.l.b16 %v685
    %v4850 = vunpack.c.h.b16 %v685
    %v4851 = vunpack.c.l.b16 %v686
    %v4852 = vunpack.c.h.b16 %v686
    %v4853 = vunpack.c.l.b16 %v687
    %v4854 = vunpack.c.h.b16 %v687
    %v4855 = vunpack.c.l.b16 %v688
    %v4856 = vunpack.c.h.b16 %v688
    %v4857 = vunpack.c.l.b16 %v689
    %v4858 = vunpack.c.h.b16 %v689
    %v4859 = vunpack.c.l.b16 %v690
    %v4860 = vunpack.c.h.b16 %v690
    %v4861 = vunpack.c.l.b16 %v691
    %v4862 = vunpack.c.h.b16 %v691
    %v4863 = vunpack.c.l.b16 %v692
    %v4864 = vunpack.c.h.b16 %v692
    %v4865 = vunpack.c.l.b16 %v693
    %v4866 = vunpack.c.h.b16 %v693
    %v4867 = vunpack.c.l.b16 %v694
    %v4868 = vunpack.c.h.b16 %v694
    %v4869 = vunpack.c.l.b16 %v695
    %v4870 = vunpack.c.h.b16 %v695
    %v4871 = vunpack.c.l.b16 %v696
    %v4872 = vunpack.c.h.b16 %v696
    %v4873 = vunpack.c.l.b16 %v697
    %v4874 = vunpack.c.h.b16 %v697
    %v4875 = vunpack.c.l.b16 %v698
    %v4876 = vunpack.c.h.b16 %v698
    %v4877 = vunpack.c.l.b16 %v699
    %v4878 = vunpack.c.h.b16 %v699
    %v4879 = vunpack.c.l.b16 %v700
    %v4880 = vunpack.c.h.b16 %v700
    %v4881 = vunpack.c.l.b16 %v701
    %v4882 = vunpack.c.h.b16 %v701
    %v4883 = vunpack.c.l.b16 %v702
    %v4884 = vunpack.c.h.b16 %v702
    %v4885 = vunpack.c.l.b16 %v703
    %v4886 = vunpack.c.h.b16 %v703
    %v4887 = vunpack.c.l.b16 %v704
    %v4888 = vunpack.c.h.b16 %v704
    %v4889 = vunpack.c.l.b16 %v705
    %v4890 = vunpack.c.h.b16 %v705
    %v4891 = vunpack.c.l.b16 %v706
    %v4892 = vunpack.c.h.b16 %v706
    %v4893 = vunpack.c.l.b16 %v707
    %v4894 = vunpack.c.h.b16 %v707
    %v4895 = vunpack.c.l.b16 %v708
    %v4896 = vunpack.c.h.b16 %v708
    %v4897 = vunpack.c.l.b16 %v709
    %v4898 = vunpack.c.h.b16 %v709
    %v4899 = vunpack.c.l.b16 %v710
    %v4900 = vunpack.c.h.b16 %v710
    %v4901 = vunpack.c.l.b16 %v711
    %v4902 = vunpack.c.h.b16 %v711
    %v4903 = vunpack.c.l.b16 %v712
    %v4904 = vunpack.c.h.b16 %v712
    %v4905 = vunpack.c.l.b16 %v713
    %v4906 = vunpack.c.h.b16 %v713
    %v4907 = vunpack.c.l.b16 %v714
    %v4908 = vunpack.c.h.b16 %v714
    %v4909 = vunpack.c.l.b16 %v715
    %v4910 = vunpack.c.h.b16 %v715
    %v4911 = vunpack.c.l.b16 %v716
    %v4912 = vunpack.c.h.b16 %v716
    %v4913 = vunpack.c.l.b16 %v717
    %v4914 = vunpack.c.h.b16 %v717
    %v4915 = vunpack.c.l.b16 %v718
    %v4916 = vunpack.c.h.b16 %v718
    %v4917 = vunpack.c.l.b16 %v719
    %v4918 = vunpack.c.h.b16 %v719
    %v4919 = vunpack.c.l.b16 %v720
    %v4920 = vunpack.c.h.b16 %v720
    %v4921 = vunpack.c.l.b16 %v721
    %v4922 = vunpack.c.h.b16 %v721
    %v4923 = vunpack.c.l.b16 %v722
    %v4924 = vunpack.c.h.b16 %v722
    %v4925 = vunpack.c.l.b16 %v723
    %v4926 = vunpack.c.h.b16 %v723
    %v4927 = vunpack.c.l.b16 %v724
    %v4928 = vunpack.c.h.b16 %v724
    %v4929 = vunpack.c.l.b16 %v725
    %v4930 = vunpack.c.h.b16 %v725
    %v4931 = vunpack.c.l.b16 %v726
    %v4932 = vunpack.c.h.b16 %v726
    %v4933 = vunpack.c.l.b16 %v727
    %v4934 = vunpack.c.h.b16 %v727
    %v4935 = vunpack.c.l.b16 %v728
    %v4936 = vunpack.c.h.b16 %v728
    %v4937 = vunpack.c.l.b16 %v729
    %v4938 = vunpack.c.h.b16 %v729
    %v4939 = vunpack.c.l.b16 %v730
    %v4940 = vunpack.c.h.b16 %v730
    %v4941 = vunpack.c.l.b16 %v731
    %v4942 = vunpack.c.h.b16 %v731
    %v4943 = vunpack.c.l.b16 %v732
    %v4944 = vunpack.c.h.b16 %v732
    %v4945 = vunpack.c.l.b16 %v733
    %v4946 = vunpack.c.h.b16 %v733
    %v4947 = vunpack.c.l.b16 %v734
    %v4948 = vunpack.c.h.b16 %v734
    %v4949 = vunpack.c.l.b16 %v735
    %v4950 = vunpack.c.h.b16 %v735
    %v4951 = vunpack.c.l.b16 %v736
    %v4952 = vunpack.c.h.b16 %v736
    %v4953 = vunpack.c.l.b16 %v737
    %v4954 = vunpack.c.h.b16 %v737
    %v4955 = vunpack.c.l.b16 %v738
    %v4956 = vunpack.c.h.b16 %v738
    %v4957 = vunpack.c.l.b16 %v739
    %v4958 = vunpack.c.h.b16 %v739
    %v4959 = vunpack.c.l.b16 %v740
    %v4960 = vunpack.c.h.b16 %v740
    %v4961 = vunpack.c.l.b16 %v741
    %v4962 = vunpack.c.h.b16 %v741
    %v4963 = vunpack.c.l.b16 %v742
    %v4964 = vunpack.c.h.b16 %v742
    %v4965 = vunpack.c.l.b16 %v743
    %v4966 = vunpack.c.h.b16 %v743
    %v4967 = vunpack.c.l.b16 %v744
    %v4968 = vunpack.c.h.b16 %v744
    %v4969 = vunpack.c.l.b16 %v745
    %v4970 = vunpack.c.h.b16 %v745
    %v4971 = vunpack.c.l.b16 %v746
    %v4972 = vunpack.c.h.b16 %v746
    %v4973 = vunpack.c.l.b16 %v747
    %v4974 = vunpack.c.h.b16 %v747
    %v4975 = vunpack.c.l.b16 %v748
    %v4976 = vunpack.c.h.b16 %v748
    %v4977 = vunpack.c.l.b16 %v749
    %v4978 = vunpack.c.h.b16 %v749
    %v4979 = vunpack.c.l.b16 %v750
    %v4980 = vunpack.c.h.b16 %v750
    %v4981 = vunpack.c.l.b16 %v751
    %v4982 = vunpack.c.h.b16 %v751
    %v4983 = vunpack.c.l.b16 %v752
    %v4984 = vunpack.c.h.b16 %v752
    %v4985 = vunpack.c.l.b16 %v753
    %v4986 = vunpack.c.h.b16 %v753
    %v4987 = vunpack.c.l.b16 %v754
    %v4988 = vunpack.c.h.b16 %v754
    %v4989 = vunpack.c.l.b16 %v755
    %v4990 = vunpack.c.h.b16 %v755
    %v4991 = vunpack.c.l.b16 %v756
    %v4992 = vunpack.c.h.b16 %v756
    %v4993 = vunpack.c.l.b16 %v757
    %v4994 = vunpack.c.h.b16 %v757
    %v4995 = vunpack.c.l.b16 %v758
    %v4996 = vunpack.c.h.b16 %v758
    %v4997 = vunpack.c.l.b16 %v759
    %v4998 = vunpack.c.h.b16 %v759
    %v4999 = vunpack.c.l.b16 %v760
    %v5000 = vunpack.c.h.b16 %v760
    %v5001 = vunpack.c.l.b16 %v761
    %v5002 = vunpack.c.h.b16 %v761
    %v5003 = vunpack.c.l.b16 %v762
    %v5004 = vunpack.c.h.b16 %v762
    %v5005 = vunpack.c.l.b16 %v763
    %v5006 = vunpack.c.h.b16 %v763
    %v5007 = vunpack.c.l.b16 %v764
    %v5008 = vunpack.c.h.b16 %v764
    %v5009 = vunpack.c.l.b16 %v765
    %v5010 = vunpack.c.h.b16 %v765
    %v5011 = vunpack.c.l.b16 %v766
    %v5012 = vunpack.c.h.b16 %v766
    %v5013 = vunpack.c.l.b16 %v767
    %v5014 = vunpack.c.h.b16 %v767
    %v5015 = vunpack.c.l.b16 %v768
    %v5016 = vunpack.c.h.b16 %v768
    %v5017 = vunpack.c.l.b16 %v769
    %v5018 = vunpack.c.h.b16 %v769
    %v5019 = vunpack.c.l.b16 %v770
    %v5020 = vunpack.c.h.b16 %v770
    %v5021 = vunpack.c.l.b16 %v771
    %v5022 = vunpack.c.h.b16 %v771
    %v5023 = vunpack.c.l.b16 %v772
    %v5024 = vunpack.c.h.b16 %v772
    %v5025 = vunpack.c.l.b16 %v773
    %v5026 = vunpack.c.h.b16 %v773
    %v5027 = vunpack.c.l.b16 %v774
    %v5028 = vunpack.c.h.b16 %v774
    %v5029 = vunpack.c.l.b16 %v775
    %v5030 = vunpack.c.h.b16 %v775
    %v5031 = vunpack.c.l.b16 %v776
    %v5032 = vunpack.c.h.b16 %v776
    %v5033 = vunpack.c.l.b16 %v777
    %v5034 = vunpack.c.h.b16 %v777
    %v5035 = vunpack.c.l.b16 %v778
    %v5036 = vunpack.c.h.b16 %v778
    %v5037 = vunpack.c.l.b16 %v779
    %v5038 = vunpack.c.h.b16 %v779
    %v5039 = vunpack.c.l.b16 %v780
    %v5040 = vunpack.c.h.b16 %v780
    %v5041 = vunpack.c.l.b16 %v781
    %v5042 = vunpack.c.h.b16 %v781
    %v5043 = vunpack.c.l.b16 %v782
    %v5044 = vunpack.c.h.b16 %v782
    %v5045 = vunpack.c.l.b16 %v783
    %v5046 = vunpack.c.h.b16 %v783
    %v5047 = vunpack.c.l.b16 %v784
    %v5048 = vunpack.c.h.b16 %v784
    %v5049 = vunpack.c.l.b16 %v785
    %v5050 = vunpack.c.h.b16 %v785
    %v5051 = vunpack.c.l.b16 %v786
    %v5052 = vunpack.c.h.b16 %v786
    %v5053 = vunpack.c.l.b16 %v787
    %v5054 = vunpack.c.h.b16 %v787
    %v5055 = vunpack.c.l.b16 %v788
    %v5056 = vunpack.c.h.b16 %v788
    %v5057 = vunpack.c.l.b16 %v789
    %v5058 = vunpack.c.h.b16 %v789
    %v5059 = vunpack.c.l.b16 %v790
    %v5060 = vunpack.c.h.b16 %v790
    %v5061 = vunpack.c.l.b16 %v791
    %v5062 = vunpack.c.h.b16 %v791
    %v5063 = vunpack.c.l.b16 %v792
    %v5064 = vunpack.c.h.b16 %v792
    %v5065 = vunpack.c.l.b16 %v793
    %v5066 = vunpack.c.h.b16 %v793
    %v5067 = vunpack.c.l.b16 %v794
    %v5068 = vunpack.c.h.b16 %v794
    %v5069 = vunpack.c.l.b16 %v795
    %v5070 = vunpack.c.h.b16 %v795
    %v5071 = vunpack.c.l.b16 %v796
    %v5072 = vunpack.c.h.b16 %v796
    %v5073 = vunpack.c.l.b16 %v797
    %v5074 = vunpack.c.h.b16 %v797
    %v5075 = vunpack.c.l.b16 %v798
    %v5076 = vunpack.c.h.b16 %v798
    %v5077 = vunpack.c.l.b16 %v799
    %v5078 = vunpack.c.h.b16 %v799
    %v5079 = vunpack.c.l.b16 %v800
    %v5080 = vunpack.c.h.b16 %v800
    %v5081 = vunpack.c.l.b16 %v801
    %v5082 = vunpack.c.h.b16 %v801
    %v5083 = vunpack.c.l.b16 %v802
    %v5084 = vunpack.c.h.b16 %v802
    %v5085 = vunpack.c.l.b16 %v803
    %v5086 = vunpack.c.h.b16 %v803
    %v5087 = vunpack.c.l.b16 %v804
    %v5088 = vunpack.c.h.b16 %v804
    %v5089 = vunpack.c.l.b16 %v805
    %v5090 = vunpack.c.h.b16 %v805
    %v5091 = vunpack.c.l.b16 %v806
    %v5092 = vunpack.c.h.b16 %v806
    %v5093 = vunpack.c.l.b16 %v807
    %v5094 = vunpack.c.h.b16 %v807
    %v5095 = vunpack.c.l.b16 %v808
    %v5096 = vunpack.c.h.b16 %v808
    %v5097 = vunpack.c.l.b16 %v809
    %v5098 = vunpack.c.h.b16 %v809
    %v5099 = vunpack.c.l.b16 %v810
    %v5100 = vunpack.c.h.b16 %v810
    %v5101 = vunpack.c.l.b16 %v811
    %v5102 = vunpack.c.h.b16 %v811
    %v5103 = vunpack.c.l.b16 %v812
    %v5104 = vunpack.c.h.b16 %v812
    %v5105 = vunpack.c.l.b16 %v813
    %v5106 = vunpack.c.h.b16 %v813
    %v5107 = vunpack.c.l.b16 %v814
    %v5108 = vunpack.c.h.b16 %v814
    %v5109 = vunpack.c.l.b16 %v815
    %v5110 = vunpack.c.h.b16 %v815
    %v5111 = vunpack.c.l.b16 %v816
    %v5112 = vunpack.c.h.b16 %v816
    %v5113 = vunpack.c.l.b16 %v817
    %v5114 = vunpack.c.h.b16 %v817
    %v5115 = vunpack.c.l.b16 %v818
    %v5116 = vunpack.c.h.b16 %v818
    %v5117 = vunpack.c.l.b16 %v819
    %v5118 = vunpack.c.h.b16 %v819
    %v5119 = vunpack.c.l.b16 %v820
    %v5120 = vunpack.c.h.b16 %v820
    %v5121 = vunpack.c.l.b16 %v821
    %v5122 = vunpack.c.h.b16 %v821
    %v5123 = vunpack.c.l.b16 %v822
    %v5124 = vunpack.c.h.b16 %v822
    %v5125 = vunpack.c.l.b16 %v823
    %v5126 = vunpack.c.h.b16 %v823
    %v5127 = vunpack.c.l.b16 %v824
    %v5128 = vunpack.c.h.b16 %v824
    %v5129 = vunpack.c.l.b16 %v825
    %v5130 = vunpack.c.h.b16 %v825
    %v5131 = vunpack.c.l.b16 %v826
    %v5132 = vunpack.c.h.b16 %v826
    %v5133 = vunpack.c.l.b16 %v827
    %v5134 = vunpack.c.h.b16 %v827
    %v5135 = vunpack.c.l.b16 %v828
    %v5136 = vunpack.c.h.b16 %v828
    %v5137 = vunpack.c.l.b16 %v829
    %v5138 = vunpack.c.h.b16 %v829
    %v5139 = vunpack.c.l.b16 %v830
    %v5140 = vunpack.c.h.b16 %v830
    %v5141 = vunpack.c.l.b16 %v831
    %v5142 = vunpack.c.h.b16 %v831
    %v5143 = vunpack.c.l.b16 %v832
    %v5144 = vunpack.c.h.b16 %v832
    %v5145 = vunpack.c.l.b16 %v833
    %v5146 = vunpack.c.h.b16 %v833
    %v5147 = vunpack.c.l.b16 %v834
    %v5148 = vunpack.c.h.b16 %v834
    %v5149 = vunpack.c.l.b16 %v835
    %v5150 = vunpack.c.h.b16 %v835
    %v5151 = vunpack.c.l.b16 %v836
    %v5152 = vunpack.c.h.b16 %v836
    %v5153 = vunpack.c.l.b16 %v837
    %v5154 = vunpack.c.h.b16 %v837
    %v5155 = vunpack.c.l.b16 %v838
    %v5156 = vunpack.c.h.b16 %v838
    %v5157 = vunpack.c.l.b16 %v839
    %v5158 = vunpack.c.h.b16 %v839
    %v5159 = vunpack.c.l.b16 %v840
    %v5160 = vunpack.c.h.b16 %v840
    %v5161 = vunpack.c.l.b16 %v841
    %v5162 = vunpack.c.h.b16 %v841
    %v5163 = vunpack.c.l.b16 %v842
    %v5164 = vunpack.c.h.b16 %v842
    %v5165 = vunpack.c.l.b16 %v843
    %v5166 = vunpack.c.h.b16 %v843
    %v5167 = vunpack.c.l.b16 %v844
    %v5168 = vunpack.c.h.b16 %v844
    %v5169 = vunpack.c.l.b16 %v845
    %v5170 = vunpack.c.h.b16 %v845
    %v5171 = vunpack.c.l.b16 %v846
    %v5172 = vunpack.c.h.b16 %v846
    %v5173 = vunpack.c.l.b16 %v847
    %v5174 = vunpack.c.h.b16 %v847
    %v5175 = vunpack.c.l.b16 %v848
    %v5176 = vunpack.c.h.b16 %v848
    %v5177 = vunpack.c.l.b16 %v849
    %v5178 = vunpack.c.h.b16 %v849
    %v5179 = vunpack.c.l.b16 %v850
    %v5180 = vunpack.c.h.b16 %v850
    %v5181 = vunpack.c.l.b16 %v851
    %v5182 = vunpack.c.h.b16 %v851
    %v5183 = vunpack.c.l.b16 %v852
    %v5184 = vunpack.c.h.b16 %v852
    %v5185 = vunpack.c.l.b16 %v853
    %v5186 = vunpack.c.h.b16 %v853
    %v5187 = vunpack.c.l.b16 %v854
    %v5188 = vunpack.c.h.b16 %v854
    %v5189 = vunpack.c.l.b16 %v855
    %v5190 = vunpack.c.h.b16 %v855
    %v5191 = vunpack.c.l.b16 %v856
    %v5192 = vunpack.c.h.b16 %v856
    %v5193 = vunpack.c.l.b16 %v857
    %v5194 = vunpack.c.h.b16 %v857
    %v5195 = vunpack.c.l.b16 %v858
    %v5196 = vunpack.c.h.b16 %v858
    %v5197 = vunpack.c.l.b16 %v859
    %v5198 = vunpack.c.h.b16 %v859
    %v5199 = vunpack.c.l.b16 %v860
    %v5200 = vunpack.c.h.b16 %v860
    %v5201 = vunpack.c.l.b16 %v861
    %v5202 = vunpack.c.h.b16 %v861
    %v5203 = vunpack.c.l.b16 %v862
    %v5204 = vunpack.c.h.b16 %v862
    %v5205 = vunpack.c.l.b16 %v863
    %v5206 = vunpack.c.h.b16 %v863
    %v5207 = vunpack.c.l.b16 %v864
    %v5208 = vunpack.c.h.b16 %v864
    %v5209 = vunpack.c.l.b16 %v865
    %v5210 = vunpack.c.h.b16 %v865
    %v5211 = vunpack.c.l.b16 %v866
    %v5212 = vunpack.c.h.b16 %v866
    %v5213 = vunpack.c.l.b16 %v867
    %v5214 = vunpack.c.h.b16 %v867
    %v5215 = vunpack.c.l.b16 %v868
    %v5216 = vunpack.c.h.b16 %v868
    %v5217 = vunpack.c.l.b16 %v869
    %v5218 = vunpack.c.h.b16 %v869
    %v5219 = vunpack.c.l.b16 %v870
    %v5220 = vunpack.c.h.b16 %v870
    %v5221 = vunpack.c.l.b16 %v871
    %v5222 = vunpack.c.h.b16 %v871
    %v5223 = vunpack.c.l.b16 %v872
    %v5224 = vunpack.c.h.b16 %v872
    %v5225 = vunpack.c.l.b16 %v873
    %v5226 = vunpack.c.h.b16 %v873
    %v5227 = vunpack.c.l.b16 %v874
    %v5228 = vunpack.c.h.b16 %v874
    %v5229 = vunpack.c.l.b16 %v875
    %v5230 = vunpack.c.h.b16 %v875
    %v5231 = vunpack.c.l.b16 %v876
    %v5232 = vunpack.c.h.b16 %v876
    %v5233 = vunpack.c.l.b16 %v877
    %v5234 = vunpack.c.h.b16 %v877
    %v5235 = vunpack.c.l.b16 %v878
    %v5236 = vunpack.c.h.b16 %v878
    %v5237 = vunpack.c.l.b16 %v879
    %v5238 = vunpack.c.h.b16 %v879
    %v5239 = vunpack.c.l.b16 %v880
    %v5240 = vunpack.c.h.b16 %v880
    %v5241 = vunpack.c.l.b16 %v881
    %v5242 = vunpack.c.h.b16 %v881
    %v5243 = vunpack.c.l.b16 %v882
    %v5244 = vunpack.c.h.b16 %v882
    %v5245 = vunpack.c.l.b16 %v883
    %v5246 = vunpack.c.h.b16 %v883
    %v5247 = vunpack.c.l.b16 %v884
    %v5248 = vunpack.c.h.b16 %v884
    %v5249 = vunpack.c.l.b16 %v885
    %v5250 = vunpack.c.h.b16 %v885
    %v5251 = vunpack.c.l.b16 %v886
    %v5252 = vunpack.c.h.b16 %v886
    %v5253 = vunpack.c.l.b16 %v887
    %v5254 = vunpack.c.h.b16 %v887
    %v5255 = vunpack.c.l.b16 %v888
    %v5256 = vunpack.c.h.b16 %v888
    %v5257 = vunpack.c.l.b16 %v889
    %v5258 = vunpack.c.h.b16 %v889
    %v5259 = vunpack.c.l.b16 %v890
    %v5260 = vunpack.c.h.b16 %v890
    %v5261 = vunpack.c.l.b16 %v891
    %v5262 = vunpack.c.h.b16 %v891
    %v5263 = vunpack.c.l.b16 %v892
    %v5264 = vunpack.c.h.b16 %v892
    %v5265 = vunpack.c.l.b16 %v893
    %v5266 = vunpack.c.h.b16 %v893
    %v5267 = vunpack.c.l.b16 %v894
    %v5268 = vunpack.c.h.b16 %v894
    %v5269 = vunpack.c.l.b16 %v895
    %v5270 = vunpack.c.h.b16 %v895
    %v5271 = vunpack.c.l.b16 %v896
    %v5272 = vunpack.c.h.b16 %v896
    %v5273 = vunpack.c.l.b16 %v897
    %v5274 = vunpack.c.h.b16 %v897
    %v5275 = vunpack.c.l.b16 %v898
    %v5276 = vunpack.c.h.b16 %v898
    %v5277 = vunpack.c.l.b16 %v899
    %v5278 = vunpack.c.h.b16 %v899
    %v5279 = vunpack.c.l.b16 %v900
    %v5280 = vunpack.c.h.b16 %v900
    %v5281 = vunpack.c.l.b16 %v901
    %v5282 = vunpack.c.h.b16 %v901
    %v5283 = vunpack.c.l.b16 %v902
    %v5284 = vunpack.c.h.b16 %v902
    %v5285 = vunpack.c.l.b16 %v903
    %v5286 = vunpack.c.h.b16 %v903
    %v5287 = vunpack.c.l.b16 %v904
    %v5288 = vunpack.c.h.b16 %v904
    %v5289 = vunpack.c.l.b16 %v905
    %v5290 = vunpack.c.h.b16 %v905
    %v5291 = vunpack.c.l.b16 %v906
    %v5292 = vunpack.c.h.b16 %v906
    %v5293 = vunpack.c.l.b16 %v907
    %v5294 = vunpack.c.h.b16 %v907
    %v5295 = vunpack.c.l.b16 %v908
    %v5296 = vunpack.c.h.b16 %v908
    %v5297 = vunpack.c.l.b16 %v909
    %v5298 = vunpack.c.h.b16 %v909
    %v5299 = vunpack.c.l.b16 %v910
    %v5300 = vunpack.c.h.b16 %v910
    %v5301 = vunpack.c.l.b16 %v911
    %v5302 = vunpack.c.h.b16 %v911
    %v5303 = vunpack.c.l.b16 %v912
    %v5304 = vunpack.c.h.b16 %v912
    %v5305 = vunpack.c.l.b16 %v913
    %v5306 = vunpack.c.h.b16 %v913
    %v5307 = vunpack.c.l.b16 %v914
    %v5308 = vunpack.c.h.b16 %v914
    %v5309 = vunpack.c.l.b16 %v915
    %v5310 = vunpack.c.h.b16 %v915
    %v5311 = vunpack.c.l.b16 %v916
    %v5312 = vunpack.c.h.b16 %v916
    %v5313 = vunpack.c.l.b16 %v917
    %v5314 = vunpack.c.h.b16 %v917
    %v5315 = vunpack.c.l.b16 %v918
    %v5316 = vunpack.c.h.b16 %v918
    %v5317 = vunpack.c.l.b16 %v919
    %v5318 = vunpack.c.h.b16 %v919
    %v5319 = vunpack.c.l.b16 %v920
    %v5320 = vunpack.c.h.b16 %v920
    %v5321 = vunpack.c.l.b16 %v921
    %v5322 = vunpack.c.h.b16 %v921
    %v5323 = vunpack.c.l.b16 %v922
    %v5324 = vunpack.c.h.b16 %v922
    %v5325 = vunpack.c.l.b16 %v923
    %v5326 = vunpack.c.h.b16 %v923
    %v5327 = vunpack.c.l.b16 %v924
    %v5328 = vunpack.c.h.b16 %v924
    %v5329 = vunpack.c.l.b16 %v925
    %v5330 = vunpack.c.h.b16 %v925
    %v5331 = vunpack.c.l.b16 %v926
    %v5332 = vunpack.c.h.b16 %v926
    %v5333 = vunpack.c.l.b16 %v927
    %v5334 = vunpack.c.h.b16 %v927
    %v5335 = vunpack.c.l.b16 %v928
    %v5336 = vunpack.c.h.b16 %v928
    %v5337 = vunpack.c.l.b16 %v929
    %v5338 = vunpack.c.h.b16 %v929
    %v5339 = vunpack.c.l.b16 %v930
    %v5340 = vunpack.c.h.b16 %v930
    %v5341 = vunpack.c.l.b16 %v931
    %v5342 = vunpack.c.h.b16 %v931
    %v5343 = vunpack.c.l.b16 %v932
    %v5344 = vunpack.c.h.b16 %v932
    %v5345 = vunpack.c.l.b16 %v933
    %v5346 = vunpack.c.h.b16 %v933
    %v5347 = vunpack.c.l.b16 %v934
    %v5348 = vunpack.c.h.b16 %v934
    %v5349 = vunpack.c.l.b16 %v935
    %v5350 = vunpack.c.h.b16 %v935
    %v5351 = vunpack.c.l.b16 %v936
    %v5352 = vunpack.c.h.b16 %v936
    %v5353 = vunpack.c.l.b16 %v937
    %v5354 = vunpack.c.h.b16 %v937
    %v5355 = vunpack.c.l.b16 %v938
    %v5356 = vunpack.c.h.b16 %v938
    %v5357 = vunpack.c.l.b16 %v939
    %v5358 = vunpack.c.h.b16 %v939
    %v5359 = vunpack.c.l.b16 %v940
    %v5360 = vunpack.c.h.b16 %v940
    %v5361 = vunpack.c.l.b16 %v941
    %v5362 = vunpack.c.h.b16 %v941
    %v5363 = vunpack.c.l.b16 %v942
    %v5364 = vunpack.c.h.b16 %v942
    %v5365 = vunpack.c.l.b16 %v943
    %v5366 = vunpack.c.h.b16 %v943
    %v5367 = vunpack.c.l.b16 %v944
    %v5368 = vunpack.c.h.b16 %v944
    %v5369 = vunpack.c.l.b16 %v945
    %v5370 = vunpack.c.h.b16 %v945
    %v5371 = vunpack.c.l.b16 %v946
    %v5372 = vunpack.c.h.b16 %v946
    %v5373 = vunpack.c.l.b16 %v947
    %v5374 = vunpack.c.h.b16 %v947
    %v5375 = vunpack.c.l.b16 %v948
    %v5376 = vunpack.c.h.b16 %v948
    %v5377 = vunpack.c.l.b16 %v949
    %v5378 = vunpack.c.h.b16 %v949
    %v5379 = vunpack.c.l.b16 %v950
    %v5380 = vunpack.c.h.b16 %v950
    %v5381 = vunpack.c.l.b16 %v951
    %v5382 = vunpack.c.h.b16 %v951
    %v5383 = vunpack.c.l.b16 %v952
    %v5384 = vunpack.c.h.b16 %v952
    %v5385 = vunpack.c.l.b16 %v953
    %v5386 = vunpack.c.h.b16 %v953
    %v5387 = vunpack.c.l.b16 %v954
    %v5388 = vunpack.c.h.b16 %v954
    %v5389 = vunpack.c.l.b16 %v955
    %v5390 = vunpack.c.h.b16 %v955
    %v5391 = vunpack.c.l.b16 %v956
    %v5392 = vunpack.c.h.b16 %v956
    %v5393 = vunpack.c.l.b16 %v957
    %v5394 = vunpack.c.h.b16 %v957
    %v5395 = vunpack.c.l.b16 %v958
    %v5396 = vunpack.c.h.b16 %v958
    %v5397 = vunpack.c.l.b16 %v959
    %v5398 = vunpack.c.h.b16 %v959
    %v5399 = vunpack.c.l.b16 %v960
    %v5400 = vunpack.c.h.b16 %v960
    %v5401 = vunpack.c.l.b16 %v961
    %v5402 = vunpack.c.h.b16 %v961
    %v5403 = vunpack.c.l.b16 %v962
    %v5404 = vunpack.c.h.b16 %v962
    %v5405 = vunpack.c.l.b16 %v963
    %v5406 = vunpack.c.h.b16 %v963
    %v5407 = vunpack.c.l.b16 %v964
    %v5408 = vunpack.c.h.b16 %v964
    %v5409 = vunpack.c.l.b16 %v965
    %v5410 = vunpack.c.h.b16 %v965
    %v5411 = vunpack.c.l.b16 %v966
    %v5412 = vunpack.c.h.b16 %v966
    %v5413 = vunpack.c.l.b16 %v967
    %v5414 = vunpack.c.h.b16 %v967
    %v5415 = vunpack.c.l.b16 %v968
    %v5416 = vunpack.c.h.b16 %v968
    %v5417 = vunpack.c.l.b16 %v969
    %v5418 = vunpack.c.h.b16 %v969
    %v5419 = vunpack.c.l.b16 %v970
    %v5420 = vunpack.c.h.b16 %v970
    %v5421 = vunpack.c.l.b16 %v971
    %v5422 = vunpack.c.h.b16 %v971
    %v5423 = vunpack.c.l.b16 %v972
    %v5424 = vunpack.c.h.b16 %v972
    %v5425 = vunpack.c.l.b16 %v973
    %v5426 = vunpack.c.h.b16 %v973
    %v5427 = vunpack.c.l.b16 %v974
    %v5428 = vunpack.c.h.b16 %v974
    %v5429 = vunpack.c.l.b16 %v975
    %v5430 = vunpack.c.h.b16 %v975
    %v5431 = vunpack.c.l.b16 %v976
    %v5432 = vunpack.c.h.b16 %v976
    %v5433 = vunpack.c.l.b16 %v977
    %v5434 = vunpack.c.h.b16 %v977
    %v5435 = vunpack.c.l.b16 %v978
    %v5436 = vunpack.c.h.b16 %v978
    %v5437 = vunpack.c.l.b16 %v979
    %v5438 = vunpack.c.h.b16 %v979
    %v5439 = vunpack.c.l.b16 %v980
    %v5440 = vunpack.c.h.b16 %v980
    %v5441 = vunpack.c.l.b16 %v981
    %v5442 = vunpack.c.h.b16 %v981
    %v5443 = vunpack.c.l.b16 %v982
    %v5444 = vunpack.c.h.b16 %v982
    %v5445 = vunpack.c.l.b16 %v983
    %v5446 = vunpack.c.h.b16 %v983
    %v5447 = vunpack.c.l.b16 %v984
    %v5448 = vunpack.c.h.b16 %v984
    %v5449 = vunpack.c.l.b16 %v985
    %v5450 = vunpack.c.h.b16 %v985
    %v5451 = vunpack.c.l.b16 %v986
    %v5452 = vunpack.c.h.b16 %v986
    %v5453 = vunpack.c.l.b16 %v987
    %v5454 = vunpack.c.h.b16 %v987
    %v5455 = vunpack.c.l.b16 %v988
    %v5456 = vunpack.c.h.b16 %v988
    %v5457 = vunpack.c.l.b16 %v989
    %v5458 = vunpack.c.h.b16 %v989
    %v5459 = vunpack.c.l.b16 %v990
    %v5460 = vunpack.c.h.b16 %v990
    %v5461 = vunpack.c.l.b16 %v991
    %v5462 = vunpack.c.h.b16 %v991
    %v5463 = vunpack.c.l.b16 %v992
    %v5464 = vunpack.c.h.b16 %v992
    %v5465 = vunpack.c.l.b16 %v993
    %v5466 = vunpack.c.h.b16 %v993
    %v5467 = vunpack.c.l.b16 %v994
    %v5468 = vunpack.c.h.b16 %v994
    %v5469 = vunpack.c.l.b16 %v995
    %v5470 = vunpack.c.h.b16 %v995
    %v5471 = vunpack.c.l.b16 %v996
    %v5472 = vunpack.c.h.b16 %v996
    %v5473 = vunpack.c.l.b16 %v997
    %v5474 = vunpack.c.h.b16 %v997
    %v5475 = vunpack.c.l.b16 %v998
    %v5476 = vunpack.c.h.b16 %v998
    %v5477 = vunpack.c.l.b16 %v999
    %v5478 = vunpack.c.h.b16 %v999
    %v5479 = vunpack.c.l.b16 %v1000
    %v5480 = vunpack.c.h.b16 %v1000
    %v5481 = vunpack.c.l.b16 %v1001
    %v5482 = vunpack.c.h.b16 %v1001
    %v5483 = vunpack.c.l.b16 %v1002
    %v5484 = vunpack.c.h.b16 %v1002
    %v5485 = vunpack.c.l.b16 %v1003
    %v5486 = vunpack.c.h.b16 %v1003
    %v5487 = vunpack.c.l.b16 %v1004
    %v5488 = vunpack.c.h.b16 %v1004
    %v5489 = vunpack.c.l.b16 %v1005
    %v5490 = vunpack.c.h.b16 %v1005
    %v5491 = vunpack.c.l.b16 %v1006
    %v5492 = vunpack.c.h.b16 %v1006
    %v5493 = vunpack.c.l.b16 %v1007
    %v5494 = vunpack.c.h.b16 %v1007
    %v5495 = vunpack.c.l.b16 %v1008
    %v5496 = vunpack.c.h.b16 %v1008
    %v5497 = vunpack.c.l.b16 %v1009
    %v5498 = vunpack.c.h.b16 %v1009
    %v5499 = vunpack.c.l.b16 %v1010
    %v5500 = vunpack.c.h.b16 %v1010
    %v5501 = vunpack.c.l.b16 %v1011
    %v5502 = vunpack.c.h.b16 %v1011
    %v5503 = vunpack.c.l.b16 %v1012
    %v5504 = vunpack.c.h.b16 %v1012
    %v5505 = vunpack.c.l.b16 %v1013
    %v5506 = vunpack.c.h.b16 %v1013
    %v5507 = vunpack.c.l.b16 %v1014
    %v5508 = vunpack.c.h.b16 %v1014
    %v5509 = vunpack.c.l.b16 %v1015
    %v5510 = vunpack.c.h.b16 %v1015
    %v5511 = vunpack.c.l.b16 %v1016
    %v5512 = vunpack.c.h.b16 %v1016
    %v5513 = vunpack.c.l.b16 %v1017
    %v5514 = vunpack.c.h.b16 %v1017
    %v5515 = vunpack.c.l.b16 %v1018
    %v5516 = vunpack.c.h.b16 %v1018
    %v5517 = vunpack.c.l.b16 %v1019
    %v5518 = vunpack.c.h.b16 %v1019
    %v5519 = vunpack.c.l.b16 %v1020
    %v5520 = vunpack.c.h.b16 %v1020
    %v5521 = vunpack.c.l.b16 %v1021
    %v5522 = vunpack.c.h.b16 %v1021
    %v5523 = vunpack.c.l.b16 %v1022
    %v5524 = vunpack.c.h.b16 %v1022
    %v5525 = vunpack.c.l.b16 %v1023
    %v5526 = vunpack.c.h.b16 %v1023
    %v5527 = vunpack.c.l.b16 %v1024
    %v5528 = vunpack.c.h.b16 %v1024
    %v5529 = vunpack.c.l.b16 %v1025
    %v5530 = vunpack.c.h.b16 %v1025
    %v5531 = vunpack.c.l.b16 %v1026
    %v5532 = vunpack.c.h.b16 %v1026
    %v5533 = vunpack.c.l.b16 %v1027
    %v5534 = vunpack.c.h.b16 %v1027
    %v5535 = vunpack.c.l.b16 %v1028
    %v5536 = vunpack.c.h.b16 %v1028
    %v5537 = vunpack.c.l.b16 %v1029
    %v5538 = vunpack.c.h.b16 %v1029
    %v5539 = vunpack.c.l.b16 %v1030
    %v5540 = vunpack.c.h.b16 %v1030
    %v5541 = vunpack.c.l.b16 %v1031
    %v5542 = vunpack.c.h.b16 %v1031
    %v5543 = vunpack.c.l.b16 %v1032
    %v5544 = vunpack.c.h.b16 %v1032
    %v5545 = vunpack.c.l.b16 %v1033
    %v5546 = vunpack.c.h.b16 %v1033
    %v5547 = vunpack.c.l.b16 %v1034
    %v5548 = vunpack.c.h.b16 %v1034
    %v5549 = vunpack.c.l.b16 %v1035
    %v5550 = vunpack.c.h.b16 %v1035
    %v5551 = vunpack.c.l.b16 %v1036
    %v5552 = vunpack.c.h.b16 %v1036
    %v5553 = vunpack.c.l.b16 %v1037
    %v5554 = vunpack.c.h.b16 %v1037
    %v5555 = vunpack.c.l.b16 %v1038
    %v5556 = vunpack.c.h.b16 %v1038
    %v5557 = vunpack.c.l.b16 %v1039
    %v5558 = vunpack.c.h.b16 %v1039
    %v5559 = vunpack.c.l.b16 %v1040
    %v5560 = vunpack.c.h.b16 %v1040
    %v5561 = vunpack.c.l.b16 %v1041
    %v5562 = vunpack.c.h.b16 %v1041
    %v5563 = vunpack.c.l.b16 %v1042
    %v5564 = vunpack.c.h.b16 %v1042
    %v5565 = vunpack.c.l.b16 %v1043
    %v5566 = vunpack.c.h.b16 %v1043
    %v5567 = vunpack.c.l.b16 %v1044
    %v5568 = vunpack.c.h.b16 %v1044
    %v5569 = vunpack.c.l.b16 %v1045
    %v5570 = vunpack.c.h.b16 %v1045
    %v5571 = vunpack.c.l.b16 %v1046
    %v5572 = vunpack.c.h.b16 %v1046
    %v5573 = vunpack.c.l.b16 %v1047
    %v5574 = vunpack.c.h.b16 %v1047
    %v5575 = vunpack.c.l.b16 %v1048
    %v5576 = vunpack.c.h.b16 %v1048
    %v5577 = vunpack.c.l.b16 %v1049
    %v5578 = vunpack.c.h.b16 %v1049
    %v5579 = vunpack.c.l.b16 %v1050
    %v5580 = vunpack.c.h.b16 %v1050
    %v5581 = vunpack.c.l.b16 %v1051
    %v5582 = vunpack.c.h.b16 %v1051
    %v5583 = vunpack.c.l.b16 %v1052
    %v5584 = vunpack.c.h.b16 %v1052
    %v5585 = vunpack.c.l.b16 %v1053
    %v5586 = vunpack.c.h.b16 %v1053
    %v5587 = vunpack.c.l.b16 %v1054
    %v5588 = vunpack.c.h.b16 %v1054
    %v5589 = vunpack.c.l.b16 %v1055
    %v5590 = vunpack.c.h.b16 %v1055
    %v5591 = vunpack.c.l.b16 %v1056
    %v5592 = vunpack.c.h.b16 %v1056
    %v5593 = vunpack.c.l.b16 %v1057
    %v5594 = vunpack.c.h.b16 %v1057
    %v5595 = vunpack.c.l.b16 %v1058
    %v5596 = vunpack.c.h.b16 %v1058
    %v5597 = vunpack.c.l.b16 %v1059
    %v5598 = vunpack.c.h.b16 %v1059
    %v5599 = vunpack.c.l.b16 %v1060
    %v5600 = vunpack.c.h.b16 %v1060
    %v5601 = vunpack.c.l.b16 %v1061
    %v5602 = vunpack.c.h.b16 %v1061
    %v5603 = vunpack.c.l.b16 %v1062
    %v5604 = vunpack.c.h.b16 %v1062
    %v5605 = vunpack.c.l.b16 %v1063
    %v5606 = vunpack.c.h.b16 %v1063
    %v5607 = vunpack.c.l.b16 %v1064
    %v5608 = vunpack.c.h.b16 %v1064
    %v5609 = vunpack.c.l.b16 %v1065
    %v5610 = vunpack.c.h.b16 %v1065
    %v5611 = vunpack.c.l.b16 %v1066
    %v5612 = vunpack.c.h.b16 %v1066
    %v5613 = vunpack.c.l.b16 %v1067
    %v5614 = vunpack.c.h.b16 %v1067
    %v5615 = vunpack.c.l.b16 %v1068
    %v5616 = vunpack.c.h.b16 %v1068
    %v5617 = vunpack.c.l.b16 %v1069
    %v5618 = vunpack.c.h.b16 %v1069
    %v5619 = vunpack.c.l.b16 %v1070
    %v5620 = vunpack.c.h.b16 %v1070
    %v5621 = vunpack.c.l.b16 %v1071
    %v5622 = vunpack.c.h.b16 %v1071
    %v5623 = vunpack.c.l.b16 %v1072
    %v5624 = vunpack.c.h.b16 %v1072
    %v5625 = vunpack.c.l.b16 %v1073
    %v5626 = vunpack.c.h.b16 %v1073
    %v5627 = vunpack.c.l.b16 %v1074
    %v5628 = vunpack.c.h.b16 %v1074
    %v5629 = vunpack.c.l.b16 %v1075
    %v5630 = vunpack.c.h.b16 %v1075
    %v5631 = vunpack.c.l.b16 %v1076
    %v5632 = vunpack.c.h.b16 %v1076
    %v5633 = vunpack.c.l.b16 %v1077
    %v5634 = vunpack.c.h.b16 %v1077
    %v5635 = vunpack.c.l.b16 %v1078
    %v5636 = vunpack.c.h.b16 %v1078
    %v5637 = vunpack.c.l.b16 %v1079
    %v5638 = vunpack.c.h.b16 %v1079
    %v5639 = vunpack.c.l.b16 %v1080
    %v5640 = vunpack.c.h.b16 %v1080
    %v5641 = vunpack.c.l.b16 %v1081
    %v5642 = vunpack.c.h.b16 %v1081
    %v5643 = vunpack.c.l.b16 %v1082
    %v5644 = vunpack.c.h.b16 %v1082
    %v5645 = vunpack.c.l.b16 %v1083
    %v5646 = vunpack.c.h.b16 %v1083
    %v5647 = vunpack.c.l.b16 %v1084
    %v5648 = vunpack.c.h.b16 %v1084
    %v5649 = vunpack.c.l.b16 %v1085
    %v5650 = vunpack.c.h.b16 %v1085
    %v5651 = vunpack.c.l.b16 %v1086
    %v5652 = vunpack.c.h.b16 %v1086
    %v5653 = vunpack.c.l.b16 %v1087
    %v5654 = vunpack.c.h.b16 %v1087
    %v5655 = vunpack.c.l.b16 %v1088
    %v5656 = vunpack.c.h.b16 %v1088
    %v5657 = vunpack.c.l.b16 %v1089
    %v5658 = vunpack.c.h.b16 %v1089
    %v5659 = vunpack.c.l.b16 %v1090
    %v5660 = vunpack.c.h.b16 %v1090
    %v5661 = vunpack.c.l.b16 %v1091
    %v5662 = vunpack.c.h.b16 %v1091
    %v5663 = vunpack.c.l.b16 %v1092
    %v5664 = vunpack.c.h.b16 %v1092
    %v5665 = vunpack.c.l.b16 %v1093
    %v5666 = vunpack.c.h.b16 %v1093
    %v5667 = vunpack.c.l.b16 %v1094
    %v5668 = vunpack.c.h.b16 %v1094
    %v5669 = vunpack.c.l.b16 %v1095
    %v5670 = vunpack.c.h.b16 %v1095
    %v5671 = vunpack.c.l.b16 %v1096
    %v5672 = vunpack.c.h.b16 %v1096
    %v5673 = vunpack.c.l.b16 %v1097
    %v5674 = vunpack.c.h.b16 %v1097
    %v5675 = vunpack.c.l.b16 %v1098
    %v5676 = vunpack.c.h.b16 %v1098
    %v5677 = vunpack.c.l.b16 %v1099
    %v5678 = vunpack.c.h.b16 %v1099
    %v5679 = vunpack.c.l.b16 %v1100
    %v5680 = vunpack.c.h.b16 %v1100
    %v5681 = vunpack.c.l.b16 %v1101
    %v5682 = vunpack.c.h.b16 %v1101
    %v5683 = vunpack.c.l.b16 %v1102
    %v5684 = vunpack.c.h.b16 %v1102
    %v5685 = vunpack.c.l.b16 %v1103
    %v5686 = vunpack.c.h.b16 %v1103
    %v5687 = vunpack.c.l.b16 %v1104
    %v5688 = vunpack.c.h.b16 %v1104
    %v5689 = vunpack.c.l.b16 %v1105
    %v5690 = vunpack.c.h.b16 %v1105
    %v5691 = vunpack.c.l.b16 %v1106
    %v5692 = vunpack.c.h.b16 %v1106
    %v5693 = vunpack.c.l.b16 %v1107
    %v5694 = vunpack.c.h.b16 %v1107
    %v5695 = vunpack.c.l.b16 %v1108
    %v5696 = vunpack.c.h.b16 %v1108
    %v5697 = vunpack.c.l.b16 %v1109
    %v5698 = vunpack.c.h.b16 %v1109
    %v5699 = vunpack.c.l.b16 %v1110
    %v5700 = vunpack.c.h.b16 %v1110
    %v5701 = vunpack.c.l.b16 %v1111
    %v5702 = vunpack.c.h.b16 %v1111
    %v5703 = vunpack.c.l.b16 %v1112
    %v5704 = vunpack.c.h.b16 %v1112
    %v5705 = vunpack.c.l.b16 %v1113
    %v5706 = vunpack.c.h.b16 %v1113
    %v5707 = vunpack.c.l.b16 %v1114
    %v5708 = vunpack.c.h.b16 %v1114
    %v5709 = vunpack.c.l.b16 %v1115
    %v5710 = vunpack.c.h.b16 %v1115
    %v5711 = vunpack.c.l.b16 %v1116
    %v5712 = vunpack.c.h.b16 %v1116
    %v5713 = vunpack.c.l.b16 %v1117
    %v5714 = vunpack.c.h.b16 %v1117
    %v5715 = vunpack.c.l.b16 %v1118
    %v5716 = vunpack.c.h.b16 %v1118
    %v5717 = vunpack.c.l.b16 %v1119
    %v5718 = vunpack.c.h.b16 %v1119
    %v5719 = vunpack.c.l.b16 %v1120
    %v5720 = vunpack.c.h.b16 %v1120
    %v5721 = vunpack.c.l.b16 %v1121
    %v5722 = vunpack.c.h.b16 %v1121
    %v5723 = vunpack.c.l.b16 %v1122
    %v5724 = vunpack.c.h.b16 %v1122
    %v5725 = vunpack.c.l.b16 %v1123
    %v5726 = vunpack.c.h.b16 %v1123
    %v5727 = vunpack.c.l.b16 %v1124
    %v5728 = vunpack.c.h.b16 %v1124
    %v5729 = vunpack.c.l.b16 %v1125
    %v5730 = vunpack.c.h.b16 %v1125
    %v5731 = vunpack.c.l.b16 %v1126
    %v5732 = vunpack.c.h.b16 %v1126
    %v5733 = vunpack.c.l.b16 %v1127
    %v5734 = vunpack.c.h.b16 %v1127
    %v5735 = vunpack.c.l.b16 %v1128
    %v5736 = vunpack.c.h.b16 %v1128
    %v5737 = vunpack.c.l.b16 %v1129
    %v5738 = vunpack.c.h.b16 %v1129
    %v5739 = vunpack.c.l.b16 %v1130
    %v5740 = vunpack.c.h.b16 %v1130
    %v5741 = vunpack.c.l.b16 %v1131
    %v5742 = vunpack.c.h.b16 %v1131
    %v5743 = vunpack.c.l.b16 %v1132
    %v5744 = vunpack.c.h.b16 %v1132
    %v5745 = vunpack.c.l.b16 %v1133
    %v5746 = vunpack.c.h.b16 %v1133
    %v5747 = vunpack.c.l.b16 %v1134
    %v5748 = vunpack.c.h.b16 %v1134
    %v5749 = vunpack.c.l.b16 %v1135
    %v5750 = vunpack.c.h.b16 %v1135
    %v5751 = vunpack.c.l.b16 %v1136
    %v5752 = vunpack.c.h.b16 %v1136
    %v5753 = vunpack.c.l.b16 %v1137
    %v5754 = vunpack.c.h.b16 %v1137
    %v5755 = vunpack.c.l.b16 %v1138
    %v5756 = vunpack.c.h.b16 %v1138
    %v5757 = vunpack.c.l.b16 %v1139
    %v5758 = vunpack.c.h.b16 %v1139
    %v5759 = vunpack.c.l.b16 %v1140
    %v5760 = vunpack.c.h.b16 %v1140
    %v5761 = vunpack.c.l.b16 %v1141
    %v5762 = vunpack.c.h.b16 %v1141
    %v5763 = vunpack.c.l.b16 %v1142
    %v5764 = vunpack.c.h.b16 %v1142
    %v5765 = vunpack.c.l.b16 %v1143
    %v5766 = vunpack.c.h.b16 %v1143
    %v5767 = vunpack.c.l.b16 %v1144
    %v5768 = vunpack.c.h.b16 %v1144
    %v5769 = vunpack.c.l.b16 %v1145
    %v5770 = vunpack.c.h.b16 %v1145
    %v5771 = vunpack.c.l.b16 %v1146
    %v5772 = vunpack.c.h.b16 %v1146
    %v5773 = vunpack.c.l.b16 %v1147
    %v5774 = vunpack.c.h.b16 %v1147
    %v5775 = vunpack.c.l.b16 %v1148
    %v5776 = vunpack.c.h.b16 %v1148
    %v5777 = vunpack.c.l.b16 %v1149
    %v5778 = vunpack.c.h.b16 %v1149
    %v5779 = vunpack.c.l.b16 %v1150
    %v5780 = vunpack.c.h.b16 %v1150
    %v5781 = vunpack.c.l.b16 %v1151
    %v5782 = vunpack.c.h.b16 %v1151
    %v5783 = vunpack.c.l.b16 %v1152
    %v5784 = vunpack.c.h.b16 %v1152
    %v5785 = vunpack.c.l.b16 %v1153
    %v5786 = vunpack.c.h.b16 %v1153
    %v5787 = vunpack.c.l.b16 %v1154
    %v5788 = vunpack.c.h.b16 %v1154
    %v5789 = vunpack.c.l.b16 %v1155
    %v5790 = vunpack.c.h.b16 %v1155
    %v5791 = vunpack.c.l.b16 %v1156
    %v5792 = vunpack.c.h.b16 %v1156
    %v5793 = vunpack.c.l.b16 %v1157
    %v5794 = vunpack.c.h.b16 %v1157
    %v5795 = vunpack.c.l.b16 %v1158
    %v5796 = vunpack.c.h.b16 %v1158
    %v5797 = vunpack.c.l.b16 %v1159
    %v5798 = vunpack.c.h.b16 %v1159
    %v5799 = vunpack.c.l.b16 %v1160
    %v5800 = vunpack.c.h.b16 %v1160
    %v5801 = vunpack.c.l.b16 %v1161
    %v5802 = vunpack.c.h.b16 %v1161
    %v5803 = vunpack.c.l.b16 %v1162
    %v5804 = vunpack.c.h.b16 %v1162
    %v5805 = vunpack.c.l.b16 %v1163
    %v5806 = vunpack.c.h.b16 %v1163
    %v5807 = vunpack.c.l.b16 %v1164
    %v5808 = vunpack.c.h.b16 %v1164
    %v5809 = vunpack.c.l.b16 %v1165
    %v5810 = vunpack.c.h.b16 %v1165
    %v5811 = vunpack.c.l.b16 %v1166
    %v5812 = vunpack.c.h.b16 %v1166
    %v5813 = vunpack.c.l.b16 %v1167
    %v5814 = vunpack.c.h.b16 %v1167
    %v5815 = vunpack.c.l.b16 %v1168
    %v5816 = vunpack.c.h.b16 %v1168
    %v5817 = vunpack.c.l.b16 %v1169
    %v5818 = vunpack.c.h.b16 %v1169
    %v5819 = vunpack.c.l.b16 %v1170
    %v5820 = vunpack.c.h.b16 %v1170
    %v5821 = vunpack.c.l.b16 %v1171
    %v5822 = vunpack.c.h.b16 %v1171
    %v5823 = vunpack.c.l.b16 %v1172
    %v5824 = vunpack.c.h.b16 %v1172
    %v5825 = vunpack.c.l.b16 %v1173
    %v5826 = vunpack.c.h.b16 %v1173
    %v5827 = vunpack.c.l.b16 %v1174
    %v5828 = vunpack.c.h.b16 %v1174
    %v5829 = vunpack.c.l.b16 %v1175
    %v5830 = vunpack.c.h.b16 %v1175
    %v5831 = vunpack.c.l.b16 %v1176
    %v5832 = vunpack.c.h.b16 %v1176
    %v5833 = vunpack.c.l.b16 %v1177
    %v5834 = vunpack.c.h.b16 %v1177
    %v5835 = vunpack.c.l.b16 %v1178
    %v5836 = vunpack.c.h.b16 %v1178
    %v5837 = vunpack.c.l.b16 %v1179
    %v5838 = vunpack.c.h.b16 %v1179
    %v5839 = vunpack.c.l.b16 %v1180
    %v5840 = vunpack.c.h.b16 %v1180
    %v5841 = vunpack.c.l.b16 %v1181
    %v5842 = vunpack.c.h.b16 %v1181
    %v5843 = vunpack.c.l.b16 %v1182
    %v5844 = vunpack.c.h.b16 %v1182
    %v5845 = vunpack.c.l.b16 %v1183
    %v5846 = vunpack.c.h.b16 %v1183
    %v5847 = vunpack.c.l.b16 %v1184
    %v5848 = vunpack.c.h.b16 %v1184
    %v5849 = vunpack.c.l.b16 %v1185
    %v5850 = vunpack.c.h.b16 %v1185
    %v5851 = vunpack.c.l.b16 %v1186
    %v5852 = vunpack.c.h.b16 %v1186
    %v5853 = vunpack.c.l.b16 %v1187
    %v5854 = vunpack.c.h.b16 %v1187
    %v5855 = vunpack.c.l.b16 %v1188
    %v5856 = vunpack.c.h.b16 %v1188
    %v5857 = vunpack.c.l.b16 %v1189
    %v5858 = vunpack.c.h.b16 %v1189
    %v5859 = vunpack.c.l.b16 %v1190
    %v5860 = vunpack.c.h.b16 %v1190
    %v5861 = vunpack.c.l.b16 %v1191
    %v5862 = vunpack.c.h.b16 %v1191
    %v5863 = vunpack.c.l.b16 %v1192
    %v5864 = vunpack.c.h.b16 %v1192
    %v5865 = vunpack.c.l.b16 %v1193
    %v5866 = vunpack.c.h.b16 %v1193
    %v5867 = vunpack.c.l.b16 %v1194
    %v5868 = vunpack.c.h.b16 %v1194
    %v5869 = vunpack.c.l.b16 %v1195
    %v5870 = vunpack.c.h.b16 %v1195
    %v5871 = vunpack.c.l.b16 %v1196
    %v5872 = vunpack.c.h.b16 %v1196
    %v5873 = vunpack.c.l.b16 %v1197
    %v5874 = vunpack.c.h.b16 %v1197
    %v5875 = vunpack.c.l.b16 %v1198
    %v5876 = vunpack.c.h.b16 %v1198
    %v5877 = vunpack.c.l.b16 %v1199
    %v5878 = vunpack.c.h.b16 %v1199
    %v5879 = vunpack.c.l.b16 %v1200
    %v5880 = vunpack.c.h.b16 %v1200
    %v5881 = vunpack.c.l.b16 %v1201
    %v5882 = vunpack.c.h.b16 %v1201
    %v5883 = vunpack.c.l.b16 %v1202
    %v5884 = vunpack.c.h.b16 %v1202
    %v5885 = vunpack.c.l.b16 %v1203
    %v5886 = vunpack.c.h.b16 %v1203
    %v5887 = vunpack.c.l.b16 %v1204
    %v5888 = vunpack.c.h.b16 %v1204
    %v5889 = vunpack.c.l.b16 %v1205
    %v5890 = vunpack.c.h.b16 %v1205
    %v5891 = vunpack.c.l.b16 %v1206
    %v5892 = vunpack.c.h.b16 %v1206
    %v5893 = vunpack.c.l.b16 %v1207
    %v5894 = vunpack.c.h.b16 %v1207
    %v5895 = vunpack.c.l.b16 %v1208
    %v5896 = vunpack.c.h.b16 %v1208
    %v5897 = vunpack.c.l.b16 %v1209
    %v5898 = vunpack.c.h.b16 %v1209
    %v5899 = vunpack.c.l.b16 %v1210
    %v5900 = vunpack.c.h.b16 %v1210
    %v5901 = vunpack.c.l.b16 %v1211
    %v5902 = vunpack.c.h.b16 %v1211
    %v5903 = vunpack.c.l.b16 %v1212
    %v5904 = vunpack.c.h.b16 %v1212
    %v5905 = vunpack.c.l.b16 %v1213
    %v5906 = vunpack.c.h.b16 %v1213
    %v5907 = vunpack.c.l.b16 %v1214
    %v5908 = vunpack.c.h.b16 %v1214
    %v5909 = vunpack.c.l.b16 %v1215
    %v5910 = vunpack.c.h.b16 %v1215
    %v5911 = vunpack.c.l.b16 %v1216
    %v5912 = vunpack.c.h.b16 %v1216
    %v5913 = vunpack.c.l.b16 %v1217
    %v5914 = vunpack.c.h.b16 %v1217
    %v5915 = vunpack.c.l.b16 %v1218
    %v5916 = vunpack.c.h.b16 %v1218
    %v5917 = vunpack.c.l.b16 %v1219
    %v5918 = vunpack.c.h.b16 %v1219
    %v5919 = vunpack.c.l.b16 %v1220
    %v5920 = vunpack.c.h.b16 %v1220
    %v5921 = vunpack.c.l.b16 %v1221
    %v5922 = vunpack.c.h.b16 %v1221
    %v5923 = vunpack.c.l.b16 %v1222
    %v5924 = vunpack.c.h.b16 %v1222
    %v5925 = vunpack.c.l.b16 %v1223
    %v5926 = vunpack.c.h.b16 %v1223
    %v5927 = vunpack.c.l.b16 %v1224
    %v5928 = vunpack.c.h.b16 %v1224
    %v5929 = vunpack.c.l.b16 %v1225
    %v5930 = vunpack.c.h.b16 %v1225
    %v5931 = vunpack.c.l.b16 %v1226
    %v5932 = vunpack.c.h.b16 %v1226
    %v5933 = vunpack.c.l.b16 %v1227
    %v5934 = vunpack.c.h.b16 %v1227
    %v5935 = vunpack.c.l.b16 %v1228
    %v5936 = vunpack.c.h.b16 %v1228
    %v5937 = vunpack.c.l.b16 %v1229
    %v5938 = vunpack.c.h.b16 %v1229
    %v5939 = vunpack.c.l.b16 %v1230
    %v5940 = vunpack.c.h.b16 %v1230
    %v5941 = vunpack.c.l.b16 %v1231
    %v5942 = vunpack.c.h.b16 %v1231
    %v5943 = vunpack.c.l.b16 %v1232
    %v5944 = vunpack.c.h.b16 %v1232
    %v5945 = vunpack.c.l.b16 %v1233
    %v5946 = vunpack.c.h.b16 %v1233
    %v5947 = vunpack.c.l.b16 %v1234
    %v5948 = vunpack.c.h.b16 %v1234
    %v5949 = vunpack.c.l.b16 %v1235
    %v5950 = vunpack.c.h.b16 %v1235
    %v5951 = vunpack.c.l.b16 %v1236
    %v5952 = vunpack.c.h.b16 %v1236
    %v5953 = vunpack.c.l.b16 %v1237
    %v5954 = vunpack.c.h.b16 %v1237
    %v5955 = vunpack.c.l.b16 %v1238
    %v5956 = vunpack.c.h.b16 %v1238
    %v5957 = vunpack.c.l.b16 %v1239
    %v5958 = vunpack.c.h.b16 %v1239
    %v5959 = vunpack.c.l.b16 %v1240
    %v5960 = vunpack.c.h.b16 %v1240
    %v5961 = vunpack.c.l.b16 %v1241
    %v5962 = vunpack.c.h.b16 %v1241
    %v5963 = vunpack.c.l.b16 %v1242
    %v5964 = vunpack.c.h.b16 %v1242
    %v5965 = vunpack.c.l.b16 %v1243
    %v5966 = vunpack.c.h.b16 %v1243
    %v5967 = vunpack.c.l.b16 %v1244
    %v5968 = vunpack.c.h.b16 %v1244
    %v5969 = vunpack.c.l.b16 %v1245
    %v5970 = vunpack.c.h.b16 %v1245
    %v5971 = vunpack.c.l.b16 %v1246
    %v5972 = vunpack.c.h.b16 %v1246
    %v5973 = vunpack.c.l.b16 %v1247
    %v5974 = vunpack.c.h.b16 %v1247
    %v5975 = vunpack.c.l.b16 %v1248
    %v5976 = vunpack.c.h.b16 %v1248
    %v5977 = vunpack.c.l.b16 %v1249
    %v5978 = vunpack.c.h.b16 %v1249
    %v5979 = vunpack.c.l.b16 %v1250
    %v5980 = vunpack.c.h.b16 %v1250
    %v5981 = vunpack.c.l.b16 %v1251
    %v5982 = vunpack.c.h.b16 %v1251
    %v5983 = vunpack.c.l.b16 %v1252
    %v5984 = vunpack.c.h.b16 %v1252
    %v5985 = vunpack.c.l.b16 %v1253
    %v5986 = vunpack.c.h.b16 %v1253
    %v5987 = vunpack.c.l.b16 %v1254
    %v5988 = vunpack.c.h.b16 %v1254
    %v5989 = vunpack.c.l.b16 %v1255
    %v5990 = vunpack.c.h.b16 %v1255
    %v5991 = vunpack.c.l.b16 %v1256
    %v5992 = vunpack.c.h.b16 %v1256
    %v5993 = vunpack.c.l.b16 %v1257
    %v5994 = vunpack.c.h.b16 %v1257
    %v5995 = vunpack.c.l.b16 %v1258
    %v5996 = vunpack.c.h.b16 %v1258
    %v5997 = vunpack.c.l.b16 %v1259
    %v5998 = vunpack.c.h.b16 %v1259
    %v5999 = vunpack.c.l.b16 %v1260
    %v6000 = vunpack.c.h.b16 %v1260
    %v6001 = vunpack.c.l.b16 %v1261
    %v6002 = vunpack.c.h.b16 %v1261
    %v6003 = vunpack.c.l.b16 %v1262
    %v6004 = vunpack.c.h.b16 %v1262
    %v6005 = vunpack.c.l.b16 %v1263
    %v6006 = vunpack.c.h.b16 %v1263
    %v6007 = vunpack.c.l.b16 %v1264
    %v6008 = vunpack.c.h.b16 %v1264
    %v6009 = vunpack.c.l.b16 %v1265
    %v6010 = vunpack.c.h.b16 %v1265
    %v6011 = vunpack.c.l.b16 %v1266
    %v6012 = vunpack.c.h.b16 %v1266
    %v6013 = vunpack.c.l.b16 %v1267
    %v6014 = vunpack.c.h.b16 %v1267
    %v6015 = vunpack.c.l.b16 %v1268
    %v6016 = vunpack.c.h.b16 %v1268
    %v6017 = vunpack.c.l.b16 %v1269
    %v6018 = vunpack.c.h.b16 %v1269
    %v6019 = vunpack.c.l.b16 %v1270
    %v6020 = vunpack.c.h.b16 %v1270
    %v6021 = vunpack.c.l.b16 %v1271
    %v6022 = vunpack.c.h.b16 %v1271
    %v6023 = vunpack.c.l.b16 %v1272
    %v6024 = vunpack.c.h.b16 %v1272
    %v6025 = vunpack.c.l.b16 %v1273
    %v6026 = vunpack.c.h.b16 %v1273
    %v6027 = vunpack.c.l.b16 %v1274
    %v6028 = vunpack.c.h.b16 %v1274
    %v6029 = vunpack.c.l.b16 %v1275
    %v6030 = vunpack.c.h.b16 %v1275
    %v6031 = vunpack.c.l.b16 %v1276
    %v6032 = vunpack.c.h.b16 %v1276
    %v6033 = vunpack.c.l.b16 %v1277
    %v6034 = vunpack.c.h.b16 %v1277
    %v6035 = vunpack.c.l.b16 %v1278
    %v6036 = vunpack.c.h.b16 %v1278
    %v6037 = vunpack.c.l.b16 %v1279
    %v6038 = vunpack.c.h.b16 %v1279
    %v6039 = vunpack.c.l.b16 %v1280
    %v6040 = vunpack.c.h.b16 %v1280
    %v6041 = vunpack.c.l.b16 %v1281
    %v6042 = vunpack.c.h.b16 %v1281
    %v6043 = vunpack.c.l.b16 %v1282
    %v6044 = vunpack.c.h.b16 %v1282
    %v6045 = vunpack.c.l.b16 %v1283
    %v6046 = vunpack.c.h.b16 %v1283
    %v6047 = vunpack.c.l.b16 %v1284
    %v6048 = vunpack.c.h.b16 %v1284
    %v6049 = vunpack.c.l.b16 %v1285
    %v6050 = vunpack.c.h.b16 %v1285
    %v6051 = vunpack.c.l.b16 %v1286
    %v6052 = vunpack.c.h.b16 %v1286
    %v6053 = vunpack.c.l.b16 %v1287
    %v6054 = vunpack.c.h.b16 %v1287
    %v6055 = vunpack.c.l.b16 %v1288
    %v6056 = vunpack.c.h.b16 %v1288
    %v6057 = vunpack.c.l.b16 %v1289
    %v6058 = vunpack.c.h.b16 %v1289
    %v6059 = vunpack.c.l.b16 %v1290
    %v6060 = vunpack.c.h.b16 %v1290
    %v6061 = vunpack.c.l.b16 %v1291
    %v6062 = vunpack.c.h.b16 %v1291
    %v6063 = vunpack.c.l.b16 %v1292
    %v6064 = vunpack.c.h.b16 %v1292
    %v6065 = vunpack.c.l.b16 %v1293
    %v6066 = vunpack.c.h.b16 %v1293
    %v6067 = vunpack.c.l.b16 %v1294
    %v6068 = vunpack.c.h.b16 %v1294
    %v6069 = vunpack.c.l.b16 %v1295
    %v6070 = vunpack.c.h.b16 %v1295
    %v6071 = vunpack.c.l.b16 %v1296
    %v6072 = vunpack.c.h.b16 %v1296
    %v6073 = vunpack.c.l.b16 %v1297
    %v6074 = vunpack.c.h.b16 %v1297
    %v6075 = vunpack.c.l.b16 %v1298
    %v6076 = vunpack.c.h.b16 %v1298
    %v6077 = vunpack.c.l.b16 %v1299
    %v6078 = vunpack.c.h.b16 %v1299
    %v6079 = vunpack.c.l.b16 %v1300
    %v6080 = vunpack.c.h.b16 %v1300
    %v6081 = vunpack.c.l.b16 %v1301
    %v6082 = vunpack.c.h.b16 %v1301
    %v6083 = vunpack.c.l.b16 %v1302
    %v6084 = vunpack.c.h.b16 %v1302
    %v6085 = vunpack.c.l.b16 %v1303
    %v6086 = vunpack.c.h.b16 %v1303
    %v6087 = vunpack.c.l.b16 %v1304
    %v6088 = vunpack.c.h.b16 %v1304
    %v6089 = vunpack.c.l.b16 %v1305
    %v6090 = vunpack.c.h.b16 %v1305
    %v6091 = vunpack.c.l.b16 %v1306
    %v6092 = vunpack.c.h.b16 %v1306
    %v6093 = vunpack.c.l.b16 %v1307
    %v6094 = vunpack.c.h.b16 %v1307
    %v6095 = vunpack.c.l.b16 %v1308
    %v6096 = vunpack.c.h.b16 %v1308
    %v6097 = vunpack.c.l.b16 %v1309
    %v6098 = vunpack.c.h.b16 %v1309
    %v6099 = vunpack.c.l.b16 %v1310
    %v6100 = vunpack.c.h.b16 %v1310
    %v6101 = vunpack.c.l.b16 %v1311
    %v6102 = vunpack.c.h.b16 %v1311
    %v6103 = vunpack.c.l.b16 %v1312
    %v6104 = vunpack.c.h.b16 %v1312
    %v6105 = vunpack.c.l.b16 %v1313
    %v6106 = vunpack.c.h.b16 %v1313
    %v6107 = vunpack.c.l.b16 %v1314
    %v6108 = vunpack.c.h.b16 %v1314
    %v6109 = vunpack.c.l.b16 %v1315
    %v6110 = vunpack.c.h.b16 %v1315
    %v6111 = vunpack.c.l.b16 %v1316
    %v6112 = vunpack.c.h.b16 %v1316
    %v6113 = vunpack.c.l.b16 %v1317
    %v6114 = vunpack.c.h.b16 %v1317
    %v6115 = vunpack.c.l.b16 %v1318
    %v6116 = vunpack.c.h.b16 %v1318
    %v6117 = vunpack.c.l.b16 %v1319
    %v6118 = vunpack.c.h.b16 %v1319
    %v6119 = vunpack.c.l.b16 %v1320
    %v6120 = vunpack.c.h.b16 %v1320
    %v6121 = vunpack.c.l.b16 %v1321
    %v6122 = vunpack.c.h.b16 %v1321
    %v6123 = vunpack.c.l.b16 %v1322
    %v6124 = vunpack.c.h.b16 %v1322
    %v6125 = vunpack.c.l.b16 %v1323
    %v6126 = vunpack.c.h.b16 %v1323
    %v6127 = vunpack.c.l.b16 %v1324
    %v6128 = vunpack.c.h.b16 %v1324
    %v6129 = vunpack.c.l.b16 %v1325
    %v6130 = vunpack.c.h.b16 %v1325
    %v6131 = vunpack.c.l.b16 %v1326
    %v6132 = vunpack.c.h.b16 %v1326
    %v6133 = vunpack.c.l.b16 %v1327
    %v6134 = vunpack.c.h.b16 %v1327
    %v6135 = vunpack.c.l.b16 %v1328
    %v6136 = vunpack.c.h.b16 %v1328
    %v6137 = vunpack.c.l.b16 %v1329
    %v6138 = vunpack.c.h.b16 %v1329
    %v6139 = vunpack.c.l.b16 %v1330
    %v6140 = vunpack.c.h.b16 %v1330
    %v6141 = vunpack.c.l.b16 %v1331
    %v6142 = vunpack.c.h.b16 %v1331
    %v6143 = vunpack.c.l.b16 %v1332
    %v6144 = vunpack.c.h.b16 %v1332
    %v6145 = vunpack.c.l.b16 %v1333
    %v6146 = vunpack.c.h.b16 %v1333
    %v6147 = vunpack.c.l.b16 %v1334
    %v6148 = vunpack.c.h.b16 %v1334
    %v6149 = vunpack.c.l.b16 %v1335
    %v6150 = vunpack.c.h.b16 %v1335
    %v6151 = vunpack.c.l.b16 %v1336
    %v6152 = vunpack.c.h.b16 %v1336
    %v6153 = vunpack.c.l.b16 %v1337
    %v6154 = vunpack.c.h.b16 %v1337
    %v6155 = vunpack.c.l.b16 %v1338
    %v6156 = vunpack.c.h.b16 %v1338
    %v6157 = vunpack.c.l.b16 %v1339
    %v6158 = vunpack.c.h.b16 %v1339
    %v6159 = vunpack.c.l.b16 %v1340
    %v6160 = vunpack.c.h.b16 %v1340
    %v6161 = vunpack.c.l.b16 %v1341
    %v6162 = vunpack.c.h.b16 %v1341
    %v6163 = vunpack.c.l.b16 %v1342
    %v6164 = vunpack.c.h.b16 %v1342
    %v6165 = vunpack.c.l.b16 %v1343
    %v6166 = vunpack.c.h.b16 %v1343
    %v6167 = vunpack.c.l.b16 %v1344
    %v6168 = vunpack.c.h.b16 %v1344
    %v6169 = vunpack.c.l.b16 %v1345
    %v6170 = vunpack.c.h.b16 %v1345
    %v6171 = vunpack.c.l.b16 %v1346
    %v6172 = vunpack.c.h.b16 %v1346
    %v6173 = vunpack.c.l.b16 %v1347
    %v6174 = vunpack.c.h.b16 %v1347
    %v6175 = vunpack.c.l.b16 %v1348
    %v6176 = vunpack.c.h.b16 %v1348
    %v6177 = vunpack.c.l.b16 %v1349
    %v6178 = vunpack.c.h.b16 %v1349
    %v6179 = vunpack.c.l.b16 %v1350
    %v6180 = vunpack.c.h.b16 %v1350
    %v6181 = vunpack.c.l.b16 %v1351
    %v6182 = vunpack.c.h.b16 %v1351
    %v6183 = vunpack.c.l.b16 %v1352
    %v6184 = vunpack.c.h.b16 %v1352
    %v6185 = vunpack.c.l.b16 %v1353
    %v6186 = vunpack.c.h.b16 %v1353
    %v6187 = vunpack.c.l.b16 %v1354
    %v6188 = vunpack.c.h.b16 %v1354
    %v6189 = vunpack.c.l.b16 %v1355
    %v6190 = vunpack.c.h.b16 %v1355
    %v6191 = vunpack.c.l.b16 %v1356
    %v6192 = vunpack.c.h.b16 %v1356
    %v6193 = vunpack.c.l.b16 %v1357
    %v6194 = vunpack.c.h.b16 %v1357
    %v6195 = vunpack.c.l.b16 %v1358
    %v6196 = vunpack.c.h.b16 %v1358
    %v6197 = vunpack.c.l.b16 %v1359
    %v6198 = vunpack.c.h.b16 %v1359
    %v6199 = vunpack.c.l.b16 %v1360
    %v6200 = vunpack.c.h.b16 %v1360
    %v6201 = vunpack.c.l.b16 %v1361
    %v6202 = vunpack.c.h.b16 %v1361
    %v6203 = vunpack.c.l.b16 %v1362
    %v6204 = vunpack.c.h.b16 %v1362
    %v6205 = vunpack.c.l.b16 %v1363
    %v6206 = vunpack.c.h.b16 %v1363
    %v6207 = vunpack.c.l.b16 %v1364
    %v6208 = vunpack.c.h.b16 %v1364
    %v6209 = vunpack.c.l.b16 %v1365
    %v6210 = vunpack.c.h.b16 %v1365
    %v6211 = vunpack.c.l.b16 %v1366
    %v6212 = vunpack.c.h.b16 %v1366
    %v6213 = vunpack.c.l.b16 %v1367
    %v6214 = vunpack.c.h.b16 %v1367
    %v6215 = vunpack.c.l.b16 %v1368
    %v6216 = vunpack.c.h.b16 %v1368
    %v6217 = vunpack.c.l.b16 %v1369
    %v6218 = vunpack.c.h.b16 %v1369
    %v6219 = vunpack.c.l.b16 %v1370
    %v6220 = vunpack.c.h.b16 %v1370
    %v6221 = vunpack.c.l.b16 %v1371
    %v6222 = vunpack.c.h.b16 %v1371
    %v6223 = vunpack.c.l.b16 %v1372
    %v6224 = vunpack.c.h.b16 %v1372
    %v6225 = vunpack.c.l.b16 %v1373
    %v6226 = vunpack.c.h.b16 %v1373
    %v6227 = vunpack.c.l.b16 %v1374
    %v6228 = vunpack.c.h.b16 %v1374
    %v6229 = vunpack.c.l.b16 %v1375
    %v6230 = vunpack.c.h.b16 %v1375
    %v6231 = vunpack.c.l.b16 %v1376
    %v6232 = vunpack.c.h.b16 %v1376
    %v6233 = vunpack.c.l.b16 %v1377
    %v6234 = vunpack.c.h.b16 %v1377
    %v6235 = vunpack.c.l.b16 %v1378
    %v6236 = vunpack.c.h.b16 %v1378
    %v6237 = vunpack.c.l.b16 %v1379
    %v6238 = vunpack.c.h.b16 %v1379
    %v6239 = vunpack.c.l.b16 %v1380
    %v6240 = vunpack.c.h.b16 %v1380
    %v6241 = vunpack.c.l.b16 %v1381
    %v6242 = vunpack.c.h.b16 %v1381
    %v6243 = vunpack.c.l.b16 %v1382
    %v6244 = vunpack.c.h.b16 %v1382
    %v6245 = vunpack.c.l.b16 %v1383
    %v6246 = vunpack.c.h.b16 %v1383
    %v6247 = vunpack.c.l.b16 %v1384
    %v6248 = vunpack.c.h.b16 %v1384
    %v6249 = vunpack.c.l.b16 %v1385
    %v6250 = vunpack.c.h.b16 %v1385
    %v6251 = vunpack.c.l.b16 %v1386
    %v6252 = vunpack.c.h.b16 %v1386
    %v6253 = vunpack.c.l.b16 %v1387
    %v6254 = vunpack.c.h.b16 %v1387
    %v6255 = vunpack.c.l.b16 %v1388
    %v6256 = vunpack.c.h.b16 %v1388
    %v6257 = vunpack.c.l.b16 %v1389
    %v6258 = vunpack.c.h.b16 %v1389
    %v6259 = vunpack.c.l.b16 %v1390
    %v6260 = vunpack.c.h.b16 %v1390
    %v6261 = vunpack.c.l.b16 %v1391
    %v6262 = vunpack.c.h.b16 %v1391
    %v6263 = vunpack.c.l.b16 %v1392
    %v6264 = vunpack.c.h.b16 %v1392
    %v6265 = vunpack.c.l.b16 %v1393
    %v6266 = vunpack.c.h.b16 %v1393
    %v6267 = vunpack.c.l.b16 %v1394
    %v6268 = vunpack.c.h.b16 %v1394
    %v6269 = vunpack.c.l.b16 %v1395
    %v6270 = vunpack.c.h.b16 %v1395
    %v6271 = vunpack.c.l.b16 %v1396
    %v6272 = vunpack.c.h.b16 %v1396
    %v6273 = vunpack.c.l.b16 %v1397
    %v6274 = vunpack.c.h.b16 %v1397
    %v6275 = vunpack.c.l.b16 %v1398
    %v6276 = vunpack.c.h.b16 %v1398
    %v6277 = vunpack.c.l.b16 %v1399
    %v6278 = vunpack.c.h.b16 %v1399
    %v6279 = vunpack.c.l.b16 %v1400
    %v6280 = vunpack.c.h.b16 %v1400
    %v6281 = vunpack.c.l.b16 %v1401
    %v6282 = vunpack.c.h.b16 %v1401
    %v6283 = vunpack.c.l.b16 %v1402
    %v6284 = vunpack.c.h.b16 %v1402
    %v6285 = vunpack.c.l.b16 %v1403
    %v6286 = vunpack.c.h.b16 %v1403
    %v6287 = vunpack.c.l.b16 %v1404
    %v6288 = vunpack.c.h.b16 %v1404
    %v6289 = vunpack.c.l.b16 %v1405
    %v6290 = vunpack.c.h.b16 %v1405
    %v6291 = vunpack.c.l.b16 %v1406
    %v6292 = vunpack.c.h.b16 %v1406
    %v6293 = vunpack.c.l.b16 %v1407
    %v6294 = vunpack.c.h.b16 %v1407
    %v6295 = vunpack.c.l.b16 %v1408
    %v6296 = vunpack.c.h.b16 %v1408
    %v6297 = vunpack.c.l.b16 %v1409
    %v6298 = vunpack.c.h.b16 %v1409
    %v6299 = vunpack.c.l.b16 %v1410
    %v6300 = vunpack.c.h.b16 %v1410
    %v6301 = vunpack.c.l.b16 %v1411
    %v6302 = vunpack.c.h.b16 %v1411
    %v6303 = vunpack.c.l.b16 %v1412
    %v6304 = vunpack.c.h.b16 %v1412
    %v6305 = vunpack.c.l.b16 %v1413
    %v6306 = vunpack.c.h.b16 %v1413
    %v6307 = vunpack.c.l.b16 %v1414
    %v6308 = vunpack.c.h.b16 %v1414
    %v6309 = vunpack.c.l.b16 %v1415
    %v6310 = vunpack.c.h.b16 %v1415
    %v6311 = vunpack.c.l.b16 %v1416
    %v6312 = vunpack.c.h.b16 %v1416
    %v6313 = vunpack.c.l.b16 %v1417
    %v6314 = vunpack.c.h.b16 %v1417
    %v6315 = vunpack.c.l.b16 %v1418
    %v6316 = vunpack.c.h.b16 %v1418
    %v6317 = vunpack.c.l.b16 %v1419
    %v6318 = vunpack.c.h.b16 %v1419
    %v6319 = vunpack.c.l.b16 %v1420
    %v6320 = vunpack.c.h.b16 %v1420
    %v6321 = vunpack.c.l.b16 %v1421
    %v6322 = vunpack.c.h.b16 %v1421
    %v6323 = vunpack.c.l.b16 %v1422
    %v6324 = vunpack.c.h.b16 %v1422
    %v6325 = vunpack.c.l.b16 %v1423
    %v6326 = vunpack.c.h.b16 %v1423
    %v6327 = vunpack.c.l.b16 %v1424
    %v6328 = vunpack.c.h.b16 %v1424
    %v6329 = vunpack.c.l.b16 %v1425
    %v6330 = vunpack.c.h.b16 %v1425
    %v6331 = vunpack.c.l.b16 %v1426
    %v6332 = vunpack.c.h.b16 %v1426
    %v6333 = vunpack.c.l.b16 %v1427
    %v6334 = vunpack.c.h.b16 %v1427
    %v6335 = vunpack.c.l.b16 %v1428
    %v6336 = vunpack.c.h.b16 %v1428
    %v6337 = vunpack.c.l.b16 %v1429
    %v6338 = vunpack.c.h.b16 %v1429
    %v6339 = vunpack.c.l.b16 %v1430
    %v6340 = vunpack.c.h.b16 %v1430
    %v6341 = vunpack.c.l.b16 %v1431
    %v6342 = vunpack.c.h.b16 %v1431
    %v6343 = vunpack.c.l.b16 %v1432
    %v6344 = vunpack.c.h.b16 %v1432
    %v6345 = vunpack.c.l.b16 %v1433
    %v6346 = vunpack.c.h.b16 %v1433
    %v6347 = vunpack.c.l.b16 %v1434
    %v6348 = vunpack.c.h.b16 %v1434
    %v6349 = vunpack.c.l.b16 %v1435
    %v6350 = vunpack.c.h.b16 %v1435
    %v6351 = vunpack.c.l.b16 %v1436
    %v6352 = vunpack.c.h.b16 %v1436
    %v6353 = vunpack.c.l.b16 %v1437
    %v6354 = vunpack.c.h.b16 %v1437
    %v6355 = vunpack.c.l.b16 %v1438
    %v6356 = vunpack.c.h.b16 %v1438
    %v6357 = vunpack.c.l.b16 %v1439
    %v6358 = vunpack.c.h.b16 %v1439
    %v6359 = vunpack.c.l.b16 %v1440
    %v6360 = vunpack.c.h.b16 %v1440
    %v6361 = vunpack.c.l.b16 %v1441
    %v6362 = vunpack.c.h.b16 %v1441
    %v6363 = vunpack.c.l.b16 %v1442
    %v6364 = vunpack.c.h.b16 %v1442
    %v6365 = vunpack.c.l.b16 %v1443
    %v6366 = vunpack.c.h.b16 %v1443
    %v6367 = vunpack.c.l.b16 %v1444
    %v6368 = vunpack.c.h.b16 %v1444
    %v6369 = vunpack.c.l.b16 %v1445
    %v6370 = vunpack.c.h.b16 %v1445
    %v6371 = vunpack.c.l.b16 %v1446
    %v6372 = vunpack.c.h.b16 %v1446
    %v6373 = vunpack.c.l.b16 %v1447
    %v6374 = vunpack.c.h.b16 %v1447
    %v6375 = vunpack.c.l.b16 %v1448
    %v6376 = vunpack.c.h.b16 %v1448
    %v6377 = vunpack.c.l.b16 %v1449
    %v6378 = vunpack.c.h.b16 %v1449
    %v6379 = vunpack.c.l.b16 %v1450
    %v6380 = vunpack.c.h.b16 %v1450
    %v6381 = vunpack.c.l.b16 %v1451
    %v6382 = vunpack.c.h.b16 %v1451
    %v6383 = vunpack.c.l.b16 %v1452
    %v6384 = vunpack.c.h.b16 %v1452
    %v6385 = vunpack.c.l.b16 %v1453
    %v6386 = vunpack.c.h.b16 %v1453
    %v6387 = vunpack.c.l.b16 %v1454
    %v6388 = vunpack.c.h.b16 %v1454
    %v6389 = vunpack.c.l.b16 %v1455
    %v6390 = vunpack.c.h.b16 %v1455
    %v6391 = vunpack.c.l.b16 %v1456
    %v6392 = vunpack.c.h.b16 %v1456
    %v6393 = vunpack.c.l.b16 %v1457
    %v6394 = vunpack.c.h.b16 %v1457
    %v6395 = vunpack.c.l.b16 %v1458
    %v6396 = vunpack.c.h.b16 %v1458
    %v6397 = vunpack.c.l.b16 %v1459
    %v6398 = vunpack.c.h.b16 %v1459
    %v6399 = vunpack.c.l.b16 %v1460
    %v6400 = vunpack.c.h.b16 %v1460
    %v6401 = vunpack.c.l.b16 %v1461
    %v6402 = vunpack.c.h.b16 %v1461
    %v6403 = vunpack.c.l.b16 %v1462
    %v6404 = vunpack.c.h.b16 %v1462
    %v6405 = vunpack.c.l.b16 %v1463
    %v6406 = vunpack.c.h.b16 %v1463
    %v6407 = vunpack.c.l.b16 %v1464
    %v6408 = vunpack.c.h.b16 %v1464
    %v6409 = vunpack.c.l.b16 %v1465
    %v6410 = vunpack.c.h.b16 %v1465
    %v6411 = vunpack.c.l.b16 %v1466
    %v6412 = vunpack.c.h.b16 %v1466
    %v6413 = vunpack.c.l.b16 %v1467
    %v6414 = vunpack.c.h.b16 %v1467
    %v6415 = vunpack.c.l.b16 %v1468
    %v6416 = vunpack.c.h.b16 %v1468
    %v6417 = vunpack.c.l.b16 %v1469
    %v6418 = vunpack.c.h.b16 %v1469
    %v6419 = vunpack.c.l.b16 %v1470
    %v6420 = vunpack.c.h.b16 %v1470
    %v6421 = vunpack.c.l.b16 %v1471
    %v6422 = vunpack.c.h.b16 %v1471
    %v6423 = vunpack.c.l.b16 %v1472
    %v6424 = vunpack.c.h.b16 %v1472
    %v6425 = vunpack.c.l.b16 %v1473
    %v6426 = vunpack.c.h.b16 %v1473
    %v6427 = vunpack.c.l.b16 %v1474
    %v6428 = vunpack.c.h.b16 %v1474
    %v6429 = vunpack.c.l.b16 %v1475
    %v6430 = vunpack.c.h.b16 %v1475
    %v6431 = vunpack.c.l.b16 %v1476
    %v6432 = vunpack.c.h.b16 %v1476
    %v6433 = vunpack.c.l.b16 %v1477
    %v6434 = vunpack.c.h.b16 %v1477
    %v6435 = vunpack.c.l.b16 %v1478
    %v6436 = vunpack.c.h.b16 %v1478
    %v6437 = vunpack.c.l.b16 %v1479
    %v6438 = vunpack.c.h.b16 %v1479
    %v6439 = vunpack.c.l.b16 %v1480
    %v6440 = vunpack.c.h.b16 %v1480
    %v6441 = vunpack.c.l.b16 %v1481
    %v6442 = vunpack.c.h.b16 %v1481
    %v6443 = vunpack.c.l.b16 %v1482
    %v6444 = vunpack.c.h.b16 %v1482
    %v6445 = vunpack.c.l.b16 %v1483
    %v6446 = vunpack.c.h.b16 %v1483
    %v6447 = vunpack.c.l.b16 %v1484
    %v6448 = vunpack.c.h.b16 %v1484
    %v6449 = vunpack.c.l.b16 %v1485
    %v6450 = vunpack.c.h.b16 %v1485
    %v6451 = vunpack.c.l.b16 %v1486
    %v6452 = vunpack.c.h.b16 %v1486
    %v6453 = vunpack.c.l.b16 %v1487
    %v6454 = vunpack.c.h.b16 %v1487
    %v6455 = vunpack.c.l.b16 %v1488
    %v6456 = vunpack.c.h.b16 %v1488
    %v6457 = vunpack.c.l.b16 %v1489
    %v6458 = vunpack.c.h.b16 %v1489
    %v6459 = vunpack.c.l.b16 %v1490
    %v6460 = vunpack.c.h.b16 %v1490
    %v6461 = vunpack.c.l.b16 %v1491
    %v6462 = vunpack.c.h.b16 %v1491
    %v6463 = vunpack.c.l.b16 %v1492
    %v6464 = vunpack.c.h.b16 %v1492
    %v6465 = vunpack.c.l.b16 %v1493
    %v6466 = vunpack.c.h.b16 %v1493
    %v6467 = vunpack.c.l.b16 %v1494
    %v6468 = vunpack.c.h.b16 %v1494
    %v6469 = vunpack.c.l.b16 %v1495
    %v6470 = vunpack.c.h.b16 %v1495
    %v6471 = vunpack.c.l.b16 %v1496
    %v6472 = vunpack.c.h.b16 %v1496
    %v6473 = vunpack.c.l.b16 %v1497
    %v6474 = vunpack.c.h.b16 %v1497
    %v6475 = vunpack.c.l.b16 %v1498
    %v6476 = vunpack.c.h.b16 %v1498
    %v6477 = vunpack.c.l.b16 %v1499
    %v6478 = vunpack.c.h.b16 %v1499
    %v6479 = vunpack.c.l.b16 %v1500
    %v6480 = vunpack.c.h.b16 %v1500
    %v6481 = vunpack.c.l.b16 %v1501
    %v6482 = vunpack.c.h.b16 %v1501
    %v6483 = vunpack.c.l.b16 %v1502
    %v6484 = vunpack.c.h.b16 %v1502
    %v6485 = vunpack.c.l.b16 %v1503
    %v6486 = vunpack.c.h.b16 %v1503
    %v6487 = vunpack.c.l.b16 %v1504
    %v6488 = vunpack.c.h.b16 %v1504
    %v6489 = vunpack.c.l.b16 %v1505
    %v6490 = vunpack.c.h.b16 %v1505
    %v6491 = vunpack.c.l.b16 %v1506
    %v6492 = vunpack.c.h.b16 %v1506
    %v6493 = vunpack.c.l.b16 %v1507
    %v6494 = vunpack.c.h.b16 %v1507
    %v6495 = vunpack.c.l.b16 %v1508
    %v6496 = vunpack.c.h.b16 %v1508
    %v6497 = vunpack.c.l.b16 %v1509
    %v6498 = vunpack.c.h.b16 %v1509
    %v6499 = vunpack.c.l.b16 %v1510
    %v6500 = vunpack.c.h.b16 %v1510
    %v6501 = vunpack.c.l.b16 %v1511
    %v6502 = vunpack.c.h.b16 %v1511
    %v6503 = vunpack.c.l.b16 %v1512
    %v6504 = vunpack.c.h.b16 %v1512
    %v6505 = vunpack.c.l.b16 %v1513
    %v6506 = vunpack.c.h.b16 %v1513
    %v6507 = vunpack.c.l.b16 %v1514
    %v6508 = vunpack.c.h.b16 %v1514
    %v6509 = vunpack.c.l.b16 %v1515
    %v6510 = vunpack.c.h.b16 %v1515
    %v6511 = vunpack.c.l.b16 %v1516
    %v6512 = vunpack.c.h.b16 %v1516
    %v6513 = vunpack.c.l.b16 %v1517
    %v6514 = vunpack.c.h.b16 %v1517
    %v6515 = vunpack.c.l.b16 %v1518
    %v6516 = vunpack.c.h.b16 %v1518
    %v6517 = vunpack.c.l.b16 %v1519
    %v6518 = vunpack.c.h.b16 %v1519
    %v6519 = vunpack.c.l.b16 %v1520
    %v6520 = vunpack.c.h.b16 %v1520
    %v6521 = vunpack.c.l.b16 %v1521
    %v6522 = vunpack.c.h.b16 %v1521
    %v6523 = vunpack.c.l.b16 %v1522
    %v6524 = vunpack.c.h.b16 %v1522
    %v6525 = vunpack.c.l.b16 %v1523
    %v6526 = vunpack.c.h.b16 %v1523
    %v6527 = vunpack.c.l.b16 %v1524
    %v6528 = vunpack.c.h.b16 %v1524
    %v6529 = vunpack.c.l.b16 %v1525
    %v6530 = vunpack.c.h.b16 %v1525
    %v6531 = vunpack.c.l.b16 %v1526
    %v6532 = vunpack.c.h.b16 %v1526
    %v6533 = vunpack.c.l.b16 %v1527
    %v6534 = vunpack.c.h.b16 %v1527
    %v6535 = vunpack.c.l.b16 %v1528
    %v6536 = vunpack.c.h.b16 %v1528
    %v6537 = vunpack.c.l.b16 %v1529
    %v6538 = vunpack.c.h.b16 %v1529
    %v6539 = vunpack.c.l.b16 %v1530
    %v6540 = vunpack.c.h.b16 %v1530
    %v6541 = vunpack.c.l.b16 %v1531
    %v6542 = vunpack.c.h.b16 %v1531
    %v6543 = vunpack.c.l.b16 %v1532
    %v6544 = vunpack.c.h.b16 %v1532
    %v6545 = vunpack.c.l.b16 %v1533
    %v6546 = vunpack.c.h.b16 %v1533
    %v6547 = vunpack.c.l.b16 %v1534
    %v6548 = vunpack.c.h.b16 %v1534
    %v6549 = vunpack.c.l.b16 %v1535
    %v6550 = vunpack.c.h.b16 %v1535
    %v6551 = vunpack.c.l.b16 %v1536
    %v6552 = vunpack.c.h.b16 %v1536
    %v6553 = vunpack.c.l.b16 %v1537
    %v6554 = vunpack.c.h.b16 %v1537
    %v6555 = vunpack.c.l.b16 %v1538
    %v6556 = vunpack.c.h.b16 %v1538
    %v6557 = vunpack.c.l.b16 %v1539
    %v6558 = vunpack.c.h.b16 %v1539
    %v6559 = vunpack.c.l.b16 %v1540
    %v6560 = vunpack.c.h.b16 %v1540
    %v6561 = vunpack.c.l.b16 %v1541
    %v6562 = vunpack.c.h.b16 %v1541
    %v6563 = vunpack.c.l.b16 %v1542
    %v6564 = vunpack.c.h.b16 %v1542
    %v6565 = vunpack.c.l.b16 %v1543
    %v6566 = vunpack.c.h.b16 %v1543
    %v6567 = vunpack.c.l.b16 %v1544
    %v6568 = vunpack.c.h.b16 %v1544
    %v6569 = vunpack.c.l.b16 %v1545
    %v6570 = vunpack.c.h.b16 %v1545
    %v6571 = vunpack.c.l.b16 %v1546
    %v6572 = vunpack.c.h.b16 %v1546
    %v6573 = vunpack.c.l.b16 %v1547
    %v6574 = vunpack.c.h.b16 %v1547
    %v6575 = vunpack.c.l.b16 %v1548
    %v6576 = vunpack.c.h.b16 %v1548
    %v6577 = vunpack.c.l.b16 %v1549
    %v6578 = vunpack.c.h.b16 %v1549
    %v6579 = vunpack.c.l.b16 %v1550
    %v6580 = vunpack.c.h.b16 %v1550
    %v6581 = vunpack.c.l.b16 %v1551
    %v6582 = vunpack.c.h.b16 %v1551
    %v6583 = vunpack.c.l.b16 %v1552
    %v6584 = vunpack.c.h.b16 %v1552
    %v6585 = vunpack.c.l.b16 %v1553
    %v6586 = vunpack.c.h.b16 %v1553
    %v6587 = vunpack.c.l.b16 %v1554
    %v6588 = vunpack.c.h.b16 %v1554
    %v6589 = vunpack.c.l.b16 %v1555
    %v6590 = vunpack.c.h.b16 %v1555
    %v6591 = vunpack.c.l.b16 %v1556
    %v6592 = vunpack.c.h.b16 %v1556
    %v6593 = vunpack.c.l.b16 %v1557
    %v6594 = vunpack.c.h.b16 %v1557
    %v6595 = vunpack.c.l.b16 %v1558
    %v6596 = vunpack.c.h.b16 %v1558
    %v6597 = vunpack.c.l.b16 %v1559
    %v6598 = vunpack.c.h.b16 %v1559
    %v6599 = vunpack.c.l.b16 %v1560
    %v6600 = vunpack.c.h.b16 %v1560
    %v6601 = vunpack.c.l.b16 %v1561
    %v6602 = vunpack.c.h.b16 %v1561
    %v6603 = vunpack.c.l.b16 %v1562
    %v6604 = vunpack.c.h.b16 %v1562
    %v6605 = vunpack.c.l.b16 %v1563
    %v6606 = vunpack.c.h.b16 %v1563
    %v6607 = vunpack.c.l.b16 %v1564
    %v6608 = vunpack.c.h.b16 %v1564
    %v6609 = vunpack.c.l.b16 %v1565
    %v6610 = vunpack.c.h.b16 %v1565
    %v6611 = vunpack.c.l.b16 %v1566
    %v6612 = vunpack.c.h.b16 %v1566
    %v6613 = vunpack.c.l.b16 %v1567
    %v6614 = vunpack.c.h.b16 %v1567
    %v6615 = vunpack.c.l.b16 %v1568
    %v6616 = vunpack.c.h.b16 %v1568
    %v6617 = vunpack.c.l.b16 %v1569
    %v6618 = vunpack.c.h.b16 %v1569
    %v6619 = vunpack.c.l.b16 %v1570
    %v6620 = vunpack.c.h.b16 %v1570
    %v6621 = vunpack.c.l.b16 %v1571
    %v6622 = vunpack.c.h.b16 %v1571
    %v6623 = vunpack.c.l.b16 %v1572
    %v6624 = vunpack.c.h.b16 %v1572
    %v6625 = vunpack.c.l.b16 %v1573
    %v6626 = vunpack.c.h.b16 %v1573
    %v6627 = vunpack.c.l.b16 %v1574
    %v6628 = vunpack.c.h.b16 %v1574
    %v6629 = vunpack.c.l.b16 %v1575
    %v6630 = vunpack.c.h.b16 %v1575
    %v6631 = vunpack.c.l.b16 %v1576
    %v6632 = vunpack.c.h.b16 %v1576
    %v6633 = vunpack.c.l.b16 %v1577
    %v6634 = vunpack.c.h.b16 %v1577
    %v6635 = vunpack.c.l.b16 %v1578
    %v6636 = vunpack.c.h.b16 %v1578
    %v6637 = vunpack.c.l.b16 %v1579
    %v6638 = vunpack.c.h.b16 %v1579
    %v6639 = vunpack.c.l.b16 %v1580
    %v6640 = vunpack.c.h.b16 %v1580
    %v6641 = vunpack.c.l.b16 %v1581
    %v6642 = vunpack.c.h.b16 %v1581
    %v6643 = vunpack.c.l.b16 %v1582
    %v6644 = vunpack.c.h.b16 %v1582
    %v6645 = vunpack.c.l.b16 %v1583
    %v6646 = vunpack.c.h.b16 %v1583
    %v6647 = vunpack.c.l.b16 %v1584
    %v6648 = vunpack.c.h.b16 %v1584
    %v6649 = vunpack.c.l.b16 %v1585
    %v6650 = vunpack.c.h.b16 %v1585
    %v6651 = vunpack.c.l.b16 %v1586
    %v6652 = vunpack.c.h.b16 %v1586
    %v6653 = vunpack.c.l.b16 %v1587
    %v6654 = vunpack.c.h.b16 %v1587
    %v6655 = vunpack.c.l.b16 %v1588
    %v6656 = vunpack.c.h.b16 %v1588
    %v6657 = vunpack.c.l.b16 %v1589
    %v6658 = vunpack.c.h.b16 %v1589
    %v6659 = vunpack.c.l.b16 %v1590
    %v6660 = vunpack.c.h.b16 %v1590
    %v6661 = vunpack.c.l.b16 %v1591
    %v6662 = vunpack.c.h.b16 %v1591
    %v6663 = vunpack.c.l.b16 %v1592
    %v6664 = vunpack.c.h.b16 %v1592
    %v6665 = vunpack.c.l.b16 %v1593
    %v6666 = vunpack.c.h.b16 %v1593
    %v6667 = vunpack.c.l.b16 %v1594
    %v6668 = vunpack.c.h.b16 %v1594
    %v6669 = vunpack.c.l.b16 %v1595
    %v6670 = vunpack.c.h.b16 %v1595
    %v6671 = vunpack.c.l.b16 %v1596
    %v6672 = vunpack.c.h.b16 %v1596
    %v6673 = vunpack.c.l.b16 %v1597
    %v6674 = vunpack.c.h.b16 %v1597
    %v6675 = vunpack.c.l.b16 %v1598
    %v6676 = vunpack.c.h.b16 %v1598
    %v6677 = vunpack.c.l.b16 %v1599
    %v6678 = vunpack.c.h.b16 %v1599
    %v6679 = vunpack.c.l.b16 %v1600
    %v6680 = vunpack.c.h.b16 %v1600
    %v6681 = vunpack.c.l.b16 %v1601
    %v6682 = vunpack.c.h.b16 %v1601
    %v6683 = vunpack.c.l.b16 %v1602
    %v6684 = vunpack.c.h.b16 %v1602
    %v6685 = vunpack.c.l.b16 %v1603
    %v6686 = vunpack.c.h.b16 %v1603
    %v6687 = vunpack.c.l.b16 %v1604
    %v6688 = vunpack.c.h.b16 %v1604
    %v6689 = vunpack.c.l.b16 %v1605
    %v6690 = vunpack.c.h.b16 %v1605
    %v6691 = vunpack.c.l.b16 %v1606
    %v6692 = vunpack.c.h.b16 %v1606
    %v6693 = vunpack.c.l.b16 %v1607
    %v6694 = vunpack.c.h.b16 %v1607
    %v6695 = vunpack.c.l.b16 %v1608
    %v6696 = vunpack.c.h.b16 %v1608
    %v6697 = vunpack.c.l.b16 %v1609
    %v6698 = vunpack.c.h.b16 %v1609
    %v6699 = vunpack.c.l.b16 %v1610
    %v6700 = vunpack.c.h.b16 %v1610
    %v6701 = vunpack.c.l.b16 %v1611
    %v6702 = vunpack.c.h.b16 %v1611
    %v6703 = vunpack.c.l.b16 %v1612
    %v6704 = vunpack.c.h.b16 %v1612
    %v6705 = vunpack.c.l.b16 %v1613
    %v6706 = vunpack.c.h.b16 %v1613
    %v6707 = vunpack.c.l.b16 %v1614
    %v6708 = vunpack.c.h.b16 %v1614
    %v6709 = vunpack.c.l.b16 %v1615
    %v6710 = vunpack.c.h.b16 %v1615
    %v6711 = vunpack.c.l.b16 %v1616
    %v6712 = vunpack.c.h.b16 %v1616
    %v6713 = vunpack.c.l.b16 %v1617
    %v6714 = vunpack.c.h.b16 %v1617
    %v6715 = vunpack.c.l.b16 %v1618
    %v6716 = vunpack.c.h.b16 %v1618
    %v6717 = vunpack.c.l.b16 %v1619
    %v6718 = vunpack.c.h.b16 %v1619
    %v6719 = vunpack.c.l.b16 %v1620
    %v6720 = vunpack.c.h.b16 %v1620
    %v6721 = vunpack.c.l.b16 %v1621
    %v6722 = vunpack.c.h.b16 %v1621
    %v6723 = vunpack.c.l.b16 %v1622
    %v6724 = vunpack.c.h.b16 %v1622
    %v6725 = vunpack.c.l.b16 %v1623
    %v6726 = vunpack.c.h.b16 %v1623
    %v6727 = vunpack.c.l.b16 %v1624
    %v6728 = vunpack.c.h.b16 %v1624
    %v6729 = vunpack.c.l.b16 %v1625
    %v6730 = vunpack.c.h.b16 %v1625
    %v6731 = vunpack.c.l.b16 %v1626
    %v6732 = vunpack.c.h.b16 %v1626
    %v6733 = vunpack.c.l.b16 %v1627
    %v6734 = vunpack.c.h.b16 %v1627
    %v6735 = vunpack.c.l.b16 %v1628
    %v6736 = vunpack.c.h.b16 %v1628
    %v6737 = vunpack.c.l.b16 %v1629
    %v6738 = vunpack.c.h.b16 %v1629
    %v6739 = vunpack.c.l.b16 %v1630
    %v6740 = vunpack.c.h.b16 %v1630
    %v6741 = vunpack.c.l.b16 %v1631
    %v6742 = vunpack.c.h.b16 %v1631
    %v6743 = vunpack.c.l.b16 %v1632
    %v6744 = vunpack.c.h.b16 %v1632
    %v6745 = vunpack.c.l.b16 %v1633
    %v6746 = vunpack.c.h.b16 %v1633
    %v6747 = vunpack.c.l.b16 %v1634
    %v6748 = vunpack.c.h.b16 %v1634
    %v6749 = vunpack.c.l.b16 %v1635
    %v6750 = vunpack.c.h.b16 %v1635
    %v6751 = vunpack.c.l.b16 %v1636
    %v6752 = vunpack.c.h.b16 %v1636
    %v6753 = vunpack.c.l.b16 %v1637
    %v6754 = vunpack.c.h.b16 %v1637
    %v6755 = vunpack.c.l.b16 %v1638
    %v6756 = vunpack.c.h.b16 %v1638
    %v6757 = vunpack.c.l.b16 %v1639
    %v6758 = vunpack.c.h.b16 %v1639
    %v6759 = vunpack.c.l.b16 %v1640
    %v6760 = vunpack.c.h.b16 %v1640
    %v6761 = vunpack.c.l.b16 %v1641
    %v6762 = vunpack.c.h.b16 %v1641
    %v6763 = vunpack.c.l.b16 %v1642
    %v6764 = vunpack.c.h.b16 %v1642
    %v6765 = vunpack.c.l.b16 %v1643
    %v6766 = vunpack.c.h.b16 %v1643
    %v6767 = vunpack.c.l.b16 %v1644
    %v6768 = vunpack.c.h.b16 %v1644
    %v6769 = vunpack.c.l.b16 %v1645
    %v6770 = vunpack.c.h.b16 %v1645
    %v6771 = vunpack.c.l.b16 %v1646
    %v6772 = vunpack.c.h.b16 %v1646
    %v6773 = vunpack.c.l.b16 %v1647
    %v6774 = vunpack.c.h.b16 %v1647
    %v6775 = vunpack.c.l.b16 %v1648
    %v6776 = vunpack.c.h.b16 %v1648
    %v6777 = vunpack.c.l.b16 %v1649
    %v6778 = vunpack.c.h.b16 %v1649
    %v6779 = vunpack.c.l.b16 %v1650
    %v6780 = vunpack.c.h.b16 %v1650
    %v6781 = vunpack.c.l.b16 %v1651
    %v6782 = vunpack.c.h.b16 %v1651
    %v6783 = vunpack.c.l.b16 %v1652
    %v6784 = vunpack.c.h.b16 %v1652
    %v6785 = vunpack.c.l.b16 %v1653
    %v6786 = vunpack.c.h.b16 %v1653
    %v6787 = vunpack.c.l.b16 %v1654
    %v6788 = vunpack.c.h.b16 %v1654
    %v6789 = vunpack.c.l.b16 %v1655
    %v6790 = vunpack.c.h.b16 %v1655
    %v6791 = vunpack.c.l.b16 %v1656
    %v6792 = vunpack.c.h.b16 %v1656
    %v6793 = vunpack.c.l.b16 %v1657
    %v6794 = vunpack.c.h.b16 %v1657
    %v6795 = vunpack.c.l.b16 %v1658
    %v6796 = vunpack.c.h.b16 %v1658
    %v6797 = vunpack.c.l.b16 %v1659
    %v6798 = vunpack.c.h.b16 %v1659
    %v6799 = vunpack.c.l.b16 %v1660
    %v6800 = vunpack.c.h.b16 %v1660
    %v6801 = vunpack.c.l.b16 %v1661
    %v6802 = vunpack.c.h.b16 %v1661
    %v6803 = vunpack.c.l.b16 %v1662
    %v6804 = vunpack.c.h.b16 %v1662
    %v6805 = vunpack.c.l.b16 %v1663
    %v6806 = vunpack.c.h.b16 %v1663
    %v6807 = vunpack.c.l.b16 %v1664
    %v6808 = vunpack.c.h.b16 %v1664
    %v6809 = vunpack.c.l.b16 %v1665
    %v6810 = vunpack.c.h.b16 %v1665
    %v6811 = vunpack.c.l.b16 %v1666
    %v6812 = vunpack.c.h.b16 %v1666
    %v6813 = vunpack.c.l.b16 %v1667
    %v6814 = vunpack.c.h.b16 %v1667
    %v6815 = vunpack.c.l.b16 %v1668
    %v6816 = vunpack.c.h.b16 %v1668
    %v6817 = vunpack.c.l.b16 %v1669
    %v6818 = vunpack.c.h.b16 %v1669
    %v6819 = vunpack.c.l.b16 %v1670
    %v6820 = vunpack.c.h.b16 %v1670
    %v6821 = vunpack.c.l.b16 %v1671
    %v6822 = vunpack.c.h.b16 %v1671
    %v6823 = vunpack.c.l.b16 %v1672
    %v6824 = vunpack.c.h.b16 %v1672
    %v6825 = vunpack.c.l.b16 %v1673
    %v6826 = vunpack.c.h.b16 %v1673
    %v6827 = vunpack.c.l.b16 %v1674
    %v6828 = vunpack.c.h.b16 %v1674
    %v6829 = vunpack.c.l.b16 %v1675
    %v6830 = vunpack.c.h.b16 %v1675
    %v6831 = vunpack.c.l.b16 %v1676
    %v6832 = vunpack.c.h.b16 %v1676
    %v6833 = vunpack.c.l.b16 %v1677
    %v6834 = vunpack.c.h.b16 %v1677
    %v6835 = vunpack.c.l.b16 %v1678
    %v6836 = vunpack.c.h.b16 %v1678
    %v6837 = vunpack.c.l.b16 %v1679
    %v6838 = vunpack.c.h.b16 %v1679
    %v6839 = vunpack.c.l.b16 %v1680
    %v6840 = vunpack.c.h.b16 %v1680
    %v6841 = vunpack.c.l.b16 %v1681
    %v6842 = vunpack.c.h.b16 %v1681
    %v6843 = vunpack.c.l.b16 %v1682
    %v6844 = vunpack.c.h.b16 %v1682
    %v6845 = vunpack.c.l.b16 %v1683
    %v6846 = vunpack.c.h.b16 %v1683
    %v6847 = vunpack.c.l.b16 %v1684
    %v6848 = vunpack.c.h.b16 %v1684
    %v6849 = vunpack.c.l.b16 %v1685
    %v6850 = vunpack.c.h.b16 %v1685
    %v6851 = vunpack.c.l.b16 %v1686
    %v6852 = vunpack.c.h.b16 %v1686
    %v6853 = vunpack.c.l.b16 %v1687
    %v6854 = vunpack.c.h.b16 %v1687
    %v6855 = vunpack.c.l.b16 %v1688
    %v6856 = vunpack.c.h.b16 %v1688
    %v6857 = vunpack.c.l.b16 %v1689
    %v6858 = vunpack.c.h.b16 %v1689
    %v6859 = vunpack.c.l.b16 %v1690
    %v6860 = vunpack.c.h.b16 %v1690
    %v6861 = vunpack.c.l.b16 %v1691
    %v6862 = vunpack.c.h.b16 %v1691
    %v6863 = vunpack.c.l.b16 %v1692
    %v6864 = vunpack.c.h.b16 %v1692
    %v6865 = vunpack.c.l.b16 %v1693
    %v6866 = vunpack.c.h.b16 %v1693
    %v6867 = vunpack.c.l.b16 %v1694
    %v6868 = vunpack.c.h.b16 %v1694
    %v6869 = vunpack.c.l.b16 %v1695
    %v6870 = vunpack.c.h.b16 %v1695
    %v6871 = vunpack.c.l.b16 %v1696
    %v6872 = vunpack.c.h.b16 %v1696
    %v6873 = vunpack.c.l.b16 %v1697
    %v6874 = vunpack.c.h.b16 %v1697
    %v6875 = vunpack.c.l.b16 %v1698
    %v6876 = vunpack.c.h.b16 %v1698
    %v6877 = vunpack.c.l.b16 %v1699
    %v6878 = vunpack.c.h.b16 %v1699
    %v6879 = vpack.c.b16 %v3567, %v3551
    %v6880 = vpack.c.b16 %v3568, %v3552
    %v6881 = vpack.c.b16 %v3569, %v3553
    %v6882 = vpack.c.b16 %v3570, %v3554
    %v6883 = vpack.c.b16 %v3571, %v3555
    %v6884 = vpack.c.b16 %v3572, %v3556
    %v6885 = vpack.c.b16 %v3573, %v3557
    %v6886 = vpack.c.b16 %v3574, %v3558
    %v6887 = vpack.c.b16 %v3575, %v3559
    %v6888 = vpack.c.b16 %v3576, %v3560
    %v6889 = vpack.c.b16 %v3577, %v3561
    %v6890 = vpack.c.b16 %v3578, %v3562
    %v6891 = vpack.c.b16 %v3579, %v3563
    %v6892 = vpack.c.b16 %v3580, %v3564
    %v6893 = vpack.c.b16 %v3581, %v3565
    %v6894 = vpack.c.b16 %v3582, %v3566
    %v6895 = vpack.c.b16 %v3599, %v3583
    %v6896 = vpack.c.b16 %v3600, %v3584
    %v6897 = vpack.c.b16 %v3601, %v3585
    %v6898 = vpack.c.b16 %v3602, %v3586
    %v6899 = vpack.c.b16 %v3603, %v3587
    %v6900 = vpack.c.b16 %v3604, %v3588
    %v6901 = vpack.c.b16 %v3605, %v3589
    %v6902 = vpack.c.b16 %v3606, %v3590
    %v6903 = vpack.c.b16 %v3607, %v3591
    %v6904 = vpack.c.b16 %v3608, %v3592
    %v6905 = vpack.c.b16 %v3609, %v3593
    %v6906 = vpack.c.b16 %v3610, %v3594
    %v6907 = vpack.c.b16 %v3611, %v3595
    %v6908 = vpack.c.b16 %v3612, %v3596
    %v6909 = vpack.c.b16 %v3613, %v3597
    %v6910 = vpack.c.b16 %v3614, %v3598
    %v6911 = vpack.c.b16 %v3631, %v3615
    %v6912 = vpack.c.b16 %v3632, %v3616
    %v6913 = vpack.c.b16 %v3633, %v3617
    %v6914 = vpack.c.b16 %v3634, %v3618
    %v6915 = vpack.c.b16 %v3635, %v3619
    %v6916 = vpack.c.b16 %v3636, %v3620
    %v6917 = vpack.c.b16 %v3637, %v3621
    %v6918 = vpack.c.b16 %v3638, %v3622
    %v6919 = vpack.c.b16 %v3639, %v3623
    %v6920 = vpack.c.b16 %v3640, %v3624
    %v6921 = vpack.c.b16 %v3641, %v3625
    %v6922 = vpack.c.b16 %v3642, %v3626
    %v6923 = vpack.c.b16 %v3643, %v3627
    %v6924 = vpack.c.b16 %v3644, %v3628
    %v6925 = vpack.c.b16 %v3645, %v3629
    %v6926 = vpack.c.b16 %v3646, %v3630
    %v6927 = vpack.c.b16 %v3663, %v3647
    %v6928 = vpack.c.b16 %v3664, %v3648
    %v6929 = vpack.c.b16 %v3665, %v3649
    %v6930 = vpack.c.b16 %v3666, %v3650
    %v6931 = vpack.c.b16 %v3667, %v3651
    %v6932 = vpack.c.b16 %v3668, %v3652
    %v6933 = vpack.c.b16 %v3669, %v3653
    %v6934 = vpack.c.b16 %v3670, %v3654
    %v6935 = vpack.c.b16 %v3671, %v3655
    %v6936 = vpack.c.b16 %v3672, %v3656
    %v6937 = vpack.c.b16 %v3673, %v3657
    %v6938 = vpack.c.b16 %v3674, %v3658
    %v6939 = vpack.c.b16 %v3675, %v3659
    %v6940 = vpack.c.b16 %v3676, %v3660
    %v6941 = vpack.c.b16 %v3677, %v3661
    %v6942 = vpack.c.b16 %v3678, %v3662
    %v6943 = vpack.c.b16 %v3695, %v3679
    %v6944 = vpack.c.b16 %v3696, %v3680
    %v6945 = vpack.c.b16 %v3697, %v3681
    %v6946 = vpack.c.b16 %v3698, %v3682
    %v6947 = vpack.c.b16 %v3699, %v3683
    %v6948 = vpack.c.b16 %v3700, %v3684
    %v6949 = vpack.c.b16 %v3701, %v3685
    %v6950 = vpack.c.b16 %v3702, %v3686
    %v6951 = vpack.c.b16 %v3703, %v3687
    %v6952 = vpack.c.b16 %v3704, %v3688
    %v6953 = vpack.c.b16 %v3705, %v3689
    %v6954 = vpack.c.b16 %v3706, %v3690
    %v6955 = vpack.c.b16 %v3707, %v3691
    %v6956 = vpack.c.b16 %v3708, %v3692
    %v6957 = vpack.c.b16 %v3709, %v3693
    %v6958 = vpack.c.b16 %v3710, %v3694
    %v6959 = vpack.c.b16 %v3727, %v3711
    %v6960 = vpack.c.b16 %v3728, %v3712
    %v6961 = vpack.c.b16 %v3729, %v3713
    %v6962 = vpack.c.b16 %v3730, %v3714
    %v6963 = vpack.c.b16 %v3731, %v3715
    %v6964 = vpack.c.b16 %v3732, %v3716
    %v6965 = vpack.c.b16 %v3733, %v3717
    %v6966 = vpack.c.b16 %v3734, %v3718
    %v6967 = vpack.c.b16 %v3735, %v3719
    %v6968 = vpack.c.b16 %v3736, %v3720
    %v6969 = vpack.c.b16 %v3737, %v3721
    %v6970 = vpack.c.b16 %v3738, %v3722
    %v6971 = vpack.c.b16 %v3739, %v3723
    %v6972 = vpack.c.b16 %v3740, %v3724
    %v6973 = vpack.c.b16 %v3741, %v3725
    %v6974 = vpack.c.b16 %v3742, %v3726
    %v6975 = vpack.c.b16 %v3759, %v3743
    %v6976 = vpack.c.b16 %v3760, %v3744
    %v6977 = vpack.c.b16 %v3761, %v3745
    %v6978 = vpack.c.b16 %v3762, %v3746
    %v6979 = vpack.c.b16 %v3763, %v3747
    %v6980 = vpack.c.b16 %v3764, %v3748
    %v6981 = vpack.c.b16 %v3765, %v3749
    %v6982 = vpack.c.b16 %v3766, %v3750
    %v6983 = vpack.c.b16 %v3767, %v3751
    %v6984 = vpack.c.b16 %v3768, %v3752
    %v6985 = vpack.c.b16 %v3769, %v3753
    %v6986 = vpack.c.b16 %v3770, %v3754
    %v6987 = vpack.c.b16 %v3771, %v3755
    %v6988 = vpack.c.b16 %v3772, %v3756
    %v6989 = vpack.c.b16 %v3773, %v3757
    %v6990 = vpack.c.b16 %v3774, %v3758
    %v6991 = vpack.c.b16 %v3791, %v3775
    %v6992 = vpack.c.b16 %v3792, %v3776
    %v6993 = vpack.c.b16 %v3793, %v3777
    %v6994 = vpack.c.b16 %v3794, %v3778
    %v6995 = vpack.c.b16 %v3795, %v3779
    %v6996 = vpack.c.b16 %v3796, %v3780
    %v6997 = vpack.c.b16 %v3797, %v3781
    %v6998 = vpack.c.b16 %v3798, %v3782
    %v6999 = vpack.c.b16 %v3799, %v3783
    %v7000 = vpack.c.b16 %v3800, %v3784
    %v7001 = vpack.c.b16 %v3801, %v3785
    %v7002 = vpack.c.b16 %v3802, %v3786
    %v7003 = vpack.c.b16 %v3803, %v3787
    %v7004 = vpack.c.b16 %v3804, %v3788
    %v7005 = vpack.c.b16 %v3805, %v3789
    %v7006 = vpack.c.b16 %v3806, %v3790
    %v7007 = vpack.c.b16 %v3823, %v3807
    %v7008 = vpack.c.b16 %v3824, %v3808
    %v7009 = vpack.c.b16 %v3825, %v3809
    %v7010 = vpack.c.b16 %v3826, %v3810
    %v7011 = vpack.c.b16 %v3827, %v3811
    %v7012 = vpack.c.b16 %v3828, %v3812
    %v7013 = vpack.c.b16 %v3829, %v3813
    %v7014 = vpack.c.b16 %v3830, %v3814
    %v7015 = vpack.c.b16 %v3831, %v3815
    %v7016 = vpack.c.b16 %v3832, %v3816
    %v7017 = vpack.c.b16 %v3833, %v3817
    %v7018 = vpack.c.b16 %v3834, %v3818
    %v7019 = vpack.c.b16 %v3835, %v3819
    %v7020 = vpack.c.b16 %v3836, %v3820
    %v7021 = vpack.c.b16 %v3837, %v3821
    %v7022 = vpack.c.b16 %v3838, %v3822
    %v7023 = vpack.c.b16 %v3855, %v3839
    %v7024 = vpack.c.b16 %v3856, %v3840
    %v7025 = vpack.c.b16 %v3857, %v3841
    %v7026 = vpack.c.b16 %v3858, %v3842
    %v7027 = vpack.c.b16 %v3859, %v3843
    %v7028 = vpack.c.b16 %v3860, %v3844
    %v7029 = vpack.c.b16 %v3861, %v3845
    %v7030 = vpack.c.b16 %v3862, %v3846
    %v7031 = vpack.c.b16 %v3863, %v3847
    %v7032 = vpack.c.b16 %v3864, %v3848
    %v7033 = vpack.c.b16 %v3865, %v3849
    %v7034 = vpack.c.b16 %v3866, %v3850
    %v7035 = vpack.c.b16 %v3867, %v3851
    %v7036 = vpack.c.b16 %v3868, %v3852
    %v7037 = vpack.c.b16 %v3869, %v3853
    %v7038 = vpack.c.b16 %v3870, %v3854
    %v7039 = vpack.c.b16 %v3887, %v3871
    %v7040 = vpack.c.b16 %v3888, %v3872
    %v7041 = vpack.c.b16 %v3889, %v3873
    %v7042 = vpack.c.b16 %v3890, %v3874
    %v7043 = vpack.c.b16 %v3891, %v3875
    %v7044 = vpack.c.b16 %v3892, %v3876
    %v7045 = vpack.c.b16 %v3893, %v3877
    %v7046 = vpack.c.b16 %v3894, %v3878
    %v7047 = vpack.c.b16 %v3895, %v3879
    %v7048 = vpack.c.b16 %v3896, %v3880
    %v7049 = vpack.c.b16 %v3897, %v3881
    %v7050 = vpack.c.b16 %v3898, %v3882
    %v7051 = vpack.c.b16 %v3899, %v3883
    %v7052 = vpack.c.b16 %v3900, %v3884
    %v7053 = vpack.c.b16 %v3901, %v3885
    %v7054 = vpack.c.b16 %v3902, %v3886
    %v7055 = vpack.c.b16 %v3919, %v3903
    %v7056 = vpack.c.b16 %v3920, %v3904
    %v7057 = vpack.c.b16 %v3921, %v3905
    %v7058 = vpack.c.b16 %v3922, %v3906
    %v7059 = vpack.c.b16 %v3923, %v3907
    %v7060 = vpack.c.b16 %v3924, %v3908
    %v7061 = vpack.c.b16 %v3925, %v3909
    %v7062 = vpack.c.b16 %v3926, %v3910
    %v7063 = vpack.c.b16 %v3927, %v3911
    %v7064 = vpack.c.b16 %v3928, %v3912
    %v7065 = vpack.c.b16 %v3929, %v3913
    %v7066 = vpack.c.b16 %v3930, %v3914
    %v7067 = vpack.c.b16 %v3931, %v3915
    %v7068 = vpack.c.b16 %v3932, %v3916
    %v7069 = vpack.c.b16 %v3933, %v3917
    %v7070 = vpack.c.b16 %v3934, %v3918
    %v7071 = vpack.c.b16 %v3951, %v3935
    %v7072 = vpack.c.b16 %v3952, %v3936
    %v7073 = vpack.c.b16 %v3953, %v3937
    %v7074 = vpack.c.b16 %v3954, %v3938
    %v7075 = vpack.c.b16 %v3955, %v3939
    %v7076 = vpack.c.b16 %v3956, %v3940
    %v7077 = vpack.c.b16 %v3957, %v3941
    %v7078 = vpack.c.b16 %v3958, %v3942
    %v7079 = vpack.c.b16 %v3959, %v3943
    %v7080 = vpack.c.b16 %v3960, %v3944
    %v7081 = vpack.c.b16 %v3961, %v3945
    %v7082 = vpack.c.b16 %v3962, %v3946
    %v7083 = vpack.c.b16 %v3963, %v3947
    %v7084 = vpack.c.b16 %v3964, %v3948
    %v7085 = vpack.c.b16 %v3965, %v3949
    %v7086 = vpack.c.b16 %v3966, %v3950
    %v7087 = vpack.c.b16 %v3983, %v3967
    %v7088 = vpack.c.b16 %v3984, %v3968
    %v7089 = vpack.c.b16 %v3985, %v3969
    %v7090 = vpack.c.b16 %v3986, %v3970
    %v7091 = vpack.c.b16 %v3987, %v3971
    %v7092 = vpack.c.b16 %v3988, %v3972
    %v7093 = vpack.c.b16 %v3989, %v3973
    %v7094 = vpack.c.b16 %v3990, %v3974
    %v7095 = vpack.c.b16 %v3991, %v3975
    %v7096 = vpack.c.b16 %v3992, %v3976
    %v7097 = vpack.c.b16 %v3993, %v3977
    %v7098 = vpack.c.b16 %v3994, %v3978
    %v7099 = vpack.c.b16 %v3995, %v3979
    %v7100 = vpack.c.b16 %v3996, %v3980
    %v7101 = vpack.c.b16 %v3997, %v3981
    %v7102 = vpack.c.b16 %v3998, %v3982
    %v7103 = vpack.c.b16 %v4015, %v3999
    %v7104 = vpack.c.b16 %v4016, %v4000
    %v7105 = vpack.c.b16 %v4017, %v4001
    %v7106 = vpack.c.b16 %v4018, %v4002
    %v7107 = vpack.c.b16 %v4019, %v4003
    %v7108 = vpack.c.b16 %v4020, %v4004
    %v7109 = vpack.c.b16 %v4021, %v4005
    %v7110 = vpack.c.b16 %v4022, %v4006
    %v7111 = vpack.c.b16 %v4023, %v4007
    %v7112 = vpack.c.b16 %v4024, %v4008
    %v7113 = vpack.c.b16 %v4025, %v4009
    %v7114 = vpack.c.b16 %v4026, %v4010
    %v7115 = vpack.c.b16 %v4027, %v4011
    %v7116 = vpack.c.b16 %v4028, %v4012
    %v7117 = vpack.c.b16 %v4029, %v4013
    %v7118 = vpack.c.b16 %v4030, %v4014
    %v7119 = vpack.c.b16 %v4047, %v4031
    %v7120 = vpack.c.b16 %v4048, %v4032
    %v7121 = vpack.c.b16 %v4049, %v4033
    %v7122 = vpack.c.b16 %v4050, %v4034
    %v7123 = vpack.c.b16 %v4051, %v4035
    %v7124 = vpack.c.b16 %v4052, %v4036
    %v7125 = vpack.c.b16 %v4053, %v4037
    %v7126 = vpack.c.b16 %v4054, %v4038
    %v7127 = vpack.c.b16 %v4055, %v4039
    %v7128 = vpack.c.b16 %v4056, %v4040
    %v7129 = vpack.c.b16 %v4057, %v4041
    %v7130 = vpack.c.b16 %v4058, %v4042
    %v7131 = vpack.c.b16 %v4059, %v4043
    %v7132 = vpack.c.b16 %v4060, %v4044
    %v7133 = vpack.c.b16 %v4061, %v4045
    %v7134 = vpack.c.b16 %v4062, %v4046
    %v7135 = vpack.c.b16 %v4079, %v4063
    %v7136 = vpack.c.b16 %v4080, %v4064
    %v7137 = vpack.c.b16 %v4081, %v4065
    %v7138 = vpack.c.b16 %v4082, %v4066
    %v7139 = vpack.c.b16 %v4083, %v4067
    %v7140 = vpack.c.b16 %v4084, %v4068
    %v7141 = vpack.c.b16 %v4085, %v4069
    %v7142 = vpack.c.b16 %v4086, %v4070
    %v7143 = vpack.c.b16 %v4087, %v4071
    %v7144 = vpack.c.b16 %v4088, %v4072
    %v7145 = vpack.c.b16 %v4089, %v4073
    %v7146 = vpack.c.b16 %v4090, %v4074
    %v7147 = vpack.c.b16 %v4091, %v4075
    %v7148 = vpack.c.b16 %v4092, %v4076
    %v7149 = vpack.c.b16 %v4093, %v4077
    %v7150 = vpack.c.b16 %v4094, %v4078
    %v7151 = vpack.c.b16 %v4111, %v4095
    %v7152 = vpack.c.b16 %v4112, %v4096
    %v7153 = vpack.c.b16 %v4113, %v4097
    %v7154 = vpack.c.b16 %v4114, %v4098
    %v7155 = vpack.c.b16 %v4115, %v4099
    %v7156 = vpack.c.b16 %v4116, %v4100
    %v7157 = vpack.c.b16 %v4117, %v4101
    %v7158 = vpack.c.b16 %v4118, %v4102
    %v7159 = vpack.c.b16 %v4119, %v4103
    %v7160 = vpack.c.b16 %v4120, %v4104
    %v7161 = vpack.c.b16 %v4121, %v4105
    %v7162 = vpack.c.b16 %v4122, %v4106
    %v7163 = vpack.c.b16 %v4123, %v4107
    %v7164 = vpack.c.b16 %v4124, %v4108
    %v7165 = vpack.c.b16 %v4125, %v4109
    %v7166 = vpack.c.b16 %v4126, %v4110
    %v7167 = vpack.c.b16 %v4143, %v4127
    %v7168 = vpack.c.b16 %v4144, %v4128
    %v7169 = vpack.c.b16 %v4145, %v4129
    %v7170 = vpack.c.b16 %v4146, %v4130
    %v7171 = vpack.c.b16 %v4147, %v4131
    %v7172 = vpack.c.b16 %v4148, %v4132
    %v7173 = vpack.c.b16 %v4149, %v4133
    %v7174 = vpack.c.b16 %v4150, %v4134
    %v7175 = vpack.c.b16 %v4151, %v4135
    %v7176 = vpack.c.b16 %v4152, %v4136
    %v7177 = vpack.c.b16 %v4153, %v4137
    %v7178 = vpack.c.b16 %v4154, %v4138
    %v7179 = vpack.c.b16 %v4155, %v4139
    %v7180 = vpack.c.b16 %v4156, %v4140
    %v7181 = vpack.c.b16 %v4157, %v4141
    %v7182 = vpack.c.b16 %v4158, %v4142
    %v7183 = vpack.c.b16 %v4175, %v4159
    %v7184 = vpack.c.b16 %v4176, %v4160
    %v7185 = vpack.c.b16 %v4177, %v4161
    %v7186 = vpack.c.b16 %v4178, %v4162
    %v7187 = vpack.c.b16 %v4179, %v4163
    %v7188 = vpack.c.b16 %v4180, %v4164
    %v7189 = vpack.c.b16 %v4181, %v4165
    %v7190 = vpack.c.b16 %v4182, %v4166
    %v7191 = vpack.c.b16 %v4183, %v4167
    %v7192 = vpack.c.b16 %v4184, %v4168
    %v7193 = vpack.c.b16 %v4185, %v4169
    %v7194 = vpack.c.b16 %v4186, %v4170
    %v7195 = vpack.c.b16 %v4187, %v4171
    %v7196 = vpack.c.b16 %v4188, %v4172
    %v7197 = vpack.c.b16 %v4189, %v4173
    %v7198 = vpack.c.b16 %v4190, %v4174
    %v7199 = vpack.c.b16 %v4207, %v4191
    %v7200 = vpack.c.b16 %v4208, %v4192
    %v7201 = vpack.c.b16 %v4209, %v4193
    %v7202 = vpack.c.b16 %v4210, %v4194
    %v7203 = vpack.c.b16 %v4211, %v4195
    %v7204 = vpack.c.b16 %v4212, %v4196
    %v7205 = vpack.c.b16 %v4213, %v4197
    %v7206 = vpack.c.b16 %v4214, %v4198
    %v7207 = vpack.c.b16 %v4215, %v4199
    %v7208 = vpack.c.b16 %v4216, %v4200
    %v7209 = vpack.c.b16 %v4217, %v4201
    %v7210 = vpack.c.b16 %v4218, %v4202
    %v7211 = vpack.c.b16 %v4219, %v4203
    %v7212 = vpack.c.b16 %v4220, %v4204
    %v7213 = vpack.c.b16 %v4221, %v4205
    %v7214 = vpack.c.b16 %v4222, %v4206
    %v7215 = vpack.c.b16 %v4239, %v4223
    %v7216 = vpack.c.b16 %v4240, %v4224
    %v7217 = vpack.c.b16 %v4241, %v4225
    %v7218 = vpack.c.b16 %v4242, %v4226
    %v7219 = vpack.c.b16 %v4243, %v4227
    %v7220 = vpack.c.b16 %v4244, %v4228
    %v7221 = vpack.c.b16 %v4245, %v4229
    %v7222 = vpack.c.b16 %v4246, %v4230
    %v7223 = vpack.c.b16 %v4247, %v4231
    %v7224 = vpack.c.b16 %v4248, %v4232
    %v7225 = vpack.c.b16 %v4249, %v4233
    %v7226 = vpack.c.b16 %v4250, %v4234
    %v7227 = vpack.c.b16 %v4251, %v4235
    %v7228 = vpack.c.b16 %v4252, %v4236
    %v7229 = vpack.c.b16 %v4253, %v4237
    %v7230 = vpack.c.b16 %v4254, %v4238
    %v7231 = vpack.c.b16 %v4271, %v4255
    %v7232 = vpack.c.b16 %v4272, %v4256
    %v7233 = vpack.c.b16 %v4273, %v4257
    %v7234 = vpack.c.b16 %v4274, %v4258
    %v7235 = vpack.c.b16 %v4275, %v4259
    %v7236 = vpack.c.b16 %v4276, %v4260
    %v7237 = vpack.c.b16 %v4277, %v4261
    %v7238 = vpack.c.b16 %v4278, %v4262
    %v7239 = vpack.c.b16 %v4279, %v4263
    %v7240 = vpack.c.b16 %v4280, %v4264
    %v7241 = vpack.c.b16 %v4281, %v4265
    %v7242 = vpack.c.b16 %v4282, %v4266
    %v7243 = vpack.c.b16 %v4283, %v4267
    %v7244 = vpack.c.b16 %v4284, %v4268
    %v7245 = vpack.c.b16 %v4285, %v4269
    %v7246 = vpack.c.b16 %v4286, %v4270
    %v7247 = vpack.c.b16 %v4303, %v4287
    %v7248 = vpack.c.b16 %v4304, %v4288
    %v7249 = vpack.c.b16 %v4305, %v4289
    %v7250 = vpack.c.b16 %v4306, %v4290
    %v7251 = vpack.c.b16 %v4307, %v4291
    %v7252 = vpack.c.b16 %v4308, %v4292
    %v7253 = vpack.c.b16 %v4309, %v4293
    %v7254 = vpack.c.b16 %v4310, %v4294
    %v7255 = vpack.c.b16 %v4311, %v4295
    %v7256 = vpack.c.b16 %v4312, %v4296
    %v7257 = vpack.c.b16 %v4313, %v4297
    %v7258 = vpack.c.b16 %v4314, %v4298
    %v7259 = vpack.c.b16 %v4315, %v4299
    %v7260 = vpack.c.b16 %v4316, %v4300
    %v7261 = vpack.c.b16 %v4317, %v4301
    %v7262 = vpack.c.b16 %v4318, %v4302
    %v7263 = vpack.c.b16 %v4335, %v4319
    %v7264 = vpack.c.b16 %v4336, %v4320
    %v7265 = vpack.c.b16 %v4337, %v4321
    %v7266 = vpack.c.b16 %v4338, %v4322
    %v7267 = vpack.c.b16 %v4339, %v4323
    %v7268 = vpack.c.b16 %v4340, %v4324
    %v7269 = vpack.c.b16 %v4341, %v4325
    %v7270 = vpack.c.b16 %v4342, %v4326
    %v7271 = vpack.c.b16 %v4343, %v4327
    %v7272 = vpack.c.b16 %v4344, %v4328
    %v7273 = vpack.c.b16 %v4345, %v4329
    %v7274 = vpack.c.b16 %v4346, %v4330
    %v7275 = vpack.c.b16 %v4347, %v4331
    %v7276 = vpack.c.b16 %v4348, %v4332
    %v7277 = vpack.c.b16 %v4349, %v4333
    %v7278 = vpack.c.b16 %v4350, %v4334
    %v7279 = vpack.c.b16 %v4367, %v4351
    %v7280 = vpack.c.b16 %v4368, %v4352
    %v7281 = vpack.c.b16 %v4369, %v4353
    %v7282 = vpack.c.b16 %v4370, %v4354
    %v7283 = vpack.c.b16 %v4371, %v4355
    %v7284 = vpack.c.b16 %v4372, %v4356
    %v7285 = vpack.c.b16 %v4373, %v4357
    %v7286 = vpack.c.b16 %v4374, %v4358
    %v7287 = vpack.c.b16 %v4375, %v4359
    %v7288 = vpack.c.b16 %v4376, %v4360
    %v7289 = vpack.c.b16 %v4377, %v4361
    %v7290 = vpack.c.b16 %v4378, %v4362
    %v7291 = vpack.c.b16 %v4379, %v4363
    %v7292 = vpack.c.b16 %v4380, %v4364
    %v7293 = vpack.c.b16 %v4381, %v4365
    %v7294 = vpack.c.b16 %v4382, %v4366
    %v7295 = vpack.c.b16 %v4399, %v4383
    %v7296 = vpack.c.b16 %v4400, %v4384
    %v7297 = vpack.c.b16 %v4401, %v4385
    %v7298 = vpack.c.b16 %v4402, %v4386
    %v7299 = vpack.c.b16 %v4403, %v4387
    %v7300 = vpack.c.b16 %v4404, %v4388
    %v7301 = vpack.c.b16 %v4405, %v4389
    %v7302 = vpack.c.b16 %v4406, %v4390
    %v7303 = vpack.c.b16 %v4407, %v4391
    %v7304 = vpack.c.b16 %v4408, %v4392
    %v7305 = vpack.c.b16 %v4409, %v4393
    %v7306 = vpack.c.b16 %v4410, %v4394
    %v7307 = vpack.c.b16 %v4411, %v4395
    %v7308 = vpack.c.b16 %v4412, %v4396
    %v7309 = vpack.c.b16 %v4413, %v4397
    %v7310 = vpack.c.b16 %v4414, %v4398
    %v7311 = vpack.c.b16 %v4431, %v4415
    %v7312 = vpack.c.b16 %v4432, %v4416
    %v7313 = vpack.c.b16 %v4433, %v4417
    %v7314 = vpack.c.b16 %v4434, %v4418
    %v7315 = vpack.c.b16 %v4435, %v4419
    %v7316 = vpack.c.b16 %v4436, %v4420
    %v7317 = vpack.c.b16 %v4437, %v4421
    %v7318 = vpack.c.b16 %v4438, %v4422
    %v7319 = vpack.c.b16 %v4439, %v4423
    %v7320 = vpack.c.b16 %v4440, %v4424
    %v7321 = vpack.c.b16 %v4441, %v4425
    %v7322 = vpack.c.b16 %v4442, %v4426
    %v7323 = vpack.c.b16 %v4443, %v4427
    %v7324 = vpack.c.b16 %v4444, %v4428
    %v7325 = vpack.c.b16 %v4445, %v4429
    %v7326 = vpack.c.b16 %v4446, %v4430
    %v7327 = vpack.c.b16 %v4463, %v4447
    %v7328 = vpack.c.b16 %v4464, %v4448
    %v7329 = vpack.c.b16 %v4465, %v4449
    %v7330 = vpack.c.b16 %v4466, %v4450
    %v7331 = vpack.c.b16 %v4467, %v4451
    %v7332 = vpack.c.b16 %v4468, %v4452
    %v7333 = vpack.c.b16 %v4469, %v4453
    %v7334 = vpack.c.b16 %v4470, %v4454
    %v7335 = vpack.c.b16 %v4471, %v4455
    %v7336 = vpack.c.b16 %v4472, %v4456
    %v7337 = vpack.c.b16 %v4473, %v4457
    %v7338 = vpack.c.b16 %v4474, %v4458
    %v7339 = vpack.c.b16 %v4475, %v4459
    %v7340 = vpack.c.b16 %v4476, %v4460
    %v7341 = vpack.c.b16 %v4477, %v4461
    %v7342 = vpack.c.b16 %v4478, %v4462
    %v7343 = vpack.c.b16 %v4495, %v4479
    %v7344 = vpack.c.b16 %v4496, %v4480
    %v7345 = vpack.c.b16 %v4497, %v4481
    %v7346 = vpack.c.b16 %v4498, %v4482
    %v7347 = vpack.c.b16 %v4499, %v4483
    %v7348 = vpack.c.b16 %v4500, %v4484
    %v7349 = vpack.c.b16 %v4501, %v4485
    %v7350 = vpack.c.b16 %v4502, %v4486
    %v7351 = vpack.c.b16 %v4503, %v4487
    %v7352 = vpack.c.b16 %v4504, %v4488
    %v7353 = vpack.c.b16 %v4505, %v4489
    %v7354 = vpack.c.b16 %v4506, %v4490
    %v7355 = vpack.c.b16 %v4507, %v4491
    %v7356 = vpack.c.b16 %v4508, %v4492
    %v7357 = vpack.c.b16 %v4509, %v4493
    %v7358 = vpack.c.b16 %v4510, %v4494
    %v7359 = vpack.c.b16 %v4527, %v4511
    %v7360 = vpack.c.b16 %v4528, %v4512
    %v7361 = vpack.c.b16 %v4529, %v4513
    %v7362 = vpack.c.b16 %v4530, %v4514
    %v7363 = vpack.c.b16 %v4531, %v4515
    %v7364 = vpack.c.b16 %v4532, %v4516
    %v7365 = vpack.c.b16 %v4533, %v4517
    %v7366 = vpack.c.b16 %v4534, %v4518
    %v7367 = vpack.c.b16 %v4535, %v4519
    %v7368 = vpack.c.b16 %v4536, %v4520
    %v7369 = vpack.c.b16 %v4537, %v4521
    %v7370 = vpack.c.b16 %v4538, %v4522
    %v7371 = vpack.c.b16 %v4539, %v4523
    %v7372 = vpack.c.b16 %v4540, %v4524
    %v7373 = vpack.c.b16 %v4541, %v4525
    %v7374 = vpack.c.b16 %v4542, %v4526
    %v7375 = vpack.c.b16 %v4559, %v4543
    %v7376 = vpack.c.b16 %v4560, %v4544
    %v7377 = vpack.c.b16 %v4561, %v4545
    %v7378 = vpack.c.b16 %v4562, %v4546
    %v7379 = vpack.c.b16 %v4563, %v4547
    %v7380 = vpack.c.b16 %v4564, %v4548
    %v7381 = vpack.c.b16 %v4565, %v4549
    %v7382 = vpack.c.b16 %v4566, %v4550
    %v7383 = vpack.c.b16 %v4567, %v4551
    %v7384 = vpack.c.b16 %v4568, %v4552
    %v7385 = vpack.c.b16 %v4569, %v4553
    %v7386 = vpack.c.b16 %v4570, %v4554
    %v7387 = vpack.c.b16 %v4571, %v4555
    %v7388 = vpack.c.b16 %v4572, %v4556
    %v7389 = vpack.c.b16 %v4573, %v4557
    %v7390 = vpack.c.b16 %v4574, %v4558
    %v7391 = vpack.c.b16 %v4591, %v4575
    %v7392 = vpack.c.b16 %v4592, %v4576
    %v7393 = vpack.c.b16 %v4593, %v4577
    %v7394 = vpack.c.b16 %v4594, %v4578
    %v7395 = vpack.c.b16 %v4595, %v4579
    %v7396 = vpack.c.b16 %v4596, %v4580
    %v7397 = vpack.c.b16 %v4597, %v4581
    %v7398 = vpack.c.b16 %v4598, %v4582
    %v7399 = vpack.c.b16 %v4599, %v4583
    %v7400 = vpack.c.b16 %v4600, %v4584
    %v7401 = vpack.c.b16 %v4601, %v4585
    %v7402 = vpack.c.b16 %v4602, %v4586
    %v7403 = vpack.c.b16 %v4603, %v4587
    %v7404 = vpack.c.b16 %v4604, %v4588
    %v7405 = vpack.c.b16 %v4605, %v4589
    %v7406 = vpack.c.b16 %v4606, %v4590
    %v7407 = vpack.c.b16 %v4623, %v4607
    %v7408 = vpack.c.b16 %v4624, %v4608
    %v7409 = vpack.c.b16 %v4625, %v4609
    %v7410 = vpack.c.b16 %v4626, %v4610
    %v7411 = vpack.c.b16 %v4627, %v4611
    %v7412 = vpack.c.b16 %v4628, %v4612
    %v7413 = vpack.c.b16 %v4629, %v4613
    %v7414 = vpack.c.b16 %v4630, %v4614
    %v7415 = vpack.c.b16 %v4631, %v4615
    %v7416 = vpack.c.b16 %v4632, %v4616
    %v7417 = vpack.c.b16 %v4633, %v4617
    %v7418 = vpack.c.b16 %v4634, %v4618
    %v7419 = vpack.c.b16 %v4635, %v4619
    %v7420 = vpack.c.b16 %v4636, %v4620
    %v7421 = vpack.c.b16 %v4637, %v4621
    %v7422 = vpack.c.b16 %v4638, %v4622
    %v7423 = vpack.c.b16 %v4655, %v4639
    %v7424 = vpack.c.b16 %v4656, %v4640
    %v7425 = vpack.c.b16 %v4657, %v4641
    %v7426 = vpack.c.b16 %v4658, %v4642
    %v7427 = vpack.c.b16 %v4659, %v4643
    %v7428 = vpack.c.b16 %v4660, %v4644
    %v7429 = vpack.c.b16 %v4661, %v4645
    %v7430 = vpack.c.b16 %v4662, %v4646
    %v7431 = vpack.c.b16 %v4663, %v4647
    %v7432 = vpack.c.b16 %v4664, %v4648
    %v7433 = vpack.c.b16 %v4665, %v4649
    %v7434 = vpack.c.b16 %v4666, %v4650
    %v7435 = vpack.c.b16 %v4667, %v4651
    %v7436 = vpack.c.b16 %v4668, %v4652
    %v7437 = vpack.c.b16 %v4669, %v4653
    %v7438 = vpack.c.b16 %v4670, %v4654
    %v7439 = vpack.c.b16 %v4687, %v4671
    %v7440 = vpack.c.b16 %v4688, %v4672
    %v7441 = vpack.c.b16 %v4689, %v4673
    %v7442 = vpack.c.b16 %v4690, %v4674
    %v7443 = vpack.c.b16 %v4691, %v4675
    %v7444 = vpack.c.b16 %v4692, %v4676
    %v7445 = vpack.c.b16 %v4693, %v4677
    %v7446 = vpack.c.b16 %v4694, %v4678
    %v7447 = vpack.c.b16 %v4695, %v4679
    %v7448 = vpack.c.b16 %v4696, %v4680
    %v7449 = vpack.c.b16 %v4697, %v4681
    %v7450 = vpack.c.b16 %v4698, %v4682
    %v7451 = vpack.c.b16 %v4699, %v4683
    %v7452 = vpack.c.b16 %v4700, %v4684
    %v7453 = vpack.c.b16 %v4701, %v4685
    %v7454 = vpack.c.b16 %v4702, %v4686
    %v7455 = vpack.c.b16 %v4719, %v4703
    %v7456 = vpack.c.b16 %v4720, %v4704
    %v7457 = vpack.c.b16 %v4721, %v4705
    %v7458 = vpack.c.b16 %v4722, %v4706
    %v7459 = vpack.c.b16 %v4723, %v4707
    %v7460 = vpack.c.b16 %v4724, %v4708
    %v7461 = vpack.c.b16 %v4725, %v4709
    %v7462 = vpack.c.b16 %v4726, %v4710
    %v7463 = vpack.c.b16 %v4727, %v4711
    %v7464 = vpack.c.b16 %v4728, %v4712
    %v7465 = vpack.c.b16 %v4729, %v4713
    %v7466 = vpack.c.b16 %v4730, %v4714
    %v7467 = vpack.c.b16 %v4731, %v4715
    %v7468 = vpack.c.b16 %v4732, %v4716
    %v7469 = vpack.c.b16 %v4733, %v4717
    %v7470 = vpack.c.b16 %v4734, %v4718
    %v7471 = vpack.c.b16 %v4751, %v4735
    %v7472 = vpack.c.b16 %v4752, %v4736
    %v7473 = vpack.c.b16 %v4753, %v4737
    %v7474 = vpack.c.b16 %v4754, %v4738
    %v7475 = vpack.c.b16 %v4755, %v4739
    %v7476 = vpack.c.b16 %v4756, %v4740
    %v7477 = vpack.c.b16 %v4757, %v4741
    %v7478 = vpack.c.b16 %v4758, %v4742
    %v7479 = vpack.c.b16 %v4759, %v4743
    %v7480 = vpack.c.b16 %v4760, %v4744
    %v7481 = vpack.c.b16 %v4761, %v4745
    %v7482 = vpack.c.b16 %v4762, %v4746
    %v7483 = vpack.c.b16 %v4763, %v4747
    %v7484 = vpack.c.b16 %v4764, %v4748
    %v7485 = vpack.c.b16 %v4765, %v4749
    %v7486 = vpack.c.b16 %v4766, %v4750
    %v7487 = vpack.c.b16 %v4783, %v4767
    %v7488 = vpack.c.b16 %v4784, %v4768
    %v7489 = vpack.c.b16 %v4785, %v4769
    %v7490 = vpack.c.b16 %v4786, %v4770
    %v7491 = vpack.c.b16 %v4787, %v4771
    %v7492 = vpack.c.b16 %v4788, %v4772
    %v7493 = vpack.c.b16 %v4789, %v4773
    %v7494 = vpack.c.b16 %v4790, %v4774
    %v7495 = vpack.c.b16 %v4791, %v4775
    %v7496 = vpack.c.b16 %v4792, %v4776
    %v7497 = vpack.c.b16 %v4793, %v4777
    %v7498 = vpack.c.b16 %v4794, %v4778
    %v7499 = vpack.c.b16 %v4795, %v4779
    %v7500 = vpack.c.b16 %v4796, %v4780
    %v7501 = vpack.c.b16 %v4797, %v4781
    %v7502 = vpack.c.b16 %v4798, %v4782
    %v7503 = vpack.c.b16 %v4815, %v4799
    %v7504 = vpack.c.b16 %v4816, %v4800
    %v7505 = vpack.c.b16 %v4817, %v4801
    %v7506 = vpack.c.b16 %v4818, %v4802
    %v7507 = vpack.c.b16 %v4819, %v4803
    %v7508 = vpack.c.b16 %v4820, %v4804
    %v7509 = vpack.c.b16 %v4821, %v4805
    %v7510 = vpack.c.b16 %v4822, %v4806
    %v7511 = vpack.c.b16 %v4823, %v4807
    %v7512 = vpack.c.b16 %v4824, %v4808
    %v7513 = vpack.c.b16 %v4825, %v4809
    %v7514 = vpack.c.b16 %v4826, %v4810
    %v7515 = vpack.c.b16 %v4827, %v4811
    %v7516 = vpack.c.b16 %v4828, %v4812
    %v7517 = vpack.c.b16 %v4829, %v4813
    %v7518 = vpack.c.b16 %v4830, %v4814
    %v7519 = vpack.c.b16 %v4847, %v4831
    %v7520 = vpack.c.b16 %v4848, %v4832
    %v7521 = vpack.c.b16 %v4849, %v4833
    %v7522 = vpack.c.b16 %v4850, %v4834
    %v7523 = vpack.c.b16 %v4851, %v4835
    %v7524 = vpack.c.b16 %v4852, %v4836
    %v7525 = vpack.c.b16 %v4853, %v4837
    %v7526 = vpack.c.b16 %v4854, %v4838
    %v7527 = vpack.c.b16 %v4855, %v4839
    %v7528 = vpack.c.b16 %v4856, %v4840
    %v7529 = vpack.c.b16 %v4857, %v4841
    %v7530 = vpack.c.b16 %v4858, %v4842
    %v7531 = vpack.c.b16 %v4859, %v4843
    %v7532 = vpack.c.b16 %v4860, %v4844
    %v7533 = vpack.c.b16 %v4861, %v4845
    %v7534 = vpack.c.b16 %v4862, %v4846
    %v7535 = vpack.c.b16 %v4879, %v4863
    %v7536 = vpack.c.b16 %v4880, %v4864
    %v7537 = vpack.c.b16 %v4881, %v4865
    %v7538 = vpack.c.b16 %v4882, %v4866
    %v7539 = vpack.c.b16 %v4883, %v4867
    %v7540 = vpack.c.b16 %v4884, %v4868
    %v7541 = vpack.c.b16 %v4885, %v4869
    %v7542 = vpack.c.b16 %v4886, %v4870
    %v7543 = vpack.c.b16 %v4887, %v4871
    %v7544 = vpack.c.b16 %v4888, %v4872
    %v7545 = vpack.c.b16 %v4889, %v4873
    %v7546 = vpack.c.b16 %v4890, %v4874
    %v7547 = vpack.c.b16 %v4891, %v4875
    %v7548 = vpack.c.b16 %v4892, %v4876
    %v7549 = vpack.c.b16 %v4893, %v4877
    %v7550 = vpack.c.b16 %v4894, %v4878
    %v7551 = vpack.c.b16 %v4911, %v4895
    %v7552 = vpack.c.b16 %v4912, %v4896
    %v7553 = vpack.c.b16 %v4913, %v4897
    %v7554 = vpack.c.b16 %v4914, %v4898
    %v7555 = vpack.c.b16 %v4915, %v4899
    %v7556 = vpack.c.b16 %v4916, %v4900
    %v7557 = vpack.c.b16 %v4917, %v4901
    %v7558 = vpack.c.b16 %v4918, %v4902
    %v7559 = vpack.c.b16 %v4919, %v4903
    %v7560 = vpack.c.b16 %v4920, %v4904
    %v7561 = vpack.c.b16 %v4921, %v4905
    %v7562 = vpack.c.b16 %v4922, %v4906
    %v7563 = vpack.c.b16 %v4923, %v4907
    %v7564 = vpack.c.b16 %v4924, %v4908
    %v7565 = vpack.c.b16 %v4925, %v4909
    %v7566 = vpack.c.b16 %v4926, %v4910
    %v7567 = vpack.c.b16 %v4943, %v4927
    %v7568 = vpack.c.b16 %v4944, %v4928
    %v7569 = vpack.c.b16 %v4945, %v4929
    %v7570 = vpack.c.b16 %v4946, %v4930
    %v7571 = vpack.c.b16 %v4947, %v4931
    %v7572 = vpack.c.b16 %v4948, %v4932
    %v7573 = vpack.c.b16 %v4949, %v4933
    %v7574 = vpack.c.b16 %v4950, %v4934
    %v7575 = vpack.c.b16 %v4951, %v4935
    %v7576 = vpack.c.b16 %v4952, %v4936
    %v7577 = vpack.c.b16 %v4953, %v4937
    %v7578 = vpack.c.b16 %v4954, %v4938
    %v7579 = vpack.c.b16 %v4955, %v4939
    %v7580 = vpack.c.b16 %v4956, %v4940
    %v7581 = vpack.c.b16 %v4957, %v4941
    %v7582 = vpack.c.b16 %v4958, %v4942
    %v7583 = vpack.c.b16 %v4975, %v4959
    %v7584 = vpack.c.b16 %v4976, %v4960
    %v7585 = vpack.c.b16 %v4977, %v4961
    %v7586 = vpack.c.b16 %v4978, %v4962
    %v7587 = vpack.c.b16 %v4979, %v4963
    %v7588 = vpack.c.b16 %v4980, %v4964
    %v7589 = vpack.c.b16 %v4981, %v4965
    %v7590 = vpack.c.b16 %v4982, %v4966
    %v7591 = vpack.c.b16 %v4983, %v4967
    %v7592 = vpack.c.b16 %v4984, %v4968
    %v7593 = vpack.c.b16 %v4985, %v4969
    %v7594 = vpack.c.b16 %v4986, %v4970
    %v7595 = vpack.c.b16 %v4987, %v4971
    %v7596 = vpack.c.b16 %v4988, %v4972
    %v7597 = vpack.c.b16 %v4989, %v4973
    %v7598 = vpack.c.b16 %v4990, %v4974
    %v7599 = vpack.c.b16 %v5007, %v4991
    %v7600 = vpack.c.b16 %v5008, %v4992
    %v7601 = vpack.c.b16 %v5009, %v4993
    %v7602 = vpack.c.b16 %v5010, %v4994
    %v7603 = vpack.c.b16 %v5011, %v4995
    %v7604 = vpack.c.b16 %v5012, %v4996
    %v7605 = vpack.c.b16 %v5013, %v4997
    %v7606 = vpack.c.b16 %v5014, %v4998
    %v7607 = vpack.c.b16 %v5015, %v4999
    %v7608 = vpack.c.b16 %v5016, %v5000
    %v7609 = vpack.c.b16 %v5017, %v5001
    %v7610 = vpack.c.b16 %v5018, %v5002
    %v7611 = vpack.c.b16 %v5019, %v5003
    %v7612 = vpack.c.b16 %v5020, %v5004
    %v7613 = vpack.c.b16 %v5021, %v5005
    %v7614 = vpack.c.b16 %v5022, %v5006
    %v7615 = vpack.c.b16 %v5039, %v5023
    %v7616 = vpack.c.b16 %v5040, %v5024
    %v7617 = vpack.c.b16 %v5041, %v5025
    %v7618 = vpack.c.b16 %v5042, %v5026
    %v7619 = vpack.c.b16 %v5043, %v5027
    %v7620 = vpack.c.b16 %v5044, %v5028
    %v7621 = vpack.c.b16 %v5045, %v5029
    %v7622 = vpack.c.b16 %v5046, %v5030
    %v7623 = vpack.c.b16 %v5047, %v5031
    %v7624 = vpack.c.b16 %v5048, %v5032
    %v7625 = vpack.c.b16 %v5049, %v5033
    %v7626 = vpack.c.b16 %v5050, %v5034
    %v7627 = vpack.c.b16 %v5051, %v5035
    %v7628 = vpack.c.b16 %v5052, %v5036
    %v7629 = vpack.c.b16 %v5053, %v5037
    %v7630 = vpack.c.b16 %v5054, %v5038
    %v7631 = vpack.c.b16 %v5071, %v5055
    %v7632 = vpack.c.b16 %v5072, %v5056
    %v7633 = vpack.c.b16 %v5073, %v5057
    %v7634 = vpack.c.b16 %v5074, %v5058
    %v7635 = vpack.c.b16 %v5075, %v5059
    %v7636 = vpack.c.b16 %v5076, %v5060
    %v7637 = vpack.c.b16 %v5077, %v5061
    %v7638 = vpack.c.b16 %v5078, %v5062
    %v7639 = vpack.c.b16 %v5079, %v5063
    %v7640 = vpack.c.b16 %v5080, %v5064
    %v7641 = vpack.c.b16 %v5081, %v5065
    %v7642 = vpack.c.b16 %v5082, %v5066
    %v7643 = vpack.c.b16 %v5083, %v5067
    %v7644 = vpack.c.b16 %v5084, %v5068
    %v7645 = vpack.c.b16 %v5085, %v5069
    %v7646 = vpack.c.b16 %v5086, %v5070
    %v7647 = vpack.c.b16 %v5103, %v5087
    %v7648 = vpack.c.b16 %v5104, %v5088
    %v7649 = vpack.c.b16 %v5105, %v5089
    %v7650 = vpack.c.b16 %v5106, %v5090
    %v7651 = vpack.c.b16 %v5107, %v5091
    %v7652 = vpack.c.b16 %v5108, %v5092
    %v7653 = vpack.c.b16 %v5109, %v5093
    %v7654 = vpack.c.b16 %v5110, %v5094
    %v7655 = vpack.c.b16 %v5111, %v5095
    %v7656 = vpack.c.b16 %v5112, %v5096
    %v7657 = vpack.c.b16 %v5113, %v5097
    %v7658 = vpack.c.b16 %v5114, %v5098
    %v7659 = vpack.c.b16 %v5115, %v5099
    %v7660 = vpack.c.b16 %v5116, %v5100
    %v7661 = vpack.c.b16 %v5117, %v5101
    %v7662 = vpack.c.b16 %v5118, %v5102
    %v7663 = vpack.c.b16 %v5135, %v5119
    %v7664 = vpack.c.b16 %v5136, %v5120
    %v7665 = vpack.c.b16 %v5137, %v5121
    %v7666 = vpack.c.b16 %v5138, %v5122
    %v7667 = vpack.c.b16 %v5139, %v5123
    %v7668 = vpack.c.b16 %v5140, %v5124
    %v7669 = vpack.c.b16 %v5141, %v5125
    %v7670 = vpack.c.b16 %v5142, %v5126
    %v7671 = vpack.c.b16 %v5143, %v5127
    %v7672 = vpack.c.b16 %v5144, %v5128
    %v7673 = vpack.c.b16 %v5145, %v5129
    %v7674 = vpack.c.b16 %v5146, %v5130
    %v7675 = vpack.c.b16 %v5147, %v5131
    %v7676 = vpack.c.b16 %v5148, %v5132
    %v7677 = vpack.c.b16 %v5149, %v5133
    %v7678 = vpack.c.b16 %v5150, %v5134
    %v7679 = vpack.c.b16 %v5167, %v5151
    %v7680 = vpack.c.b16 %v5168, %v5152
    %v7681 = vpack.c.b16 %v5169, %v5153
    %v7682 = vpack.c.b16 %v5170, %v5154
    %v7683 = vpack.c.b16 %v5171, %v5155
    %v7684 = vpack.c.b16 %v5172, %v5156
    %v7685 = vpack.c.b16 %v5173, %v5157
    %v7686 = vpack.c.b16 %v5174, %v5158
    %v7687 = vpack.c.b16 %v5175, %v5159
    %v7688 = vpack.c.b16 %v5176, %v5160
    %v7689 = vpack.c.b16 %v5177, %v5161
    %v7690 = vpack.c.b16 %v5178, %v5162
    %v7691 = vpack.c.b16 %v5179, %v5163
    %v7692 = vpack.c.b16 %v5180, %v5164
    %v7693 = vpack.c.b16 %v5181, %v5165
    %v7694 = vpack.c.b16 %v5182, %v5166
    %v7695 = vpack.c.b16 %v5199, %v5183
    %v7696 = vpack.c.b16 %v5200, %v5184
    %v7697 = vpack.c.b16 %v5201, %v5185
    %v7698 = vpack.c.b16 %v5202, %v5186
    %v7699 = vpack.c.b16 %v5203, %v5187
    %v7700 = vpack.c.b16 %v5204, %v5188
    %v7701 = vpack.c.b16 %v5205, %v5189
    %v7702 = vpack.c.b16 %v5206, %v5190
    %v7703 = vpack.c.b16 %v5207, %v5191
    %v7704 = vpack.c.b16 %v5208, %v5192
    %v7705 = vpack.c.b16 %v5209, %v5193
    %v7706 = vpack.c.b16 %v5210, %v5194
    %v7707 = vpack.c.b16 %v5211, %v5195
    %v7708 = vpack.c.b16 %v5212, %v5196
    %v7709 = vpack.c.b16 %v5213, %v5197
    %v7710 = vpack.c.b16 %v5214, %v5198
    %v7711 = vpack.c.b16 %v5231, %v5215
    %v7712 = vpack.c.b16 %v5232, %v5216
    %v7713 = vpack.c.b16 %v5233, %v5217
    %v7714 = vpack.c.b16 %v5234, %v5218
    %v7715 = vpack.c.b16 %v5235, %v5219
    %v7716 = vpack.c.b16 %v5236, %v5220
    %v7717 = vpack.c.b16 %v5237, %v5221
    %v7718 = vpack.c.b16 %v5238, %v5222
    %v7719 = vpack.c.b16 %v5239, %v5223
    %v7720 = vpack.c.b16 %v5240, %v5224
    %v7721 = vpack.c.b16 %v5241, %v5225
    %v7722 = vpack.c.b16 %v5242, %v5226
    %v7723 = vpack.c.b16 %v5243, %v5227
    %v7724 = vpack.c.b16 %v5244, %v5228
    %v7725 = vpack.c.b16 %v5245, %v5229
    %v7726 = vpack.c.b16 %v5246, %v5230
    %v7727 = vpack.c.b16 %v5263, %v5247
    %v7728 = vpack.c.b16 %v5264, %v5248
    %v7729 = vpack.c.b16 %v5265, %v5249
    %v7730 = vpack.c.b16 %v5266, %v5250
    %v7731 = vpack.c.b16 %v5267, %v5251
    %v7732 = vpack.c.b16 %v5268, %v5252
    %v7733 = vpack.c.b16 %v5269, %v5253
    %v7734 = vpack.c.b16 %v5270, %v5254
    %v7735 = vpack.c.b16 %v5271, %v5255
    %v7736 = vpack.c.b16 %v5272, %v5256
    %v7737 = vpack.c.b16 %v5273, %v5257
    %v7738 = vpack.c.b16 %v5274, %v5258
    %v7739 = vpack.c.b16 %v5275, %v5259
    %v7740 = vpack.c.b16 %v5276, %v5260
    %v7741 = vpack.c.b16 %v5277, %v5261
    %v7742 = vpack.c.b16 %v5278, %v5262
    %v7743 = vpack.c.b16 %v5295, %v5279
    %v7744 = vpack.c.b16 %v5296, %v5280
    %v7745 = vpack.c.b16 %v5297, %v5281
    %v7746 = vpack.c.b16 %v5298, %v5282
    %v7747 = vpack.c.b16 %v5299, %v5283
    %v7748 = vpack.c.b16 %v5300, %v5284
    %v7749 = vpack.c.b16 %v5301, %v5285
    %v7750 = vpack.c.b16 %v5302, %v5286
    %v7751 = vpack.c.b16 %v5303, %v5287
    %v7752 = vpack.c.b16 %v5304, %v5288
    %v7753 = vpack.c.b16 %v5305, %v5289
    %v7754 = vpack.c.b16 %v5306, %v5290
    %v7755 = vpack.c.b16 %v5307, %v5291
    %v7756 = vpack.c.b16 %v5308, %v5292
    %v7757 = vpack.c.b16 %v5309, %v5293
    %v7758 = vpack.c.b16 %v5310, %v5294
    %v7759 = vpack.c.b16 %v5327, %v5311
    %v7760 = vpack.c.b16 %v5328, %v5312
    %v7761 = vpack.c.b16 %v5329, %v5313
    %v7762 = vpack.c.b16 %v5330, %v5314
    %v7763 = vpack.c.b16 %v5331, %v5315
    %v7764 = vpack.c.b16 %v5332, %v5316
    %v7765 = vpack.c.b16 %v5333, %v5317
    %v7766 = vpack.c.b16 %v5334, %v5318
    %v7767 = vpack.c.b16 %v5335, %v5319
    %v7768 = vpack.c.b16 %v5336, %v5320
    %v7769 = vpack.c.b16 %v5337, %v5321
    %v7770 = vpack.c.b16 %v5338, %v5322
    %v7771 = vpack.c.b16 %v5339, %v5323
    %v7772 = vpack.c.b16 %v5340, %v5324
    %v7773 = vpack.c.b16 %v5341, %v5325
    %v7774 = vpack.c.b16 %v5342, %v5326
    %v7775 = vpack.c.b16 %v5359, %v5343
    %v7776 = vpack.c.b16 %v5360, %v5344
    %v7777 = vpack.c.b16 %v5361, %v5345
    %v7778 = vpack.c.b16 %v5362, %v5346
    %v7779 = vpack.c.b16 %v5363, %v5347
    %v7780 = vpack.c.b16 %v5364, %v5348
    %v7781 = vpack.c.b16 %v5365, %v5349
    %v7782 = vpack.c.b16 %v5366, %v5350
    %v7783 = vpack.c.b16 %v5367, %v5351
    %v7784 = vpack.c.b16 %v5368, %v5352
    %v7785 = vpack.c.b16 %v5369, %v5353
    %v7786 = vpack.c.b16 %v5370, %v5354
    %v7787 = vpack.c.b16 %v5371, %v5355
    %v7788 = vpack.c.b16 %v5372, %v5356
    %v7789 = vpack.c.b16 %v5373, %v5357
    %v7790 = vpack.c.b16 %v5374, %v5358
    %v7791 = vpack.c.b16 %v5391, %v5375
    %v7792 = vpack.c.b16 %v5392, %v5376
    %v7793 = vpack.c.b16 %v5393, %v5377
    %v7794 = vpack.c.b16 %v5394, %v5378
    %v7795 = vpack.c.b16 %v5395, %v5379
    %v7796 = vpack.c.b16 %v5396, %v5380
    %v7797 = vpack.c.b16 %v5397, %v5381
    %v7798 = vpack.c.b16 %v5398, %v5382
    %v7799 = vpack.c.b16 %v5399, %v5383
    %v7800 = vpack.c.b16 %v5400, %v5384
    %v7801 = vpack.c.b16 %v5401, %v5385
    %v7802 = vpack.c.b16 %v5402, %v5386
    %v7803 = vpack.c.b16 %v5403, %v5387
    %v7804 = vpack.c.b16 %v5404, %v5388
    %v7805 = vpack.c.b16 %v5405, %v5389
    %v7806 = vpack.c.b16 %v5406, %v5390
    %v7807 = vpack.c.b16 %v5423, %v5407
    %v7808 = vpack.c.b16 %v5424, %v5408
    %v7809 = vpack.c.b16 %v5425, %v5409
    %v7810 = vpack.c.b16 %v5426, %v5410
    %v7811 = vpack.c.b16 %v5427, %v5411
    %v7812 = vpack.c.b16 %v5428, %v5412
    %v7813 = vpack.c.b16 %v5429, %v5413
    %v7814 = vpack.c.b16 %v5430, %v5414
    %v7815 = vpack.c.b16 %v5431, %v5415
    %v7816 = vpack.c.b16 %v5432, %v5416
    %v7817 = vpack.c.b16 %v5433, %v5417
    %v7818 = vpack.c.b16 %v5434, %v5418
    %v7819 = vpack.c.b16 %v5435, %v5419
    %v7820 = vpack.c.b16 %v5436, %v5420
    %v7821 = vpack.c.b16 %v5437, %v5421
    %v7822 = vpack.c.b16 %v5438, %v5422
    %v7823 = vpack.c.b16 %v5455, %v5439
    %v7824 = vpack.c.b16 %v5456, %v5440
    %v7825 = vpack.c.b16 %v5457, %v5441
    %v7826 = vpack.c.b16 %v5458, %v5442
    %v7827 = vpack.c.b16 %v5459, %v5443
    %v7828 = vpack.c.b16 %v5460, %v5444
    %v7829 = vpack.c.b16 %v5461, %v5445
    %v7830 = vpack.c.b16 %v5462, %v5446
    %v7831 = vpack.c.b16 %v5463, %v5447
    %v7832 = vpack.c.b16 %v5464, %v5448
    %v7833 = vpack.c.b16 %v5465, %v5449
    %v7834 = vpack.c.b16 %v5466, %v5450
    %v7835 = vpack.c.b16 %v5467, %v5451
    %v7836 = vpack.c.b16 %v5468, %v5452
    %v7837 = vpack.c.b16 %v5469, %v5453
    %v7838 = vpack.c.b16 %v5470, %v5454
    %v7839 = vpack.c.b16 %v5487, %v5471
    %v7840 = vpack.c.b16 %v5488, %v5472
    %v7841 = vpack.c.b16 %v5489, %v5473
    %v7842 = vpack.c.b16 %v5490, %v5474
    %v7843 = vpack.c.b16 %v5491, %v5475
    %v7844 = vpack.c.b16 %v5492, %v5476
    %v7845 = vpack.c.b16 %v5493, %v5477
    %v7846 = vpack.c.b16 %v5494, %v5478
    %v7847 = vpack.c.b16 %v5495, %v5479
    %v7848 = vpack.c.b16 %v5496, %v5480
    %v7849 = vpack.c.b16 %v5497, %v5481
    %v7850 = vpack.c.b16 %v5498, %v5482
    %v7851 = vpack.c.b16 %v5499, %v5483
    %v7852 = vpack.c.b16 %v5500, %v5484
    %v7853 = vpack.c.b16 %v5501, %v5485
    %v7854 = vpack.c.b16 %v5502, %v5486
    %v7855 = vpack.c.b16 %v5519, %v5503
    %v7856 = vpack.c.b16 %v5520, %v5504
    %v7857 = vpack.c.b16 %v5521, %v5505
    %v7858 = vpack.c.b16 %v5522, %v5506
    %v7859 = vpack.c.b16 %v5523, %v5507
    %v7860 = vpack.c.b16 %v5524, %v5508
    %v7861 = vpack.c.b16 %v5525, %v5509
    %v7862 = vpack.c.b16 %v5526, %v5510
    %v7863 = vpack.c.b16 %v5527, %v5511
    %v7864 = vpack.c.b16 %v5528, %v5512
    %v7865 = vpack.c.b16 %v5529, %v5513
    %v7866 = vpack.c.b16 %v5530, %v5514
    %v7867 = vpack.c.b16 %v5531, %v5515
    %v7868 = vpack.c.b16 %v5532, %v5516
    %v7869 = vpack.c.b16 %v5533, %v5517
    %v7870 = vpack.c.b16 %v5534, %v5518
    %v7871 = vpack.c.b16 %v5551, %v5535
    %v7872 = vpack.c.b16 %v5552, %v5536
    %v7873 = vpack.c.b16 %v5553, %v5537
    %v7874 = vpack.c.b16 %v5554, %v5538
    %v7875 = vpack.c.b16 %v5555, %v5539
    %v7876 = vpack.c.b16 %v5556, %v5540
    %v7877 = vpack.c.b16 %v5557, %v5541
    %v7878 = vpack.c.b16 %v5558, %v5542
    %v7879 = vpack.c.b16 %v5559, %v5543
    %v7880 = vpack.c.b16 %v5560, %v5544
    %v7881 = vpack.c.b16 %v5561, %v5545
    %v7882 = vpack.c.b16 %v5562, %v5546
    %v7883 = vpack.c.b16 %v5563, %v5547
    %v7884 = vpack.c.b16 %v5564, %v5548
    %v7885 = vpack.c.b16 %v5565, %v5549
    %v7886 = vpack.c.b16 %v5566, %v5550
    %v7887 = vpack.c.b16 %v5583, %v5567
    %v7888 = vpack.c.b16 %v5584, %v5568
    %v7889 = vpack.c.b16 %v5585, %v5569
    %v7890 = vpack.c.b16 %v5586, %v5570
    %v7891 = vpack.c.b16 %v5587, %v5571
    %v7892 = vpack.c.b16 %v5588, %v5572
    %v7893 = vpack.c.b16 %v5589, %v5573
    %v7894 = vpack.c.b16 %v5590, %v5574
    %v7895 = vpack.c.b16 %v5591, %v5575
    %v7896 = vpack.c.b16 %v5592, %v5576
    %v7897 = vpack.c.b16 %v5593, %v5577
    %v7898 = vpack.c.b16 %v5594, %v5578
    %v7899 = vpack.c.b16 %v5595, %v5579
    %v7900 = vpack.c.b16 %v5596, %v5580
    %v7901 = vpack.c.b16 %v5597, %v5581
    %v7902 = vpack.c.b16 %v5598, %v5582
    %v7903 = vpack.c.b16 %v5615, %v5599
    %v7904 = vpack.c.b16 %v5616, %v5600
    %v7905 = vpack.c.b16 %v5617, %v5601
    %v7906 = vpack.c.b16 %v5618, %v5602
    %v7907 = vpack.c.b16 %v5619, %v5603
    %v7908 = vpack.c.b16 %v5620, %v5604
    %v7909 = vpack.c.b16 %v5621, %v5605
    %v7910 = vpack.c.b16 %v5622, %v5606
    %v7911 = vpack.c.b16 %v5623, %v5607
    %v7912 = vpack.c.b16 %v5624, %v5608
    %v7913 = vpack.c.b16 %v5625, %v5609
    %v7914 = vpack.c.b16 %v5626, %v5610
    %v7915 = vpack.c.b16 %v5627, %v5611
    %v7916 = vpack.c.b16 %v5628, %v5612
    %v7917 = vpack.c.b16 %v5629, %v5613
    %v7918 = vpack.c.b16 %v5630, %v5614
    %v7919 = vpack.c.b16 %v5647, %v5631
    %v7920 = vpack.c.b16 %v5648, %v5632
    %v7921 = vpack.c.b16 %v5649, %v5633
    %v7922 = vpack.c.b16 %v5650, %v5634
    %v7923 = vpack.c.b16 %v5651, %v5635
    %v7924 = vpack.c.b16 %v5652, %v5636
    %v7925 = vpack.c.b16 %v5653, %v5637
    %v7926 = vpack.c.b16 %v5654, %v5638
    %v7927 = vpack.c.b16 %v5655, %v5639
    %v7928 = vpack.c.b16 %v5656, %v5640
    %v7929 = vpack.c.b16 %v5657, %v5641
    %v7930 = vpack.c.b16 %v5658, %v5642
    %v7931 = vpack.c.b16 %v5659, %v5643
    %v7932 = vpack.c.b16 %v5660, %v5644
    %v7933 = vpack.c.b16 %v5661, %v5645
    %v7934 = vpack.c.b16 %v5662, %v5646
    %v7935 = vpack.c.b16 %v5679, %v5663
    %v7936 = vpack.c.b16 %v5680, %v5664
    %v7937 = vpack.c.b16 %v5681, %v5665
    %v7938 = vpack.c.b16 %v5682, %v5666
    %v7939 = vpack.c.b16 %v5683, %v5667
    %v7940 = vpack.c.b16 %v5684, %v5668
    %v7941 = vpack.c.b16 %v5685, %v5669
    %v7942 = vpack.c.b16 %v5686, %v5670
    %v7943 = vpack.c.b16 %v5687, %v5671
    %v7944 = vpack.c.b16 %v5688, %v5672
    %v7945 = vpack.c.b16 %v5689, %v5673
    %v7946 = vpack.c.b16 %v5690, %v5674
    %v7947 = vpack.c.b16 %v5691, %v5675
    %v7948 = vpack.c.b16 %v5692, %v5676
    %v7949 = vpack.c.b16 %v5693, %v5677
    %v7950 = vpack.c.b16 %v5694, %v5678
    %v7951 = vpack.c.b16 %v5711, %v5695
    %v7952 = vpack.c.b16 %v5712, %v5696
    %v7953 = vpack.c.b16 %v5713, %v5697
    %v7954 = vpack.c.b16 %v5714, %v5698
    %v7955 = vpack.c.b16 %v5715, %v5699
    %v7956 = vpack.c.b16 %v5716, %v5700
    %v7957 = vpack.c.b16 %v5717, %v5701
    %v7958 = vpack.c.b16 %v5718, %v5702
    %v7959 = vpack.c.b16 %v5719, %v5703
    %v7960 = vpack.c.b16 %v5720, %v5704
    %v7961 = vpack.c.b16 %v5721, %v5705
    %v7962 = vpack.c.b16 %v5722, %v5706
    %v7963 = vpack.c.b16 %v5723, %v5707
    %v7964 = vpack.c.b16 %v5724, %v5708
    %v7965 = vpack.c.b16 %v5725, %v5709
    %v7966 = vpack.c.b16 %v5726, %v5710
    %v7967 = vpack.c.b16 %v5743, %v5727
    %v7968 = vpack.c.b16 %v5744, %v5728
    %v7969 = vpack.c.b16 %v5745, %v5729
    %v7970 = vpack.c.b16 %v5746, %v5730
    %v7971 = vpack.c.b16 %v5747, %v5731
    %v7972 = vpack.c.b16 %v5748, %v5732
    %v7973 = vpack.c.b16 %v5749, %v5733
    %v7974 = vpack.c.b16 %v5750, %v5734
    %v7975 = vpack.c.b16 %v5751, %v5735
    %v7976 = vpack.c.b16 %v5752, %v5736
    %v7977 = vpack.c.b16 %v5753, %v5737
    %v7978 = vpack.c.b16 %v5754, %v5738
    %v7979 = vpack.c.b16 %v5755, %v5739
    %v7980 = vpack.c.b16 %v5756, %v5740
    %v7981 = vpack.c.b16 %v5757, %v5741
    %v7982 = vpack.c.b16 %v5758, %v5742
    %v7983 = vpack.c.b16 %v5775, %v5759
    %v7984 = vpack.c.b16 %v5776, %v5760
    %v7985 = vpack.c.b16 %v5777, %v5761
    %v7986 = vpack.c.b16 %v5778, %v5762
    %v7987 = vpack.c.b16 %v5779, %v5763
    %v7988 = vpack.c.b16 %v5780, %v5764
    %v7989 = vpack.c.b16 %v5781, %v5765
    %v7990 = vpack.c.b16 %v5782, %v5766
    %v7991 = vpack.c.b16 %v5783, %v5767
    %v7992 = vpack.c.b16 %v5784, %v5768
    %v7993 = vpack.c.b16 %v5785, %v5769
    %v7994 = vpack.c.b16 %v5786, %v5770
    %v7995 = vpack.c.b16 %v5787, %v5771
    %v7996 = vpack.c.b16 %v5788, %v5772
    %v7997 = vpack.c.b16 %v5789, %v5773
    %v7998 = vpack.c.b16 %v5790, %v5774
    %v7999 = vpack.c.b16 %v5807, %v5791
    %v8000 = vpack.c.b16 %v5808, %v5792
    %v8001 = vpack.c.b16 %v5809, %v5793
    %v8002 = vpack.c.b16 %v5810, %v5794
    %v8003 = vpack.c.b16 %v5811, %v5795
    %v8004 = vpack.c.b16 %v5812, %v5796
    %v8005 = vpack.c.b16 %v5813, %v5797
    %v8006 = vpack.c.b16 %v5814, %v5798
    %v8007 = vpack.c.b16 %v5815, %v5799
    %v8008 = vpack.c.b16 %v5816, %v5800
    %v8009 = vpack.c.b16 %v5817, %v5801
    %v8010 = vpack.c.b16 %v5818, %v5802
    %v8011 = vpack.c.b16 %v5819, %v5803
    %v8012 = vpack.c.b16 %v5820, %v5804
    %v8013 = vpack.c.b16 %v5821, %v5805
    %v8014 = vpack.c.b16 %v5822, %v5806
    %v8015 = vpack.c.b16 %v5839, %v5823
    %v8016 = vpack.c.b16 %v5840, %v5824
    %v8017 = vpack.c.b16 %v5841, %v5825
    %v8018 = vpack.c.b16 %v5842, %v5826
    %v8019 = vpack.c.b16 %v5843, %v5827
    %v8020 = vpack.c.b16 %v5844, %v5828
    %v8021 = vpack.c.b16 %v5845, %v5829
    %v8022 = vpack.c.b16 %v5846, %v5830
    %v8023 = vpack.c.b16 %v5847, %v5831
    %v8024 = vpack.c.b16 %v5848, %v5832
    %v8025 = vpack.c.b16 %v5849, %v5833
    %v8026 = vpack.c.b16 %v5850, %v5834
    %v8027 = vpack.c.b16 %v5851, %v5835
    %v8028 = vpack.c.b16 %v5852, %v5836
    %v8029 = vpack.c.b16 %v5853, %v5837
    %v8030 = vpack.c.b16 %v5854, %v5838
    %v8031 = vpack.c.b16 %v5871, %v5855
    %v8032 = vpack.c.b16 %v5872, %v5856
    %v8033 = vpack.c.b16 %v5873, %v5857
    %v8034 = vpack.c.b16 %v5874, %v5858
    %v8035 = vpack.c.b16 %v5875, %v5859
    %v8036 = vpack.c.b16 %v5876, %v5860
    %v8037 = vpack.c.b16 %v5877, %v5861
    %v8038 = vpack.c.b16 %v5878, %v5862
    %v8039 = vpack.c.b16 %v5879, %v5863
    %v8040 = vpack.c.b16 %v5880, %v5864
    %v8041 = vpack.c.b16 %v5881, %v5865
    %v8042 = vpack.c.b16 %v5882, %v5866
    %v8043 = vpack.c.b16 %v5883, %v5867
    %v8044 = vpack.c.b16 %v5884, %v5868
    %v8045 = vpack.c.b16 %v5885, %v5869
    %v8046 = vpack.c.b16 %v5886, %v5870
    %v8047 = vpack.c.b16 %v5903, %v5887
    %v8048 = vpack.c.b16 %v5904, %v5888
    %v8049 = vpack.c.b16 %v5905, %v5889
    %v8050 = vpack.c.b16 %v5906, %v5890
    %v8051 = vpack.c.b16 %v5907, %v5891
    %v8052 = vpack.c.b16 %v5908, %v5892
    %v8053 = vpack.c.b16 %v5909, %v5893
    %v8054 = vpack.c.b16 %v5910, %v5894
    %v8055 = vpack.c.b16 %v5911, %v5895
    %v8056 = vpack.c.b16 %v5912, %v5896
    %v8057 = vpack.c.b16 %v5913, %v5897
    %v8058 = vpack.c.b16 %v5914, %v5898
    %v8059 = vpack.c.b16 %v5915, %v5899
    %v8060 = vpack.c.b16 %v5916, %v5900
    %v8061 = vpack.c.b16 %v5917, %v5901
    %v8062 = vpack.c.b16 %v5918, %v5902
    %v8063 = vpack.c.b16 %v5935, %v5919
    %v8064 = vpack.c.b16 %v5936, %v5920
    %v8065 = vpack.c.b16 %v5937, %v5921
    %v8066 = vpack.c.b16 %v5938, %v5922
    %v8067 = vpack.c.b16 %v5939, %v5923
    %v8068 = vpack.c.b16 %v5940, %v5924
    %v8069 = vpack.c.b16 %v5941, %v5925
    %v8070 = vpack.c.b16 %v5942, %v5926
    %v8071 = vpack.c.b16 %v5943, %v5927
    %v8072 = vpack.c.b16 %v5944, %v5928
    %v8073 = vpack.c.b16 %v5945, %v5929
    %v8074 = vpack.c.b16 %v5946, %v5930
    %v8075 = vpack.c.b16 %v5947, %v5931
    %v8076 = vpack.c.b16 %v5948, %v5932
    %v8077 = vpack.c.b16 %v5949, %v5933
    %v8078 = vpack.c.b16 %v5950, %v5934
    %v8079 = vpack.c.b16 %v5967, %v5951
    %v8080 = vpack.c.b16 %v5968, %v5952
    %v8081 = vpack.c.b16 %v5969, %v5953
    %v8082 = vpack.c.b16 %v5970, %v5954
    %v8083 = vpack.c.b16 %v5971, %v5955
    %v8084 = vpack.c.b16 %v5972, %v5956
    %v8085 = vpack.c.b16 %v5973, %v5957
    %v8086 = vpack.c.b16 %v5974, %v5958
    %v8087 = vpack.c.b16 %v5975, %v5959
    %v8088 = vpack.c.b16 %v5976, %v5960
    %v8089 = vpack.c.b16 %v5977, %v5961
    %v8090 = vpack.c.b16 %v5978, %v5962
    %v8091 = vpack.c.b16 %v5979, %v5963
    %v8092 = vpack.c.b16 %v5980, %v5964
    %v8093 = vpack.c.b16 %v5981, %v5965
    %v8094 = vpack.c.b16 %v5982, %v5966
    %v8095 = vpack.c.b16 %v5999, %v5983
    %v8096 = vpack.c.b16 %v6000, %v5984
    %v8097 = vpack.c.b16 %v6001, %v5985
    %v8098 = vpack.c.b16 %v6002, %v5986
    %v8099 = vpack.c.b16 %v6003, %v5987
    %v8100 = vpack.c.b16 %v6004, %v5988
    %v8101 = vpack.c.b16 %v6005, %v5989
    %v8102 = vpack.c.b16 %v6006, %v5990
    %v8103 = vpack.c.b16 %v6007, %v5991
    %v8104 = vpack.c.b16 %v6008, %v5992
    %v8105 = vpack.c.b16 %v6009, %v5993
    %v8106 = vpack.c.b16 %v6010, %v5994
    %v8107 = vpack.c.b16 %v6011, %v5995
    %v8108 = vpack.c.b16 %v6012, %v5996
    %v8109 = vpack.c.b16 %v6013, %v5997
    %v8110 = vpack.c.b16 %v6014, %v5998
    %v8111 = vpack.c.b16 %v6031, %v6015
    %v8112 = vpack.c.b16 %v6032, %v6016
    %v8113 = vpack.c.b16 %v6033, %v6017
    %v8114 = vpack.c.b16 %v6034, %v6018
    %v8115 = vpack.c.b16 %v6035, %v6019
    %v8116 = vpack.c.b16 %v6036, %v6020
    %v8117 = vpack.c.b16 %v6037, %v6021
    %v8118 = vpack.c.b16 %v6038, %v6022
    %v8119 = vpack.c.b16 %v6039, %v6023
    %v8120 = vpack.c.b16 %v6040, %v6024
    %v8121 = vpack.c.b16 %v6041, %v6025
    %v8122 = vpack.c.b16 %v6042, %v6026
    %v8123 = vpack.c.b16 %v6043, %v6027
    %v8124 = vpack.c.b16 %v6044, %v6028
    %v8125 = vpack.c.b16 %v6045, %v6029
    %v8126 = vpack.c.b16 %v6046, %v6030
    %v8127 = vpack.c.b16 %v6063, %v6047
    %v8128 = vpack.c.b16 %v6064, %v6048
    %v8129 = vpack.c.b16 %v6065, %v6049
    %v8130 = vpack.c.b16 %v6066, %v6050
    %v8131 = vpack.c.b16 %v6067, %v6051
    %v8132 = vpack.c.b16 %v6068, %v6052
    %v8133 = vpack.c.b16 %v6069, %v6053
    %v8134 = vpack.c.b16 %v6070, %v6054
    %v8135 = vpack.c.b16 %v6071, %v6055
    %v8136 = vpack.c.b16 %v6072, %v6056
    %v8137 = vpack.c.b16 %v6073, %v6057
    %v8138 = vpack.c.b16 %v6074, %v6058
    %v8139 = vpack.c.b16 %v6075, %v6059
    %v8140 = vpack.c.b16 %v6076, %v6060
    %v8141 = vpack.c.b16 %v6077, %v6061
    %v8142 = vpack.c.b16 %v6078, %v6062
    %v8143 = vpack.c.b16 %v6095, %v6079
    %v8144 = vpack.c.b16 %v6096, %v6080
    %v8145 = vpack.c.b16 %v6097, %v6081
    %v8146 = vpack.c.b16 %v6098, %v6082
    %v8147 = vpack.c.b16 %v6099, %v6083
    %v8148 = vpack.c.b16 %v6100, %v6084
    %v8149 = vpack.c.b16 %v6101, %v6085
    %v8150 = vpack.c.b16 %v6102, %v6086
    %v8151 = vpack.c.b16 %v6103, %v6087
    %v8152 = vpack.c.b16 %v6104, %v6088
    %v8153 = vpack.c.b16 %v6105, %v6089
    %v8154 = vpack.c.b16 %v6106, %v6090
    %v8155 = vpack.c.b16 %v6107, %v6091
    %v8156 = vpack.c.b16 %v6108, %v6092
    %v8157 = vpack.c.b16 %v6109, %v6093
    %v8158 = vpack.c.b16 %v6110, %v6094
    %v8159 = vpack.c.b16 %v6127, %v6111
    %v8160 = vpack.c.b16 %v6128, %v6112
    %v8161 = vpack.c.b16 %v6129, %v6113
    %v8162 = vpack.c.b16 %v6130, %v6114
    %v8163 = vpack.c.b16 %v6131, %v6115
    %v8164 = vpack.c.b16 %v6132, %v6116
    %v8165 = vpack.c.b16 %v6133, %v6117
    %v8166 = vpack.c.b16 %v6134, %v6118
    %v8167 = vpack.c.b16 %v6135, %v6119
    %v8168 = vpack.c.b16 %v6136, %v6120
    %v8169 = vpack.c.b16 %v6137, %v6121
    %v8170 = vpack.c.b16 %v6138, %v6122
    %v8171 = vpack.c.b16 %v6139, %v6123
    %v8172 = vpack.c.b16 %v6140, %v6124
    %v8173 = vpack.c.b16 %v6141, %v6125
    %v8174 = vpack.c.b16 %v6142, %v6126
    %v8175 = vpack.c.b16 %v6159, %v6143
    %v8176 = vpack.c.b16 %v6160, %v6144
    %v8177 = vpack.c.b16 %v6161, %v6145
    %v8178 = vpack.c.b16 %v6162, %v6146
    %v8179 = vpack.c.b16 %v6163, %v6147
    %v8180 = vpack.c.b16 %v6164, %v6148
    %v8181 = vpack.c.b16 %v6165, %v6149
    %v8182 = vpack.c.b16 %v6166, %v6150
    %v8183 = vpack.c.b16 %v6167, %v6151
    %v8184 = vpack.c.b16 %v6168, %v6152
    %v8185 = vpack.c.b16 %v6169, %v6153
    %v8186 = vpack.c.b16 %v6170, %v6154
    %v8187 = vpack.c.b16 %v6171, %v6155
    %v8188 = vpack.c.b16 %v6172, %v6156
    %v8189 = vpack.c.b16 %v6173, %v6157
    %v8190 = vpack.c.b16 %v6174, %v6158
    %v8191 = vpack.c.b16 %v6191, %v6175
    %v8192 = vpack.c.b16 %v6192, %v6176
    %v8193 = vpack.c.b16 %v6193, %v6177
    %v8194 = vpack.c.b16 %v6194, %v6178
    %v8195 = vpack.c.b16 %v6195, %v6179
    %v8196 = vpack.c.b16 %v6196, %v6180
    %v8197 = vpack.c.b16 %v6197, %v6181
    %v8198 = vpack.c.b16 %v6198, %v6182
    %v8199 = vpack.c.b16 %v6199, %v6183
    %v8200 = vpack.c.b16 %v6200, %v6184
    %v8201 = vpack.c.b16 %v6201, %v6185
    %v8202 = vpack.c.b16 %v6202, %v6186
    %v8203 = vpack.c.b16 %v6203, %v6187
    %v8204 = vpack.c.b16 %v6204, %v6188
    %v8205 = vpack.c.b16 %v6205, %v6189
    %v8206 = vpack.c.b16 %v6206, %v6190
    %v8207 = vpack.c.b16 %v6223, %v6207
    %v8208 = vpack.c.b16 %v6224, %v6208
    %v8209 = vpack.c.b16 %v6225, %v6209
    %v8210 = vpack.c.b16 %v6226, %v6210
    %v8211 = vpack.c.b16 %v6227, %v6211
    %v8212 = vpack.c.b16 %v6228, %v6212
    %v8213 = vpack.c.b16 %v6229, %v6213
    %v8214 = vpack.c.b16 %v6230, %v6214
    %v8215 = vpack.c.b16 %v6231, %v6215
    %v8216 = vpack.c.b16 %v6232, %v6216
    %v8217 = vpack.c.b16 %v6233, %v6217
    %v8218 = vpack.c.b16 %v6234, %v6218
    %v8219 = vpack.c.b16 %v6235, %v6219
    %v8220 = vpack.c.b16 %v6236, %v6220
    %v8221 = vpack.c.b16 %v6237, %v6221
    %v8222 = vpack.c.b16 %v6238, %v6222
    %v8223 = vpack.c.b16 %v6255, %v6239
    %v8224 = vpack.c.b16 %v6256, %v6240
    %v8225 = vpack.c.b16 %v6257, %v6241
    %v8226 = vpack.c.b16 %v6258, %v6242
    %v8227 = vpack.c.b16 %v6259, %v6243
    %v8228 = vpack.c.b16 %v6260, %v6244
    %v8229 = vpack.c.b16 %v6261, %v6245
    %v8230 = vpack.c.b16 %v6262, %v6246
    %v8231 = vpack.c.b16 %v6263, %v6247
    %v8232 = vpack.c.b16 %v6264, %v6248
    %v8233 = vpack.c.b16 %v6265, %v6249
    %v8234 = vpack.c.b16 %v6266, %v6250
    %v8235 = vpack.c.b16 %v6267, %v6251
    %v8236 = vpack.c.b16 %v6268, %v6252
    %v8237 = vpack.c.b16 %v6269, %v6253
    %v8238 = vpack.c.b16 %v6270, %v6254
    %v8239 = vpack.c.b16 %v6287, %v6271
    %v8240 = vpack.c.b16 %v6288, %v6272
    %v8241 = vpack.c.b16 %v6289, %v6273
    %v8242 = vpack.c.b16 %v6290, %v6274
    %v8243 = vpack.c.b16 %v6291, %v6275
    %v8244 = vpack.c.b16 %v6292, %v6276
    %v8245 = vpack.c.b16 %v6293, %v6277
    %v8246 = vpack.c.b16 %v6294, %v6278
    %v8247 = vpack.c.b16 %v6295, %v6279
    %v8248 = vpack.c.b16 %v6296, %v6280
    %v8249 = vpack.c.b16 %v6297, %v6281
    %v8250 = vpack.c.b16 %v6298, %v6282
    %v8251 = vpack.c.b16 %v6299, %v6283
    %v8252 = vpack.c.b16 %v6300, %v6284
    %v8253 = vpack.c.b16 %v6301, %v6285
    %v8254 = vpack.c.b16 %v6302, %v6286
    %v8255 = vpack.c.b16 %v6319, %v6303
    %v8256 = vpack.c.b16 %v6320, %v6304
    %v8257 = vpack.c.b16 %v6321, %v6305
    %v8258 = vpack.c.b16 %v6322, %v6306
    %v8259 = vpack.c.b16 %v6323, %v6307
    %v8260 = vpack.c.b16 %v6324, %v6308
    %v8261 = vpack.c.b16 %v6325, %v6309
    %v8262 = vpack.c.b16 %v6326, %v6310
    %v8263 = vpack.c.b16 %v6327, %v6311
    %v8264 = vpack.c.b16 %v6328, %v6312
    %v8265 = vpack.c.b16 %v6329, %v6313
    %v8266 = vpack.c.b16 %v6330, %v6314
    %v8267 = vpack.c.b16 %v6331, %v6315
    %v8268 = vpack.c.b16 %v6332, %v6316
    %v8269 = vpack.c.b16 %v6333, %v6317
    %v8270 = vpack.c.b16 %v6334, %v6318
    %v8271 = vpack.c.b16 %v6351, %v6335
    %v8272 = vpack.c.b16 %v6352, %v6336
    %v8273 = vpack.c.b16 %v6353, %v6337
    %v8274 = vpack.c.b16 %v6354, %v6338
    %v8275 = vpack.c.b16 %v6355, %v6339
    %v8276 = vpack.c.b16 %v6356, %v6340
    %v8277 = vpack.c.b16 %v6357, %v6341
    %v8278 = vpack.c.b16 %v6358, %v6342
    %v8279 = vpack.c.b16 %v6359, %v6343
    %v8280 = vpack.c.b16 %v6360, %v6344
    %v8281 = vpack.c.b16 %v6361, %v6345
    %v8282 = vpack.c.b16 %v6362, %v6346
    %v8283 = vpack.c.b16 %v6363, %v6347
    %v8284 = vpack.c.b16 %v6364, %v6348
    %v8285 = vpack.c.b16 %v6365, %v6349
    %v8286 = vpack.c.b16 %v6366, %v6350
    %v8287 = vpack.c.b16 %v6383, %v6367
    %v8288 = vpack.c.b16 %v6384, %v6368
    %v8289 = vpack.c.b16 %v6385, %v6369
    %v8290 = vpack.c.b16 %v6386, %v6370
    %v8291 = vpack.c.b16 %v6387, %v6371
    %v8292 = vpack.c.b16 %v6388, %v6372
    %v8293 = vpack.c.b16 %v6389, %v6373
    %v8294 = vpack.c.b16 %v6390, %v6374
    %v8295 = vpack.c.b16 %v6391, %v6375
    %v8296 = vpack.c.b16 %v6392, %v6376
    %v8297 = vpack.c.b16 %v6393, %v6377
    %v8298 = vpack.c.b16 %v6394, %v6378
    %v8299 = vpack.c.b16 %v6395, %v6379
    %v8300 = vpack.c.b16 %v6396, %v6380
    %v8301 = vpack.c.b16 %v6397, %v6381
    %v8302 = vpack.c.b16 %v6398, %v6382
    %v8303 = vpack.c.b16 %v6415, %v6399
    %v8304 = vpack.c.b16 %v6416, %v6400
    %v8305 = vpack.c.b16 %v6417, %v6401
    %v8306 = vpack.c.b16 %v6418, %v6402
    %v8307 = vpack.c.b16 %v6419, %v6403
    %v8308 = vpack.c.b16 %v6420, %v6404
    %v8309 = vpack.c.b16 %v6421, %v6405
    %v8310 = vpack.c.b16 %v6422, %v6406
    %v8311 = vpack.c.b16 %v6423, %v6407
    %v8312 = vpack.c.b16 %v6424, %v6408
    %v8313 = vpack.c.b16 %v6425, %v6409
    %v8314 = vpack.c.b16 %v6426, %v6410
    %v8315 = vpack.c.b16 %v6427, %v6411
    %v8316 = vpack.c.b16 %v6428, %v6412
    %v8317 = vpack.c.b16 %v6429, %v6413
    %v8318 = vpack.c.b16 %v6430, %v6414
    %v8319 = vpack.c.b16 %v6447, %v6431
    %v8320 = vpack.c.b16 %v6448, %v6432
    %v8321 = vpack.c.b16 %v6449, %v6433
    %v8322 = vpack.c.b16 %v6450, %v6434
    %v8323 = vpack.c.b16 %v6451, %v6435
    %v8324 = vpack.c.b16 %v6452, %v6436
    %v8325 = vpack.c.b16 %v6453, %v6437
    %v8326 = vpack.c.b16 %v6454, %v6438
    %v8327 = vpack.c.b16 %v6455, %v6439
    %v8328 = vpack.c.b16 %v6456, %v6440
    %v8329 = vpack.c.b16 %v6457, %v6441
    %v8330 = vpack.c.b16 %v6458, %v6442
    %v8331 = vpack.c.b16 %v6459, %v6443
    %v8332 = vpack.c.b16 %v6460, %v6444
    %v8333 = vpack.c.b16 %v6461, %v6445
    %v8334 = vpack.c.b16 %v6462, %v6446
    %v8335 = vpack.c.b16 %v6479, %v6463
    %v8336 = vpack.c.b16 %v6480, %v6464
    %v8337 = vpack.c.b16 %v6481, %v6465
    %v8338 = vpack.c.b16 %v6482, %v6466
    %v8339 = vpack.c.b16 %v6483, %v6467
    %v8340 = vpack.c.b16 %v6484, %v6468
    %v8341 = vpack.c.b16 %v6485, %v6469
    %v8342 = vpack.c.b16 %v6486, %v6470
    %v8343 = vpack.c.b16 %v6487, %v6471
    %v8344 = vpack.c.b16 %v6488, %v6472
    %v8345 = vpack.c.b16 %v6489, %v6473
    %v8346 = vpack.c.b16 %v6490, %v6474
    %v8347 = vpack.c.b16 %v6491, %v6475
    %v8348 = vpack.c.b16 %v6492, %v6476
    %v8349 = vpack.c.b16 %v6493, %v6477
    %v8350 = vpack.c.b16 %v6494, %v6478
    %v8351 = vpack.c.b16 %v6511, %v6495
    %v8352 = vpack.c.b16 %v6512, %v6496
    %v8353 = vpack.c.b16 %v6513, %v6497
    %v8354 = vpack.c.b16 %v6514, %v6498
    %v8355 = vpack.c.b16 %v6515, %v6499
    %v8356 = vpack.c.b16 %v6516, %v6500
    %v8357 = vpack.c.b16 %v6517, %v6501
    %v8358 = vpack.c.b16 %v6518, %v6502
    %v8359 = vpack.c.b16 %v6519, %v6503
    %v8360 = vpack.c.b16 %v6520, %v6504
    %v8361 = vpack.c.b16 %v6521, %v6505
    %v8362 = vpack.c.b16 %v6522, %v6506
    %v8363 = vpack.c.b16 %v6523, %v6507
    %v8364 = vpack.c.b16 %v6524, %v6508
    %v8365 = vpack.c.b16 %v6525, %v6509
    %v8366 = vpack.c.b16 %v6526, %v6510
    %v8367 = vpack.c.b16 %v6543, %v6527
    %v8368 = vpack.c.b16 %v6544, %v6528
    %v8369 = vpack.c.b16 %v6545, %v6529
    %v8370 = vpack.c.b16 %v6546, %v6530
    %v8371 = vpack.c.b16 %v6547, %v6531
    %v8372 = vpack.c.b16 %v6548, %v6532
    %v8373 = vpack.c.b16 %v6549, %v6533
    %v8374 = vpack.c.b16 %v6550, %v6534
    %v8375 = vpack.c.b16 %v6551, %v6535
    %v8376 = vpack.c.b16 %v6552, %v6536
    %v8377 = vpack.c.b16 %v6553, %v6537
    %v8378 = vpack.c.b16 %v6554, %v6538
    %v8379 = vpack.c.b16 %v6555, %v6539
    %v8380 = vpack.c.b16 %v6556, %v6540
    %v8381 = vpack.c.b16 %v6557, %v6541
    %v8382 = vpack.c.b16 %v6558, %v6542
    %v8383 = vpack.c.b16 %v6575, %v6559
    %v8384 = vpack.c.b16 %v6576, %v6560
    %v8385 = vpack.c.b16 %v6577, %v6561
    %v8386 = vpack.c.b16 %v6578, %v6562
    %v8387 = vpack.c.b16 %v6579, %v6563
    %v8388 = vpack.c.b16 %v6580, %v6564
    %v8389 = vpack.c.b16 %v6581, %v6565
    %v8390 = vpack.c.b16 %v6582, %v6566
    %v8391 = vpack.c.b16 %v6583, %v6567
    %v8392 = vpack.c.b16 %v6584, %v6568
    %v8393 = vpack.c.b16 %v6585, %v6569
    %v8394 = vpack.c.b16 %v6586, %v6570
    %v8395 = vpack.c.b16 %v6587, %v6571
    %v8396 = vpack.c.b16 %v6588, %v6572
    %v8397 = vpack.c.b16 %v6589, %v6573
    %v8398 = vpack.c.b16 %v6590, %v6574
    %v8399 = vpack.c.b16 %v6607, %v6591
    %v8400 = vpack.c.b16 %v6608, %v6592
    %v8401 = vpack.c.b16 %v6609, %v6593
    %v8402 = vpack.c.b16 %v6610, %v6594
    %v8403 = vpack.c.b16 %v6611, %v6595
    %v8404 = vpack.c.b16 %v6612, %v6596
    %v8405 = vpack.c.b16 %v6613, %v6597
    %v8406 = vpack.c.b16 %v6614, %v6598
    %v8407 = vpack.c.b16 %v6615, %v6599
    %v8408 = vpack.c.b16 %v6616, %v6600
    %v8409 = vpack.c.b16 %v6617, %v6601
    %v8410 = vpack.c.b16 %v6618, %v6602
    %v8411 = vpack.c.b16 %v6619, %v6603
    %v8412 = vpack.c.b16 %v6620, %v6604
    %v8413 = vpack.c.b16 %v6621, %v6605
    %v8414 = vpack.c.b16 %v6622, %v6606
    %v8415 = vpack.c.b16 %v6639, %v6623
    %v8416 = vpack.c.b16 %v6640, %v6624
    %v8417 = vpack.c.b16 %v6641, %v6625
    %v8418 = vpack.c.b16 %v6642, %v6626
    %v8419 = vpack.c.b16 %v6643, %v6627
    %v8420 = vpack.c.b16 %v6644, %v6628
    %v8421 = vpack.c.b16 %v6645, %v6629
    %v8422 = vpack.c.b16 %v6646, %v6630
    %v8423 = vpack.c.b16 %v6647, %v6631
    %v8424 = vpack.c.b16 %v6648, %v6632
    %v8425 = vpack.c.b16 %v6649, %v6633
    %v8426 = vpack.c.b16 %v6650, %v6634
    %v8427 = vpack.c.b16 %v6651, %v6635
    %v8428 = vpack.c.b16 %v6652, %v6636
    %v8429 = vpack.c.b16 %v6653, %v6637
    %v8430 = vpack.c.b16 %v6654, %v6638
    %v8431 = vpack.c.b16 %v6671, %v6655
    %v8432 = vpack.c.b16 %v6672, %v6656
    %v8433 = vpack.c.b16 %v6673, %v6657
    %v8434 = vpack.c.b16 %v6674, %v6658
    %v8435 = vpack.c.b16 %v6675, %v6659
    %v8436 = vpack.c.b16 %v6676, %v6660
    %v8437 = vpack.c.b16 %v6677, %v6661
    %v8438 = vpack.c.b16 %v6678, %v6662
    %v8439 = vpack.c.b16 %v6679, %v6663
    %v8440 = vpack.c.b16 %v6680, %v6664
    %v8441 = vpack.c.b16 %v6681, %v6665
    %v8442 = vpack.c.b16 %v6682, %v6666
    %v8443 = vpack.c.b16 %v6683, %v6667
    %v8444 = vpack.c.b16 %v6684, %v6668
    %v8445 = vpack.c.b16 %v6685, %v6669
    %v8446 = vpack.c.b16 %v6686, %v6670
    %v8447 = vpack.c.b16 %v6703, %v6687
    %v8448 = vpack.c.b16 %v6704, %v6688
    %v8449 = vpack.c.b16 %v6705, %v6689
    %v8450 = vpack.c.b16 %v6706, %v6690
    %v8451 = vpack.c.b16 %v6707, %v6691
    %v8452 = vpack.c.b16 %v6708, %v6692
    %v8453 = vpack.c.b16 %v6709, %v6693
    %v8454 = vpack.c.b16 %v6710, %v6694
    %v8455 = vpack.c.b16 %v6711, %v6695
    %v8456 = vpack.c.b16 %v6712, %v6696
    %v8457 = vpack.c.b16 %v6713, %v6697
    %v8458 = vpack.c.b16 %v6714, %v6698
    %v8459 = vpack.c.b16 %v6715, %v6699
    %v8460 = vpack.c.b16 %v6716, %v6700
    %v8461 = vpack.c.b16 %v6717, %v6701
    %v8462 = vpack.c.b16 %v6718, %v6702
    %v8463 = vpack.c.b16 %v6735, %v6719
    %v8464 = vpack.c.b16 %v6736, %v6720
    %v8465 = vpack.c.b16 %v6737, %v6721
    %v8466 = vpack.c.b16 %v6738, %v6722
    %v8467 = vpack.c.b16 %v6739, %v6723
    %v8468 = vpack.c.b16 %v6740, %v6724
    %v8469 = vpack.c.b16 %v6741, %v6725
    %v8470 = vpack.c.b16 %v6742, %v6726
    %v8471 = vpack.c.b16 %v6743, %v6727
    %v8472 = vpack.c.b16 %v6744, %v6728
    %v8473 = vpack.c.b16 %v6745, %v6729
    %v8474 = vpack.c.b16 %v6746, %v6730
    %v8475 = vpack.c.b16 %v6747, %v6731
    %v8476 = vpack.c.b16 %v6748, %v6732
    %v8477 = vpack.c.b16 %v6749, %v6733
    %v8478 = vpack.c.b16 %v6750, %v6734
    %v8479 = vpack.c.b16 %v6767, %v6751
    %v8480 = vpack.c.b16 %v6768, %v6752
    %v8481 = vpack.c.b16 %v6769, %v6753
    %v8482 = vpack.c.b16 %v6770, %v6754
    %v8483 = vpack.c.b16 %v6771, %v6755
    %v8484 = vpack.c.b16 %v6772, %v6756
    %v8485 = vpack.c.b16 %v6773, %v6757
    %v8486 = vpack.c.b16 %v6774, %v6758
    %v8487 = vpack.c.b16 %v6775, %v6759
    %v8488 = vpack.c.b16 %v6776, %v6760
    %v8489 = vpack.c.b16 %v6777, %v6761
    %v8490 = vpack.c.b16 %v6778, %v6762
    %v8491 = vpack.c.b16 %v6779, %v6763
    %v8492 = vpack.c.b16 %v6780, %v6764
    %v8493 = vpack.c.b16 %v6781, %v6765
    %v8494 = vpack.c.b16 %v6782, %v6766
    %v8495 = vpack.c.b16 %v6799, %v6783
    %v8496 = vpack.c.b16 %v6800, %v6784
    %v8497 = vpack.c.b16 %v6801, %v6785
    %v8498 = vpack.c.b16 %v6802, %v6786
    %v8499 = vpack.c.b16 %v6803, %v6787
    %v8500 = vpack.c.b16 %v6804, %v6788
    %v8501 = vpack.c.b16 %v6805, %v6789
    %v8502 = vpack.c.b16 %v6806, %v6790
    %v8503 = vpack.c.b16 %v6807, %v6791
    %v8504 = vpack.c.b16 %v6808, %v6792
    %v8505 = vpack.c.b16 %v6809, %v6793
    %v8506 = vpack.c.b16 %v6810, %v6794
    %v8507 = vpack.c.b16 %v6811, %v6795
    %v8508 = vpack.c.b16 %v6812, %v6796
    %v8509 = vpack.c.b16 %v6813, %v6797
    %v8510 = vpack.c.b16 %v6814, %v6798
    %v8511 = vpack.c.b16 %v6831, %v6815
    %v8512 = vpack.c.b16 %v6832, %v6816
    %v8513 = vpack.c.b16 %v6833, %v6817
    %v8514 = vpack.c.b16 %v6834, %v6818
    %v8515 = vpack.c.b16 %v6835, %v6819
    %v8516 = vpack.c.b16 %v6836, %v6820
    %v8517 = vpack.c.b16 %v6837, %v6821
    %v8518 = vpack.c.b16 %v6838, %v6822
    %v8519 = vpack.c.b16 %v6839, %v6823
    %v8520 = vpack.c.b16 %v6840, %v6824
    %v8521 = vpack.c.b16 %v6841, %v6825
    %v8522 = vpack.c.b16 %v6842, %v6826
    %v8523 = vpack.c.b16 %v6843, %v6827
    %v8524 = vpack.c.b16 %v6844, %v6828
    %v8525 = vpack.c.b16 %v6845, %v6829
    %v8526 = vpack.c.b16 %v6846, %v6830
    %v8527 = vpack.c.b16 %v6863, %v6847
    %v8528 = vpack.c.b16 %v6864, %v6848
    %v8529 = vpack.c.b16 %v6865, %v6849
    %v8530 = vpack.c.b16 %v6866, %v6850
    %v8531 = vpack.c.b16 %v6867, %v6851
    %v8532 = vpack.c.b16 %v6868, %v6852
    %v8533 = vpack.c.b16 %v6869, %v6853
    %v8534 = vpack.c.b16 %v6870, %v6854
    %v8535 = vpack.c.b16 %v6871, %v6855
    %v8536 = vpack.c.b16 %v6872, %v6856
    %v8537 = vpack.c.b16 %v6873, %v6857
    %v8538 = vpack.c.b16 %v6874, %v6858
    %v8539 = vpack.c.b16 %v6875, %v6859
    %v8540 = vpack.c.b16 %v6876, %v6860
    %v8541 = vpack.c.b16 %v6877, %v6861
    %v8542 = vpack.c.b16 %v6878, %v6862
    %10207 = vmatprep.subr.bf16.mxu0 %v6992
    %10208 = vmatpush1.bf16.msra.mxu0 %v6991
    %10209 = vmatprep.subr.bf16.mxu0 %v6976
    %10210 = vmatpush1.bf16.msra.mxu0 %v6975
    %10211 = vmatprep.subr.bf16.mxu0 %v6960
    %10212 = vmatpush1.bf16.msra.mxu0 %v6959
    %10213 = vmatprep.subr.bf16.mxu0 %v6944
    %10214 = vmatpush1.bf16.msra.mxu0 %v6943
    %10215 = vmatprep.subr.bf16.mxu0 %v6928
    %10216 = vmatpush1.bf16.msra.mxu0 %v6927
    %10217 = vmatprep.subr.bf16.mxu0 %v6912
    %10218 = vmatpush1.bf16.msra.mxu0 %v6911
    %10219 = vmatprep.subr.bf16.mxu0 %v6896
    %10220 = vmatpush1.bf16.msra.mxu0 %v6895
    %10221 = vmatprep.subr.bf16.mxu0 %v6880
    %10222 = vmatpush1.bf16.msra.mxu0 %v6879
    %10223 = vmatprep.subr.bf16.mxu0 %v7120
    %10224 = vmatpush2.bf16.msra.mxu0 %v7119
    %10225 = vmatprep.subr.bf16.mxu0 %v7104
    %10226 = vmatpush2.bf16.msra.mxu0 %v7103
    %10227 = vmatprep.subr.bf16.mxu0 %v7088
    %10228 = vmatpush2.bf16.msra.mxu0 %v7087
    %10229 = vmatprep.subr.bf16.mxu0 %v7072
    %10230 = vmatpush2.bf16.msra.mxu0 %v7071
    %10231 = vmatprep.subr.bf16.mxu0 %v7056
    %10232 = vmatpush2.bf16.msra.mxu0 %v7055
    %10233 = vmatprep.subr.bf16.mxu0 %v7040
    %10234 = vmatpush2.bf16.msra.mxu0 %v7039
    %10235 = vmatprep.subr.bf16.mxu0 %v7024
    %10236 = vmatpush2.bf16.msra.mxu0 %v7023
    %10237 = vmatprep.subr.bf16.mxu0 %v7008
    %10238 = vmatpush2.bf16.msra.mxu0 %v7007
    %10239 = vmatprep.mubr.bf16.mxu0 %v1823
    %10240 = vmatmul.mubr.bf16.gmra.mxu0 %v1809
    %v10241 = vpop.f32.mrf.mxu0
    %v10242 = vadd.f32 %v1707, %v10241
    %v10243 = vpop.f32.mrf.mxu0
    %v10244 = vadd.f32 %v1711, %v10243
    %v10245 = vpop.f32.mrf.mxu0
    %v10246 = vpop.f32.mrf.mxu0
    %10247 = vdwg.mxu0
    %10248 = vmatprep.subr.bf16.mxu0 %v7248
    %10249 = vmatpush1.bf16.msra.mxu0 %v7247
    %10250 = vmatprep.subr.bf16.mxu0 %v7232
    %10251 = vmatpush1.bf16.msra.mxu0 %v7231
    %10252 = vmatprep.subr.bf16.mxu0 %v7216
    %10253 = vmatpush1.bf16.msra.mxu0 %v7215
    %10254 = vmatprep.subr.bf16.mxu0 %v7200
    %10255 = vmatpush1.bf16.msra.mxu0 %v7199
    %10256 = vmatprep.subr.bf16.mxu0 %v7184
    %10257 = vmatpush1.bf16.msra.mxu0 %v7183
    %10258 = vmatprep.subr.bf16.mxu0 %v7168
    %10259 = vmatpush1.bf16.msra.mxu0 %v7167
    %10260 = vmatprep.subr.bf16.mxu0 %v7152
    %10261 = vmatpush1.bf16.msra.mxu0 %v7151
    %10262 = vmatprep.subr.bf16.mxu0 %v7136
    %10263 = vmatpush1.bf16.msra.mxu0 %v7135
    %10264 = vmatprep.subr.bf16.mxu0 %v7376
    %10265 = vmatpush2.bf16.msra.mxu0 %v7375
    %10266 = vmatprep.subr.bf16.mxu0 %v7360
    %10267 = vmatpush2.bf16.msra.mxu0 %v7359
    %10268 = vmatprep.subr.bf16.mxu0 %v7344
    %10269 = vmatpush2.bf16.msra.mxu0 %v7343
    %10270 = vmatprep.subr.bf16.mxu0 %v7328
    %10271 = vmatpush2.bf16.msra.mxu0 %v7327
    %10272 = vmatprep.subr.bf16.mxu0 %v7312
    %10273 = vmatpush2.bf16.msra.mxu0 %v7311
    %10274 = vmatprep.subr.bf16.mxu0 %v7296
    %10275 = vmatpush2.bf16.msra.mxu0 %v7295
    %10276 = vmatprep.subr.bf16.mxu0 %v7280
    %10277 = vmatpush2.bf16.msra.mxu0 %v7279
    %10278 = vmatprep.subr.bf16.mxu0 %v7264
    %10279 = vmatpush2.bf16.msra.mxu0 %v7263
    %10280 = vmatprep.mubr.bf16.mxu0 %v1833
    %10281 = vmatmul.mubr.bf16.gmra.mxu0 %v1831
    %v10282 = vpop.f32.mrf.mxu0
    %v10283 = vadd.f32 %v10242, %v10282
    %v10284 = vpop.f32.mrf.mxu0
    %v10285 = vadd.f32 %v10244, %v10284
    %v10286 = vpop.f32.mrf.mxu0
    %v10287 = vpop.f32.mrf.mxu0
    %10288 = vdwg.mxu0
    %10289 = vmatprep.subr.bf16.mxu0 %v7504
    %10290 = vmatpush1.bf16.msra.mxu0 %v7503
    %10291 = vmatprep.subr.bf16.mxu0 %v7488
    %10292 = vmatpush1.bf16.msra.mxu0 %v7487
    %10293 = vmatprep.subr.bf16.mxu0 %v7472
    %10294 = vmatpush1.bf16.msra.mxu0 %v7471
    %10295 = vmatprep.subr.bf16.mxu0 %v7456
    %10296 = vmatpush1.bf16.msra.mxu0 %v7455
    %10297 = vmatprep.subr.bf16.mxu0 %v7440
    %10298 = vmatpush1.bf16.msra.mxu0 %v7439
    %10299 = vmatprep.subr.bf16.mxu0 %v7424
    %10300 = vmatpush1.bf16.msra.mxu0 %v7423
    %10301 = vmatprep.subr.bf16.mxu0 %v7408
    %10302 = vmatpush1.bf16.msra.mxu0 %v7407
    %10303 = vmatprep.subr.bf16.mxu0 %v7392
    %10304 = vmatpush1.bf16.msra.mxu0 %v7391
    %10305 = vmatprep.subr.bf16.mxu0 %v7632
    %10306 = vmatpush2.bf16.msra.mxu0 %v7631
    %10307 = vmatprep.subr.bf16.mxu0 %v7616
    %10308 = vmatpush2.bf16.msra.mxu0 %v7615
    %10309 = vmatprep.subr.bf16.mxu0 %v7600
    %10310 = vmatpush2.bf16.msra.mxu0 %v7599
    %10311 = vmatprep.subr.bf16.mxu0 %v7584
    %10312 = vmatpush2.bf16.msra.mxu0 %v7583
    %10313 = vmatprep.subr.bf16.mxu0 %v7568
    %10314 = vmatpush2.bf16.msra.mxu0 %v7567
    %10315 = vmatprep.subr.bf16.mxu0 %v7552
    %10316 = vmatpush2.bf16.msra.mxu0 %v7551
    %10317 = vmatprep.subr.bf16.mxu0 %v7536
    %10318 = vmatpush2.bf16.msra.mxu0 %v7535
    %10319 = vmatprep.subr.bf16.mxu0 %v7520
    %10320 = vmatpush2.bf16.msra.mxu0 %v7519
    %10321 = vmatprep.mubr.bf16.mxu0 %v1830
    %10322 = vmatmul.mubr.bf16.gmra.mxu0 %v1816
    %v10323 = vpop.f32.mrf.mxu0
    %v10324 = vadd.f32 %v10283, %v10323
    %v10325 = vpop.f32.mrf.mxu0
    %v10326 = vadd.f32 %v10285, %v10325
    %v10327 = vpop.f32.mrf.mxu0
    %v10328 = vpop.f32.mrf.mxu0
    %10329 = vdwg.mxu0
    %10330 = vmatprep.subr.bf16.mxu0 %v7760
    %10331 = vmatpush1.bf16.msra.mxu0 %v7759
    %10332 = vmatprep.subr.bf16.mxu0 %v7744
    %10333 = vmatpush1.bf16.msra.mxu0 %v7743
    %10334 = vmatprep.subr.bf16.mxu0 %v7728
    %10335 = vmatpush1.bf16.msra.mxu0 %v7727
    %10336 = vmatprep.subr.bf16.mxu0 %v7712
    %10337 = vmatpush1.bf16.msra.mxu0 %v7711
    %10338 = vmatprep.subr.bf16.mxu0 %v7696
    %10339 = vmatpush1.bf16.msra.mxu0 %v7695
    %10340 = vmatprep.subr.bf16.mxu0 %v7680
    %10341 = vmatpush1.bf16.msra.mxu0 %v7679
    %10342 = vmatprep.subr.bf16.mxu0 %v7664
    %10343 = vmatpush1.bf16.msra.mxu0 %v7663
    %10344 = vmatprep.subr.bf16.mxu0 %v7648
    %10345 = vmatpush1.bf16.msra.mxu0 %v7647
    %10346 = vmatprep.subr.bf16.mxu0 %v7888
    %10347 = vmatpush2.bf16.msra.mxu0 %v7887
    %10348 = vmatprep.subr.bf16.mxu0 %v7872
    %10349 = vmatpush2.bf16.msra.mxu0 %v7871
    %10350 = vmatprep.subr.bf16.mxu0 %v7856
    %10351 = vmatpush2.bf16.msra.mxu0 %v7855
    %10352 = vmatprep.subr.bf16.mxu0 %v7840
    %10353 = vmatpush2.bf16.msra.mxu0 %v7839
    %10354 = vmatprep.subr.bf16.mxu0 %v7824
    %10355 = vmatpush2.bf16.msra.mxu0 %v7823
    %10356 = vmatprep.subr.bf16.mxu0 %v7808
    %10357 = vmatpush2.bf16.msra.mxu0 %v7807
    %10358 = vmatprep.subr.bf16.mxu0 %v7792
    %10359 = vmatpush2.bf16.msra.mxu0 %v7791
    %10360 = vmatprep.subr.bf16.mxu0 %v7776
    %10361 = vmatpush2.bf16.msra.mxu0 %v7775
    %10362 = vmatprep.mubr.bf16.mxu0 %v1834
    %10363 = vmatmul.mubr.bf16.gmra.mxu0 %v1832
    %v10364 = vpop.f32.mrf.mxu0
    %v10365 = vadd.f32 %v10324, %v10364
    %v10366 = vpop.f32.mrf.mxu0
    %v10367 = vadd.f32 %v10326, %v10366
    %v10368 = vpop.f32.mrf.mxu0
    %v10369 = vpop.f32.mrf.mxu0
    %10370 = vdwg.mxu0
    %10371 = vmatprep.subr.bf16.mxu0 %v8016
    %10372 = vmatpush1.bf16.msra.mxu0 %v8015
    %10373 = vmatprep.subr.bf16.mxu0 %v8000
    %10374 = vmatpush1.bf16.msra.mxu0 %v7999
    %10375 = vmatprep.subr.bf16.mxu0 %v7984
    %10376 = vmatpush1.bf16.msra.mxu0 %v7983
    %10377 = vmatprep.subr.bf16.mxu0 %v7968
    %10378 = vmatpush1.bf16.msra.mxu0 %v7967
    %10379 = vmatprep.subr.bf16.mxu0 %v7952
    %10380 = vmatpush1.bf16.msra.mxu0 %v7951
    %10381 = vmatprep.subr.bf16.mxu0 %v7936
    %10382 = vmatpush1.bf16.msra.mxu0 %v7935
    %10383 = vmatprep.subr.bf16.mxu0 %v7920
    %10384 = vmatpush1.bf16.msra.mxu0 %v7919
    %10385 = vmatprep.subr.bf16.mxu0 %v7904
    %10386 = vmatpush1.bf16.msra.mxu0 %v7903
    %10387 = vmatprep.subr.bf16.mxu0 %v8144
    %10388 = vmatpush2.bf16.msra.mxu0 %v8143
    %10389 = vmatprep.subr.bf16.mxu0 %v8128
    %10390 = vmatpush2.bf16.msra.mxu0 %v8127
    %10391 = vmatprep.subr.bf16.mxu0 %v8112
    %10392 = vmatpush2.bf16.msra.mxu0 %v8111
    %10393 = vmatprep.subr.bf16.mxu0 %v8096
    %10394 = vmatpush2.bf16.msra.mxu0 %v8095
    %10395 = vmatprep.subr.bf16.mxu0 %v8080
    %10396 = vmatpush2.bf16.msra.mxu0 %v8079
    %10397 = vmatprep.subr.bf16.mxu0 %v8064
    %10398 = vmatpush2.bf16.msra.mxu0 %v8063
    %10399 = vmatprep.subr.bf16.mxu0 %v8048
    %10400 = vmatpush2.bf16.msra.mxu0 %v8047
    %10401 = vmatprep.subr.bf16.mxu0 %v8032
    %10402 = vmatpush2.bf16.msra.mxu0 %v8031
    %10403 = vmatprep.mubr.bf16.mxu0 %v1871
    %10404 = vmatmul.mubr.bf16.gmra.mxu0 %v1857
    %v10405 = vpop.f32.mrf.mxu0
    %v10406 = vadd.f32 %v10365, %v10405
    %v10407 = vpop.f32.mrf.mxu0
    %v10408 = vadd.f32 %v10367, %v10407
    %v10409 = vpop.f32.mrf.mxu0
    %v10410 = vpop.f32.mrf.mxu0
    %10411 = vdwg.mxu0
    %10412 = vmatprep.subr.bf16.mxu0 %v8272
    %10413 = vmatpush1.bf16.msra.mxu0 %v8271
    %10414 = vmatprep.subr.bf16.mxu0 %v8256
    %10415 = vmatpush1.bf16.msra.mxu0 %v8255
    %10416 = vmatprep.subr.bf16.mxu0 %v8240
    %10417 = vmatpush1.bf16.msra.mxu0 %v8239
    %10418 = vmatprep.subr.bf16.mxu0 %v8224
    %10419 = vmatpush1.bf16.msra.mxu0 %v8223
    %10420 = vmatprep.subr.bf16.mxu0 %v8208
    %10421 = vmatpush1.bf16.msra.mxu0 %v8207
    %10422 = vmatprep.subr.bf16.mxu0 %v8192
    %10423 = vmatpush1.bf16.msra.mxu0 %v8191
    %10424 = vmatprep.subr.bf16.mxu0 %v8176
    %10425 = vmatpush1.bf16.msra.mxu0 %v8175
    %10426 = vmatprep.subr.bf16.mxu0 %v8160
    %10427 = vmatpush1.bf16.msra.mxu0 %v8159
    %10428 = vmatprep.subr.bf16.mxu0 %v8400
    %10429 = vmatpush2.bf16.msra.mxu0 %v8399
    %10430 = vmatprep.subr.bf16.mxu0 %v8384
    %10431 = vmatpush2.bf16.msra.mxu0 %v8383
    %10432 = vmatprep.subr.bf16.mxu0 %v8368
    %10433 = vmatpush2.bf16.msra.mxu0 %v8367
    %10434 = vmatprep.subr.bf16.mxu0 %v8352
    %10435 = vmatpush2.bf16.msra.mxu0 %v8351
    %10436 = vmatprep.subr.bf16.mxu0 %v8336
    %10437 = vmatpush2.bf16.msra.mxu0 %v8335
    %10438 = vmatprep.subr.bf16.mxu0 %v8320
    %10439 = vmatpush2.bf16.msra.mxu0 %v8319
    %10440 = vmatprep.subr.bf16.mxu0 %v8304
    %10441 = vmatpush2.bf16.msra.mxu0 %v8303
    %10442 = vmatprep.subr.bf16.mxu0 %v8288
    %10443 = vmatpush2.bf16.msra.mxu0 %v8287
    %10444 = vmatprep.mubr.bf16.mxu0 %v1873
    %10445 = vmatmul.mubr.bf16.gmra.mxu0 %v1872
    %v10446 = vpop.f32.mrf.mxu0
    %v10447 = vadd.f32 %v10406, %v10446
    %v10448 = vpop.f32.mrf.mxu0
    %v10449 = vadd.f32 %v10408, %v10448
    %v10450 = vpop.f32.mrf.mxu0
    %v10451 = vpop.f32.mrf.mxu0
    %10452 = vdwg.mxu0
    %10453 = vmatprep.subr.bf16.mxu0 %v8528
    %10454 = vmatpush1.bf16.msra.mxu0 %v8527
    %10455 = vmatprep.subr.bf16.mxu0 %v8512
    %10456 = vmatpush1.bf16.msra.mxu0 %v8511
    %10457 = vmatprep.subr.bf16.mxu0 %v8496
    %10458 = vmatpush1.bf16.msra.mxu0 %v8495
    %10459 = vmatprep.subr.bf16.mxu0 %v8480
    %10460 = vmatpush1.bf16.msra.mxu0 %v8479
    %10461 = vmatprep.subr.bf16.mxu0 %v8464
    %10462 = vmatpush1.bf16.msra.mxu0 %v8463
    %10463 = vmatprep.subr.bf16.mxu0 %v8448
    %10464 = vmatpush1.bf16.msra.mxu0 %v8447
    %10465 = vmatprep.subr.bf16.mxu0 %v8432
    %10466 = vmatpush1.bf16.msra.mxu0 %v8431
    %10467 = vmatprep.subr.bf16.mxu0 %v8416
    %10468 = vmatpush1.bf16.msra.mxu0 %v8415
    %10469 = vmatprep.subr.bf16.mxu0 0
    %10470 = vmatpush2.bf16.msra.mxu0 0
    %10471 = vmatprep.subr.bf16.mxu0 0
    %10472 = vmatpush2.bf16.msra.mxu0 0
    %10473 = vmatprep.subr.bf16.mxu0 0
    %10474 = vmatpush2.bf16.msra.mxu0 0
    %10475 = vmatprep.subr.bf16.mxu0 0
    %10476 = vmatpush2.bf16.msra.mxu0 0
    %10477 = vmatprep.subr.bf16.mxu0 0
    %10478 = vmatpush2.bf16.msra.mxu0 0
    %10479 = vmatprep.subr.bf16.mxu0 0
    %10480 = vmatpush2.bf16.msra.mxu0 0
    %10481 = vmatprep.subr.bf16.mxu0 0
    %10482 = vmatpush2.bf16.msra.mxu0 0
    %10483 = vmatprep.subr.bf16.mxu0 0
    %10484 = vmatpush2.bf16.msra.mxu0 0
    %10485 = vmatprep.mubr.bf16.mxu0 0
    %10486 = vmatmul.mubr.bf16.gmra.mxu0 %v1864
    %v10487 = vpop.f32.mrf.mxu0
    %v10488 = vadd.f32 %v10447, %v10487
    %v10489 = vpop.f32.mrf.mxu0
    %v10490 = vadd.f32 %v10449, %v10489
    %v10491 = vpop.f32.mrf.mxu0
    %v10492 = vpop.f32.mrf.mxu0
    %10493 = vdwg.mxu0
    %10494 = vmatprep.subr.bf16.mxu0 %v6994
    %10495 = vmatpush1.bf16.msra.mxu0 %v6993
    %10496 = vmatprep.subr.bf16.mxu0 %v6978
    %10497 = vmatpush1.bf16.msra.mxu0 %v6977
    %10498 = vmatprep.subr.bf16.mxu0 %v6962
    %10499 = vmatpush1.bf16.msra.mxu0 %v6961
    %10500 = vmatprep.subr.bf16.mxu0 %v6946
    %10501 = vmatpush1.bf16.msra.mxu0 %v6945
    %10502 = vmatprep.subr.bf16.mxu0 %v6930
    %10503 = vmatpush1.bf16.msra.mxu0 %v6929
    %10504 = vmatprep.subr.bf16.mxu0 %v6914
    %10505 = vmatpush1.bf16.msra.mxu0 %v6913
    %10506 = vmatprep.subr.bf16.mxu0 %v6898
    %10507 = vmatpush1.bf16.msra.mxu0 %v6897
    %10508 = vmatprep.subr.bf16.mxu0 %v6882
    %10509 = vmatpush1.bf16.msra.mxu0 %v6881
    %10510 = vmatprep.subr.bf16.mxu0 %v7122
    %10511 = vmatpush2.bf16.msra.mxu0 %v7121
    %10512 = vmatprep.subr.bf16.mxu0 %v7106
    %10513 = vmatpush2.bf16.msra.mxu0 %v7105
    %10514 = vmatprep.subr.bf16.mxu0 %v7090
    %10515 = vmatpush2.bf16.msra.mxu0 %v7089
    %10516 = vmatprep.subr.bf16.mxu0 %v7074
    %10517 = vmatpush2.bf16.msra.mxu0 %v7073
    %10518 = vmatprep.subr.bf16.mxu0 %v7058
    %10519 = vmatpush2.bf16.msra.mxu0 %v7057
    %10520 = vmatprep.subr.bf16.mxu0 %v7042
    %10521 = vmatpush2.bf16.msra.mxu0 %v7041
    %10522 = vmatprep.subr.bf16.mxu0 %v7026
    %10523 = vmatpush2.bf16.msra.mxu0 %v7025
    %10524 = vmatprep.subr.bf16.mxu0 %v7010
    %10525 = vmatpush2.bf16.msra.mxu0 %v7009
    %10526 = vmatprep.mubr.bf16.mxu0 %v1823
    %10527 = vmatmul.mubr.bf16.gmra.mxu0 %v1809
    %v10528 = vpop.f32.mrf.mxu0
    %v10529 = vadd.f32 %v1715, %v10528
    %v10530 = vpop.f32.mrf.mxu0
    %v10531 = vadd.f32 %v1719, %v10530
    %v10532 = vpop.f32.mrf.mxu0
    %v10533 = vpop.f32.mrf.mxu0
    %10534 = vdwg.mxu0
    %10535 = vmatprep.subr.bf16.mxu0 %v7250
    %10536 = vmatpush1.bf16.msra.mxu0 %v7249
    %10537 = vmatprep.subr.bf16.mxu0 %v7234
    %10538 = vmatpush1.bf16.msra.mxu0 %v7233
    %10539 = vmatprep.subr.bf16.mxu0 %v7218
    %10540 = vmatpush1.bf16.msra.mxu0 %v7217
    %10541 = vmatprep.subr.bf16.mxu0 %v7202
    %10542 = vmatpush1.bf16.msra.mxu0 %v7201
    %10543 = vmatprep.subr.bf16.mxu0 %v7186
    %10544 = vmatpush1.bf16.msra.mxu0 %v7185
    %10545 = vmatprep.subr.bf16.mxu0 %v7170
    %10546 = vmatpush1.bf16.msra.mxu0 %v7169
    %10547 = vmatprep.subr.bf16.mxu0 %v7154
    %10548 = vmatpush1.bf16.msra.mxu0 %v7153
    %10549 = vmatprep.subr.bf16.mxu0 %v7138
    %10550 = vmatpush1.bf16.msra.mxu0 %v7137
    %10551 = vmatprep.subr.bf16.mxu0 %v7378
    %10552 = vmatpush2.bf16.msra.mxu0 %v7377
    %10553 = vmatprep.subr.bf16.mxu0 %v7362
    %10554 = vmatpush2.bf16.msra.mxu0 %v7361
    %10555 = vmatprep.subr.bf16.mxu0 %v7346
    %10556 = vmatpush2.bf16.msra.mxu0 %v7345
    %10557 = vmatprep.subr.bf16.mxu0 %v7330
    %10558 = vmatpush2.bf16.msra.mxu0 %v7329
    %10559 = vmatprep.subr.bf16.mxu0 %v7314
    %10560 = vmatpush2.bf16.msra.mxu0 %v7313
    %10561 = vmatprep.subr.bf16.mxu0 %v7298
    %10562 = vmatpush2.bf16.msra.mxu0 %v7297
    %10563 = vmatprep.subr.bf16.mxu0 %v7282
    %10564 = vmatpush2.bf16.msra.mxu0 %v7281
    %10565 = vmatprep.subr.bf16.mxu0 %v7266
    %10566 = vmatpush2.bf16.msra.mxu0 %v7265
    %10567 = vmatprep.mubr.bf16.mxu0 %v1833
    %10568 = vmatmul.mubr.bf16.gmra.mxu0 %v1831
    %v10569 = vpop.f32.mrf.mxu0
    %v10570 = vadd.f32 %v10529, %v10569
    %v10571 = vpop.f32.mrf.mxu0
    %v10572 = vadd.f32 %v10531, %v10571
    %v10573 = vpop.f32.mrf.mxu0
    %v10574 = vpop.f32.mrf.mxu0
    %10575 = vdwg.mxu0
    %10576 = vmatprep.subr.bf16.mxu0 %v7506
    %10577 = vmatpush1.bf16.msra.mxu0 %v7505
    %10578 = vmatprep.subr.bf16.mxu0 %v7490
    %10579 = vmatpush1.bf16.msra.mxu0 %v7489
    %10580 = vmatprep.subr.bf16.mxu0 %v7474
    %10581 = vmatpush1.bf16.msra.mxu0 %v7473
    %10582 = vmatprep.subr.bf16.mxu0 %v7458
    %10583 = vmatpush1.bf16.msra.mxu0 %v7457
    %10584 = vmatprep.subr.bf16.mxu0 %v7442
    %10585 = vmatpush1.bf16.msra.mxu0 %v7441
    %10586 = vmatprep.subr.bf16.mxu0 %v7426
    %10587 = vmatpush1.bf16.msra.mxu0 %v7425
    %10588 = vmatprep.subr.bf16.mxu0 %v7410
    %10589 = vmatpush1.bf16.msra.mxu0 %v7409
    %10590 = vmatprep.subr.bf16.mxu0 %v7394
    %10591 = vmatpush1.bf16.msra.mxu0 %v7393
    %10592 = vmatprep.subr.bf16.mxu0 %v7634
    %10593 = vmatpush2.bf16.msra.mxu0 %v7633
    %10594 = vmatprep.subr.bf16.mxu0 %v7618
    %10595 = vmatpush2.bf16.msra.mxu0 %v7617
    %10596 = vmatprep.subr.bf16.mxu0 %v7602
    %10597 = vmatpush2.bf16.msra.mxu0 %v7601
    %10598 = vmatprep.subr.bf16.mxu0 %v7586
    %10599 = vmatpush2.bf16.msra.mxu0 %v7585
    %10600 = vmatprep.subr.bf16.mxu0 %v7570
    %10601 = vmatpush2.bf16.msra.mxu0 %v7569
    %10602 = vmatprep.subr.bf16.mxu0 %v7554
    %10603 = vmatpush2.bf16.msra.mxu0 %v7553
    %10604 = vmatprep.subr.bf16.mxu0 %v7538
    %10605 = vmatpush2.bf16.msra.mxu0 %v7537
    %10606 = vmatprep.subr.bf16.mxu0 %v7522
    %10607 = vmatpush2.bf16.msra.mxu0 %v7521
    %10608 = vmatprep.mubr.bf16.mxu0 %v1830
    %10609 = vmatmul.mubr.bf16.gmra.mxu0 %v1816
    %v10610 = vpop.f32.mrf.mxu0
    %v10611 = vadd.f32 %v10570, %v10610
    %v10612 = vpop.f32.mrf.mxu0
    %v10613 = vadd.f32 %v10572, %v10612
    %v10614 = vpop.f32.mrf.mxu0
    %v10615 = vpop.f32.mrf.mxu0
    %10616 = vdwg.mxu0
    %10617 = vmatprep.subr.bf16.mxu0 %v7762
    %10618 = vmatpush1.bf16.msra.mxu0 %v7761
    %10619 = vmatprep.subr.bf16.mxu0 %v7746
    %10620 = vmatpush1.bf16.msra.mxu0 %v7745
    %10621 = vmatprep.subr.bf16.mxu0 %v7730
    %10622 = vmatpush1.bf16.msra.mxu0 %v7729
    %10623 = vmatprep.subr.bf16.mxu0 %v7714
    %10624 = vmatpush1.bf16.msra.mxu0 %v7713
    %10625 = vmatprep.subr.bf16.mxu0 %v7698
    %10626 = vmatpush1.bf16.msra.mxu0 %v7697
    %10627 = vmatprep.subr.bf16.mxu0 %v7682
    %10628 = vmatpush1.bf16.msra.mxu0 %v7681
    %10629 = vmatprep.subr.bf16.mxu0 %v7666
    %10630 = vmatpush1.bf16.msra.mxu0 %v7665
    %10631 = vmatprep.subr.bf16.mxu0 %v7650
    %10632 = vmatpush1.bf16.msra.mxu0 %v7649
    %10633 = vmatprep.subr.bf16.mxu0 %v7890
    %10634 = vmatpush2.bf16.msra.mxu0 %v7889
    %10635 = vmatprep.subr.bf16.mxu0 %v7874
    %10636 = vmatpush2.bf16.msra.mxu0 %v7873
    %10637 = vmatprep.subr.bf16.mxu0 %v7858
    %10638 = vmatpush2.bf16.msra.mxu0 %v7857
    %10639 = vmatprep.subr.bf16.mxu0 %v7842
    %10640 = vmatpush2.bf16.msra.mxu0 %v7841
    %10641 = vmatprep.subr.bf16.mxu0 %v7826
    %10642 = vmatpush2.bf16.msra.mxu0 %v7825
    %10643 = vmatprep.subr.bf16.mxu0 %v7810
    %10644 = vmatpush2.bf16.msra.mxu0 %v7809
    %10645 = vmatprep.subr.bf16.mxu0 %v7794
    %10646 = vmatpush2.bf16.msra.mxu0 %v7793
    %10647 = vmatprep.subr.bf16.mxu0 %v7778
    %10648 = vmatpush2.bf16.msra.mxu0 %v7777
    %10649 = vmatprep.mubr.bf16.mxu0 %v1834
    %10650 = vmatmul.mubr.bf16.gmra.mxu0 %v1832
    %v10651 = vpop.f32.mrf.mxu0
    %v10652 = vadd.f32 %v10611, %v10651
    %v10653 = vpop.f32.mrf.mxu0
    %v10654 = vadd.f32 %v10613, %v10653
    %v10655 = vpop.f32.mrf.mxu0
    %v10656 = vpop.f32.mrf.mxu0
    %10657 = vdwg.mxu0
    %10658 = vmatprep.subr.bf16.mxu0 %v8018
    %10659 = vmatpush1.bf16.msra.mxu0 %v8017
    %10660 = vmatprep.subr.bf16.mxu0 %v8002
    %10661 = vmatpush1.bf16.msra.mxu0 %v8001
    %10662 = vmatprep.subr.bf16.mxu0 %v7986
    %10663 = vmatpush1.bf16.msra.mxu0 %v7985
    %10664 = vmatprep.subr.bf16.mxu0 %v7970
    %10665 = vmatpush1.bf16.msra.mxu0 %v7969
    %10666 = vmatprep.subr.bf16.mxu0 %v7954
    %10667 = vmatpush1.bf16.msra.mxu0 %v7953
    %10668 = vmatprep.subr.bf16.mxu0 %v7938
    %10669 = vmatpush1.bf16.msra.mxu0 %v7937
    %10670 = vmatprep.subr.bf16.mxu0 %v7922
    %10671 = vmatpush1.bf16.msra.mxu0 %v7921
    %10672 = vmatprep.subr.bf16.mxu0 %v7906
    %10673 = vmatpush1.bf16.msra.mxu0 %v7905
    %10674 = vmatprep.subr.bf16.mxu0 %v8146
    %10675 = vmatpush2.bf16.msra.mxu0 %v8145
    %10676 = vmatprep.subr.bf16.mxu0 %v8130
    %10677 = vmatpush2.bf16.msra.mxu0 %v8129
    %10678 = vmatprep.subr.bf16.mxu0 %v8114
    %10679 = vmatpush2.bf16.msra.mxu0 %v8113
    %10680 = vmatprep.subr.bf16.mxu0 %v8098
    %10681 = vmatpush2.bf16.msra.mxu0 %v8097
    %10682 = vmatprep.subr.bf16.mxu0 %v8082
    %10683 = vmatpush2.bf16.msra.mxu0 %v8081
    %10684 = vmatprep.subr.bf16.mxu0 %v8066
    %10685 = vmatpush2.bf16.msra.mxu0 %v8065
    %10686 = vmatprep.subr.bf16.mxu0 %v8050
    %10687 = vmatpush2.bf16.msra.mxu0 %v8049
    %10688 = vmatprep.subr.bf16.mxu0 %v8034
    %10689 = vmatpush2.bf16.msra.mxu0 %v8033
    %10690 = vmatprep.mubr.bf16.mxu0 %v1871
    %10691 = vmatmul.mubr.bf16.gmra.mxu0 %v1857
    %v10692 = vpop.f32.mrf.mxu0
    %v10693 = vadd.f32 %v10652, %v10692
    %v10694 = vpop.f32.mrf.mxu0
    %v10695 = vadd.f32 %v10654, %v10694
    %v10696 = vpop.f32.mrf.mxu0
    %v10697 = vpop.f32.mrf.mxu0
    %10698 = vdwg.mxu0
    %10699 = vmatprep.subr.bf16.mxu0 %v8274
    %10700 = vmatpush1.bf16.msra.mxu0 %v8273
    %10701 = vmatprep.subr.bf16.mxu0 %v8258
    %10702 = vmatpush1.bf16.msra.mxu0 %v8257
    %10703 = vmatprep.subr.bf16.mxu0 %v8242
    %10704 = vmatpush1.bf16.msra.mxu0 %v8241
    %10705 = vmatprep.subr.bf16.mxu0 %v8226
    %10706 = vmatpush1.bf16.msra.mxu0 %v8225
    %10707 = vmatprep.subr.bf16.mxu0 %v8210
    %10708 = vmatpush1.bf16.msra.mxu0 %v8209
    %10709 = vmatprep.subr.bf16.mxu0 %v8194
    %10710 = vmatpush1.bf16.msra.mxu0 %v8193
    %10711 = vmatprep.subr.bf16.mxu0 %v8178
    %10712 = vmatpush1.bf16.msra.mxu0 %v8177
    %10713 = vmatprep.subr.bf16.mxu0 %v8162
    %10714 = vmatpush1.bf16.msra.mxu0 %v8161
    %10715 = vmatprep.subr.bf16.mxu0 %v8402
    %10716 = vmatpush2.bf16.msra.mxu0 %v8401
    %10717 = vmatprep.subr.bf16.mxu0 %v8386
    %10718 = vmatpush2.bf16.msra.mxu0 %v8385
    %10719 = vmatprep.subr.bf16.mxu0 %v8370
    %10720 = vmatpush2.bf16.msra.mxu0 %v8369
    %10721 = vmatprep.subr.bf16.mxu0 %v8354
    %10722 = vmatpush2.bf16.msra.mxu0 %v8353
    %10723 = vmatprep.subr.bf16.mxu0 %v8338
    %10724 = vmatpush2.bf16.msra.mxu0 %v8337
    %10725 = vmatprep.subr.bf16.mxu0 %v8322
    %10726 = vmatpush2.bf16.msra.mxu0 %v8321
    %10727 = vmatprep.subr.bf16.mxu0 %v8306
    %10728 = vmatpush2.bf16.msra.mxu0 %v8305
    %10729 = vmatprep.subr.bf16.mxu0 %v8290
    %10730 = vmatpush2.bf16.msra.mxu0 %v8289
    %10731 = vmatprep.mubr.bf16.mxu0 %v1873
    %10732 = vmatmul.mubr.bf16.gmra.mxu0 %v1872
    %v10733 = vpop.f32.mrf.mxu0
    %v10734 = vadd.f32 %v10693, %v10733
    %v10735 = vpop.f32.mrf.mxu0
    %v10736 = vadd.f32 %v10695, %v10735
    %v10737 = vpop.f32.mrf.mxu0
    %v10738 = vpop.f32.mrf.mxu0
    %10739 = vdwg.mxu0
    %10740 = vmatprep.subr.bf16.mxu0 %v8530
    %10741 = vmatpush1.bf16.msra.mxu0 %v8529
    %10742 = vmatprep.subr.bf16.mxu0 %v8514
    %10743 = vmatpush1.bf16.msra.mxu0 %v8513
    %10744 = vmatprep.subr.bf16.mxu0 %v8498
    %10745 = vmatpush1.bf16.msra.mxu0 %v8497
    %10746 = vmatprep.subr.bf16.mxu0 %v8482
    %10747 = vmatpush1.bf16.msra.mxu0 %v8481
    %10748 = vmatprep.subr.bf16.mxu0 %v8466
    %10749 = vmatpush1.bf16.msra.mxu0 %v8465
    %10750 = vmatprep.subr.bf16.mxu0 %v8450
    %10751 = vmatpush1.bf16.msra.mxu0 %v8449
    %10752 = vmatprep.subr.bf16.mxu0 %v8434
    %10753 = vmatpush1.bf16.msra.mxu0 %v8433
    %10754 = vmatprep.subr.bf16.mxu0 %v8418
    %10755 = vmatpush1.bf16.msra.mxu0 %v8417
    %10756 = vmatprep.subr.bf16.mxu0 0
    %10757 = vmatpush2.bf16.msra.mxu0 0
    %10758 = vmatprep.subr.bf16.mxu0 0
    %10759 = vmatpush2.bf16.msra.mxu0 0
    %10760 = vmatprep.subr.bf16.mxu0 0
    %10761 = vmatpush2.bf16.msra.mxu0 0
    %10762 = vmatprep.subr.bf16.mxu0 0
    %10763 = vmatpush2.bf16.msra.mxu0 0
    %10764 = vmatprep.subr.bf16.mxu0 0
    %10765 = vmatpush2.bf16.msra.mxu0 0
    %10766 = vmatprep.subr.bf16.mxu0 0
    %10767 = vmatpush2.bf16.msra.mxu0 0
    %10768 = vmatprep.subr.bf16.mxu0 0
    %10769 = vmatpush2.bf16.msra.mxu0 0
    %10770 = vmatprep.subr.bf16.mxu0 0
    %10771 = vmatpush2.bf16.msra.mxu0 0
    %10772 = vmatprep.mubr.bf16.mxu0 0
    %10773 = vmatmul.mubr.bf16.gmra.mxu0 %v1864
    %v10774 = vpop.f32.mrf.mxu0
    %v10775 = vadd.f32 %v10734, %v10774
    %v10776 = vpop.f32.mrf.mxu0
    %v10777 = vadd.f32 %v10736, %v10776
    %v10778 = vpop.f32.mrf.mxu0
    %v10779 = vpop.f32.mrf.mxu0
    %10780 = vdwg.mxu0
    %10781 = vmatprep.subr.bf16.mxu0 %v6996
    %10782 = vmatpush1.bf16.msra.mxu0 %v6995
    %10783 = vmatprep.subr.bf16.mxu0 %v6980
    %10784 = vmatpush1.bf16.msra.mxu0 %v6979
    %10785 = vmatprep.subr.bf16.mxu0 %v6964
    %10786 = vmatpush1.bf16.msra.mxu0 %v6963
    %10787 = vmatprep.subr.bf16.mxu0 %v6948
    %10788 = vmatpush1.bf16.msra.mxu0 %v6947
    %10789 = vmatprep.subr.bf16.mxu0 %v6932
    %10790 = vmatpush1.bf16.msra.mxu0 %v6931
    %10791 = vmatprep.subr.bf16.mxu0 %v6916
    %10792 = vmatpush1.bf16.msra.mxu0 %v6915
    %10793 = vmatprep.subr.bf16.mxu0 %v6900
    %10794 = vmatpush1.bf16.msra.mxu0 %v6899
    %10795 = vmatprep.subr.bf16.mxu0 %v6884
    %10796 = vmatpush1.bf16.msra.mxu0 %v6883
    %10797 = vmatprep.subr.bf16.mxu0 %v7124
    %10798 = vmatpush2.bf16.msra.mxu0 %v7123
    %10799 = vmatprep.subr.bf16.mxu0 %v7108
    %10800 = vmatpush2.bf16.msra.mxu0 %v7107
    %10801 = vmatprep.subr.bf16.mxu0 %v7092
    %10802 = vmatpush2.bf16.msra.mxu0 %v7091
    %10803 = vmatprep.subr.bf16.mxu0 %v7076
    %10804 = vmatpush2.bf16.msra.mxu0 %v7075
    %10805 = vmatprep.subr.bf16.mxu0 %v7060
    %10806 = vmatpush2.bf16.msra.mxu0 %v7059
    %10807 = vmatprep.subr.bf16.mxu0 %v7044
    %10808 = vmatpush2.bf16.msra.mxu0 %v7043
    %10809 = vmatprep.subr.bf16.mxu0 %v7028
    %10810 = vmatpush2.bf16.msra.mxu0 %v7027
    %10811 = vmatprep.subr.bf16.mxu0 %v7012
    %10812 = vmatpush2.bf16.msra.mxu0 %v7011
    %10813 = vmatprep.mubr.bf16.mxu0 %v1823
    %10814 = vmatmul.mubr.bf16.gmra.mxu0 %v1809
    %v10815 = vpop.f32.mrf.mxu0
    %v10816 = vadd.f32 %v1723, %v10815
    %v10817 = vpop.f32.mrf.mxu0
    %v10818 = vadd.f32 %v1727, %v10817
    %v10819 = vpop.f32.mrf.mxu0
    %v10820 = vpop.f32.mrf.mxu0
    %10821 = vdwg.mxu0
    %10822 = vmatprep.subr.bf16.mxu0 %v7252
    %10823 = vmatpush1.bf16.msra.mxu0 %v7251
    %10824 = vmatprep.subr.bf16.mxu0 %v7236
    %10825 = vmatpush1.bf16.msra.mxu0 %v7235
    %10826 = vmatprep.subr.bf16.mxu0 %v7220
    %10827 = vmatpush1.bf16.msra.mxu0 %v7219
    %10828 = vmatprep.subr.bf16.mxu0 %v7204
    %10829 = vmatpush1.bf16.msra.mxu0 %v7203
    %10830 = vmatprep.subr.bf16.mxu0 %v7188
    %10831 = vmatpush1.bf16.msra.mxu0 %v7187
    %10832 = vmatprep.subr.bf16.mxu0 %v7172
    %10833 = vmatpush1.bf16.msra.mxu0 %v7171
    %10834 = vmatprep.subr.bf16.mxu0 %v7156
    %10835 = vmatpush1.bf16.msra.mxu0 %v7155
    %10836 = vmatprep.subr.bf16.mxu0 %v7140
    %10837 = vmatpush1.bf16.msra.mxu0 %v7139
    %10838 = vmatprep.subr.bf16.mxu0 %v7380
    %10839 = vmatpush2.bf16.msra.mxu0 %v7379
    %10840 = vmatprep.subr.bf16.mxu0 %v7364
    %10841 = vmatpush2.bf16.msra.mxu0 %v7363
    %10842 = vmatprep.subr.bf16.mxu0 %v7348
    %10843 = vmatpush2.bf16.msra.mxu0 %v7347
    %10844 = vmatprep.subr.bf16.mxu0 %v7332
    %10845 = vmatpush2.bf16.msra.mxu0 %v7331
    %10846 = vmatprep.subr.bf16.mxu0 %v7316
    %10847 = vmatpush2.bf16.msra.mxu0 %v7315
    %10848 = vmatprep.subr.bf16.mxu0 %v7300
    %10849 = vmatpush2.bf16.msra.mxu0 %v7299
    %10850 = vmatprep.subr.bf16.mxu0 %v7284
    %10851 = vmatpush2.bf16.msra.mxu0 %v7283
    %10852 = vmatprep.subr.bf16.mxu0 %v7268
    %10853 = vmatpush2.bf16.msra.mxu0 %v7267
    %10854 = vmatprep.mubr.bf16.mxu0 %v1833
    %10855 = vmatmul.mubr.bf16.gmra.mxu0 %v1831
    %v10856 = vpop.f32.mrf.mxu0
    %v10857 = vadd.f32 %v10816, %v10856
    %v10858 = vpop.f32.mrf.mxu0
    %v10859 = vadd.f32 %v10818, %v10858
    %v10860 = vpop.f32.mrf.mxu0
    %v10861 = vpop.f32.mrf.mxu0
    %10862 = vdwg.mxu0
    %10863 = vmatprep.subr.bf16.mxu0 %v7508
    %10864 = vmatpush1.bf16.msra.mxu0 %v7507
    %10865 = vmatprep.subr.bf16.mxu0 %v7492
    %10866 = vmatpush1.bf16.msra.mxu0 %v7491
    %10867 = vmatprep.subr.bf16.mxu0 %v7476
    %10868 = vmatpush1.bf16.msra.mxu0 %v7475
    %10869 = vmatprep.subr.bf16.mxu0 %v7460
    %10870 = vmatpush1.bf16.msra.mxu0 %v7459
    %10871 = vmatprep.subr.bf16.mxu0 %v7444
    %10872 = vmatpush1.bf16.msra.mxu0 %v7443
    %10873 = vmatprep.subr.bf16.mxu0 %v7428
    %10874 = vmatpush1.bf16.msra.mxu0 %v7427
    %10875 = vmatprep.subr.bf16.mxu0 %v7412
    %10876 = vmatpush1.bf16.msra.mxu0 %v7411
    %10877 = vmatprep.subr.bf16.mxu0 %v7396
    %10878 = vmatpush1.bf16.msra.mxu0 %v7395
    %10879 = vmatprep.subr.bf16.mxu0 %v7636
    %10880 = vmatpush2.bf16.msra.mxu0 %v7635
    %10881 = vmatprep.subr.bf16.mxu0 %v7620
    %10882 = vmatpush2.bf16.msra.mxu0 %v7619
    %10883 = vmatprep.subr.bf16.mxu0 %v7604
    %10884 = vmatpush2.bf16.msra.mxu0 %v7603
    %10885 = vmatprep.subr.bf16.mxu0 %v7588
    %10886 = vmatpush2.bf16.msra.mxu0 %v7587
    %10887 = vmatprep.subr.bf16.mxu0 %v7572
    %10888 = vmatpush2.bf16.msra.mxu0 %v7571
    %10889 = vmatprep.subr.bf16.mxu0 %v7556
    %10890 = vmatpush2.bf16.msra.mxu0 %v7555
    %10891 = vmatprep.subr.bf16.mxu0 %v7540
    %10892 = vmatpush2.bf16.msra.mxu0 %v7539
    %10893 = vmatprep.subr.bf16.mxu0 %v7524
    %10894 = vmatpush2.bf16.msra.mxu0 %v7523
    %10895 = vmatprep.mubr.bf16.mxu0 %v1830
    %10896 = vmatmul.mubr.bf16.gmra.mxu0 %v1816
    %v10897 = vpop.f32.mrf.mxu0
    %v10898 = vadd.f32 %v10857, %v10897
    %v10899 = vpop.f32.mrf.mxu0
    %v10900 = vadd.f32 %v10859, %v10899
    %v10901 = vpop.f32.mrf.mxu0
    %v10902 = vpop.f32.mrf.mxu0
    %10903 = vdwg.mxu0
    %10904 = vmatprep.subr.bf16.mxu0 %v7764
    %10905 = vmatpush1.bf16.msra.mxu0 %v7763
    %10906 = vmatprep.subr.bf16.mxu0 %v7748
    %10907 = vmatpush1.bf16.msra.mxu0 %v7747
    %10908 = vmatprep.subr.bf16.mxu0 %v7732
    %10909 = vmatpush1.bf16.msra.mxu0 %v7731
    %10910 = vmatprep.subr.bf16.mxu0 %v7716
    %10911 = vmatpush1.bf16.msra.mxu0 %v7715
    %10912 = vmatprep.subr.bf16.mxu0 %v7700
    %10913 = vmatpush1.bf16.msra.mxu0 %v7699
    %10914 = vmatprep.subr.bf16.mxu0 %v7684
    %10915 = vmatpush1.bf16.msra.mxu0 %v7683
    %10916 = vmatprep.subr.bf16.mxu0 %v7668
    %10917 = vmatpush1.bf16.msra.mxu0 %v7667
    %10918 = vmatprep.subr.bf16.mxu0 %v7652
    %10919 = vmatpush1.bf16.msra.mxu0 %v7651
    %10920 = vmatprep.subr.bf16.mxu0 %v7892
    %10921 = vmatpush2.bf16.msra.mxu0 %v7891
    %10922 = vmatprep.subr.bf16.mxu0 %v7876
    %10923 = vmatpush2.bf16.msra.mxu0 %v7875
    %10924 = vmatprep.subr.bf16.mxu0 %v7860
    %10925 = vmatpush2.bf16.msra.mxu0 %v7859
    %10926 = vmatprep.subr.bf16.mxu0 %v7844
    %10927 = vmatpush2.bf16.msra.mxu0 %v7843
    %10928 = vmatprep.subr.bf16.mxu0 %v7828
    %10929 = vmatpush2.bf16.msra.mxu0 %v7827
    %10930 = vmatprep.subr.bf16.mxu0 %v7812
    %10931 = vmatpush2.bf16.msra.mxu0 %v7811
    %10932 = vmatprep.subr.bf16.mxu0 %v7796
    %10933 = vmatpush2.bf16.msra.mxu0 %v7795
    %10934 = vmatprep.subr.bf16.mxu0 %v7780
    %10935 = vmatpush2.bf16.msra.mxu0 %v7779
    %10936 = vmatprep.mubr.bf16.mxu0 %v1834
    %10937 = vmatmul.mubr.bf16.gmra.mxu0 %v1832
    %v10938 = vpop.f32.mrf.mxu0
    %v10939 = vadd.f32 %v10898, %v10938
    %v10940 = vpop.f32.mrf.mxu0
    %v10941 = vadd.f32 %v10900, %v10940
    %v10942 = vpop.f32.mrf.mxu0
    %v10943 = vpop.f32.mrf.mxu0
    %10944 = vdwg.mxu0
    %10945 = vmatprep.subr.bf16.mxu0 %v8020
    %10946 = vmatpush1.bf16.msra.mxu0 %v8019
    %10947 = vmatprep.subr.bf16.mxu0 %v8004
    %10948 = vmatpush1.bf16.msra.mxu0 %v8003
    %10949 = vmatprep.subr.bf16.mxu0 %v7988
    %10950 = vmatpush1.bf16.msra.mxu0 %v7987
    %10951 = vmatprep.subr.bf16.mxu0 %v7972
    %10952 = vmatpush1.bf16.msra.mxu0 %v7971
    %10953 = vmatprep.subr.bf16.mxu0 %v7956
    %10954 = vmatpush1.bf16.msra.mxu0 %v7955
    %10955 = vmatprep.subr.bf16.mxu0 %v7940
    %10956 = vmatpush1.bf16.msra.mxu0 %v7939
    %10957 = vmatprep.subr.bf16.mxu0 %v7924
    %10958 = vmatpush1.bf16.msra.mxu0 %v7923
    %10959 = vmatprep.subr.bf16.mxu0 %v7908
    %10960 = vmatpush1.bf16.msra.mxu0 %v7907
    %10961 = vmatprep.subr.bf16.mxu0 %v8148
    %10962 = vmatpush2.bf16.msra.mxu0 %v8147
    %10963 = vmatprep.subr.bf16.mxu0 %v8132
    %10964 = vmatpush2.bf16.msra.mxu0 %v8131
    %10965 = vmatprep.subr.bf16.mxu0 %v8116
    %10966 = vmatpush2.bf16.msra.mxu0 %v8115
    %10967 = vmatprep.subr.bf16.mxu0 %v8100
    %10968 = vmatpush2.bf16.msra.mxu0 %v8099
    %10969 = vmatprep.subr.bf16.mxu0 %v8084
    %10970 = vmatpush2.bf16.msra.mxu0 %v8083
    %10971 = vmatprep.subr.bf16.mxu0 %v8068
    %10972 = vmatpush2.bf16.msra.mxu0 %v8067
    %10973 = vmatprep.subr.bf16.mxu0 %v8052
    %10974 = vmatpush2.bf16.msra.mxu0 %v8051
    %10975 = vmatprep.subr.bf16.mxu0 %v8036
    %10976 = vmatpush2.bf16.msra.mxu0 %v8035
    %10977 = vmatprep.mubr.bf16.mxu0 %v1871
    %10978 = vmatmul.mubr.bf16.gmra.mxu0 %v1857
    %v10979 = vpop.f32.mrf.mxu0
    %v10980 = vadd.f32 %v10939, %v10979
    %v10981 = vpop.f32.mrf.mxu0
    %v10982 = vadd.f32 %v10941, %v10981
    %v10983 = vpop.f32.mrf.mxu0
    %v10984 = vpop.f32.mrf.mxu0
    %10985 = vdwg.mxu0
    %10986 = vmatprep.subr.bf16.mxu0 %v8276
    %10987 = vmatpush1.bf16.msra.mxu0 %v8275
    %10988 = vmatprep.subr.bf16.mxu0 %v8260
    %10989 = vmatpush1.bf16.msra.mxu0 %v8259
    %10990 = vmatprep.subr.bf16.mxu0 %v8244
    %10991 = vmatpush1.bf16.msra.mxu0 %v8243
    %10992 = vmatprep.subr.bf16.mxu0 %v8228
    %10993 = vmatpush1.bf16.msra.mxu0 %v8227
    %10994 = vmatprep.subr.bf16.mxu0 %v8212
    %10995 = vmatpush1.bf16.msra.mxu0 %v8211
    %10996 = vmatprep.subr.bf16.mxu0 %v8196
    %10997 = vmatpush1.bf16.msra.mxu0 %v8195
    %10998 = vmatprep.subr.bf16.mxu0 %v8180
    %10999 = vmatpush1.bf16.msra.mxu0 %v8179
    %11000 = vmatprep.subr.bf16.mxu0 %v8164
    %11001 = vmatpush1.bf16.msra.mxu0 %v8163
    %11002 = vmatprep.subr.bf16.mxu0 %v8404
    %11003 = vmatpush2.bf16.msra.mxu0 %v8403
    %11004 = vmatprep.subr.bf16.mxu0 %v8388
    %11005 = vmatpush2.bf16.msra.mxu0 %v8387
    %11006 = vmatprep.subr.bf16.mxu0 %v8372
    %11007 = vmatpush2.bf16.msra.mxu0 %v8371
    %11008 = vmatprep.subr.bf16.mxu0 %v8356
    %11009 = vmatpush2.bf16.msra.mxu0 %v8355
    %11010 = vmatprep.subr.bf16.mxu0 %v8340
    %11011 = vmatpush2.bf16.msra.mxu0 %v8339
    %11012 = vmatprep.subr.bf16.mxu0 %v8324
    %11013 = vmatpush2.bf16.msra.mxu0 %v8323
    %11014 = vmatprep.subr.bf16.mxu0 %v8308
    %11015 = vmatpush2.bf16.msra.mxu0 %v8307
    %11016 = vmatprep.subr.bf16.mxu0 %v8292
    %11017 = vmatpush2.bf16.msra.mxu0 %v8291
    %11018 = vmatprep.mubr.bf16.mxu0 %v1873
    %11019 = vmatmul.mubr.bf16.gmra.mxu0 %v1872
    %v11020 = vpop.f32.mrf.mxu0
    %v11021 = vadd.f32 %v10980, %v11020
    %v11022 = vpop.f32.mrf.mxu0
    %v11023 = vadd.f32 %v10982, %v11022
    %v11024 = vpop.f32.mrf.mxu0
    %v11025 = vpop.f32.mrf.mxu0
    %11026 = vdwg.mxu0
    %11027 = vmatprep.subr.bf16.mxu0 %v8532
    %11028 = vmatpush1.bf16.msra.mxu0 %v8531
    %11029 = vmatprep.subr.bf16.mxu0 %v8516
    %11030 = vmatpush1.bf16.msra.mxu0 %v8515
    %11031 = vmatprep.subr.bf16.mxu0 %v8500
    %11032 = vmatpush1.bf16.msra.mxu0 %v8499
    %11033 = vmatprep.subr.bf16.mxu0 %v8484
    %11034 = vmatpush1.bf16.msra.mxu0 %v8483
    %11035 = vmatprep.subr.bf16.mxu0 %v8468
    %11036 = vmatpush1.bf16.msra.mxu0 %v8467
    %11037 = vmatprep.subr.bf16.mxu0 %v8452
    %11038 = vmatpush1.bf16.msra.mxu0 %v8451
    %11039 = vmatprep.subr.bf16.mxu0 %v8436
    %11040 = vmatpush1.bf16.msra.mxu0 %v8435
    %11041 = vmatprep.subr.bf16.mxu0 %v8420
    %11042 = vmatpush1.bf16.msra.mxu0 %v8419
    %11043 = vmatprep.subr.bf16.mxu0 0
    %11044 = vmatpush2.bf16.msra.mxu0 0
    %11045 = vmatprep.subr.bf16.mxu0 0
    %11046 = vmatpush2.bf16.msra.mxu0 0
    %11047 = vmatprep.subr.bf16.mxu0 0
    %11048 = vmatpush2.bf16.msra.mxu0 0
    %11049 = vmatprep.subr.bf16.mxu0 0
    %11050 = vmatpush2.bf16.msra.mxu0 0
    %11051 = vmatprep.subr.bf16.mxu0 0
    %11052 = vmatpush2.bf16.msra.mxu0 0
    %11053 = vmatprep.subr.bf16.mxu0 0
    %11054 = vmatpush2.bf16.msra.mxu0 0
    %11055 = vmatprep.subr.bf16.mxu0 0
    %11056 = vmatpush2.bf16.msra.mxu0 0
    %11057 = vmatprep.subr.bf16.mxu0 0
    %11058 = vmatpush2.bf16.msra.mxu0 0
    %11059 = vmatprep.mubr.bf16.mxu0 0
    %11060 = vmatmul.mubr.bf16.gmra.mxu0 %v1864
    %v11061 = vpop.f32.mrf.mxu0
    %v11062 = vadd.f32 %v11021, %v11061
    %v11063 = vpop.f32.mrf.mxu0
    %v11064 = vadd.f32 %v11023, %v11063
    %v11065 = vpop.f32.mrf.mxu0
    %v11066 = vpop.f32.mrf.mxu0
    %11067 = vdwg.mxu0
    %11068 = vmatprep.subr.bf16.mxu0 %v6998
    %11069 = vmatpush1.bf16.msra.mxu0 %v6997
    %11070 = vmatprep.subr.bf16.mxu0 %v6982
    %11071 = vmatpush1.bf16.msra.mxu0 %v6981
    %11072 = vmatprep.subr.bf16.mxu0 %v6966
    %11073 = vmatpush1.bf16.msra.mxu0 %v6965
    %11074 = vmatprep.subr.bf16.mxu0 %v6950
    %11075 = vmatpush1.bf16.msra.mxu0 %v6949
    %11076 = vmatprep.subr.bf16.mxu0 %v6934
    %11077 = vmatpush1.bf16.msra.mxu0 %v6933
    %11078 = vmatprep.subr.bf16.mxu0 %v6918
    %11079 = vmatpush1.bf16.msra.mxu0 %v6917
    %11080 = vmatprep.subr.bf16.mxu0 %v6902
    %11081 = vmatpush1.bf16.msra.mxu0 %v6901
    %11082 = vmatprep.subr.bf16.mxu0 %v6886
    %11083 = vmatpush1.bf16.msra.mxu0 %v6885
    %11084 = vmatprep.subr.bf16.mxu0 %v7126
    %11085 = vmatpush2.bf16.msra.mxu0 %v7125
    %11086 = vmatprep.subr.bf16.mxu0 %v7110
    %11087 = vmatpush2.bf16.msra.mxu0 %v7109
    %11088 = vmatprep.subr.bf16.mxu0 %v7094
    %11089 = vmatpush2.bf16.msra.mxu0 %v7093
    %11090 = vmatprep.subr.bf16.mxu0 %v7078
    %11091 = vmatpush2.bf16.msra.mxu0 %v7077
    %11092 = vmatprep.subr.bf16.mxu0 %v7062
    %11093 = vmatpush2.bf16.msra.mxu0 %v7061
    %11094 = vmatprep.subr.bf16.mxu0 %v7046
    %11095 = vmatpush2.bf16.msra.mxu0 %v7045
    %11096 = vmatprep.subr.bf16.mxu0 %v7030
    %11097 = vmatpush2.bf16.msra.mxu0 %v7029
    %11098 = vmatprep.subr.bf16.mxu0 %v7014
    %11099 = vmatpush2.bf16.msra.mxu0 %v7013
    %11100 = vmatprep.mubr.bf16.mxu0 %v1823
    %11101 = vmatmul.mubr.bf16.gmra.mxu0 %v1809
    %v11102 = vpop.f32.mrf.mxu0
    %v11103 = vadd.f32 %v1731, %v11102
    %v11104 = vpop.f32.mrf.mxu0
    %v11105 = vadd.f32 %v1735, %v11104
    %v11106 = vpop.f32.mrf.mxu0
    %v11107 = vpop.f32.mrf.mxu0
    %11108 = vdwg.mxu0
    %11109 = vmatprep.subr.bf16.mxu0 %v7254
    %11110 = vmatpush1.bf16.msra.mxu0 %v7253
    %11111 = vmatprep.subr.bf16.mxu0 %v7238
    %11112 = vmatpush1.bf16.msra.mxu0 %v7237
    %11113 = vmatprep.subr.bf16.mxu0 %v7222
    %11114 = vmatpush1.bf16.msra.mxu0 %v7221
    %11115 = vmatprep.subr.bf16.mxu0 %v7206
    %11116 = vmatpush1.bf16.msra.mxu0 %v7205
    %11117 = vmatprep.subr.bf16.mxu0 %v7190
    %11118 = vmatpush1.bf16.msra.mxu0 %v7189
    %11119 = vmatprep.subr.bf16.mxu0 %v7174
    %11120 = vmatpush1.bf16.msra.mxu0 %v7173
    %11121 = vmatprep.subr.bf16.mxu0 %v7158
    %11122 = vmatpush1.bf16.msra.mxu0 %v7157
    %11123 = vmatprep.subr.bf16.mxu0 %v7142
    %11124 = vmatpush1.bf16.msra.mxu0 %v7141
    %11125 = vmatprep.subr.bf16.mxu0 %v7382
    %11126 = vmatpush2.bf16.msra.mxu0 %v7381
    %11127 = vmatprep.subr.bf16.mxu0 %v7366
    %11128 = vmatpush2.bf16.msra.mxu0 %v7365
    %11129 = vmatprep.subr.bf16.mxu0 %v7350
    %11130 = vmatpush2.bf16.msra.mxu0 %v7349
    %11131 = vmatprep.subr.bf16.mxu0 %v7334
    %11132 = vmatpush2.bf16.msra.mxu0 %v7333
    %11133 = vmatprep.subr.bf16.mxu0 %v7318
    %11134 = vmatpush2.bf16.msra.mxu0 %v7317
    %11135 = vmatprep.subr.bf16.mxu0 %v7302
    %11136 = vmatpush2.bf16.msra.mxu0 %v7301
    %11137 = vmatprep.subr.bf16.mxu0 %v7286
    %11138 = vmatpush2.bf16.msra.mxu0 %v7285
    %11139 = vmatprep.subr.bf16.mxu0 %v7270
    %11140 = vmatpush2.bf16.msra.mxu0 %v7269
    %11141 = vmatprep.mubr.bf16.mxu0 %v1833
    %11142 = vmatmul.mubr.bf16.gmra.mxu0 %v1831
    %v11143 = vpop.f32.mrf.mxu0
    %v11144 = vadd.f32 %v11103, %v11143
    %v11145 = vpop.f32.mrf.mxu0
    %v11146 = vadd.f32 %v11105, %v11145
    %v11147 = vpop.f32.mrf.mxu0
    %v11148 = vpop.f32.mrf.mxu0
    %11149 = vdwg.mxu0
    %11150 = vmatprep.subr.bf16.mxu0 %v7510
    %11151 = vmatpush1.bf16.msra.mxu0 %v7509
    %11152 = vmatprep.subr.bf16.mxu0 %v7494
    %11153 = vmatpush1.bf16.msra.mxu0 %v7493
    %11154 = vmatprep.subr.bf16.mxu0 %v7478
    %11155 = vmatpush1.bf16.msra.mxu0 %v7477
    %11156 = vmatprep.subr.bf16.mxu0 %v7462
    %11157 = vmatpush1.bf16.msra.mxu0 %v7461
    %11158 = vmatprep.subr.bf16.mxu0 %v7446
    %11159 = vmatpush1.bf16.msra.mxu0 %v7445
    %11160 = vmatprep.subr.bf16.mxu0 %v7430
    %11161 = vmatpush1.bf16.msra.mxu0 %v7429
    %11162 = vmatprep.subr.bf16.mxu0 %v7414
    %11163 = vmatpush1.bf16.msra.mxu0 %v7413
    %11164 = vmatprep.subr.bf16.mxu0 %v7398
    %11165 = vmatpush1.bf16.msra.mxu0 %v7397
    %11166 = vmatprep.subr.bf16.mxu0 %v7638
    %11167 = vmatpush2.bf16.msra.mxu0 %v7637
    %11168 = vmatprep.subr.bf16.mxu0 %v7622
    %11169 = vmatpush2.bf16.msra.mxu0 %v7621
    %11170 = vmatprep.subr.bf16.mxu0 %v7606
    %11171 = vmatpush2.bf16.msra.mxu0 %v7605
    %11172 = vmatprep.subr.bf16.mxu0 %v7590
    %11173 = vmatpush2.bf16.msra.mxu0 %v7589
    %11174 = vmatprep.subr.bf16.mxu0 %v7574
    %11175 = vmatpush2.bf16.msra.mxu0 %v7573
    %11176 = vmatprep.subr.bf16.mxu0 %v7558
    %11177 = vmatpush2.bf16.msra.mxu0 %v7557
    %11178 = vmatprep.subr.bf16.mxu0 %v7542
    %11179 = vmatpush2.bf16.msra.mxu0 %v7541
    %11180 = vmatprep.subr.bf16.mxu0 %v7526
    %11181 = vmatpush2.bf16.msra.mxu0 %v7525
    %11182 = vmatprep.mubr.bf16.mxu0 %v1830
    %11183 = vmatmul.mubr.bf16.gmra.mxu0 %v1816
    %v11184 = vpop.f32.mrf.mxu0
    %v11185 = vadd.f32 %v11144, %v11184
    %v11186 = vpop.f32.mrf.mxu0
    %v11187 = vadd.f32 %v11146, %v11186
    %v11188 = vpop.f32.mrf.mxu0
    %v11189 = vpop.f32.mrf.mxu0
    %11190 = vdwg.mxu0
    %11191 = vmatprep.subr.bf16.mxu0 %v7766
    %11192 = vmatpush1.bf16.msra.mxu0 %v7765
    %11193 = vmatprep.subr.bf16.mxu0 %v7750
    %11194 = vmatpush1.bf16.msra.mxu0 %v7749
    %11195 = vmatprep.subr.bf16.mxu0 %v7734
    %11196 = vmatpush1.bf16.msra.mxu0 %v7733
    %11197 = vmatprep.subr.bf16.mxu0 %v7718
    %11198 = vmatpush1.bf16.msra.mxu0 %v7717
    %11199 = vmatprep.subr.bf16.mxu0 %v7702
    %11200 = vmatpush1.bf16.msra.mxu0 %v7701
    %11201 = vmatprep.subr.bf16.mxu0 %v7686
    %11202 = vmatpush1.bf16.msra.mxu0 %v7685
    %11203 = vmatprep.subr.bf16.mxu0 %v7670
    %11204 = vmatpush1.bf16.msra.mxu0 %v7669
    %11205 = vmatprep.subr.bf16.mxu0 %v7654
    %11206 = vmatpush1.bf16.msra.mxu0 %v7653
    %11207 = vmatprep.subr.bf16.mxu0 %v7894
    %11208 = vmatpush2.bf16.msra.mxu0 %v7893
    %11209 = vmatprep.subr.bf16.mxu0 %v7878
    %11210 = vmatpush2.bf16.msra.mxu0 %v7877
    %11211 = vmatprep.subr.bf16.mxu0 %v7862
    %11212 = vmatpush2.bf16.msra.mxu0 %v7861
    %11213 = vmatprep.subr.bf16.mxu0 %v7846
    %11214 = vmatpush2.bf16.msra.mxu0 %v7845
    %11215 = vmatprep.subr.bf16.mxu0 %v7830
    %11216 = vmatpush2.bf16.msra.mxu0 %v7829
    %11217 = vmatprep.subr.bf16.mxu0 %v7814
    %11218 = vmatpush2.bf16.msra.mxu0 %v7813
    %11219 = vmatprep.subr.bf16.mxu0 %v7798
    %11220 = vmatpush2.bf16.msra.mxu0 %v7797
    %11221 = vmatprep.subr.bf16.mxu0 %v7782
    %11222 = vmatpush2.bf16.msra.mxu0 %v7781
    %11223 = vmatprep.mubr.bf16.mxu0 %v1834
    %11224 = vmatmul.mubr.bf16.gmra.mxu0 %v1832
    %v11225 = vpop.f32.mrf.mxu0
    %v11226 = vadd.f32 %v11185, %v11225
    %v11227 = vpop.f32.mrf.mxu0
    %v11228 = vadd.f32 %v11187, %v11227
    %v11229 = vpop.f32.mrf.mxu0
    %v11230 = vpop.f32.mrf.mxu0
    %11231 = vdwg.mxu0
    %11232 = vmatprep.subr.bf16.mxu0 %v8022
    %11233 = vmatpush1.bf16.msra.mxu0 %v8021
    %11234 = vmatprep.subr.bf16.mxu0 %v8006
    %11235 = vmatpush1.bf16.msra.mxu0 %v8005
    %11236 = vmatprep.subr.bf16.mxu0 %v7990
    %11237 = vmatpush1.bf16.msra.mxu0 %v7989
    %11238 = vmatprep.subr.bf16.mxu0 %v7974
    %11239 = vmatpush1.bf16.msra.mxu0 %v7973
    %11240 = vmatprep.subr.bf16.mxu0 %v7958
    %11241 = vmatpush1.bf16.msra.mxu0 %v7957
    %11242 = vmatprep.subr.bf16.mxu0 %v7942
    %11243 = vmatpush1.bf16.msra.mxu0 %v7941
    %11244 = vmatprep.subr.bf16.mxu0 %v7926
    %11245 = vmatpush1.bf16.msra.mxu0 %v7925
    %11246 = vmatprep.subr.bf16.mxu0 %v7910
    %11247 = vmatpush1.bf16.msra.mxu0 %v7909
    %11248 = vmatprep.subr.bf16.mxu0 %v8150
    %11249 = vmatpush2.bf16.msra.mxu0 %v8149
    %11250 = vmatprep.subr.bf16.mxu0 %v8134
    %11251 = vmatpush2.bf16.msra.mxu0 %v8133
    %11252 = vmatprep.subr.bf16.mxu0 %v8118
    %11253 = vmatpush2.bf16.msra.mxu0 %v8117
    %11254 = vmatprep.subr.bf16.mxu0 %v8102
    %11255 = vmatpush2.bf16.msra.mxu0 %v8101
    %11256 = vmatprep.subr.bf16.mxu0 %v8086
    %11257 = vmatpush2.bf16.msra.mxu0 %v8085
    %11258 = vmatprep.subr.bf16.mxu0 %v8070
    %11259 = vmatpush2.bf16.msra.mxu0 %v8069
    %11260 = vmatprep.subr.bf16.mxu0 %v8054
    %11261 = vmatpush2.bf16.msra.mxu0 %v8053
    %11262 = vmatprep.subr.bf16.mxu0 %v8038
    %11263 = vmatpush2.bf16.msra.mxu0 %v8037
    %11264 = vmatprep.mubr.bf16.mxu0 %v1871
    %11265 = vmatmul.mubr.bf16.gmra.mxu0 %v1857
    %v11266 = vpop.f32.mrf.mxu0
    %v11267 = vadd.f32 %v11226, %v11266
    %v11268 = vpop.f32.mrf.mxu0
    %v11269 = vadd.f32 %v11228, %v11268
    %v11270 = vpop.f32.mrf.mxu0
    %v11271 = vpop.f32.mrf.mxu0
    %11272 = vdwg.mxu0
    %11273 = vmatprep.subr.bf16.mxu0 %v8278
    %11274 = vmatpush1.bf16.msra.mxu0 %v8277
    %11275 = vmatprep.subr.bf16.mxu0 %v8262
    %11276 = vmatpush1.bf16.msra.mxu0 %v8261
    %11277 = vmatprep.subr.bf16.mxu0 %v8246
    %11278 = vmatpush1.bf16.msra.mxu0 %v8245
    %11279 = vmatprep.subr.bf16.mxu0 %v8230
    %11280 = vmatpush1.bf16.msra.mxu0 %v8229
    %11281 = vmatprep.subr.bf16.mxu0 %v8214
    %11282 = vmatpush1.bf16.msra.mxu0 %v8213
    %11283 = vmatprep.subr.bf16.mxu0 %v8198
    %11284 = vmatpush1.bf16.msra.mxu0 %v8197
    %11285 = vmatprep.subr.bf16.mxu0 %v8182
    %11286 = vmatpush1.bf16.msra.mxu0 %v8181
    %11287 = vmatprep.subr.bf16.mxu0 %v8166
    %11288 = vmatpush1.bf16.msra.mxu0 %v8165
    %11289 = vmatprep.subr.bf16.mxu0 %v8406
    %11290 = vmatpush2.bf16.msra.mxu0 %v8405
    %11291 = vmatprep.subr.bf16.mxu0 %v8390
    %11292 = vmatpush2.bf16.msra.mxu0 %v8389
    %11293 = vmatprep.subr.bf16.mxu0 %v8374
    %11294 = vmatpush2.bf16.msra.mxu0 %v8373
    %11295 = vmatprep.subr.bf16.mxu0 %v8358
    %11296 = vmatpush2.bf16.msra.mxu0 %v8357
    %11297 = vmatprep.subr.bf16.mxu0 %v8342
    %11298 = vmatpush2.bf16.msra.mxu0 %v8341
    %11299 = vmatprep.subr.bf16.mxu0 %v8326
    %11300 = vmatpush2.bf16.msra.mxu0 %v8325
    %11301 = vmatprep.subr.bf16.mxu0 %v8310
    %11302 = vmatpush2.bf16.msra.mxu0 %v8309
    %11303 = vmatprep.subr.bf16.mxu0 %v8294
    %11304 = vmatpush2.bf16.msra.mxu0 %v8293
    %11305 = vmatprep.mubr.bf16.mxu0 %v1873
    %11306 = vmatmul.mubr.bf16.gmra.mxu0 %v1872
    %v11307 = vpop.f32.mrf.mxu0
    %v11308 = vadd.f32 %v11267, %v11307
    %v11309 = vpop.f32.mrf.mxu0
    %v11310 = vadd.f32 %v11269, %v11309
    %v11311 = vpop.f32.mrf.mxu0
    %v11312 = vpop.f32.mrf.mxu0
    %11313 = vdwg.mxu0
    %11314 = vmatprep.subr.bf16.mxu0 %v8534
    %11315 = vmatpush1.bf16.msra.mxu0 %v8533
    %11316 = vmatprep.subr.bf16.mxu0 %v8518
    %11317 = vmatpush1.bf16.msra.mxu0 %v8517
    %11318 = vmatprep.subr.bf16.mxu0 %v8502
    %11319 = vmatpush1.bf16.msra.mxu0 %v8501
    %11320 = vmatprep.subr.bf16.mxu0 %v8486
    %11321 = vmatpush1.bf16.msra.mxu0 %v8485
    %11322 = vmatprep.subr.bf16.mxu0 %v8470
    %11323 = vmatpush1.bf16.msra.mxu0 %v8469
    %11324 = vmatprep.subr.bf16.mxu0 %v8454
    %11325 = vmatpush1.bf16.msra.mxu0 %v8453
    %11326 = vmatprep.subr.bf16.mxu0 %v8438
    %11327 = vmatpush1.bf16.msra.mxu0 %v8437
    %11328 = vmatprep.subr.bf16.mxu0 %v8422
    %11329 = vmatpush1.bf16.msra.mxu0 %v8421
    %11330 = vmatprep.subr.bf16.mxu0 0
    %11331 = vmatpush2.bf16.msra.mxu0 0
    %11332 = vmatprep.subr.bf16.mxu0 0
    %11333 = vmatpush2.bf16.msra.mxu0 0
    %11334 = vmatprep.subr.bf16.mxu0 0
    %11335 = vmatpush2.bf16.msra.mxu0 0
    %11336 = vmatprep.subr.bf16.mxu0 0
    %11337 = vmatpush2.bf16.msra.mxu0 0
    %11338 = vmatprep.subr.bf16.mxu0 0
    %11339 = vmatpush2.bf16.msra.mxu0 0
    %11340 = vmatprep.subr.bf16.mxu0 0
    %11341 = vmatpush2.bf16.msra.mxu0 0
    %11342 = vmatprep.subr.bf16.mxu0 0
    %11343 = vmatpush2.bf16.msra.mxu0 0
    %11344 = vmatprep.subr.bf16.mxu0 0
    %11345 = vmatpush2.bf16.msra.mxu0 0
    %11346 = vmatprep.mubr.bf16.mxu0 0
    %11347 = vmatmul.mubr.bf16.gmra.mxu0 %v1864
    %v11348 = vpop.f32.mrf.mxu0
    %v11349 = vadd.f32 %v11308, %v11348
    %v11350 = vpop.f32.mrf.mxu0
    %v11351 = vadd.f32 %v11310, %v11350
    %v11352 = vpop.f32.mrf.mxu0
    %v11353 = vpop.f32.mrf.mxu0
    %11354 = vdwg.mxu0
    %11355 = vmatprep.subr.bf16.mxu0 %v7000
    %11356 = vmatpush1.bf16.msra.mxu0 %v6999
    %11357 = vmatprep.subr.bf16.mxu0 %v6984
    %11358 = vmatpush1.bf16.msra.mxu0 %v6983
    %11359 = vmatprep.subr.bf16.mxu0 %v6968
    %11360 = vmatpush1.bf16.msra.mxu0 %v6967
    %11361 = vmatprep.subr.bf16.mxu0 %v6952
    %11362 = vmatpush1.bf16.msra.mxu0 %v6951
    %11363 = vmatprep.subr.bf16.mxu0 %v6936
    %11364 = vmatpush1.bf16.msra.mxu0 %v6935
    %11365 = vmatprep.subr.bf16.mxu0 %v6920
    %11366 = vmatpush1.bf16.msra.mxu0 %v6919
    %11367 = vmatprep.subr.bf16.mxu0 %v6904
    %11368 = vmatpush1.bf16.msra.mxu0 %v6903
    %11369 = vmatprep.subr.bf16.mxu0 %v6888
    %11370 = vmatpush1.bf16.msra.mxu0 %v6887
    %11371 = vmatprep.subr.bf16.mxu0 %v7128
    %11372 = vmatpush2.bf16.msra.mxu0 %v7127
    %11373 = vmatprep.subr.bf16.mxu0 %v7112
    %11374 = vmatpush2.bf16.msra.mxu0 %v7111
    %11375 = vmatprep.subr.bf16.mxu0 %v7096
    %11376 = vmatpush2.bf16.msra.mxu0 %v7095
    %11377 = vmatprep.subr.bf16.mxu0 %v7080
    %11378 = vmatpush2.bf16.msra.mxu0 %v7079
    %11379 = vmatprep.subr.bf16.mxu0 %v7064
    %11380 = vmatpush2.bf16.msra.mxu0 %v7063
    %11381 = vmatprep.subr.bf16.mxu0 %v7048
    %11382 = vmatpush2.bf16.msra.mxu0 %v7047
    %11383 = vmatprep.subr.bf16.mxu0 %v7032
    %11384 = vmatpush2.bf16.msra.mxu0 %v7031
    %11385 = vmatprep.subr.bf16.mxu0 %v7016
    %11386 = vmatpush2.bf16.msra.mxu0 %v7015
    %11387 = vmatprep.mubr.bf16.mxu0 %v1823
    %11388 = vmatmul.mubr.bf16.gmra.mxu0 %v1809
    %v11389 = vpop.f32.mrf.mxu0
    %v11390 = vadd.f32 %v1739, %v11389
    %v11391 = vpop.f32.mrf.mxu0
    %v11392 = vadd.f32 %v1743, %v11391
    %v11393 = vpop.f32.mrf.mxu0
    %v11394 = vpop.f32.mrf.mxu0
    %11395 = vdwg.mxu0
    %11396 = vmatprep.subr.bf16.mxu0 %v7256
    %11397 = vmatpush1.bf16.msra.mxu0 %v7255
    %11398 = vmatprep.subr.bf16.mxu0 %v7240
    %11399 = vmatpush1.bf16.msra.mxu0 %v7239
    %11400 = vmatprep.subr.bf16.mxu0 %v7224
    %11401 = vmatpush1.bf16.msra.mxu0 %v7223
    %11402 = vmatprep.subr.bf16.mxu0 %v7208
    %11403 = vmatpush1.bf16.msra.mxu0 %v7207
    %11404 = vmatprep.subr.bf16.mxu0 %v7192
    %11405 = vmatpush1.bf16.msra.mxu0 %v7191
    %11406 = vmatprep.subr.bf16.mxu0 %v7176
    %11407 = vmatpush1.bf16.msra.mxu0 %v7175
    %11408 = vmatprep.subr.bf16.mxu0 %v7160
    %11409 = vmatpush1.bf16.msra.mxu0 %v7159
    %11410 = vmatprep.subr.bf16.mxu0 %v7144
    %11411 = vmatpush1.bf16.msra.mxu0 %v7143
    %11412 = vmatprep.subr.bf16.mxu0 %v7384
    %11413 = vmatpush2.bf16.msra.mxu0 %v7383
    %11414 = vmatprep.subr.bf16.mxu0 %v7368
    %11415 = vmatpush2.bf16.msra.mxu0 %v7367
    %11416 = vmatprep.subr.bf16.mxu0 %v7352
    %11417 = vmatpush2.bf16.msra.mxu0 %v7351
    %11418 = vmatprep.subr.bf16.mxu0 %v7336
    %11419 = vmatpush2.bf16.msra.mxu0 %v7335
    %11420 = vmatprep.subr.bf16.mxu0 %v7320
    %11421 = vmatpush2.bf16.msra.mxu0 %v7319
    %11422 = vmatprep.subr.bf16.mxu0 %v7304
    %11423 = vmatpush2.bf16.msra.mxu0 %v7303
    %11424 = vmatprep.subr.bf16.mxu0 %v7288
    %11425 = vmatpush2.bf16.msra.mxu0 %v7287
    %11426 = vmatprep.subr.bf16.mxu0 %v7272
    %11427 = vmatpush2.bf16.msra.mxu0 %v7271
    %11428 = vmatprep.mubr.bf16.mxu0 %v1833
    %11429 = vmatmul.mubr.bf16.gmra.mxu0 %v1831
    %v11430 = vpop.f32.mrf.mxu0
    %v11431 = vadd.f32 %v11390, %v11430
    %v11432 = vpop.f32.mrf.mxu0
    %v11433 = vadd.f32 %v11392, %v11432
    %v11434 = vpop.f32.mrf.mxu0
    %v11435 = vpop.f32.mrf.mxu0
    %11436 = vdwg.mxu0
    %11437 = vmatprep.subr.bf16.mxu0 %v7512
    %11438 = vmatpush1.bf16.msra.mxu0 %v7511
    %11439 = vmatprep.subr.bf16.mxu0 %v7496
    %11440 = vmatpush1.bf16.msra.mxu0 %v7495
    %11441 = vmatprep.subr.bf16.mxu0 %v7480
    %11442 = vmatpush1.bf16.msra.mxu0 %v7479
    %11443 = vmatprep.subr.bf16.mxu0 %v7464
    %11444 = vmatpush1.bf16.msra.mxu0 %v7463
    %11445 = vmatprep.subr.bf16.mxu0 %v7448
    %11446 = vmatpush1.bf16.msra.mxu0 %v7447
    %11447 = vmatprep.subr.bf16.mxu0 %v7432
    %11448 = vmatpush1.bf16.msra.mxu0 %v7431
    %11449 = vmatprep.subr.bf16.mxu0 %v7416
    %11450 = vmatpush1.bf16.msra.mxu0 %v7415
    %11451 = vmatprep.subr.bf16.mxu0 %v7400
    %11452 = vmatpush1.bf16.msra.mxu0 %v7399
    %11453 = vmatprep.subr.bf16.mxu0 %v7640
    %11454 = vmatpush2.bf16.msra.mxu0 %v7639
    %11455 = vmatprep.subr.bf16.mxu0 %v7624
    %11456 = vmatpush2.bf16.msra.mxu0 %v7623
    %11457 = vmatprep.subr.bf16.mxu0 %v7608
    %11458 = vmatpush2.bf16.msra.mxu0 %v7607
    %11459 = vmatprep.subr.bf16.mxu0 %v7592
    %11460 = vmatpush2.bf16.msra.mxu0 %v7591
    %11461 = vmatprep.subr.bf16.mxu0 %v7576
    %11462 = vmatpush2.bf16.msra.mxu0 %v7575
    %11463 = vmatprep.subr.bf16.mxu0 %v7560
    %11464 = vmatpush2.bf16.msra.mxu0 %v7559
    %11465 = vmatprep.subr.bf16.mxu0 %v7544
    %11466 = vmatpush2.bf16.msra.mxu0 %v7543
    %11467 = vmatprep.subr.bf16.mxu0 %v7528
    %11468 = vmatpush2.bf16.msra.mxu0 %v7527
    %11469 = vmatprep.mubr.bf16.mxu0 %v1830
    %11470 = vmatmul.mubr.bf16.gmra.mxu0 %v1816
    %v11471 = vpop.f32.mrf.mxu0
    %v11472 = vadd.f32 %v11431, %v11471
    %v11473 = vpop.f32.mrf.mxu0
    %v11474 = vadd.f32 %v11433, %v11473
    %v11475 = vpop.f32.mrf.mxu0
    %v11476 = vpop.f32.mrf.mxu0
    %11477 = vdwg.mxu0
    %11478 = vmatprep.subr.bf16.mxu0 %v7768
    %11479 = vmatpush1.bf16.msra.mxu0 %v7767
    %11480 = vmatprep.subr.bf16.mxu0 %v7752
    %11481 = vmatpush1.bf16.msra.mxu0 %v7751
    %11482 = vmatprep.subr.bf16.mxu0 %v7736
    %11483 = vmatpush1.bf16.msra.mxu0 %v7735
    %11484 = vmatprep.subr.bf16.mxu0 %v7720
    %11485 = vmatpush1.bf16.msra.mxu0 %v7719
    %11486 = vmatprep.subr.bf16.mxu0 %v7704
    %11487 = vmatpush1.bf16.msra.mxu0 %v7703
    %11488 = vmatprep.subr.bf16.mxu0 %v7688
    %11489 = vmatpush1.bf16.msra.mxu0 %v7687
    %11490 = vmatprep.subr.bf16.mxu0 %v7672
    %11491 = vmatpush1.bf16.msra.mxu0 %v7671
    %11492 = vmatprep.subr.bf16.mxu0 %v7656
    %11493 = vmatpush1.bf16.msra.mxu0 %v7655
    %11494 = vmatprep.subr.bf16.mxu0 %v7896
    %11495 = vmatpush2.bf16.msra.mxu0 %v7895
    %11496 = vmatprep.subr.bf16.mxu0 %v7880
    %11497 = vmatpush2.bf16.msra.mxu0 %v7879
    %11498 = vmatprep.subr.bf16.mxu0 %v7864
    %11499 = vmatpush2.bf16.msra.mxu0 %v7863
    %11500 = vmatprep.subr.bf16.mxu0 %v7848
    %11501 = vmatpush2.bf16.msra.mxu0 %v7847
    %11502 = vmatprep.subr.bf16.mxu0 %v7832
    %11503 = vmatpush2.bf16.msra.mxu0 %v7831
    %11504 = vmatprep.subr.bf16.mxu0 %v7816
    %11505 = vmatpush2.bf16.msra.mxu0 %v7815
    %11506 = vmatprep.subr.bf16.mxu0 %v7800
    %11507 = vmatpush2.bf16.msra.mxu0 %v7799
    %11508 = vmatprep.subr.bf16.mxu0 %v7784
    %11509 = vmatpush2.bf16.msra.mxu0 %v7783
    %11510 = vmatprep.mubr.bf16.mxu0 %v1834
    %11511 = vmatmul.mubr.bf16.gmra.mxu0 %v1832
    %v11512 = vpop.f32.mrf.mxu0
    %v11513 = vadd.f32 %v11472, %v11512
    %v11514 = vpop.f32.mrf.mxu0
    %v11515 = vadd.f32 %v11474, %v11514
    %v11516 = vpop.f32.mrf.mxu0
    %v11517 = vpop.f32.mrf.mxu0
    %11518 = vdwg.mxu0
    %11519 = vmatprep.subr.bf16.mxu0 %v8024
    %11520 = vmatpush1.bf16.msra.mxu0 %v8023
    %11521 = vmatprep.subr.bf16.mxu0 %v8008
    %11522 = vmatpush1.bf16.msra.mxu0 %v8007
    %11523 = vmatprep.subr.bf16.mxu0 %v7992
    %11524 = vmatpush1.bf16.msra.mxu0 %v7991
    %11525 = vmatprep.subr.bf16.mxu0 %v7976
    %11526 = vmatpush1.bf16.msra.mxu0 %v7975
    %11527 = vmatprep.subr.bf16.mxu0 %v7960
    %11528 = vmatpush1.bf16.msra.mxu0 %v7959
    %11529 = vmatprep.subr.bf16.mxu0 %v7944
    %11530 = vmatpush1.bf16.msra.mxu0 %v7943
    %11531 = vmatprep.subr.bf16.mxu0 %v7928
    %11532 = vmatpush1.bf16.msra.mxu0 %v7927
    %11533 = vmatprep.subr.bf16.mxu0 %v7912
    %11534 = vmatpush1.bf16.msra.mxu0 %v7911
    %11535 = vmatprep.subr.bf16.mxu0 %v8152
    %11536 = vmatpush2.bf16.msra.mxu0 %v8151
    %11537 = vmatprep.subr.bf16.mxu0 %v8136
    %11538 = vmatpush2.bf16.msra.mxu0 %v8135
    %11539 = vmatprep.subr.bf16.mxu0 %v8120
    %11540 = vmatpush2.bf16.msra.mxu0 %v8119
    %11541 = vmatprep.subr.bf16.mxu0 %v8104
    %11542 = vmatpush2.bf16.msra.mxu0 %v8103
    %11543 = vmatprep.subr.bf16.mxu0 %v8088
    %11544 = vmatpush2.bf16.msra.mxu0 %v8087
    %11545 = vmatprep.subr.bf16.mxu0 %v8072
    %11546 = vmatpush2.bf16.msra.mxu0 %v8071
    %11547 = vmatprep.subr.bf16.mxu0 %v8056
    %11548 = vmatpush2.bf16.msra.mxu0 %v8055
    %11549 = vmatprep.subr.bf16.mxu0 %v8040
    %11550 = vmatpush2.bf16.msra.mxu0 %v8039
    %11551 = vmatprep.mubr.bf16.mxu0 %v1871
    %11552 = vmatmul.mubr.bf16.gmra.mxu0 %v1857
    %v11553 = vpop.f32.mrf.mxu0
    %v11554 = vadd.f32 %v11513, %v11553
    %v11555 = vpop.f32.mrf.mxu0
    %v11556 = vadd.f32 %v11515, %v11555
    %v11557 = vpop.f32.mrf.mxu0
    %v11558 = vpop.f32.mrf.mxu0
    %11559 = vdwg.mxu0
    %11560 = vmatprep.subr.bf16.mxu0 %v8280
    %11561 = vmatpush1.bf16.msra.mxu0 %v8279
    %11562 = vmatprep.subr.bf16.mxu0 %v8264
    %11563 = vmatpush1.bf16.msra.mxu0 %v8263
    %11564 = vmatprep.subr.bf16.mxu0 %v8248
    %11565 = vmatpush1.bf16.msra.mxu0 %v8247
    %11566 = vmatprep.subr.bf16.mxu0 %v8232
    %11567 = vmatpush1.bf16.msra.mxu0 %v8231
    %11568 = vmatprep.subr.bf16.mxu0 %v8216
    %11569 = vmatpush1.bf16.msra.mxu0 %v8215
    %11570 = vmatprep.subr.bf16.mxu0 %v8200
    %11571 = vmatpush1.bf16.msra.mxu0 %v8199
    %11572 = vmatprep.subr.bf16.mxu0 %v8184
    %11573 = vmatpush1.bf16.msra.mxu0 %v8183
    %11574 = vmatprep.subr.bf16.mxu0 %v8168
    %11575 = vmatpush1.bf16.msra.mxu0 %v8167
    %11576 = vmatprep.subr.bf16.mxu0 %v8408
    %11577 = vmatpush2.bf16.msra.mxu0 %v8407
    %11578 = vmatprep.subr.bf16.mxu0 %v8392
    %11579 = vmatpush2.bf16.msra.mxu0 %v8391
    %11580 = vmatprep.subr.bf16.mxu0 %v8376
    %11581 = vmatpush2.bf16.msra.mxu0 %v8375
    %11582 = vmatprep.subr.bf16.mxu0 %v8360
    %11583 = vmatpush2.bf16.msra.mxu0 %v8359
    %11584 = vmatprep.subr.bf16.mxu0 %v8344
    %11585 = vmatpush2.bf16.msra.mxu0 %v8343
    %11586 = vmatprep.subr.bf16.mxu0 %v8328
    %11587 = vmatpush2.bf16.msra.mxu0 %v8327
    %11588 = vmatprep.subr.bf16.mxu0 %v8312
    %11589 = vmatpush2.bf16.msra.mxu0 %v8311
    %11590 = vmatprep.subr.bf16.mxu0 %v8296
    %11591 = vmatpush2.bf16.msra.mxu0 %v8295
    %11592 = vmatprep.mubr.bf16.mxu0 %v1873
    %11593 = vmatmul.mubr.bf16.gmra.mxu0 %v1872
    %v11594 = vpop.f32.mrf.mxu0
    %v11595 = vadd.f32 %v11554, %v11594
    %v11596 = vpop.f32.mrf.mxu0
    %v11597 = vadd.f32 %v11556, %v11596
    %v11598 = vpop.f32.mrf.mxu0
    %v11599 = vpop.f32.mrf.mxu0
    %11600 = vdwg.mxu0
    %11601 = vmatprep.subr.bf16.mxu0 %v8536
    %11602 = vmatpush1.bf16.msra.mxu0 %v8535
    %11603 = vmatprep.subr.bf16.mxu0 %v8520
    %11604 = vmatpush1.bf16.msra.mxu0 %v8519
    %11605 = vmatprep.subr.bf16.mxu0 %v8504
    %11606 = vmatpush1.bf16.msra.mxu0 %v8503
    %11607 = vmatprep.subr.bf16.mxu0 %v8488
    %11608 = vmatpush1.bf16.msra.mxu0 %v8487
    %11609 = vmatprep.subr.bf16.mxu0 %v8472
    %11610 = vmatpush1.bf16.msra.mxu0 %v8471
    %11611 = vmatprep.subr.bf16.mxu0 %v8456
    %11612 = vmatpush1.bf16.msra.mxu0 %v8455
    %11613 = vmatprep.subr.bf16.mxu0 %v8440
    %11614 = vmatpush1.bf16.msra.mxu0 %v8439
    %11615 = vmatprep.subr.bf16.mxu0 %v8424
    %11616 = vmatpush1.bf16.msra.mxu0 %v8423
    %11617 = vmatprep.subr.bf16.mxu0 0
    %11618 = vmatpush2.bf16.msra.mxu0 0
    %11619 = vmatprep.subr.bf16.mxu0 0
    %11620 = vmatpush2.bf16.msra.mxu0 0
    %11621 = vmatprep.subr.bf16.mxu0 0
    %11622 = vmatpush2.bf16.msra.mxu0 0
    %11623 = vmatprep.subr.bf16.mxu0 0
    %11624 = vmatpush2.bf16.msra.mxu0 0
    %11625 = vmatprep.subr.bf16.mxu0 0
    %11626 = vmatpush2.bf16.msra.mxu0 0
    %11627 = vmatprep.subr.bf16.mxu0 0
    %11628 = vmatpush2.bf16.msra.mxu0 0
    %11629 = vmatprep.subr.bf16.mxu0 0
    %11630 = vmatpush2.bf16.msra.mxu0 0
    %11631 = vmatprep.subr.bf16.mxu0 0
    %11632 = vmatpush2.bf16.msra.mxu0 0
    %11633 = vmatprep.mubr.bf16.mxu0 0
    %11634 = vmatmul.mubr.bf16.gmra.mxu0 %v1864
    %v11635 = vpop.f32.mrf.mxu0
    %v11636 = vadd.f32 %v11595, %v11635
    %v11637 = vpop.f32.mrf.mxu0
    %v11638 = vadd.f32 %v11597, %v11637
    %v11639 = vpop.f32.mrf.mxu0
    %v11640 = vpop.f32.mrf.mxu0
    %11641 = vdwg.mxu0
    %11642 = vmatprep.subr.bf16.mxu0 %v7002
    %11643 = vmatpush1.bf16.msra.mxu0 %v7001
    %11644 = vmatprep.subr.bf16.mxu0 %v6986
    %11645 = vmatpush1.bf16.msra.mxu0 %v6985
    %11646 = vmatprep.subr.bf16.mxu0 %v6970
    %11647 = vmatpush1.bf16.msra.mxu0 %v6969
    %11648 = vmatprep.subr.bf16.mxu0 %v6954
    %11649 = vmatpush1.bf16.msra.mxu0 %v6953
    %11650 = vmatprep.subr.bf16.mxu0 %v6938
    %11651 = vmatpush1.bf16.msra.mxu0 %v6937
    %11652 = vmatprep.subr.bf16.mxu0 %v6922
    %11653 = vmatpush1.bf16.msra.mxu0 %v6921
    %11654 = vmatprep.subr.bf16.mxu0 %v6906
    %11655 = vmatpush1.bf16.msra.mxu0 %v6905
    %11656 = vmatprep.subr.bf16.mxu0 %v6890
    %11657 = vmatpush1.bf16.msra.mxu0 %v6889
    %11658 = vmatprep.subr.bf16.mxu0 %v7130
    %11659 = vmatpush2.bf16.msra.mxu0 %v7129
    %11660 = vmatprep.subr.bf16.mxu0 %v7114
    %11661 = vmatpush2.bf16.msra.mxu0 %v7113
    %11662 = vmatprep.subr.bf16.mxu0 %v7098
    %11663 = vmatpush2.bf16.msra.mxu0 %v7097
    %11664 = vmatprep.subr.bf16.mxu0 %v7082
    %11665 = vmatpush2.bf16.msra.mxu0 %v7081
    %11666 = vmatprep.subr.bf16.mxu0 %v7066
    %11667 = vmatpush2.bf16.msra.mxu0 %v7065
    %11668 = vmatprep.subr.bf16.mxu0 %v7050
    %11669 = vmatpush2.bf16.msra.mxu0 %v7049
    %11670 = vmatprep.subr.bf16.mxu0 %v7034
    %11671 = vmatpush2.bf16.msra.mxu0 %v7033
    %11672 = vmatprep.subr.bf16.mxu0 %v7018
    %11673 = vmatpush2.bf16.msra.mxu0 %v7017
    %11674 = vmatprep.mubr.bf16.mxu0 %v1823
    %11675 = vmatmul.mubr.bf16.gmra.mxu0 %v1809
    %v11676 = vpop.f32.mrf.mxu0
    %v11677 = vadd.f32 %v1747, %v11676
    %v11678 = vpop.f32.mrf.mxu0
    %v11679 = vadd.f32 %v1751, %v11678
    %v11680 = vpop.f32.mrf.mxu0
    %v11681 = vpop.f32.mrf.mxu0
    %11682 = vdwg.mxu0
    %11683 = vmatprep.subr.bf16.mxu0 %v7258
    %11684 = vmatpush1.bf16.msra.mxu0 %v7257
    %11685 = vmatprep.subr.bf16.mxu0 %v7242
    %11686 = vmatpush1.bf16.msra.mxu0 %v7241
    %11687 = vmatprep.subr.bf16.mxu0 %v7226
    %11688 = vmatpush1.bf16.msra.mxu0 %v7225
    %11689 = vmatprep.subr.bf16.mxu0 %v7210
    %11690 = vmatpush1.bf16.msra.mxu0 %v7209
    %11691 = vmatprep.subr.bf16.mxu0 %v7194
    %11692 = vmatpush1.bf16.msra.mxu0 %v7193
    %11693 = vmatprep.subr.bf16.mxu0 %v7178
    %11694 = vmatpush1.bf16.msra.mxu0 %v7177
    %11695 = vmatprep.subr.bf16.mxu0 %v7162
    %11696 = vmatpush1.bf16.msra.mxu0 %v7161
    %11697 = vmatprep.subr.bf16.mxu0 %v7146
    %11698 = vmatpush1.bf16.msra.mxu0 %v7145
    %11699 = vmatprep.subr.bf16.mxu0 %v7386
    %11700 = vmatpush2.bf16.msra.mxu0 %v7385
    %11701 = vmatprep.subr.bf16.mxu0 %v7370
    %11702 = vmatpush2.bf16.msra.mxu0 %v7369
    %11703 = vmatprep.subr.bf16.mxu0 %v7354
    %11704 = vmatpush2.bf16.msra.mxu0 %v7353
    %11705 = vmatprep.subr.bf16.mxu0 %v7338
    %11706 = vmatpush2.bf16.msra.mxu0 %v7337
    %11707 = vmatprep.subr.bf16.mxu0 %v7322
    %11708 = vmatpush2.bf16.msra.mxu0 %v7321
    %11709 = vmatprep.subr.bf16.mxu0 %v7306
    %11710 = vmatpush2.bf16.msra.mxu0 %v7305
    %11711 = vmatprep.subr.bf16.mxu0 %v7290
    %11712 = vmatpush2.bf16.msra.mxu0 %v7289
    %11713 = vmatprep.subr.bf16.mxu0 %v7274
    %11714 = vmatpush2.bf16.msra.mxu0 %v7273
    %11715 = vmatprep.mubr.bf16.mxu0 %v1833
    %11716 = vmatmul.mubr.bf16.gmra.mxu0 %v1831
    %v11717 = vpop.f32.mrf.mxu0
    %v11718 = vadd.f32 %v11677, %v11717
    %v11719 = vpop.f32.mrf.mxu0
    %v11720 = vadd.f32 %v11679, %v11719
    %v11721 = vpop.f32.mrf.mxu0
    %v11722 = vpop.f32.mrf.mxu0
    %11723 = vdwg.mxu0
    %11724 = vmatprep.subr.bf16.mxu0 %v7514
    %11725 = vmatpush1.bf16.msra.mxu0 %v7513
    %11726 = vmatprep.subr.bf16.mxu0 %v7498
    %11727 = vmatpush1.bf16.msra.mxu0 %v7497
    %11728 = vmatprep.subr.bf16.mxu0 %v7482
    %11729 = vmatpush1.bf16.msra.mxu0 %v7481
    %11730 = vmatprep.subr.bf16.mxu0 %v7466
    %11731 = vmatpush1.bf16.msra.mxu0 %v7465
    %11732 = vmatprep.subr.bf16.mxu0 %v7450
    %11733 = vmatpush1.bf16.msra.mxu0 %v7449
    %11734 = vmatprep.subr.bf16.mxu0 %v7434
    %11735 = vmatpush1.bf16.msra.mxu0 %v7433
    %11736 = vmatprep.subr.bf16.mxu0 %v7418
    %11737 = vmatpush1.bf16.msra.mxu0 %v7417
    %11738 = vmatprep.subr.bf16.mxu0 %v7402
    %11739 = vmatpush1.bf16.msra.mxu0 %v7401
    %11740 = vmatprep.subr.bf16.mxu0 %v7642
    %11741 = vmatpush2.bf16.msra.mxu0 %v7641
    %11742 = vmatprep.subr.bf16.mxu0 %v7626
    %11743 = vmatpush2.bf16.msra.mxu0 %v7625
    %11744 = vmatprep.subr.bf16.mxu0 %v7610
    %11745 = vmatpush2.bf16.msra.mxu0 %v7609
    %11746 = vmatprep.subr.bf16.mxu0 %v7594
    %11747 = vmatpush2.bf16.msra.mxu0 %v7593
    %11748 = vmatprep.subr.bf16.mxu0 %v7578
    %11749 = vmatpush2.bf16.msra.mxu0 %v7577
    %11750 = vmatprep.subr.bf16.mxu0 %v7562
    %11751 = vmatpush2.bf16.msra.mxu0 %v7561
    %11752 = vmatprep.subr.bf16.mxu0 %v7546
    %11753 = vmatpush2.bf16.msra.mxu0 %v7545
    %11754 = vmatprep.subr.bf16.mxu0 %v7530
    %11755 = vmatpush2.bf16.msra.mxu0 %v7529
    %11756 = vmatprep.mubr.bf16.mxu0 %v1830
    %11757 = vmatmul.mubr.bf16.gmra.mxu0 %v1816
    %v11758 = vpop.f32.mrf.mxu0
    %v11759 = vadd.f32 %v11718, %v11758
    %v11760 = vpop.f32.mrf.mxu0
    %v11761 = vadd.f32 %v11720, %v11760
    %v11762 = vpop.f32.mrf.mxu0
    %v11763 = vpop.f32.mrf.mxu0
    %11764 = vdwg.mxu0
    %11765 = vmatprep.subr.bf16.mxu0 %v7770
    %11766 = vmatpush1.bf16.msra.mxu0 %v7769
    %11767 = vmatprep.subr.bf16.mxu0 %v7754
    %11768 = vmatpush1.bf16.msra.mxu0 %v7753
    %11769 = vmatprep.subr.bf16.mxu0 %v7738
    %11770 = vmatpush1.bf16.msra.mxu0 %v7737
    %11771 = vmatprep.subr.bf16.mxu0 %v7722
    %11772 = vmatpush1.bf16.msra.mxu0 %v7721
    %11773 = vmatprep.subr.bf16.mxu0 %v7706
    %11774 = vmatpush1.bf16.msra.mxu0 %v7705
    %11775 = vmatprep.subr.bf16.mxu0 %v7690
    %11776 = vmatpush1.bf16.msra.mxu0 %v7689
    %11777 = vmatprep.subr.bf16.mxu0 %v7674
    %11778 = vmatpush1.bf16.msra.mxu0 %v7673
    %11779 = vmatprep.subr.bf16.mxu0 %v7658
    %11780 = vmatpush1.bf16.msra.mxu0 %v7657
    %11781 = vmatprep.subr.bf16.mxu0 %v7898
    %11782 = vmatpush2.bf16.msra.mxu0 %v7897
    %11783 = vmatprep.subr.bf16.mxu0 %v7882
    %11784 = vmatpush2.bf16.msra.mxu0 %v7881
    %11785 = vmatprep.subr.bf16.mxu0 %v7866
    %11786 = vmatpush2.bf16.msra.mxu0 %v7865
    %11787 = vmatprep.subr.bf16.mxu0 %v7850
    %11788 = vmatpush2.bf16.msra.mxu0 %v7849
    %11789 = vmatprep.subr.bf16.mxu0 %v7834
    %11790 = vmatpush2.bf16.msra.mxu0 %v7833
    %11791 = vmatprep.subr.bf16.mxu0 %v7818
    %11792 = vmatpush2.bf16.msra.mxu0 %v7817
    %11793 = vmatprep.subr.bf16.mxu0 %v7802
    %11794 = vmatpush2.bf16.msra.mxu0 %v7801
    %11795 = vmatprep.subr.bf16.mxu0 %v7786
    %11796 = vmatpush2.bf16.msra.mxu0 %v7785
    %11797 = vmatprep.mubr.bf16.mxu0 %v1834
    %11798 = vmatmul.mubr.bf16.gmra.mxu0 %v1832
    %v11799 = vpop.f32.mrf.mxu0
    %v11800 = vadd.f32 %v11759, %v11799
    %v11801 = vpop.f32.mrf.mxu0
    %v11802 = vadd.f32 %v11761, %v11801
    %v11803 = vpop.f32.mrf.mxu0
    %v11804 = vpop.f32.mrf.mxu0
    %11805 = vdwg.mxu0
    %11806 = vmatprep.subr.bf16.mxu0 %v8026
    %11807 = vmatpush1.bf16.msra.mxu0 %v8025
    %11808 = vmatprep.subr.bf16.mxu0 %v8010
    %11809 = vmatpush1.bf16.msra.mxu0 %v8009
    %11810 = vmatprep.subr.bf16.mxu0 %v7994
    %11811 = vmatpush1.bf16.msra.mxu0 %v7993
    %11812 = vmatprep.subr.bf16.mxu0 %v7978
    %11813 = vmatpush1.bf16.msra.mxu0 %v7977
    %11814 = vmatprep.subr.bf16.mxu0 %v7962
    %11815 = vmatpush1.bf16.msra.mxu0 %v7961
    %11816 = vmatprep.subr.bf16.mxu0 %v7946
    %11817 = vmatpush1.bf16.msra.mxu0 %v7945
    %11818 = vmatprep.subr.bf16.mxu0 %v7930
    %11819 = vmatpush1.bf16.msra.mxu0 %v7929
    %11820 = vmatprep.subr.bf16.mxu0 %v7914
    %11821 = vmatpush1.bf16.msra.mxu0 %v7913
    %11822 = vmatprep.subr.bf16.mxu0 %v8154
    %11823 = vmatpush2.bf16.msra.mxu0 %v8153
    %11824 = vmatprep.subr.bf16.mxu0 %v8138
    %11825 = vmatpush2.bf16.msra.mxu0 %v8137
    %11826 = vmatprep.subr.bf16.mxu0 %v8122
    %11827 = vmatpush2.bf16.msra.mxu0 %v8121
    %11828 = vmatprep.subr.bf16.mxu0 %v8106
    %11829 = vmatpush2.bf16.msra.mxu0 %v8105
    %11830 = vmatprep.subr.bf16.mxu0 %v8090
    %11831 = vmatpush2.bf16.msra.mxu0 %v8089
    %11832 = vmatprep.subr.bf16.mxu0 %v8074
    %11833 = vmatpush2.bf16.msra.mxu0 %v8073
    %11834 = vmatprep.subr.bf16.mxu0 %v8058
    %11835 = vmatpush2.bf16.msra.mxu0 %v8057
    %11836 = vmatprep.subr.bf16.mxu0 %v8042
    %11837 = vmatpush2.bf16.msra.mxu0 %v8041
    %11838 = vmatprep.mubr.bf16.mxu0 %v1871
    %11839 = vmatmul.mubr.bf16.gmra.mxu0 %v1857
    %v11840 = vpop.f32.mrf.mxu0
    %v11841 = vadd.f32 %v11800, %v11840
    %v11842 = vpop.f32.mrf.mxu0
    %v11843 = vadd.f32 %v11802, %v11842
    %v11844 = vpop.f32.mrf.mxu0
    %v11845 = vpop.f32.mrf.mxu0
    %11846 = vdwg.mxu0
    %11847 = vmatprep.subr.bf16.mxu0 %v8282
    %11848 = vmatpush1.bf16.msra.mxu0 %v8281
    %11849 = vmatprep.subr.bf16.mxu0 %v8266
    %11850 = vmatpush1.bf16.msra.mxu0 %v8265
    %11851 = vmatprep.subr.bf16.mxu0 %v8250
    %11852 = vmatpush1.bf16.msra.mxu0 %v8249
    %11853 = vmatprep.subr.bf16.mxu0 %v8234
    %11854 = vmatpush1.bf16.msra.mxu0 %v8233
    %11855 = vmatprep.subr.bf16.mxu0 %v8218
    %11856 = vmatpush1.bf16.msra.mxu0 %v8217
    %11857 = vmatprep.subr.bf16.mxu0 %v8202
    %11858 = vmatpush1.bf16.msra.mxu0 %v8201
    %11859 = vmatprep.subr.bf16.mxu0 %v8186
    %11860 = vmatpush1.bf16.msra.mxu0 %v8185
    %11861 = vmatprep.subr.bf16.mxu0 %v8170
    %11862 = vmatpush1.bf16.msra.mxu0 %v8169
    %11863 = vmatprep.subr.bf16.mxu0 %v8410
    %11864 = vmatpush2.bf16.msra.mxu0 %v8409
    %11865 = vmatprep.subr.bf16.mxu0 %v8394
    %11866 = vmatpush2.bf16.msra.mxu0 %v8393
    %11867 = vmatprep.subr.bf16.mxu0 %v8378
    %11868 = vmatpush2.bf16.msra.mxu0 %v8377
    %11869 = vmatprep.subr.bf16.mxu0 %v8362
    %11870 = vmatpush2.bf16.msra.mxu0 %v8361
    %11871 = vmatprep.subr.bf16.mxu0 %v8346
    %11872 = vmatpush2.bf16.msra.mxu0 %v8345
    %11873 = vmatprep.subr.bf16.mxu0 %v8330
    %11874 = vmatpush2.bf16.msra.mxu0 %v8329
    %11875 = vmatprep.subr.bf16.mxu0 %v8314
    %11876 = vmatpush2.bf16.msra.mxu0 %v8313
    %11877 = vmatprep.subr.bf16.mxu0 %v8298
    %11878 = vmatpush2.bf16.msra.mxu0 %v8297
    %11879 = vmatprep.mubr.bf16.mxu0 %v1873
    %11880 = vmatmul.mubr.bf16.gmra.mxu0 %v1872
    %v11881 = vpop.f32.mrf.mxu0
    %v11882 = vadd.f32 %v11841, %v11881
    %v11883 = vpop.f32.mrf.mxu0
    %v11884 = vadd.f32 %v11843, %v11883
    %v11885 = vpop.f32.mrf.mxu0
    %v11886 = vpop.f32.mrf.mxu0
    %11887 = vdwg.mxu0
    %11888 = vmatprep.subr.bf16.mxu0 %v8538
    %11889 = vmatpush1.bf16.msra.mxu0 %v8537
    %11890 = vmatprep.subr.bf16.mxu0 %v8522
    %11891 = vmatpush1.bf16.msra.mxu0 %v8521
    %11892 = vmatprep.subr.bf16.mxu0 %v8506
    %11893 = vmatpush1.bf16.msra.mxu0 %v8505
    %11894 = vmatprep.subr.bf16.mxu0 %v8490
    %11895 = vmatpush1.bf16.msra.mxu0 %v8489
    %11896 = vmatprep.subr.bf16.mxu0 %v8474
    %11897 = vmatpush1.bf16.msra.mxu0 %v8473
    %11898 = vmatprep.subr.bf16.mxu0 %v8458
    %11899 = vmatpush1.bf16.msra.mxu0 %v8457
    %11900 = vmatprep.subr.bf16.mxu0 %v8442
    %11901 = vmatpush1.bf16.msra.mxu0 %v8441
    %11902 = vmatprep.subr.bf16.mxu0 %v8426
    %11903 = vmatpush1.bf16.msra.mxu0 %v8425
    %11904 = vmatprep.subr.bf16.mxu0 0
    %11905 = vmatpush2.bf16.msra.mxu0 0
    %11906 = vmatprep.subr.bf16.mxu0 0
    %11907 = vmatpush2.bf16.msra.mxu0 0
    %11908 = vmatprep.subr.bf16.mxu0 0
    %11909 = vmatpush2.bf16.msra.mxu0 0
    %11910 = vmatprep.subr.bf16.mxu0 0
    %11911 = vmatpush2.bf16.msra.mxu0 0
    %11912 = vmatprep.subr.bf16.mxu0 0
    %11913 = vmatpush2.bf16.msra.mxu0 0
    %11914 = vmatprep.subr.bf16.mxu0 0
    %11915 = vmatpush2.bf16.msra.mxu0 0
    %11916 = vmatprep.subr.bf16.mxu0 0
    %11917 = vmatpush2.bf16.msra.mxu0 0
    %11918 = vmatprep.subr.bf16.mxu0 0
    %11919 = vmatpush2.bf16.msra.mxu0 0
    %11920 = vmatprep.mubr.bf16.mxu0 0
    %11921 = vmatmul.mubr.bf16.gmra.mxu0 %v1864
    %v11922 = vpop.f32.mrf.mxu0
    %v11923 = vadd.f32 %v11882, %v11922
    %v11924 = vpop.f32.mrf.mxu0
    %v11925 = vadd.f32 %v11884, %v11924
    %v11926 = vpop.f32.mrf.mxu0
    %v11927 = vpop.f32.mrf.mxu0
    %11928 = vdwg.mxu0
    %11929 = vmatprep.subr.bf16.mxu0 %v7004
    %11930 = vmatpush1.bf16.msra.mxu0 %v7003
    %11931 = vmatprep.subr.bf16.mxu0 %v6988
    %11932 = vmatpush1.bf16.msra.mxu0 %v6987
    %11933 = vmatprep.subr.bf16.mxu0 %v6972
    %11934 = vmatpush1.bf16.msra.mxu0 %v6971
    %11935 = vmatprep.subr.bf16.mxu0 %v6956
    %11936 = vmatpush1.bf16.msra.mxu0 %v6955
    %11937 = vmatprep.subr.bf16.mxu0 %v6940
    %11938 = vmatpush1.bf16.msra.mxu0 %v6939
    %11939 = vmatprep.subr.bf16.mxu0 %v6924
    %11940 = vmatpush1.bf16.msra.mxu0 %v6923
    %11941 = vmatprep.subr.bf16.mxu0 %v6908
    %11942 = vmatpush1.bf16.msra.mxu0 %v6907
    %11943 = vmatprep.subr.bf16.mxu0 %v6892
    %11944 = vmatpush1.bf16.msra.mxu0 %v6891
    %11945 = vmatprep.subr.bf16.mxu0 %v7132
    %11946 = vmatpush2.bf16.msra.mxu0 %v7131
    %11947 = vmatprep.subr.bf16.mxu0 %v7116
    %11948 = vmatpush2.bf16.msra.mxu0 %v7115
    %11949 = vmatprep.subr.bf16.mxu0 %v7100
    %11950 = vmatpush2.bf16.msra.mxu0 %v7099
    %11951 = vmatprep.subr.bf16.mxu0 %v7084
    %11952 = vmatpush2.bf16.msra.mxu0 %v7083
    %11953 = vmatprep.subr.bf16.mxu0 %v7068
    %11954 = vmatpush2.bf16.msra.mxu0 %v7067
    %11955 = vmatprep.subr.bf16.mxu0 %v7052
    %11956 = vmatpush2.bf16.msra.mxu0 %v7051
    %11957 = vmatprep.subr.bf16.mxu0 %v7036
    %11958 = vmatpush2.bf16.msra.mxu0 %v7035
    %11959 = vmatprep.subr.bf16.mxu0 %v7020
    %11960 = vmatpush2.bf16.msra.mxu0 %v7019
    %11961 = vmatprep.mubr.bf16.mxu0 %v1823
    %11962 = vmatmul.mubr.bf16.gmra.mxu0 %v1809
    %v11963 = vpop.f32.mrf.mxu0
    %v11964 = vadd.f32 %v1755, %v11963
    %v11965 = vpop.f32.mrf.mxu0
    %v11966 = vadd.f32 %v1759, %v11965
    %v11967 = vpop.f32.mrf.mxu0
    %v11968 = vpop.f32.mrf.mxu0
    %11969 = vdwg.mxu0
    %11970 = vmatprep.subr.bf16.mxu0 %v7260
    %11971 = vmatpush1.bf16.msra.mxu0 %v7259
    %11972 = vmatprep.subr.bf16.mxu0 %v7244
    %11973 = vmatpush1.bf16.msra.mxu0 %v7243
    %11974 = vmatprep.subr.bf16.mxu0 %v7228
    %11975 = vmatpush1.bf16.msra.mxu0 %v7227
    %11976 = vmatprep.subr.bf16.mxu0 %v7212
    %11977 = vmatpush1.bf16.msra.mxu0 %v7211
    %11978 = vmatprep.subr.bf16.mxu0 %v7196
    %11979 = vmatpush1.bf16.msra.mxu0 %v7195
    %11980 = vmatprep.subr.bf16.mxu0 %v7180
    %11981 = vmatpush1.bf16.msra.mxu0 %v7179
    %11982 = vmatprep.subr.bf16.mxu0 %v7164
    %11983 = vmatpush1.bf16.msra.mxu0 %v7163
    %11984 = vmatprep.subr.bf16.mxu0 %v7148
    %11985 = vmatpush1.bf16.msra.mxu0 %v7147
    %11986 = vmatprep.subr.bf16.mxu0 %v7388
    %11987 = vmatpush2.bf16.msra.mxu0 %v7387
    %11988 = vmatprep.subr.bf16.mxu0 %v7372
    %11989 = vmatpush2.bf16.msra.mxu0 %v7371
    %11990 = vmatprep.subr.bf16.mxu0 %v7356
    %11991 = vmatpush2.bf16.msra.mxu0 %v7355
    %11992 = vmatprep.subr.bf16.mxu0 %v7340
    %11993 = vmatpush2.bf16.msra.mxu0 %v7339
    %11994 = vmatprep.subr.bf16.mxu0 %v7324
    %11995 = vmatpush2.bf16.msra.mxu0 %v7323
    %11996 = vmatprep.subr.bf16.mxu0 %v7308
    %11997 = vmatpush2.bf16.msra.mxu0 %v7307
    %11998 = vmatprep.subr.bf16.mxu0 %v7292
    %11999 = vmatpush2.bf16.msra.mxu0 %v7291
    %12000 = vmatprep.subr.bf16.mxu0 %v7276
    %12001 = vmatpush2.bf16.msra.mxu0 %v7275
    %12002 = vmatprep.mubr.bf16.mxu0 %v1833
    %12003 = vmatmul.mubr.bf16.gmra.mxu0 %v1831
    %v12004 = vpop.f32.mrf.mxu0
    %v12005 = vadd.f32 %v11964, %v12004
    %v12006 = vpop.f32.mrf.mxu0
    %v12007 = vadd.f32 %v11966, %v12006
    %v12008 = vpop.f32.mrf.mxu0
    %v12009 = vpop.f32.mrf.mxu0
    %12010 = vdwg.mxu0
    %12011 = vmatprep.subr.bf16.mxu0 %v7516
    %12012 = vmatpush1.bf16.msra.mxu0 %v7515
    %12013 = vmatprep.subr.bf16.mxu0 %v7500
    %12014 = vmatpush1.bf16.msra.mxu0 %v7499
    %12015 = vmatprep.subr.bf16.mxu0 %v7484
    %12016 = vmatpush1.bf16.msra.mxu0 %v7483
    %12017 = vmatprep.subr.bf16.mxu0 %v7468
    %12018 = vmatpush1.bf16.msra.mxu0 %v7467
    %12019 = vmatprep.subr.bf16.mxu0 %v7452
    %12020 = vmatpush1.bf16.msra.mxu0 %v7451
    %12021 = vmatprep.subr.bf16.mxu0 %v7436
    %12022 = vmatpush1.bf16.msra.mxu0 %v7435
    %12023 = vmatprep.subr.bf16.mxu0 %v7420
    %12024 = vmatpush1.bf16.msra.mxu0 %v7419
    %12025 = vmatprep.subr.bf16.mxu0 %v7404
    %12026 = vmatpush1.bf16.msra.mxu0 %v7403
    %12027 = vmatprep.subr.bf16.mxu0 %v7644
    %12028 = vmatpush2.bf16.msra.mxu0 %v7643
    %12029 = vmatprep.subr.bf16.mxu0 %v7628
    %12030 = vmatpush2.bf16.msra.mxu0 %v7627
    %12031 = vmatprep.subr.bf16.mxu0 %v7612
    %12032 = vmatpush2.bf16.msra.mxu0 %v7611
    %12033 = vmatprep.subr.bf16.mxu0 %v7596
    %12034 = vmatpush2.bf16.msra.mxu0 %v7595
    %12035 = vmatprep.subr.bf16.mxu0 %v7580
    %12036 = vmatpush2.bf16.msra.mxu0 %v7579
    %12037 = vmatprep.subr.bf16.mxu0 %v7564
    %12038 = vmatpush2.bf16.msra.mxu0 %v7563
    %12039 = vmatprep.subr.bf16.mxu0 %v7548
    %12040 = vmatpush2.bf16.msra.mxu0 %v7547
    %12041 = vmatprep.subr.bf16.mxu0 %v7532
    %12042 = vmatpush2.bf16.msra.mxu0 %v7531
    %12043 = vmatprep.mubr.bf16.mxu0 %v1830
    %12044 = vmatmul.mubr.bf16.gmra.mxu0 %v1816
    %v12045 = vpop.f32.mrf.mxu0
    %v12046 = vadd.f32 %v12005, %v12045
    %v12047 = vpop.f32.mrf.mxu0
    %v12048 = vadd.f32 %v12007, %v12047
    %v12049 = vpop.f32.mrf.mxu0
    %v12050 = vpop.f32.mrf.mxu0
    %12051 = vdwg.mxu0
    %12052 = vmatprep.subr.bf16.mxu0 %v7772
    %12053 = vmatpush1.bf16.msra.mxu0 %v7771
    %12054 = vmatprep.subr.bf16.mxu0 %v7756
    %12055 = vmatpush1.bf16.msra.mxu0 %v7755
    %12056 = vmatprep.subr.bf16.mxu0 %v7740
    %12057 = vmatpush1.bf16.msra.mxu0 %v7739
    %12058 = vmatprep.subr.bf16.mxu0 %v7724
    %12059 = vmatpush1.bf16.msra.mxu0 %v7723
    %12060 = vmatprep.subr.bf16.mxu0 %v7708
    %12061 = vmatpush1.bf16.msra.mxu0 %v7707
    %12062 = vmatprep.subr.bf16.mxu0 %v7692
    %12063 = vmatpush1.bf16.msra.mxu0 %v7691
    %12064 = vmatprep.subr.bf16.mxu0 %v7676
    %12065 = vmatpush1.bf16.msra.mxu0 %v7675
    %12066 = vmatprep.subr.bf16.mxu0 %v7660
    %12067 = vmatpush1.bf16.msra.mxu0 %v7659
    %12068 = vmatprep.subr.bf16.mxu0 %v7900
    %12069 = vmatpush2.bf16.msra.mxu0 %v7899
    %12070 = vmatprep.subr.bf16.mxu0 %v7884
    %12071 = vmatpush2.bf16.msra.mxu0 %v7883
    %12072 = vmatprep.subr.bf16.mxu0 %v7868
    %12073 = vmatpush2.bf16.msra.mxu0 %v7867
    %12074 = vmatprep.subr.bf16.mxu0 %v7852
    %12075 = vmatpush2.bf16.msra.mxu0 %v7851
    %12076 = vmatprep.subr.bf16.mxu0 %v7836
    %12077 = vmatpush2.bf16.msra.mxu0 %v7835
    %12078 = vmatprep.subr.bf16.mxu0 %v7820
    %12079 = vmatpush2.bf16.msra.mxu0 %v7819
    %12080 = vmatprep.subr.bf16.mxu0 %v7804
    %12081 = vmatpush2.bf16.msra.mxu0 %v7803
    %12082 = vmatprep.subr.bf16.mxu0 %v7788
    %12083 = vmatpush2.bf16.msra.mxu0 %v7787
    %12084 = vmatprep.mubr.bf16.mxu0 %v1834
    %12085 = vmatmul.mubr.bf16.gmra.mxu0 %v1832
    %v12086 = vpop.f32.mrf.mxu0
    %v12087 = vadd.f32 %v12046, %v12086
    %v12088 = vpop.f32.mrf.mxu0
    %v12089 = vadd.f32 %v12048, %v12088
    %v12090 = vpop.f32.mrf.mxu0
    %v12091 = vpop.f32.mrf.mxu0
    %12092 = vdwg.mxu0
    %12093 = vmatprep.subr.bf16.mxu0 %v8028
    %12094 = vmatpush1.bf16.msra.mxu0 %v8027
    %12095 = vmatprep.subr.bf16.mxu0 %v8012
    %12096 = vmatpush1.bf16.msra.mxu0 %v8011
    %12097 = vmatprep.subr.bf16.mxu0 %v7996
    %12098 = vmatpush1.bf16.msra.mxu0 %v7995
    %12099 = vmatprep.subr.bf16.mxu0 %v7980
    %12100 = vmatpush1.bf16.msra.mxu0 %v7979
    %12101 = vmatprep.subr.bf16.mxu0 %v7964
    %12102 = vmatpush1.bf16.msra.mxu0 %v7963
    %12103 = vmatprep.subr.bf16.mxu0 %v7948
    %12104 = vmatpush1.bf16.msra.mxu0 %v7947
    %12105 = vmatprep.subr.bf16.mxu0 %v7932
    %12106 = vmatpush1.bf16.msra.mxu0 %v7931
    %12107 = vmatprep.subr.bf16.mxu0 %v7916
    %12108 = vmatpush1.bf16.msra.mxu0 %v7915
    %12109 = vmatprep.subr.bf16.mxu0 %v8156
    %12110 = vmatpush2.bf16.msra.mxu0 %v8155
    %12111 = vmatprep.subr.bf16.mxu0 %v8140
    %12112 = vmatpush2.bf16.msra.mxu0 %v8139
    %12113 = vmatprep.subr.bf16.mxu0 %v8124
    %12114 = vmatpush2.bf16.msra.mxu0 %v8123
    %12115 = vmatprep.subr.bf16.mxu0 %v8108
    %12116 = vmatpush2.bf16.msra.mxu0 %v8107
    %12117 = vmatprep.subr.bf16.mxu0 %v8092
    %12118 = vmatpush2.bf16.msra.mxu0 %v8091
    %12119 = vmatprep.subr.bf16.mxu0 %v8076
    %12120 = vmatpush2.bf16.msra.mxu0 %v8075
    %12121 = vmatprep.subr.bf16.mxu0 %v8060
    %12122 = vmatpush2.bf16.msra.mxu0 %v8059
    %12123 = vmatprep.subr.bf16.mxu0 %v8044
    %12124 = vmatpush2.bf16.msra.mxu0 %v8043
    %12125 = vmatprep.mubr.bf16.mxu0 %v1871
    %12126 = vmatmul.mubr.bf16.gmra.mxu0 %v1857
    %v12127 = vpop.f32.mrf.mxu0
    %v12128 = vadd.f32 %v12087, %v12127
    %v12129 = vpop.f32.mrf.mxu0
    %v12130 = vadd.f32 %v12089, %v12129
    %v12131 = vpop.f32.mrf.mxu0
    %v12132 = vpop.f32.mrf.mxu0
    %12133 = vdwg.mxu0
    %12134 = vmatprep.subr.bf16.mxu0 %v8284
    %12135 = vmatpush1.bf16.msra.mxu0 %v8283
    %12136 = vmatprep.subr.bf16.mxu0 %v8268
    %12137 = vmatpush1.bf16.msra.mxu0 %v8267
    %12138 = vmatprep.subr.bf16.mxu0 %v8252
    %12139 = vmatpush1.bf16.msra.mxu0 %v8251
    %12140 = vmatprep.subr.bf16.mxu0 %v8236
    %12141 = vmatpush1.bf16.msra.mxu0 %v8235
    %12142 = vmatprep.subr.bf16.mxu0 %v8220
    %12143 = vmatpush1.bf16.msra.mxu0 %v8219
    %12144 = vmatprep.subr.bf16.mxu0 %v8204
    %12145 = vmatpush1.bf16.msra.mxu0 %v8203
    %12146 = vmatprep.subr.bf16.mxu0 %v8188
    %12147 = vmatpush1.bf16.msra.mxu0 %v8187
    %12148 = vmatprep.subr.bf16.mxu0 %v8172
    %12149 = vmatpush1.bf16.msra.mxu0 %v8171
    %12150 = vmatprep.subr.bf16.mxu0 %v8412
    %12151 = vmatpush2.bf16.msra.mxu0 %v8411
    %12152 = vmatprep.subr.bf16.mxu0 %v8396
    %12153 = vmatpush2.bf16.msra.mxu0 %v8395
    %12154 = vmatprep.subr.bf16.mxu0 %v8380
    %12155 = vmatpush2.bf16.msra.mxu0 %v8379
    %12156 = vmatprep.subr.bf16.mxu0 %v8364
    %12157 = vmatpush2.bf16.msra.mxu0 %v8363
    %12158 = vmatprep.subr.bf16.mxu0 %v8348
    %12159 = vmatpush2.bf16.msra.mxu0 %v8347
    %12160 = vmatprep.subr.bf16.mxu0 %v8332
    %12161 = vmatpush2.bf16.msra.mxu0 %v8331
    %12162 = vmatprep.subr.bf16.mxu0 %v8316
    %12163 = vmatpush2.bf16.msra.mxu0 %v8315
    %12164 = vmatprep.subr.bf16.mxu0 %v8300
    %12165 = vmatpush2.bf16.msra.mxu0 %v8299
    %12166 = vmatprep.mubr.bf16.mxu0 %v1873
    %12167 = vmatmul.mubr.bf16.gmra.mxu0 %v1872
    %v12168 = vpop.f32.mrf.mxu0
    %v12169 = vadd.f32 %v12128, %v12168
    %v12170 = vpop.f32.mrf.mxu0
    %v12171 = vadd.f32 %v12130, %v12170
    %v12172 = vpop.f32.mrf.mxu0
    %v12173 = vpop.f32.mrf.mxu0
    %12174 = vdwg.mxu0
    %12175 = vmatprep.subr.bf16.mxu0 %v8540
    %12176 = vmatpush1.bf16.msra.mxu0 %v8539
    %12177 = vmatprep.subr.bf16.mxu0 %v8524
    %12178 = vmatpush1.bf16.msra.mxu0 %v8523
    %12179 = vmatprep.subr.bf16.mxu0 %v8508
    %12180 = vmatpush1.bf16.msra.mxu0 %v8507
    %12181 = vmatprep.subr.bf16.mxu0 %v8492
    %12182 = vmatpush1.bf16.msra.mxu0 %v8491
    %12183 = vmatprep.subr.bf16.mxu0 %v8476
    %12184 = vmatpush1.bf16.msra.mxu0 %v8475
    %12185 = vmatprep.subr.bf16.mxu0 %v8460
    %12186 = vmatpush1.bf16.msra.mxu0 %v8459
    %12187 = vmatprep.subr.bf16.mxu0 %v8444
    %12188 = vmatpush1.bf16.msra.mxu0 %v8443
    %12189 = vmatprep.subr.bf16.mxu0 %v8428
    %12190 = vmatpush1.bf16.msra.mxu0 %v8427
    %12191 = vmatprep.subr.bf16.mxu0 0
    %12192 = vmatpush2.bf16.msra.mxu0 0
    %12193 = vmatprep.subr.bf16.mxu0 0
    %12194 = vmatpush2.bf16.msra.mxu0 0
    %12195 = vmatprep.subr.bf16.mxu0 0
    %12196 = vmatpush2.bf16.msra.mxu0 0
    %12197 = vmatprep.subr.bf16.mxu0 0
    %12198 = vmatpush2.bf16.msra.mxu0 0
    %12199 = vmatprep.subr.bf16.mxu0 0
    %12200 = vmatpush2.bf16.msra.mxu0 0
    %12201 = vmatprep.subr.bf16.mxu0 0
    %12202 = vmatpush2.bf16.msra.mxu0 0
    %12203 = vmatprep.subr.bf16.mxu0 0
    %12204 = vmatpush2.bf16.msra.mxu0 0
    %12205 = vmatprep.subr.bf16.mxu0 0
    %12206 = vmatpush2.bf16.msra.mxu0 0
    %12207 = vmatprep.mubr.bf16.mxu0 0
    %12208 = vmatmul.mubr.bf16.gmra.mxu0 %v1864
    %v12209 = vpop.f32.mrf.mxu0
    %v12210 = vadd.f32 %v12169, %v12209
    %v12211 = vpop.f32.mrf.mxu0
    %v12212 = vadd.f32 %v12171, %v12211
    %v12213 = vpop.f32.mrf.mxu0
    %v12214 = vpop.f32.mrf.mxu0
    %12215 = vdwg.mxu0
    %12216 = vmatprep.subr.bf16.mxu0 %v7006
    %12217 = vmatpush1.bf16.msra.mxu0 %v7005
    %12218 = vmatprep.subr.bf16.mxu0 %v6990
    %12219 = vmatpush1.bf16.msra.mxu0 %v6989
    %12220 = vmatprep.subr.bf16.mxu0 %v6974
    %12221 = vmatpush1.bf16.msra.mxu0 %v6973
    %12222 = vmatprep.subr.bf16.mxu0 %v6958
    %12223 = vmatpush1.bf16.msra.mxu0 %v6957
    %12224 = vmatprep.subr.bf16.mxu0 %v6942
    %12225 = vmatpush1.bf16.msra.mxu0 %v6941
    %12226 = vmatprep.subr.bf16.mxu0 %v6926
    %12227 = vmatpush1.bf16.msra.mxu0 %v6925
    %12228 = vmatprep.subr.bf16.mxu0 %v6910
    %12229 = vmatpush1.bf16.msra.mxu0 %v6909
    %12230 = vmatprep.subr.bf16.mxu0 %v6894
    %12231 = vmatpush1.bf16.msra.mxu0 %v6893
    %12232 = vmatprep.subr.bf16.mxu0 %v7134
    %12233 = vmatpush2.bf16.msra.mxu0 %v7133
    %12234 = vmatprep.subr.bf16.mxu0 %v7118
    %12235 = vmatpush2.bf16.msra.mxu0 %v7117
    %12236 = vmatprep.subr.bf16.mxu0 %v7102
    %12237 = vmatpush2.bf16.msra.mxu0 %v7101
    %12238 = vmatprep.subr.bf16.mxu0 %v7086
    %12239 = vmatpush2.bf16.msra.mxu0 %v7085
    %12240 = vmatprep.subr.bf16.mxu0 %v7070
    %12241 = vmatpush2.bf16.msra.mxu0 %v7069
    %12242 = vmatprep.subr.bf16.mxu0 %v7054
    %12243 = vmatpush2.bf16.msra.mxu0 %v7053
    %12244 = vmatprep.subr.bf16.mxu0 %v7038
    %12245 = vmatpush2.bf16.msra.mxu0 %v7037
    %12246 = vmatprep.subr.bf16.mxu0 %v7022
    %12247 = vmatpush2.bf16.msra.mxu0 %v7021
    %12248 = vmatprep.mubr.bf16.mxu0 %v1823
    %12249 = vmatmul.mubr.bf16.gmra.mxu0 %v1809
    %v12250 = vpop.f32.mrf.mxu0
    %v12251 = vadd.f32 %v1763, %v12250
    %v12252 = vpop.f32.mrf.mxu0
    %v12253 = vadd.f32 %v1767, %v12252
    %v12254 = vpop.f32.mrf.mxu0
    %v12255 = vpop.f32.mrf.mxu0
    %12256 = vdwg.mxu0
    %12257 = vmatprep.subr.bf16.mxu0 %v7262
    %12258 = vmatpush1.bf16.msra.mxu0 %v7261
    %12259 = vmatprep.subr.bf16.mxu0 %v7246
    %12260 = vmatpush1.bf16.msra.mxu0 %v7245
    %12261 = vmatprep.subr.bf16.mxu0 %v7230
    %12262 = vmatpush1.bf16.msra.mxu0 %v7229
    %12263 = vmatprep.subr.bf16.mxu0 %v7214
    %12264 = vmatpush1.bf16.msra.mxu0 %v7213
    %12265 = vmatprep.subr.bf16.mxu0 %v7198
    %12266 = vmatpush1.bf16.msra.mxu0 %v7197
    %12267 = vmatprep.subr.bf16.mxu0 %v7182
    %12268 = vmatpush1.bf16.msra.mxu0 %v7181
    %12269 = vmatprep.subr.bf16.mxu0 %v7166
    %12270 = vmatpush1.bf16.msra.mxu0 %v7165
    %12271 = vmatprep.subr.bf16.mxu0 %v7150
    %12272 = vmatpush1.bf16.msra.mxu0 %v7149
    %12273 = vmatprep.subr.bf16.mxu0 %v7390
    %12274 = vmatpush2.bf16.msra.mxu0 %v7389
    %12275 = vmatprep.subr.bf16.mxu0 %v7374
    %12276 = vmatpush2.bf16.msra.mxu0 %v7373
    %12277 = vmatprep.subr.bf16.mxu0 %v7358
    %12278 = vmatpush2.bf16.msra.mxu0 %v7357
    %12279 = vmatprep.subr.bf16.mxu0 %v7342
    %12280 = vmatpush2.bf16.msra.mxu0 %v7341
    %12281 = vmatprep.subr.bf16.mxu0 %v7326
    %12282 = vmatpush2.bf16.msra.mxu0 %v7325
    %12283 = vmatprep.subr.bf16.mxu0 %v7310
    %12284 = vmatpush2.bf16.msra.mxu0 %v7309
    %12285 = vmatprep.subr.bf16.mxu0 %v7294
    %12286 = vmatpush2.bf16.msra.mxu0 %v7293
    %12287 = vmatprep.subr.bf16.mxu0 %v7278
    %12288 = vmatpush2.bf16.msra.mxu0 %v7277
    %12289 = vmatprep.mubr.bf16.mxu0 %v1833
    %12290 = vmatmul.mubr.bf16.gmra.mxu0 %v1831
    %v12291 = vpop.f32.mrf.mxu0
    %v12292 = vadd.f32 %v12251, %v12291
    %v12293 = vpop.f32.mrf.mxu0
    %v12294 = vadd.f32 %v12253, %v12293
    %v12295 = vpop.f32.mrf.mxu0
    %v12296 = vpop.f32.mrf.mxu0
    %12297 = vdwg.mxu0
    %12298 = vmatprep.subr.bf16.mxu0 %v7518
    %12299 = vmatpush1.bf16.msra.mxu0 %v7517
    %12300 = vmatprep.subr.bf16.mxu0 %v7502
    %12301 = vmatpush1.bf16.msra.mxu0 %v7501
    %12302 = vmatprep.subr.bf16.mxu0 %v7486
    %12303 = vmatpush1.bf16.msra.mxu0 %v7485
    %12304 = vmatprep.subr.bf16.mxu0 %v7470
    %12305 = vmatpush1.bf16.msra.mxu0 %v7469
    %12306 = vmatprep.subr.bf16.mxu0 %v7454
    %12307 = vmatpush1.bf16.msra.mxu0 %v7453
    %12308 = vmatprep.subr.bf16.mxu0 %v7438
    %12309 = vmatpush1.bf16.msra.mxu0 %v7437
    %12310 = vmatprep.subr.bf16.mxu0 %v7422
    %12311 = vmatpush1.bf16.msra.mxu0 %v7421
    %12312 = vmatprep.subr.bf16.mxu0 %v7406
    %12313 = vmatpush1.bf16.msra.mxu0 %v7405
    %12314 = vmatprep.subr.bf16.mxu0 %v7646
    %12315 = vmatpush2.bf16.msra.mxu0 %v7645
    %12316 = vmatprep.subr.bf16.mxu0 %v7630
    %12317 = vmatpush2.bf16.msra.mxu0 %v7629
    %12318 = vmatprep.subr.bf16.mxu0 %v7614
    %12319 = vmatpush2.bf16.msra.mxu0 %v7613
    %12320 = vmatprep.subr.bf16.mxu0 %v7598
    %12321 = vmatpush2.bf16.msra.mxu0 %v7597
    %12322 = vmatprep.subr.bf16.mxu0 %v7582
    %12323 = vmatpush2.bf16.msra.mxu0 %v7581
    %12324 = vmatprep.subr.bf16.mxu0 %v7566
    %12325 = vmatpush2.bf16.msra.mxu0 %v7565
    %12326 = vmatprep.subr.bf16.mxu0 %v7550
    %12327 = vmatpush2.bf16.msra.mxu0 %v7549
    %12328 = vmatprep.subr.bf16.mxu0 %v7534
    %12329 = vmatpush2.bf16.msra.mxu0 %v7533
    %12330 = vmatprep.mubr.bf16.mxu0 %v1830
    %12331 = vmatmul.mubr.bf16.gmra.mxu0 %v1816
    %v12332 = vpop.f32.mrf.mxu0
    %v12333 = vadd.f32 %v12292, %v12332
    %v12334 = vpop.f32.mrf.mxu0
    %v12335 = vadd.f32 %v12294, %v12334
    %v12336 = vpop.f32.mrf.mxu0
    %v12337 = vpop.f32.mrf.mxu0
    %12338 = vdwg.mxu0
    %12339 = vmatprep.subr.bf16.mxu0 %v7774
    %12340 = vmatpush1.bf16.msra.mxu0 %v7773
    %12341 = vmatprep.subr.bf16.mxu0 %v7758
    %12342 = vmatpush1.bf16.msra.mxu0 %v7757
    %12343 = vmatprep.subr.bf16.mxu0 %v7742
    %12344 = vmatpush1.bf16.msra.mxu0 %v7741
    %12345 = vmatprep.subr.bf16.mxu0 %v7726
    %12346 = vmatpush1.bf16.msra.mxu0 %v7725
    %12347 = vmatprep.subr.bf16.mxu0 %v7710
    %12348 = vmatpush1.bf16.msra.mxu0 %v7709
    %12349 = vmatprep.subr.bf16.mxu0 %v7694
    %12350 = vmatpush1.bf16.msra.mxu0 %v7693
    %12351 = vmatprep.subr.bf16.mxu0 %v7678
    %12352 = vmatpush1.bf16.msra.mxu0 %v7677
    %12353 = vmatprep.subr.bf16.mxu0 %v7662
    %12354 = vmatpush1.bf16.msra.mxu0 %v7661
    %12355 = vmatprep.subr.bf16.mxu0 %v7902
    %12356 = vmatpush2.bf16.msra.mxu0 %v7901
    %12357 = vmatprep.subr.bf16.mxu0 %v7886
    %12358 = vmatpush2.bf16.msra.mxu0 %v7885
    %12359 = vmatprep.subr.bf16.mxu0 %v7870
    %12360 = vmatpush2.bf16.msra.mxu0 %v7869
    %12361 = vmatprep.subr.bf16.mxu0 %v7854
    %12362 = vmatpush2.bf16.msra.mxu0 %v7853
    %12363 = vmatprep.subr.bf16.mxu0 %v7838
    %12364 = vmatpush2.bf16.msra.mxu0 %v7837
    %12365 = vmatprep.subr.bf16.mxu0 %v7822
    %12366 = vmatpush2.bf16.msra.mxu0 %v7821
    %12367 = vmatprep.subr.bf16.mxu0 %v7806
    %12368 = vmatpush2.bf16.msra.mxu0 %v7805
    %12369 = vmatprep.subr.bf16.mxu0 %v7790
    %12370 = vmatpush2.bf16.msra.mxu0 %v7789
    %12371 = vmatprep.mubr.bf16.mxu0 %v1834
    %12372 = vmatmul.mubr.bf16.gmra.mxu0 %v1832
    %v12373 = vpop.f32.mrf.mxu0
    %v12374 = vadd.f32 %v12333, %v12373
    %v12375 = vpop.f32.mrf.mxu0
    %v12376 = vadd.f32 %v12335, %v12375
    %v12377 = vpop.f32.mrf.mxu0
    %v12378 = vpop.f32.mrf.mxu0
    %12379 = vdwg.mxu0
    %12380 = vmatprep.subr.bf16.mxu0 %v8030
    %12381 = vmatpush1.bf16.msra.mxu0 %v8029
    %12382 = vmatprep.subr.bf16.mxu0 %v8014
    %12383 = vmatpush1.bf16.msra.mxu0 %v8013
    %12384 = vmatprep.subr.bf16.mxu0 %v7998
    %12385 = vmatpush1.bf16.msra.mxu0 %v7997
    %12386 = vmatprep.subr.bf16.mxu0 %v7982
    %12387 = vmatpush1.bf16.msra.mxu0 %v7981
    %12388 = vmatprep.subr.bf16.mxu0 %v7966
    %12389 = vmatpush1.bf16.msra.mxu0 %v7965
    %12390 = vmatprep.subr.bf16.mxu0 %v7950
    %12391 = vmatpush1.bf16.msra.mxu0 %v7949
    %12392 = vmatprep.subr.bf16.mxu0 %v7934
    %12393 = vmatpush1.bf16.msra.mxu0 %v7933
    %12394 = vmatprep.subr.bf16.mxu0 %v7918
    %12395 = vmatpush1.bf16.msra.mxu0 %v7917
    %12396 = vmatprep.subr.bf16.mxu0 %v8158
    %12397 = vmatpush2.bf16.msra.mxu0 %v8157
    %12398 = vmatprep.subr.bf16.mxu0 %v8142
    %12399 = vmatpush2.bf16.msra.mxu0 %v8141
    %12400 = vmatprep.subr.bf16.mxu0 %v8126
    %12401 = vmatpush2.bf16.msra.mxu0 %v8125
    %12402 = vmatprep.subr.bf16.mxu0 %v8110
    %12403 = vmatpush2.bf16.msra.mxu0 %v8109
    %12404 = vmatprep.subr.bf16.mxu0 %v8094
    %12405 = vmatpush2.bf16.msra.mxu0 %v8093
    %12406 = vmatprep.subr.bf16.mxu0 %v8078
    %12407 = vmatpush2.bf16.msra.mxu0 %v8077
    %12408 = vmatprep.subr.bf16.mxu0 %v8062
    %12409 = vmatpush2.bf16.msra.mxu0 %v8061
    %12410 = vmatprep.subr.bf16.mxu0 %v8046
    %12411 = vmatpush2.bf16.msra.mxu0 %v8045
    %12412 = vmatprep.mubr.bf16.mxu0 %v1871
    %12413 = vmatmul.mubr.bf16.gmra.mxu0 %v1857
    %v12414 = vpop.f32.mrf.mxu0
    %v12415 = vadd.f32 %v12374, %v12414
    %v12416 = vpop.f32.mrf.mxu0
    %v12417 = vadd.f32 %v12376, %v12416
    %v12418 = vpop.f32.mrf.mxu0
    %v12419 = vpop.f32.mrf.mxu0
    %12420 = vdwg.mxu0
    %12421 = vmatprep.subr.bf16.mxu0 %v8286
    %12422 = vmatpush1.bf16.msra.mxu0 %v8285
    %12423 = vmatprep.subr.bf16.mxu0 %v8270
    %12424 = vmatpush1.bf16.msra.mxu0 %v8269
    %12425 = vmatprep.subr.bf16.mxu0 %v8254
    %12426 = vmatpush1.bf16.msra.mxu0 %v8253
    %12427 = vmatprep.subr.bf16.mxu0 %v8238
    %12428 = vmatpush1.bf16.msra.mxu0 %v8237
    %12429 = vmatprep.subr.bf16.mxu0 %v8222
    %12430 = vmatpush1.bf16.msra.mxu0 %v8221
    %12431 = vmatprep.subr.bf16.mxu0 %v8206
    %12432 = vmatpush1.bf16.msra.mxu0 %v8205
    %12433 = vmatprep.subr.bf16.mxu0 %v8190
    %12434 = vmatpush1.bf16.msra.mxu0 %v8189
    %12435 = vmatprep.subr.bf16.mxu0 %v8174
    %12436 = vmatpush1.bf16.msra.mxu0 %v8173
    %12437 = vmatprep.subr.bf16.mxu0 %v8414
    %12438 = vmatpush2.bf16.msra.mxu0 %v8413
    %12439 = vmatprep.subr.bf16.mxu0 %v8398
    %12440 = vmatpush2.bf16.msra.mxu0 %v8397
    %12441 = vmatprep.subr.bf16.mxu0 %v8382
    %12442 = vmatpush2.bf16.msra.mxu0 %v8381
    %12443 = vmatprep.subr.bf16.mxu0 %v8366
    %12444 = vmatpush2.bf16.msra.mxu0 %v8365
    %12445 = vmatprep.subr.bf16.mxu0 %v8350
    %12446 = vmatpush2.bf16.msra.mxu0 %v8349
    %12447 = vmatprep.subr.bf16.mxu0 %v8334
    %12448 = vmatpush2.bf16.msra.mxu0 %v8333
    %12449 = vmatprep.subr.bf16.mxu0 %v8318
    %12450 = vmatpush2.bf16.msra.mxu0 %v8317
    %12451 = vmatprep.subr.bf16.mxu0 %v8302
    %12452 = vmatpush2.bf16.msra.mxu0 %v8301
    %12453 = vmatprep.mubr.bf16.mxu0 %v1873
    %12454 = vmatmul.mubr.bf16.gmra.mxu0 %v1872
    %v12455 = vpop.f32.mrf.mxu0
    %v12456 = vadd.f32 %v12415, %v12455
    %v12457 = vpop.f32.mrf.mxu0
    %v12458 = vadd.f32 %v12417, %v12457
    %v12459 = vpop.f32.mrf.mxu0
    %v12460 = vpop.f32.mrf.mxu0
    %12461 = vdwg.mxu0
    %12462 = vmatprep.subr.bf16.mxu0 %v8542
    %12463 = vmatpush1.bf16.msra.mxu0 %v8541
    %12464 = vmatprep.subr.bf16.mxu0 %v8526
    %12465 = vmatpush1.bf16.msra.mxu0 %v8525
    %12466 = vmatprep.subr.bf16.mxu0 %v8510
    %12467 = vmatpush1.bf16.msra.mxu0 %v8509
    %12468 = vmatprep.subr.bf16.mxu0 %v8494
    %12469 = vmatpush1.bf16.msra.mxu0 %v8493
    %12470 = vmatprep.subr.bf16.mxu0 %v8478
    %12471 = vmatpush1.bf16.msra.mxu0 %v8477
    %12472 = vmatprep.subr.bf16.mxu0 %v8462
    %12473 = vmatpush1.bf16.msra.mxu0 %v8461
    %12474 = vmatprep.subr.bf16.mxu0 %v8446
    %12475 = vmatpush1.bf16.msra.mxu0 %v8445
    %12476 = vmatprep.subr.bf16.mxu0 %v8430
    %12477 = vmatpush1.bf16.msra.mxu0 %v8429
    %12478 = vmatprep.subr.bf16.mxu0 0
    %12479 = vmatpush2.bf16.msra.mxu0 0
    %12480 = vmatprep.subr.bf16.mxu0 0
    %12481 = vmatpush2.bf16.msra.mxu0 0
    %12482 = vmatprep.subr.bf16.mxu0 0
    %12483 = vmatpush2.bf16.msra.mxu0 0
    %12484 = vmatprep.subr.bf16.mxu0 0
    %12485 = vmatpush2.bf16.msra.mxu0 0
    %12486 = vmatprep.subr.bf16.mxu0 0
    %12487 = vmatpush2.bf16.msra.mxu0 0
    %12488 = vmatprep.subr.bf16.mxu0 0
    %12489 = vmatpush2.bf16.msra.mxu0 0
    %12490 = vmatprep.subr.bf16.mxu0 0
    %12491 = vmatpush2.bf16.msra.mxu0 0
    %12492 = vmatprep.subr.bf16.mxu0 0
    %12493 = vmatpush2.bf16.msra.mxu0 0
    %12494 = vmatprep.mubr.bf16.mxu0 0
    %12495 = vmatmul.mubr.bf16.gmra.mxu0 %v1864
    %v12496 = vpop.f32.mrf.mxu0
    %v12497 = vadd.f32 %v12456, %v12496
    %v12498 = vpop.f32.mrf.mxu0
    %v12499 = vadd.f32 %v12458, %v12498
    %v12500 = vpop.f32.mrf.mxu0
    %v12501 = vpop.f32.mrf.mxu0
    %12502 = vdwg.mxu0
    %v12503 = vmax.f32 %v10488, 0.0
    %v12504 = vmax.f32 %v10490, 0.0
    %v12505 = vmax.f32 %v10775, 0.0
    %v12506 = vmax.f32 %v10777, 0.0
    %v12507 = vmax.f32 %v11062, 0.0
    %v12508 = vmax.f32 %v11064, 0.0
    %v12509 = vmax.f32 %v11349, 0.0
    %v12510 = vmax.f32 %v11351, 0.0
    %v12511 = vmax.f32 %v11636, 0.0
    %v12512 = vmax.f32 %v11638, 0.0
    %v12513 = vmax.f32 %v11923, 0.0
    %v12514 = vmax.f32 %v11925, 0.0
    %v12515 = vmax.f32 %v12210, 0.0
    %v12516 = vmax.f32 %v12212, 0.0
    %v12517 = vmax.f32 %v12497, 0.0
    %v12518 = vmax.f32 %v12499, 0.0
    %v12519 = vmax.f32 %v12503, %v12507
    %v12520 = vmax.f32 %v12504, %v12508
    %v12521 = vmax.f32 %v12505, %v12509
    %v12522 = vmax.f32 %v12506, %v12510
    %v12523 = vmax.f32 %v12511, %v12515
    %v12524 = vmax.f32 %v12512, %v12516
    %v12525 = vmax.f32 %v12513, %v12517
    %v12526 = vmax.f32 %v12514, %v12518
    %v12527 = vmax.f32 %v12519, %v12523
    %v12528 = vmax.f32 %v12520, %v12524
    %v12529 = vmax.f32 %v12521, %v12525
    %v12530 = vmax.f32 %v12522, %v12526
    %v12531 = vpack.c.bf16 %v12527, %v12527
    %v12532 = vpack.c.bf16 %v12528, %v12528
    %v12533 = vpack.c.bf16 %v12529, %v12529
    %v12534 = vpack.c.bf16 %v12530, %v12530
    %v12535 = vld [vmem:[%s3] sm:$0xf]
    %v12536 = vld [vmem:[%s3 + $0x4] sm:$0xf]
    %v12537 = vld [vmem:[%s3 + $0x8] sm:$0xf]
    %v12538 = vld [vmem:[%s3 + $0xc] sm:$0xf]
    %v12539 = vld [vmem:[%s3 + $0x10] sm:$0xf]
    %v12540 = vld [vmem:[%s3 + $0x14] sm:$0xf]
    %v12541 = vld [vmem:[%s3 + $0x18] sm:$0xf]
    %v12542 = vld [vmem:[%s3 + $0x1c] sm:$0xf]
    %v12543 = vld [vmem:[%s3 + $0x20] sm:$0xf]
    %v12544 = vld [vmem:[%s3 + $0x24] sm:$0xf]
    %v12545 = vld [vmem:[%s3 + $0x28] sm:$0xf]
    %v12546 = vld [vmem:[%s3 + $0x2c] sm:$0xf]
    %v12547 = vld [vmem:[%s3 + $0x30] sm:$0xf]
    %v12548 = vld [vmem:[%s3 + $0x34] sm:$0xf]
    %v12549 = vld [vmem:[%s3 + $0x38] sm:$0xf]
    %v12550 = vld [vmem:[%s3 + $0x3c] sm:$0xf]
    %v12551 = vld [vmem:[%s3 + $0x40] sm:$0xf]
    %v12552 = vld [vmem:[%s3 + $0x44] sm:$0xf]
    %v12553 = vld [vmem:[%s3 + $0x48] sm:$0xf]
    %v12554 = vld [vmem:[%s3 + $0x4c] sm:$0xf]
    %v12555 = vld [vmem:[%s3 + $0x50] sm:$0xf]
    %v12556 = vld [vmem:[%s3 + $0x54] sm:$0xf]
    %v12557 = vld [vmem:[%s3 + $0x58] sm:$0xf]
    %v12558 = vld [vmem:[%s3 + $0x5c] sm:$0xf]
    %v12559 = vld [vmem:[%s3 + $0x60] sm:$0xf]
    %v12560 = vld [vmem:[%s3 + $0x64] sm:$0xf]
    %v12561 = vld [vmem:[%s3 + $0x68] sm:$0xf]
    %v12562 = vld [vmem:[%s3 + $0x6c] sm:$0xf]
    %v12563 = vld [vmem:[%s3 + $0x70] sm:$0xf]
    %v12564 = vld [vmem:[%s3 + $0x74] sm:$0xf]
    %v12565 = vld [vmem:[%s3 + $0x78] sm:$0xf]
    %v12566 = vld [vmem:[%s3 + $0x7c] sm:$0xf]
    %v12567 = vld [vmem:[%s3 + $0x80] sm:$0xf]
    %v12568 = vld [vmem:[%s3 + $0x84] sm:$0xf]
    %v12569 = vld [vmem:[%s3 + $0x88] sm:$0xf]
    %v12570 = vld [vmem:[%s3 + $0x8c] sm:$0xf]
    %v12571 = vld [vmem:[%s3 + $0x90] sm:$0xf]
    %v12572 = vld [vmem:[%s3 + $0x94] sm:$0xf]
    %v12573 = vld [vmem:[%s3 + $0x98] sm:$0xf]
    %v12574 = vld [vmem:[%s3 + $0x9c] sm:$0xf]
    %v12575 = vld [vmem:[%s3 + $0xa0] sm:$0xf]
    %v12576 = vld [vmem:[%s3 + $0xa4] sm:$0xf]
    %v12577 = vld [vmem:[%s3 + $0xa8] sm:$0xf]
    %v12578 = vld [vmem:[%s3 + $0xac] sm:$0xf]
    %v12579 = vld [vmem:[%s3 + $0xb0] sm:$0xf]
    %v12580 = vld [vmem:[%s3 + $0xb4] sm:$0xf]
    %v12581 = vld [vmem:[%s3 + $0xb8] sm:$0xf]
    %v12582 = vld [vmem:[%s3 + $0xbc] sm:$0xf]
    %v12583 = vld [vmem:[%s3 + $0xc0] sm:$0xf]
    %v12584 = vld [vmem:[%s3 + $0xc4] sm:$0xf]
    %v12585 = vld [vmem:[%s3 + $0xc8] sm:$0xf]
    %v12586 = vld [vmem:[%s3 + $0xcc] sm:$0xf]
    %v12587 = vld [vmem:[%s3 + $0xd0] sm:$0xf]
    %v12588 = vld [vmem:[%s3 + $0xd4] sm:$0xf]
    %v12589 = vld [vmem:[%s3 + $0xd8] sm:$0xf]
    %v12590 = vld [vmem:[%s3 + $0xdc] sm:$0xf]
    %v12591 = vld [vmem:[%s3 + $0xe0] sm:$0xf]
    %v12592 = vld [vmem:[%s3 + $0xe4] sm:$0xf]
    %v12593 = vld [vmem:[%s3 + $0xe8] sm:$0xf]
    %v12594 = vld [vmem:[%s3 + $0xec] sm:$0xf]
    %v12595 = vld [vmem:[%s3 + $0xf0] sm:$0xf]
    %v12596 = vld [vmem:[%s3 + $0xf4] sm:$0xf]
    %v12597 = vld [vmem:[%s3 + $0xf8] sm:$0xf]
    %v12598 = vld [vmem:[%s3 + $0xfc] sm:$0xf]
    %v12599 = vld [vmem:[%s4] sm:$0x1]
    %v12601 = vlaneseq
    %v12602 = vshrl.u32 %v12601, 7
    %v12603 = vsub.s32 0, %v12602
    %v12604 = vrot.slane %v12599, %v12603
    %v12670 = vunpack.c.l.b16 %v12535
    %v12671 = vunpack.c.l.b16 %v12536
    %v12672 = vunpack.c.l.b16 %v12537
    %v12673 = vunpack.c.l.b16 %v12538
    %v12674 = vunpack.c.l.b16 %v12539
    %v12675 = vunpack.c.l.b16 %v12540
    %v12676 = vunpack.c.l.b16 %v12541
    %v12677 = vunpack.c.l.b16 %v12542
    %v12678 = vunpack.c.l.b16 %v12543
    %v12679 = vunpack.c.l.b16 %v12544
    %v12680 = vunpack.c.l.b16 %v12545
    %v12681 = vunpack.c.l.b16 %v12546
    %v12682 = vunpack.c.l.b16 %v12547
    %v12683 = vunpack.c.l.b16 %v12548
    %v12684 = vunpack.c.l.b16 %v12549
    %v12685 = vunpack.c.l.b16 %v12550
    %v12686 = vunpack.c.l.b16 %v12551
    %v12687 = vunpack.c.l.b16 %v12552
    %v12688 = vunpack.c.l.b16 %v12553
    %v12689 = vunpack.c.l.b16 %v12554
    %v12690 = vunpack.c.l.b16 %v12555
    %v12691 = vunpack.c.l.b16 %v12556
    %v12692 = vunpack.c.l.b16 %v12557
    %v12693 = vunpack.c.l.b16 %v12558
    %v12694 = vunpack.c.l.b16 %v12559
    %v12695 = vunpack.c.l.b16 %v12560
    %v12696 = vunpack.c.l.b16 %v12561
    %v12697 = vunpack.c.l.b16 %v12562
    %v12698 = vunpack.c.l.b16 %v12563
    %v12699 = vunpack.c.l.b16 %v12564
    %v12700 = vunpack.c.l.b16 %v12565
    %v12701 = vunpack.c.l.b16 %v12566
    %v12702 = vunpack.c.l.b16 %v12567
    %v12703 = vunpack.c.l.b16 %v12568
    %v12704 = vunpack.c.l.b16 %v12569
    %v12705 = vunpack.c.l.b16 %v12570
    %v12706 = vunpack.c.l.b16 %v12571
    %v12707 = vunpack.c.l.b16 %v12572
    %v12708 = vunpack.c.l.b16 %v12573
    %v12709 = vunpack.c.l.b16 %v12574
    %v12710 = vunpack.c.l.b16 %v12575
    %v12711 = vunpack.c.l.b16 %v12576
    %v12712 = vunpack.c.l.b16 %v12577
    %v12713 = vunpack.c.l.b16 %v12578
    %v12714 = vunpack.c.l.b16 %v12579
    %v12715 = vunpack.c.l.b16 %v12580
    %v12716 = vunpack.c.l.b16 %v12581
    %v12717 = vunpack.c.l.b16 %v12582
    %v12718 = vunpack.c.l.b16 %v12583
    %v12719 = vunpack.c.l.b16 %v12584
    %v12720 = vunpack.c.l.b16 %v12585
    %v12721 = vunpack.c.l.b16 %v12586
    %v12722 = vunpack.c.l.b16 %v12587
    %v12723 = vunpack.c.l.b16 %v12588
    %v12724 = vunpack.c.l.b16 %v12589
    %v12725 = vunpack.c.l.b16 %v12590
    %v12726 = vunpack.c.l.b16 %v12591
    %v12727 = vunpack.c.l.b16 %v12592
    %v12728 = vunpack.c.l.b16 %v12593
    %v12729 = vunpack.c.l.b16 %v12594
    %v12730 = vunpack.c.l.b16 %v12595
    %v12731 = vunpack.c.l.b16 %v12596
    %v12732 = vunpack.c.l.b16 %v12597
    %v12733 = vunpack.c.l.b16 %v12598
    %v12734 = vpack.c.b16 %v12671, %v12670
    %v12735 = vpack.c.b16 %v12673, %v12672
    %v12736 = vpack.c.b16 %v12675, %v12674
    %v12737 = vpack.c.b16 %v12677, %v12676
    %v12738 = vpack.c.b16 %v12679, %v12678
    %v12739 = vpack.c.b16 %v12681, %v12680
    %v12740 = vpack.c.b16 %v12683, %v12682
    %v12741 = vpack.c.b16 %v12685, %v12684
    %v12742 = vpack.c.b16 %v12687, %v12686
    %v12743 = vpack.c.b16 %v12689, %v12688
    %v12744 = vpack.c.b16 %v12691, %v12690
    %v12745 = vpack.c.b16 %v12693, %v12692
    %v12746 = vpack.c.b16 %v12695, %v12694
    %v12747 = vpack.c.b16 %v12697, %v12696
    %v12748 = vpack.c.b16 %v12699, %v12698
    %v12749 = vpack.c.b16 %v12701, %v12700
    %v12750 = vpack.c.b16 %v12703, %v12702
    %v12751 = vpack.c.b16 %v12705, %v12704
    %v12752 = vpack.c.b16 %v12707, %v12706
    %v12753 = vpack.c.b16 %v12709, %v12708
    %v12754 = vpack.c.b16 %v12711, %v12710
    %v12755 = vpack.c.b16 %v12713, %v12712
    %v12756 = vpack.c.b16 %v12715, %v12714
    %v12757 = vpack.c.b16 %v12717, %v12716
    %v12758 = vpack.c.b16 %v12719, %v12718
    %v12759 = vpack.c.b16 %v12721, %v12720
    %v12760 = vpack.c.b16 %v12723, %v12722
    %v12761 = vpack.c.b16 %v12725, %v12724
    %v12762 = vpack.c.b16 %v12727, %v12726
    %v12763 = vpack.c.b16 %v12729, %v12728
    %v12764 = vpack.c.b16 %v12731, %v12730
    %v12765 = vpack.c.b16 %v12733, %v12732
    %12798 = vmatprep.subr.bf16.mxu0 0
    %12799 = vmatpush1.bf16.msra.mxu0 %v12741
    %12800 = vmatprep.subr.bf16.mxu0 0
    %12801 = vmatpush1.bf16.msra.mxu0 %v12740
    %12802 = vmatprep.subr.bf16.mxu0 0
    %12803 = vmatpush1.bf16.msra.mxu0 %v12739
    %12804 = vmatprep.subr.bf16.mxu0 0
    %12805 = vmatpush1.bf16.msra.mxu0 %v12738
    %12806 = vmatprep.subr.bf16.mxu0 0
    %12807 = vmatpush1.bf16.msra.mxu0 %v12737
    %12808 = vmatprep.subr.bf16.mxu0 0
    %12809 = vmatpush1.bf16.msra.mxu0 %v12736
    %12810 = vmatprep.subr.bf16.mxu0 0
    %12811 = vmatpush1.bf16.msra.mxu0 %v12735
    %12812 = vmatprep.subr.bf16.mxu0 0
    %12813 = vmatpush1.bf16.msra.mxu0 %v12734
    %12814 = vmatprep.subr.bf16.mxu0 0
    %12815 = vmatpush2.bf16.msra.mxu0 %v12749
    %12816 = vmatprep.subr.bf16.mxu0 0
    %12817 = vmatpush2.bf16.msra.mxu0 %v12748
    %12818 = vmatprep.subr.bf16.mxu0 0
    %12819 = vmatpush2.bf16.msra.mxu0 %v12747
    %12820 = vmatprep.subr.bf16.mxu0 0
    %12821 = vmatpush2.bf16.msra.mxu0 %v12746
    %12822 = vmatprep.subr.bf16.mxu0 0
    %12823 = vmatpush2.bf16.msra.mxu0 %v12745
    %12824 = vmatprep.subr.bf16.mxu0 0
    %12825 = vmatpush2.bf16.msra.mxu0 %v12744
    %12826 = vmatprep.subr.bf16.mxu0 0
    %12827 = vmatpush2.bf16.msra.mxu0 %v12743
    %12828 = vmatprep.subr.bf16.mxu0 0
    %12829 = vmatpush2.bf16.msra.mxu0 %v12742
    %12830 = vmatprep.mubr.bf16.mxu0 %v12532
    %12831 = vmatmul.mubr.bf16.gmra.mxu0 %v12531
    %v12832 = vpop.f32.mrf.mxu0
    %v12833 = vadd.f32 %v12604, %v12832
    %v12834 = vpop.f32.mrf.mxu0
    %v12835 = vpop.f32.mrf.mxu0
    %v12836 = vpop.f32.mrf.mxu0
    %12837 = vdwg.mxu0
    %12838 = vmatprep.subr.bf16.mxu0 0
    %12839 = vmatpush1.bf16.msra.mxu0 %v12757
    %12840 = vmatprep.subr.bf16.mxu0 0
    %12841 = vmatpush1.bf16.msra.mxu0 %v12756
    %12842 = vmatprep.subr.bf16.mxu0 0
    %12843 = vmatpush1.bf16.msra.mxu0 %v12755
    %12844 = vmatprep.subr.bf16.mxu0 0
    %12845 = vmatpush1.bf16.msra.mxu0 %v12754
    %12846 = vmatprep.subr.bf16.mxu0 0
    %12847 = vmatpush1.bf16.msra.mxu0 %v12753
    %12848 = vmatprep.subr.bf16.mxu0 0
    %12849 = vmatpush1.bf16.msra.mxu0 %v12752
    %12850 = vmatprep.subr.bf16.mxu0 0
    %12851 = vmatpush1.bf16.msra.mxu0 %v12751
    %12852 = vmatprep.subr.bf16.mxu0 0
    %12853 = vmatpush1.bf16.msra.mxu0 %v12750
    %12854 = vmatprep.subr.bf16.mxu0 0
    %12855 = vmatpush2.bf16.msra.mxu0 %v12765
    %12856 = vmatprep.subr.bf16.mxu0 0
    %12857 = vmatpush2.bf16.msra.mxu0 %v12764
    %12858 = vmatprep.subr.bf16.mxu0 0
    %12859 = vmatpush2.bf16.msra.mxu0 %v12763
    %12860 = vmatprep.subr.bf16.mxu0 0
    %12861 = vmatpush2.bf16.msra.mxu0 %v12762
    %12862 = vmatprep.subr.bf16.mxu0 0
    %12863 = vmatpush2.bf16.msra.mxu0 %v12761
    %12864 = vmatprep.subr.bf16.mxu0 0
    %12865 = vmatpush2.bf16.msra.mxu0 %v12760
    %12866 = vmatprep.subr.bf16.mxu0 0
    %12867 = vmatpush2.bf16.msra.mxu0 %v12759
    %12868 = vmatprep.subr.bf16.mxu0 0
    %12869 = vmatpush2.bf16.msra.mxu0 %v12758
    %12870 = vmatprep.mubr.bf16.mxu0 %v12534
    %12871 = vmatmul.mubr.bf16.gmra.mxu0 %v12533
    %v12872 = vpop.f32.mrf.mxu0
    %v12873 = vadd.f32 %v12833, %v12872
    %v12874 = vpop.f32.mrf.mxu0
    %v12875 = vpop.f32.mrf.mxu0
    %v12876 = vpop.f32.mrf.mxu0
    %12877 = vdwg.mxu0
    %v12878 = vmax.f32 %v12873, 0.0
    %v12879 = vpack.c.bf16 %v12878, %v12878
    %v12880 = vld [vmem:[%s5] sm:$0xf]
    %v12881 = vld [vmem:[%s5 + $0x4] sm:$0xf]
    %v12882 = vld [vmem:[%s5 + $0x8] sm:$0xf]
    %v12883 = vld [vmem:[%s5 + $0xc] sm:$0xf]
    %v12884 = vld [vmem:[%s5 + $0x10] sm:$0xf]
    %v12885 = vld [vmem:[%s5 + $0x14] sm:$0xf]
    %v12886 = vld [vmem:[%s5 + $0x18] sm:$0xf]
    %v12887 = vld [vmem:[%s5 + $0x1c] sm:$0xf]
    %v12888 = vld [vmem:[%s5 + $0x20] sm:$0xf]
    %v12889 = vld [vmem:[%s5 + $0x24] sm:$0xf]
    %v12890 = vld [vmem:[%s5 + $0x28] sm:$0xf]
    %v12891 = vld [vmem:[%s5 + $0x2c] sm:$0xf]
    %v12892 = vld [vmem:[%s5 + $0x30] sm:$0xf]
    %v12893 = vld [vmem:[%s5 + $0x34] sm:$0xf]
    %v12894 = vld [vmem:[%s5 + $0x38] sm:$0xf]
    %v12895 = vld [vmem:[%s5 + $0x3c] sm:$0xf]
    %v12896 = vld [vmem:[%s6] sm:$0x1]
    %v12898 = vlaneseq
    %v12899 = vshrl.u32 %v12898, 7
    %v12900 = vsub.s32 0, %v12899
    %v12901 = vrot.slane %v12896, %v12900
    %v12919 = vunpack.c.l.b16 %v12880
    %v12920 = vunpack.c.l.b16 %v12881
    %v12921 = vunpack.c.l.b16 %v12882
    %v12922 = vunpack.c.l.b16 %v12883
    %v12923 = vunpack.c.l.b16 %v12884
    %v12924 = vunpack.c.l.b16 %v12885
    %v12925 = vunpack.c.l.b16 %v12886
    %v12926 = vunpack.c.l.b16 %v12887
    %v12927 = vunpack.c.l.b16 %v12888
    %v12928 = vunpack.c.l.b16 %v12889
    %v12929 = vunpack.c.l.b16 %v12890
    %v12930 = vunpack.c.l.b16 %v12891
    %v12931 = vunpack.c.l.b16 %v12892
    %v12932 = vunpack.c.l.b16 %v12893
    %v12933 = vunpack.c.l.b16 %v12894
    %v12934 = vunpack.c.l.b16 %v12895
    %v12935 = vpack.c.b16 %v12920, %v12919
    %v12936 = vpack.c.b16 %v12922, %v12921
    %v12937 = vpack.c.b16 %v12924, %v12923
    %v12938 = vpack.c.b16 %v12926, %v12925
    %v12939 = vpack.c.b16 %v12928, %v12927
    %v12940 = vpack.c.b16 %v12930, %v12929
    %v12941 = vpack.c.b16 %v12932, %v12931
    %v12942 = vpack.c.b16 %v12934, %v12933
    %12951 = vmatprep.subr.bf16.mxu0 0
    %12952 = vmatpush1.bf16.msra.mxu0 %v12942
    %12953 = vmatprep.subr.bf16.mxu0 0
    %12954 = vmatpush1.bf16.msra.mxu0 %v12941
    %12955 = vmatprep.subr.bf16.mxu0 0
    %12956 = vmatpush1.bf16.msra.mxu0 %v12940
    %12957 = vmatprep.subr.bf16.mxu0 0
    %12958 = vmatpush1.bf16.msra.mxu0 %v12939
    %12959 = vmatprep.subr.bf16.mxu0 0
    %12960 = vmatpush1.bf16.msra.mxu0 %v12938
    %12961 = vmatprep.subr.bf16.mxu0 0
    %12962 = vmatpush1.bf16.msra.mxu0 %v12937
    %12963 = vmatprep.subr.bf16.mxu0 0
    %12964 = vmatpush1.bf16.msra.mxu0 %v12936
    %12965 = vmatprep.subr.bf16.mxu0 0
    %12966 = vmatpush1.bf16.msra.mxu0 %v12935
    %12967 = vmatprep.subr.bf16.mxu0 0
    %12968 = vmatpush2.bf16.msra.mxu0 0
    %12969 = vmatprep.subr.bf16.mxu0 0
    %12970 = vmatpush2.bf16.msra.mxu0 0
    %12971 = vmatprep.subr.bf16.mxu0 0
    %12972 = vmatpush2.bf16.msra.mxu0 0
    %12973 = vmatprep.subr.bf16.mxu0 0
    %12974 = vmatpush2.bf16.msra.mxu0 0
    %12975 = vmatprep.subr.bf16.mxu0 0
    %12976 = vmatpush2.bf16.msra.mxu0 0
    %12977 = vmatprep.subr.bf16.mxu0 0
    %12978 = vmatpush2.bf16.msra.mxu0 0
    %12979 = vmatprep.subr.bf16.mxu0 0
    %12980 = vmatpush2.bf16.msra.mxu0 0
    %12981 = vmatprep.subr.bf16.mxu0 0
    %12982 = vmatpush2.bf16.msra.mxu0 0
    %12983 = vmatprep.mubr.bf16.mxu0 0
    %12984 = vmatmul.mubr.bf16.gmra.mxu0 %v12879
    %v12985 = vpop.f32.mrf.mxu0
    %v12986 = vadd.f32 %v12901, %v12985
    %v12987 = vpop.f32.mrf.mxu0
    %v12988 = vpop.f32.mrf.mxu0
    %v12989 = vpop.f32.mrf.mxu0
    %12990 = vdwg.mxu0
    %v12991 = vmax.f32 %v12986, 0.0
    %v12992 = vpack.c.bf16 %v12991, %v12991
    %v12993 = vld [vmem:[%s7] sm:$0xf]
    %v12994 = vld [vmem:[%s7 + $0x4] sm:$0xf]
    %v12995 = vld [vmem:[%s7 + $0x8] sm:$0xf]
    %v12996 = vld [vmem:[%s7 + $0xc] sm:$0xf]
    %v12997 = vld [vmem:[%s7 + $0x10] sm:$0xf]
    %v12998 = vld [vmem:[%s7 + $0x14] sm:$0xf]
    %v12999 = vld [vmem:[%s7 + $0x18] sm:$0xf]
    %v13000 = vld [vmem:[%s7 + $0x1c] sm:$0xf]
    %v13001 = vld [vmem:[%s7 + $0x20] sm:$0xf]
    %v13002 = vld [vmem:[%s7 + $0x24] sm:$0xf]
    %v13003 = vld [vmem:[%s7 + $0x28] sm:$0xf]
    %v13004 = vld [vmem:[%s7 + $0x2c] sm:$0xf]
    %v13005 = vld [vmem:[%s7 + $0x30] sm:$0xf]
    %v13006 = vld [vmem:[%s7 + $0x34] sm:$0xf]
    %v13007 = vld [vmem:[%s7 + $0x38] sm:$0xf]
    %v13008 = vld [vmem:[%s7 + $0x3c] sm:$0xf]
    %v13009 = vld [vmem:[%s8] sm:$0x1]
    %v13011 = vlaneseq
    %v13012 = vshrl.u32 %v13011, 7
    %v13013 = vsub.s32 0, %v13012
    %v13014 = vrot.slane %v13009, %v13013
    %v13032 = vunpack.c.l.b16 %v12993
    %v13033 = vunpack.c.l.b16 %v12994
    %v13034 = vunpack.c.l.b16 %v12995
    %v13035 = vunpack.c.l.b16 %v12996
    %v13036 = vunpack.c.l.b16 %v12997
    %v13037 = vunpack.c.l.b16 %v12998
    %v13038 = vunpack.c.l.b16 %v12999
    %v13039 = vunpack.c.l.b16 %v13000
    %v13040 = vunpack.c.l.b16 %v13001
    %v13041 = vunpack.c.l.b16 %v13002
    %v13042 = vunpack.c.l.b16 %v13003
    %v13043 = vunpack.c.l.b16 %v13004
    %v13044 = vunpack.c.l.b16 %v13005
    %v13045 = vunpack.c.l.b16 %v13006
    %v13046 = vunpack.c.l.b16 %v13007
    %v13047 = vunpack.c.l.b16 %v13008
    %v13048 = vpack.c.b16 %v13033, %v13032
    %v13049 = vpack.c.b16 %v13035, %v13034
    %v13050 = vpack.c.b16 %v13037, %v13036
    %v13051 = vpack.c.b16 %v13039, %v13038
    %v13052 = vpack.c.b16 %v13041, %v13040
    %v13053 = vpack.c.b16 %v13043, %v13042
    %v13054 = vpack.c.b16 %v13045, %v13044
    %v13055 = vpack.c.b16 %v13047, %v13046
    %13064 = vmatprep.subr.bf16.mxu0 0
    %13065 = vmatpush1.bf16.msra.mxu0 %v13055
    %13066 = vmatprep.subr.bf16.mxu0 0
    %13067 = vmatpush1.bf16.msra.mxu0 %v13054
    %13068 = vmatprep.subr.bf16.mxu0 0
    %13069 = vmatpush1.bf16.msra.mxu0 %v13053
    %13070 = vmatprep.subr.bf16.mxu0 0
    %13071 = vmatpush1.bf16.msra.mxu0 %v13052
    %13072 = vmatprep.subr.bf16.mxu0 0
    %13073 = vmatpush1.bf16.msra.mxu0 %v13051
    %13074 = vmatprep.subr.bf16.mxu0 0
    %13075 = vmatpush1.bf16.msra.mxu0 %v13050
    %13076 = vmatprep.subr.bf16.mxu0 0
    %13077 = vmatpush1.bf16.msra.mxu0 %v13049
    %13078 = vmatprep.subr.bf16.mxu0 0
    %13079 = vmatpush1.bf16.msra.mxu0 %v13048
    %13080 = vmatprep.subr.bf16.mxu0 0
    %13081 = vmatpush2.bf16.msra.mxu0 0
    %13082 = vmatprep.subr.bf16.mxu0 0
    %13083 = vmatpush2.bf16.msra.mxu0 0
    %13084 = vmatprep.subr.bf16.mxu0 0
    %13085 = vmatpush2.bf16.msra.mxu0 0
    %13086 = vmatprep.subr.bf16.mxu0 0
    %13087 = vmatpush2.bf16.msra.mxu0 0
    %13088 = vmatprep.subr.bf16.mxu0 0
    %13089 = vmatpush2.bf16.msra.mxu0 0
    %13090 = vmatprep.subr.bf16.mxu0 0
    %13091 = vmatpush2.bf16.msra.mxu0 0
    %13092 = vmatprep.subr.bf16.mxu0 0
    %13093 = vmatpush2.bf16.msra.mxu0 0
    %13094 = vmatprep.subr.bf16.mxu0 0
    %13095 = vmatpush2.bf16.msra.mxu0 0
    %13096 = vmatprep.mubr.bf16.mxu0 0
    %13097 = vmatmul.mubr.bf16.gmra.mxu0 %v12992
    %v13098 = vpop.f32.mrf.mxu0
    %v13099 = vadd.f32 %v13014, %v13098
    %v13100 = vpop.f32.mrf.mxu0
    %v13101 = vpop.f32.mrf.mxu0
    %v13102 = vpop.f32.mrf.mxu0
    %13103 = vdwg.mxu0
    %13104 = vst [vmem:[#allocation2] sm:$0x3] %v13099
    // Predicated region
    $region38: #{net_forward.3} parent=1 // pred_check
      _
    $region39: #{net_forward.3} parent=1 // pred_check_branch
      %13106 = sbr.rel (0) target = $region41
    $region40: #{net_forward.3} parent=1 // pred_region
      %s13108 = ssub.s32 32, 32
      %13109 = vsyncadd [#allocation3], %s13108
      %s13111 = sshll.u32 [#allocation2], 4
      %s13112 = int_to_ptr.vmem [resolvable:$true] %s13111
      %13114 = dma.vmem_to_hbm [thread:$0]  %s13112, 32, %s9, [#allocation3]
    $region41: #{net_forward.3} parent=1 // pred_fallthru
      _
    // Predicated region
    $region42: #{net_forward.3} parent=1 // pred_check
      _
    $region43: #{net_forward.3} parent=1 // pred_check_branch
      %13116 = sbr.rel (0) target = $region45
    $region44: #{net_forward.3} parent=1 // pred_region
      %13117 = dma.done [#allocation3], 32
    $region45: #{net_forward.3} parent=1 // pred_fallthru
      _
    %13118 = vsyncpa [#allocation3], 1

</llo_original>
